<compile_context>
chip_gen: v7x
topology: tpu7x:2x2x1
jax: 0.10.0
libtpu: 0.0.40
codegen_flags: <defaults>
</compile_context>

<pallas_src>
import functools

import jax
import jax.numpy as jnp
from jax.experimental import pallas as pl
from jax.experimental.pallas import tpu as pltpu

NUM_FEATURES = 2048                 # ResNet101 final channel count
INTERMEDIATE = NUM_FEATURES // 2    # 1024
OUTPUT_SIZE = 12
OUT_PAD = 128                       # logits lane-padded to a full 128-lane tile
PATCH = 8                           # stand-in backbone patch size -> K = 3*8*8 = 192
DEFAULT_TILE_B = 32                 # images per grid step (>=16 per perf review; clamped to batch)
DEFAULT_TILE_P = 512                # patch chunk per grid step (was 128)


def _round_up(x, m):
    return (x + m - 1) // m * m


def _cnn_extractor_kernel(patches_ref, wstem_ref, w1_ref, b1_ref, w2_ref, b2_ref,
                          logits_ref, feats_ref, acc_ref, *, inv_num_patches):
    """Grid = (batch tiles, patch chunks).  Streams patch chunks, accumulates the per-image
    pooled sum in VMEM scratch, runs the classifier head once in the finalize branch.

    patches_ref : [tile_b, tile_p, Kpad]   bf16
    wstem_ref   : [Kpad, 2048]             bf16   (synthetic frozen backbone projection)
    w1_ref      : [2048, 1024]             f32    (classifier[1].weight^T)
    b1_ref      : [1, 1024]                f32
    w2_ref      : [1024, 128]              f32    (classifier[3].weight^T, lane padded)
    b2_ref      : [1, 128]                 f32    (lane padded)
    logits_ref  : [tile_b, 128]            f32
    feats_ref   : [tile_b, 1024]           f32    (last_features)
    acc_ref     : [tile_b, 2048]           f32    (pooled-sum accumulator, VMEM scratch)
    """
    p_idx = pl.program_id(1)

    @pl.when(p_idx == 0)
    def _init():
        acc_ref[...] = jnp.zeros_like(acc_ref)

    # ---- stand-in frozen backbone: patch-embed matmul + ReLU on this patch chunk ----
    x = patches_ref[...]                                        # [tile_b, tile_p, Kpad] bf16
    tb, tp, kp = x.shape
    fmap = jnp.dot(x.reshape(tb * tp, kp), wstem_ref[...],
                   preferred_element_type=jnp.float32)          # [tile_b*tile_p, 2048] f32
    fmap = jnp.maximum(fmap, 0.0)

    # ---- AdaptiveAvgPool2d((1,1)): accumulate per-image sums; scale once at the end ----
    # (zero-padded patch rows contribute relu(0 @ W) = 0, and the mean divides by the true P)
    acc_ref[...] += jnp.sum(fmap.reshape(tb, tp, NUM_FEATURES), axis=1)

    @pl.when(p_idx == pl.num_programs(1) - 1)
    def _finalize():
        pooled = acc_ref[...] * inv_num_patches                 # mean over true patch count
        # classifier[1]: Linear(2048 -> 1024), f32   (Dropout skipped, exactly as in forward)
        last = jnp.dot(pooled, w1_ref[...],
                       preferred_element_type=jnp.float32) + b1_ref[...]
        feats_ref[...] = last.astype(feats_ref.dtype)
        # classifier[3]: Linear(1024 -> 12), f32     (ReLU skipped, exactly as in forward)
        logits_ref[...] = (jnp.dot(last, w2_ref[...],
                                   preferred_element_type=jnp.float32)
                           + b2_ref[...]).astype(logits_ref.dtype)


def init_params(key):
    """Deterministic parameter init mirroring the module's shapes (PyTorch Linear: [out, in])."""
    k_stem, k_w1, k_b1, k_w2, k_b2 = jax.random.split(key, 5)
    in_stem = 3 * PATCH * PATCH
    w_stem = jax.random.normal(k_stem, (in_stem, NUM_FEATURES), jnp.float32) / jnp.sqrt(in_stem)
    # classifier[1]: Linear(2048, 1024)
    w1 = jax.random.uniform(k_w1, (INTERMEDIATE, NUM_FEATURES), jnp.float32,
                            -1.0, 1.0) / jnp.sqrt(NUM_FEATURES)
    b1 = jax.random.uniform(k_b1, (INTERMEDIATE,), jnp.float32,
                            -1.0, 1.0) / jnp.sqrt(NUM_FEATURES)
    # classifier[3]: Linear(1024, 12)
    w2 = jax.random.uniform(k_w2, (OUTPUT_SIZE, INTERMEDIATE), jnp.float32,
                            -1.0, 1.0) / jnp.sqrt(INTERMEDIATE)
    b2 = jax.random.uniform(k_b2, (OUTPUT_SIZE,), jnp.float32,
                            -1.0, 1.0) / jnp.sqrt(INTERMEDIATE)
    return dict(w_stem=w_stem, w1=w1, b1=b1, w2=w2, b2=b2)


def _const_spec(shape):
    """Single-buffered BlockSpec for operands whose block never changes across the grid."""
    idx = lambda b, p: (0,) * len(shape)
    try:
        return pl.BlockSpec(shape, idx, pipeline_mode=pl.Buffered(1))
    except TypeError:
        # Older jax without pipeline_mode= — fall back to default (double-buffered) behavior.
        return pl.BlockSpec(shape, idx)


def _pick_vmem_limit():
    """Per-generation scoped-VMEM limit: ~3/4 of physical VMEM, capped at 100 MiB.
    v5e/v6e (128 MiB) -> ~96 MiB; v7x (64 MiB) -> ~48 MiB; unknown -> safe 48 MiB."""
    try:
        cap = getattr(pltpu.get_tpu_info(), "vmem_capacity_bytes", None)
    except Exception:
        cap = None
    if not cap:
        return 48 * 1024 * 1024
    return int(min(cap * 3 // 4, 100 * 1024 * 1024))


def cnn_extractor_forward(images, params, *, tile_b=DEFAULT_TILE_B, tile_p=DEFAULT_TILE_P):
    """images: [B, C, H, W] NCHW (PyTorch convention).
    Returns (logits [B, 12], last_features [B, 1024])."""
    B, C, H, W = images.shape
    assert H % PATCH == 0 and W % PATCH == 0
    hp, wp = H // PATCH, W // PATCH
    P = hp * wp
    K = C * PATCH * PATCH

    # One-time layout pass: NCHW -> non-overlapping patch rows [B, P, K].
    x = images.reshape(B, C, hp, PATCH, wp, PATCH)
    x = x.transpose(0, 2, 4, 1, 3, 5).reshape(B, P, K)

    # Alignment / padding: K -> multiple of 128, P -> multiple of tile_p, B -> multiple of tile_b.
    k_pad = _round_up(K, 128)
    # Clamp tile_b to the padded batch so small batches don't waste stem FLOPs on zero rows;
    # production batches > tile_b keep grid[0] >= 2 so v7x's second TensorCore has work.
    tile_b = max(8, min(_round_up(tile_b, 8), _round_up(B, 8)))
    b_pad = _round_up(B, tile_b)
    tile_p = _round_up(min(tile_p, _round_up(P, 8)), 8)
    p_pad = _round_up(P, tile_p)
    x = jnp.pad(x, ((0, b_pad - B), (0, p_pad - P), (0, k_pad - K))).astype(jnp.bfloat16)

    # Weights: bf16 for the big streaming stem matmul; head weights stay f32 (runs once per tile).
    w_stem = jnp.pad(params["w_stem"], ((0, k_pad - K), (0, 0))).astype(jnp.bfloat16)
    w1_t = params["w1"].T.astype(jnp.float32)                                  # [2048, 1024]
    b1 = params["b1"].reshape(1, INTERMEDIATE).astype(jnp.float32)             # [1, 1024]
    w2_t = jnp.pad(params["w2"].T,
                   ((0, 0), (0, OUT_PAD - OUTPUT_SIZE))).astype(jnp.float32)   # [1024, 128]
    b2 = jnp.pad(params["b2"],
                 (0, OUT_PAD - OUTPUT_SIZE)).reshape(1, OUT_PAD).astype(jnp.float32)

    grid = (b_pad // tile_b, p_pad // tile_p)
    kernel = functools.partial(_cnn_extractor_kernel, inv_num_patches=1.0 / P)

    # Advisory cost estimate so XLA schedules the layout transpose / consumers around the call.
    flops = (2 * b_pad * p_pad * k_pad * NUM_FEATURES
             + 2 * b_pad * NUM_FEATURES * INTERMEDIATE
             + 2 * b_pad * INTERMEDIATE * OUT_PAD)
    bytes_accessed = (x.size * 2 + w_stem.size * 2
                      + (w1_t.size + w2_t.size + b1.size + b2.size) * 4
                      + b_pad * (OUT_PAD + INTERMEDIATE) * 4)

    logits_pad, feats_pad = pl.pallas_call(
        kernel,
        out_shape=(jax.ShapeDtypeStruct((b_pad, OUT_PAD), jnp.float32),
                   jax.ShapeDtypeStruct((b_pad, INTERMEDIATE), jnp.float32)),
        grid_spec=pltpu.PrefetchScalarGridSpec(
            num_scalar_prefetch=0,
            grid=grid,
            in_specs=[
                pl.BlockSpec((tile_b, tile_p, k_pad), lambda b, p: (b, p, 0)),  # patches (streamed)
                _const_spec((k_pad, NUM_FEATURES)),                             # stem proj (resident)
                _const_spec((NUM_FEATURES, INTERMEDIATE)),                      # w1^T     (resident)
                _const_spec((1, INTERMEDIATE)),                                 # b1       (resident)
                _const_spec((INTERMEDIATE, OUT_PAD)),                           # w2^T     (resident)
                _const_spec((1, OUT_PAD)),                                      # b2       (resident)
            ],
            out_specs=(
                pl.BlockSpec((tile_b, OUT_PAD), lambda b, p: (b, 0)),           # logits
                pl.BlockSpec((tile_b, INTERMEDIATE), lambda b, p: (b, 0)),      # last_features
            ),
            scratch_shapes=[pltpu.VMEM((tile_b, NUM_FEATURES), jnp.float32)],
        ),
        compiler_params=pltpu.CompilerParams(
            dimension_semantics=("parallel", "arbitrary"),
            vmem_limit_bytes=_pick_vmem_limit(),
        ),
        cost_estimate=pl.CostEstimate(flops=flops, transcendentals=0,
                                      bytes_accessed=bytes_accessed),
    )(x, w_stem, w1_t, b1, w2_t, b2)

    return logits_pad[:B, :OUTPUT_SIZE], feats_pad[:B, :]


if __name__ == "__main__":
    key = jax.random.PRNGKey(0)
    k_img, k_params = jax.random.split(key)
    # Small image batch, NCHW like the PyTorch module.  32x32 with PATCH=8 -> 16 patches/image.
    images = jax.random.normal(k_img, (2, 3, 32, 32), jnp.float32)
    params = init_params(k_params)

    # tile_p=8 -> 2 reduction steps, so the accumulator init/finalize path is exercised;
    # tile_b clamps from 32 down to 8 for this tiny batch.
    logits, last_features = cnn_extractor_forward(images, params, tile_p=8)
    jax.block_until_ready((logits, last_features))

    assert logits.shape == (2, OUTPUT_SIZE)
    assert last_features.shape == (2, INTERMEDIATE)
    assert bool(jnp.all(jnp.isfinite(logits))) and bool(jnp.all(jnp.isfinite(last_features)))
    print("KERNEL_OK")
</pallas_src>

<mosaic_0001>
module attributes {stable_mosaic.version = 11 : i64} {
  func.func @_cnn_extractor_kernel(%arg0: i32, %arg1: i32, %arg2: memref<8x8x256xbf16, #tpu.memory_space<vmem>>, %arg3: memref<256x2048xbf16, #tpu.memory_space<vmem>>, %arg4: memref<2048x1024xf32, #tpu.memory_space<vmem>>, %arg5: memref<1x1024xf32, #tpu.memory_space<vmem>>, %arg6: memref<1024x128xf32, #tpu.memory_space<vmem>>, %arg7: memref<1x128xf32, #tpu.memory_space<vmem>>, %arg8: memref<8x128xf32, #tpu.memory_space<vmem>>, %arg9: memref<8x1024xf32, #tpu.memory_space<vmem>>, %arg10: memref<8x2048xf32, #tpu.memory_space<vmem>>) attributes {dimension_semantics = [#tpu.dimension_semantics<parallel>, #tpu.dimension_semantics<arbitrary>], iteration_bounds = array<i64: 1, 2>, scalar_prefetch = 0 : i64, scratch_operands = 1 : i64, tpu.core_type = #tpu.core_type<tc>, window_params = [{transform_indices = @transform_0, window_bounds = array<i64: 8, 8, 256>}, {pipeline_mode = #tpu.pipeline_mode<synchronous>, transform_indices = @transform_1, window_bounds = array<i64: 256, 2048>}, {pipeline_mode = #tpu.pipeline_mode<synchronous>, transform_indices = @transform_2, window_bounds = array<i64: 2048, 1024>}, {pipeline_mode = #tpu.pipeline_mode<synchronous>, transform_indices = @transform_3, window_bounds = array<i64: 1, 1024>}, {pipeline_mode = #tpu.pipeline_mode<synchronous>, transform_indices = @transform_4, window_bounds = array<i64: 1024, 128>}, {pipeline_mode = #tpu.pipeline_mode<synchronous>, transform_indices = @transform_5, window_bounds = array<i64: 1, 128>}, {transform_indices = @transform_6, window_bounds = array<i64: 8, 128>}, {transform_indices = @transform_7, window_bounds = array<i64: 8, 1024>}]} {
    %c0_i32 = arith.constant 0 : i32
    %0 = arith.cmpi eq, %arg1, %c0_i32 : i32
    %1 = arith.extui %0 : i1 to i32
    %c0_i32_0 = arith.constant 0 : i32
    %2 = arith.cmpi ne, %1, %c0_i32_0 : i32
    scf.if %2 {
      %cst_12 = arith.constant 0.000000e+00 : f32
      %17 = vector.broadcast %cst_12 : f32 to vector<8x2048xf32>
      %c0_13 = arith.constant 0 : index
      %c0_14 = arith.constant 0 : index
      %18 = vector.load %arg10[%c0_13, %c0_14] : memref<8x2048xf32, #tpu.memory_space<vmem>>, vector<8x2048xf32>
      tpu.vector_store %arg10[%c0_13, %c0_14], %17 {strides = array<i32>} : memref<8x2048xf32, #tpu.memory_space<vmem>>, vector<8x2048xf32>,
    } else {
    }
    %c0 = arith.constant 0 : index
    %c0_1 = arith.constant 0 : index
    %c0_2 = arith.constant 0 : index
    %3 = vector.load %arg2[%c0, %c0_1, %c0_2] : memref<8x8x256xbf16, #tpu.memory_space<vmem>>, vector<8x8x256xbf16>
    %4 = vector.shape_cast %3 : vector<8x8x256xbf16> to vector<64x256xbf16>
    %c0_3 = arith.constant 0 : index
    %c0_4 = arith.constant 0 : index
    %5 = vector.load %arg3[%c0_3, %c0_4] : memref<256x2048xbf16, #tpu.memory_space<vmem>>, vector<256x2048xbf16>
    %cst = arith.constant dense<0.000000e+00> : vector<64x2048xf32>
    %6 = tpu.matmul %4, %5, %cst {dimension_numbers = #tpu.dot_dimension_numbers<[1], [0], [0], [1], [0, 0, 1, 1], [], []>} : vector<64x256xbf16>, vector<256x2048xbf16>, vector<64x2048xf32> -> vector<64x2048xf32>
    %cst_5 = arith.constant 0.000000e+00 : f32
    %7 = vector.broadcast %cst_5 : f32 to vector<64x2048xf32>
    %8 = arith.maximumf %6, %7 : vector<64x2048xf32>
    %c0_6 = arith.constant 0 : index
    %c0_7 = arith.constant 0 : index
    %9 = vector.load %arg10[%c0_6, %c0_7] : memref<8x2048xf32, #tpu.memory_space<vmem>>, vector<8x2048xf32>
    %10 = vector.shape_cast %8 : vector<64x2048xf32> to vector<8x8x2048xf32>
    %cst_8 = arith.constant dense<0.000000e+00> : vector<8x2048xf32>
    %11 = vector.multi_reduction <add>, %10, %cst_8 [1] : vector<8x8x2048xf32> to vector<8x2048xf32>
    %12 = arith.addf %9, %11 : vector<8x2048xf32>
    %c0_9 = arith.constant 0 : index
    %c0_10 = arith.constant 0 : index
    %13 = vector.load %arg10[%c0_9, %c0_10] : memref<8x2048xf32, #tpu.memory_space<vmem>>, vector<8x2048xf32>
    tpu.vector_store %arg10[%c0_9, %c0_10], %12 {strides = array<i32>} : memref<8x2048xf32, #tpu.memory_space<vmem>>, vector<8x2048xf32>,
    %c1_i32 = arith.constant 1 : i32
    %14 = arith.cmpi eq, %arg1, %c1_i32 : i32
    %15 = arith.extui %14 : i1 to i32
    %c0_i32_11 = arith.constant 0 : i32
    %16 = arith.cmpi ne, %15, %c0_i32_11 : i32
    scf.if %16 {
      %c0_12 = arith.constant 0 : index
      %c0_13 = arith.constant 0 : index
      %17 = vector.load %arg10[%c0_12, %c0_13] : memref<8x2048xf32, #tpu.memory_space<vmem>>, vector<8x2048xf32>
      %cst_14 = arith.constant 6.250000e-02 : f32
      %18 = vector.broadcast %cst_14 : f32 to vector<8x2048xf32>
      %19 = arith.mulf %17, %18 : vector<8x2048xf32>
      %c0_15 = arith.constant 0 : index
      %c0_16 = arith.constant 0 : index
      %20 = vector.load %arg4[%c0_15, %c0_16] : memref<2048x1024xf32, #tpu.memory_space<vmem>>, vector<2048x1024xf32>
      %cst_17 = arith.constant dense<0.000000e+00> : vector<8x1024xf32>
      %21 = tpu.matmul %19, %20, %cst_17 {dimension_numbers = #tpu.dot_dimension_numbers<[1], [0], [0], [1], [0, 0, 1, 1], [], []>} : vector<8x2048xf32>, vector<2048x1024xf32>, vector<8x1024xf32> -> vector<8x1024xf32>
      %c0_18 = arith.constant 0 : index
      %c0_19 = arith.constant 0 : index
      %22 = vector.load %arg5[%c0_18, %c0_19] : memref<1x1024xf32, #tpu.memory_space<vmem>>, vector<1x1024xf32>
      %23 = vector.broadcast %22 : vector<1x1024xf32> to vector<8x1024xf32>
      %24 = arith.addf %21, %23 : vector<8x1024xf32>
      %c0_20 = arith.constant 0 : index
      %c0_21 = arith.constant 0 : index
      %25 = vector.load %arg9[%c0_20, %c0_21] : memref<8x1024xf32, #tpu.memory_space<vmem>>, vector<8x1024xf32>
      tpu.vector_store %arg9[%c0_20, %c0_21], %24 {strides = array<i32>} : memref<8x1024xf32, #tpu.memory_space<vmem>>, vector<8x1024xf32>,
      %c0_22 = arith.constant 0 : index
      %c0_23 = arith.constant 0 : index
      %26 = vector.load %arg6[%c0_22, %c0_23] : memref<1024x128xf32, #tpu.memory_space<vmem>>, vector<1024x128xf32>
      %cst_24 = arith.constant dense<0.000000e+00> : vector<8x128xf32>
      %27 = tpu.matmul %24, %26, %cst_24 {dimension_numbers = #tpu.dot_dimension_numbers<[1], [0], [0], [1], [0, 0, 1, 1], [], []>} : vector<8x1024xf32>, vector<1024x128xf32>, vector<8x128xf32> -> vector<8x128xf32>
      %c0_25 = arith.constant 0 : index
      %c0_26 = arith.constant 0 : index
      %28 = vector.load %arg7[%c0_25, %c0_26] : memref<1x128xf32, #tpu.memory_space<vmem>>, vector<1x128xf32>
      %29 = vector.broadcast %28 : vector<1x128xf32> to vector<8x128xf32>
      %30 = arith.addf %27, %29 : vector<8x128xf32>
      %c0_27 = arith.constant 0 : index
      %c0_28 = arith.constant 0 : index
      %31 = vector.load %arg8[%c0_27, %c0_28] : memref<8x128xf32, #tpu.memory_space<vmem>>, vector<8x128xf32>
      tpu.vector_store %arg8[%c0_27, %c0_28], %30 {strides = array<i32>} : memref<8x128xf32, #tpu.memory_space<vmem>>, vector<8x128xf32>,
    } else {
    }
    return
  }
  func.func @transform_0(%arg0: i32, %arg1: i32) -> (i32, i32, i32) {
    %c0_i32 = arith.constant 0 : i32
    %c0_i32_0 = arith.constant 0 : i32
    return %arg0, %arg1, %c0_i32 : i32, i32, i32
  }
  func.func @transform_1(%arg0: i32, %arg1: i32) -> (i32, i32) {
    %c0_i32 = arith.constant 0 : i32
    %c0_i32_0 = arith.constant 0 : i32
    %c0_i32_1 = arith.constant 0 : i32
    return %c0_i32, %c0_i32_0 : i32, i32
  }
  func.func @transform_2(%arg0: i32, %arg1: i32) -> (i32, i32) {
    %c0_i32 = arith.constant 0 : i32
    %c0_i32_0 = arith.constant 0 : i32
    %c0_i32_1 = arith.constant 0 : i32
    return %c0_i32, %c0_i32_0 : i32, i32
  }
  func.func @transform_3(%arg0: i32, %arg1: i32) -> (i32, i32) {
    %c0_i32 = arith.constant 0 : i32
    %c0_i32_0 = arith.constant 0 : i32
    %c0_i32_1 = arith.constant 0 : i32
    return %c0_i32, %c0_i32_0 : i32, i32
  }
  func.func @transform_4(%arg0: i32, %arg1: i32) -> (i32, i32) {
    %c0_i32 = arith.constant 0 : i32
    %c0_i32_0 = arith.constant 0 : i32
    %c0_i32_1 = arith.constant 0 : i32
    return %c0_i32, %c0_i32_0 : i32, i32
  }
  func.func @transform_5(%arg0: i32, %arg1: i32) -> (i32, i32) {
    %c0_i32 = arith.constant 0 : i32
    %c0_i32_0 = arith.constant 0 : i32
    %c0_i32_1 = arith.constant 0 : i32
    return %c0_i32, %c0_i32_0 : i32, i32
  }
  func.func @transform_6(%arg0: i32, %arg1: i32) -> (i32, i32) {
    %c0_i32 = arith.constant 0 : i32
    %c0_i32_0 = arith.constant 0 : i32
    return %arg0, %c0_i32 : i32, i32
  }
  func.func @transform_7(%arg0: i32, %arg1: i32) -> (i32, i32) {
    %c0_i32 = arith.constant 0 : i32
    %c0_i32_0 = arith.constant 0 : i32
    return %arg0, %c0_i32 : i32, i32
  }
}

</mosaic_0001>

<llo_original>
// kernel: tpu_custom_call.1
$region0: #{tpu_custom_call.1}
  #allocation0 [shape = 'u32[]', space=smem, size = 0x4, offset = 0x4, fixed_abs, tag = 'smem constant byte address 0x4 - core index']
  #allocation1 [shape = 'u32[144,128]{1,0:T(1,128)}', space=vmem, size = 0x12000, scoped, tag = 'internal scratch']
  #allocation2 [shape = 'f32[8,2048]{1,0:T(8,128)}', space=vmem, size = 0x10000, scoped, tag = 'scratch operand']
  %s0 = inlined_call_operand.hbm [shape: bf16[8,16,256], index: 0, kind: input, shape index: {}]
  %s1 = inlined_call_operand.hbm [shape: bf16[256,2048], index: 1, kind: input, shape index: {}]
  %s2 = inlined_call_operand.hbm [shape: f32[2048,1024], index: 2, kind: input, shape index: {}]
  %s3 = inlined_call_operand.hbm [shape: f32[1,1024], index: 3, kind: input, shape index: {}]
  %s4 = inlined_call_operand.hbm [shape: f32[1024,128], index: 4, kind: input, shape index: {}]
  %s5 = inlined_call_operand.hbm [shape: f32[1,128], index: 5, kind: input, shape index: {}]
  %s6 = inlined_call_operand.hbm [shape: f32[8,128], index: 6, kind: output, shape index: {0}]
  %s7 = inlined_call_operand.hbm [shape: f32[8,1024], index: 7, kind: output, shape index: {1}]
  %8 = xla_tuple %s6, %s7
  %s9 = sld [smem:[#allocation0]]
  $region97: #{tpu_custom_call.1} parent=0
    _
  %s11 = ssub.s32 1, %s9
  %s12 = scalar_select 0, %s11, %s9
  $region1: #{tpu_custom_call.1} parent=0
    #allocation3 [shape = 'u8[65536]{0}', space=vmem, size = 0x10000, scoped, tag = 'input window, operand 0']
    #allocation4 [shape = 's32[2]{0}', space=sflag, size = 0x8, scoped, tag = 'scoped memory for tpu_custom_call.1']
    #allocation5 [shape = 's32[2]{0}', space=sflag, size = 0x8, scoped, tag = 'scoped memory for tpu_custom_call.1']
    #allocation6 [shape = 'u8[1048576]{0}', space=vmem, size = 0x100000, scoped, tag = 'input window, operand 1, single buffered']
    #allocation7 [shape = 's32[1]{0}', space=sflag, size = 0x4, scoped, tag = 'scoped memory for tpu_custom_call.1']
    #allocation8 [shape = 'u8[8388608]{0}', space=vmem, size = 0x800000, scoped, tag = 'input window, operand 2, single buffered']
    #allocation9 [shape = 'u8[4096]{0}', space=vmem, size = 0x1000, scoped, tag = 'input window, operand 3, single buffered']
    #allocation10 [shape = 's32[1]{0}', space=sflag, size = 0x4, scoped, tag = 'scoped memory for tpu_custom_call.1']
    #allocation11 [shape = 'u8[524288]{0}', space=vmem, size = 0x80000, scoped, tag = 'input window, operand 4, single buffered']
    #allocation12 [shape = 'u8[512]{0}', space=vmem, size = 0x400, scoped, tag = 'input window, operand 5, single buffered']
    #allocation13 [shape = 's32[1]{0}', space=sflag, size = 0x4, scoped, tag = 'scoped memory for tpu_custom_call.1']
    #allocation14 [shape = 'u8[4096]{0}', space=vmem, size = 0x1000, scoped, tag = 'output window, operand 0, single buffered']
    #allocation15 [shape = 'u8[32768]{0}', space=vmem, size = 0x8000, scoped, tag = 'output window, operand 1, single buffered']
    #allocation16 [shape = 's32[1]{0}', space=sflag, size = 0x4, scoped, tag = 'scoped memory for tpu_custom_call.1']
    %13 = vsyncpa [#allocation4], 0
    %s14 = scalar_lea.sflag [#allocation4], 1
    %15 = vsyncpa %s14, 0
    %16 = vsyncpa [#allocation7], 0
    %17 = vsyncpa [#allocation10], 0
    %18 = vsyncpa [#allocation13], 0
    %19 = vsyncpa [#allocation5], 0
    %20 = vsyncpa [#allocation16], 0
    loop: start=0, step=1, limit=4
    $region2: #{tpu_custom_call.1} parent=1 // loop_pre_header
      _
    $region3: #{tpu_custom_call.1} parent=1 // loop_header
      %s22 = sphi 0, %s26
      %p23 = scmp.ge.s32.totalorder %s22, 4
      %s29 = sphi 0, %s41
      %s30 = sphi 0, %s37
      %s31 = sphi 0, %s29
      %s32 = sphi 0, %s30
      %s33 = sphi 0, %s31
      %s34 = sphi 0, %s32
      %s46 = sphi 0, %s48
      %s49 = sphi 0, %s46
      %s50 = sphi 0, %s49
      %s66 = sphi 0, %s50
      %s70 = sphi 0, %s70
      %s72 = sphi 0, %s70
      %s73 = sphi 0, %s72
      %s87 = sphi 0, %s73
      %s91 = sphi 0, %s91
      %s93 = sphi 0, %s91
      %s94 = sphi 0, %s93
      %s108 = sphi 0, %s94
      %s112 = sphi 0, %s112
      %s114 = sphi 0, %s112
      %s115 = sphi 0, %s114
      %s129 = sphi 0, %s115
      %s133 = sphi 0, %s133
      %s135 = sphi 0, %s133
      %s136 = sphi 0, %s135
      %s150 = sphi 0, %s136
      %s154 = sphi 0, %s154
      %s156 = sphi 0, %s154
      %s157 = sphi 0, %s156
      %s171 = sphi 0, %s157
      %s177 = sphi 0, %s179
      %s180 = sphi 0, %s177
      %s181 = sphi 0, %s180
      %s197 = sphi 0, %s181
      %s203 = sphi 0, %s205
      %s206 = sphi 0, %s203
      %s207 = sphi 0, %s206
      %s223 = sphi 0, %s207
    $region4: #{tpu_custom_call.1} parent=1 // loop_header_branch
      %25 = sbr.rel (%p23) target = $region8
    $region5: #{tpu_custom_call.1} parent=1 // loop_body
      %s27 = ssub.s32 %s22, 1
      %s28 = ssub.s32 %s22, 2
      %s35 = sadd.s32 1, %s30
      %p36 = scmp.ge.s32.totalorder %s35, 2
      %s37 = scalar_select %p36, 0, %s35
      %s38 = sadd.s32 1, %s29
      %s39 = scalar_select %p36, %s38, %s29
      %p40 = scmp.ge.s32.totalorder %s39, 1
      %s41 = scalar_select %p40, 0, %s39
      %s42 = ssub.s32 %s29, %s41
      %s43 = ssub.s32 %s30, %s37
      %s44 = sor.u32 %s42, %s43
      %p45 = scmp.eq.s32.totalorder %s44, 0
      %s47 = sadd.s32 %s46, 1
      %s48 = scalar_select %p45, %s46, %s47
      %p51 = pneg %p45
      %p52 = scmp.eq.s32.totalorder %s22, 1
      %p53 = por %p51, %p52
      %p54 = scmp.ne.s32.totalorder %s46, %s49
      %p55 = scmp.eq.s32.totalorder %s22, 0
      %p56 = por %p54, %p55
      %p57 = scmp.ne.s32.totalorder %s46, %s49
      %p58 = scmp.eq.s32.totalorder %s27, 1
      %p59 = por %p57, %p58
      %p60 = scmp.ne.s32.totalorder %s49, %s50
      %p61 = scmp.eq.s32.totalorder %s27, 0
      %p62 = por %p60, %p61
      %p63 = scmp.ne.s32.totalorder %s49, %s50
      %p64 = scmp.eq.s32.totalorder %s28, 1
      %p65 = por %p63, %p64
      %p67 = scmp.ne.s32.totalorder %s50, %s66
      %p68 = scmp.eq.s32.totalorder %s28, 0
      %p69 = por %p67, %p68
      %s71 = sadd.s32 %s70, 1
      %p74 = scmp.eq.s32.totalorder %s22, 1
      %p75 = scmp.ne.s32.totalorder %s70, %s72
      %p76 = scmp.eq.s32.totalorder %s22, 0
      %p77 = por %p75, %p76
      %p78 = scmp.ne.s32.totalorder %s70, %s72
      %p79 = scmp.eq.s32.totalorder %s27, 1
      %p80 = por %p78, %p79
      %p81 = scmp.ne.s32.totalorder %s72, %s73
      %p82 = scmp.eq.s32.totalorder %s27, 0
      %p83 = por %p81, %p82
      %p84 = scmp.ne.s32.totalorder %s72, %s73
      %p85 = scmp.eq.s32.totalorder %s28, 1
      %p86 = por %p84, %p85
      %p88 = scmp.ne.s32.totalorder %s73, %s87
      %p89 = scmp.eq.s32.totalorder %s28, 0
      %p90 = por %p88, %p89
      %s92 = sadd.s32 %s91, 1
      %p95 = scmp.eq.s32.totalorder %s22, 1
      %p96 = scmp.ne.s32.totalorder %s91, %s93
      %p97 = scmp.eq.s32.totalorder %s22, 0
      %p98 = por %p96, %p97
      %p99 = scmp.ne.s32.totalorder %s91, %s93
      %p100 = scmp.eq.s32.totalorder %s27, 1
      %p101 = por %p99, %p100
      %p102 = scmp.ne.s32.totalorder %s93, %s94
      %p103 = scmp.eq.s32.totalorder %s27, 0
      %p104 = por %p102, %p103
      %p105 = scmp.ne.s32.totalorder %s93, %s94
      %p106 = scmp.eq.s32.totalorder %s28, 1
      %p107 = por %p105, %p106
      %p109 = scmp.ne.s32.totalorder %s94, %s108
      %p110 = scmp.eq.s32.totalorder %s28, 0
      %p111 = por %p109, %p110
      %s113 = sadd.s32 %s112, 1
      %p116 = scmp.eq.s32.totalorder %s22, 1
      %p117 = scmp.ne.s32.totalorder %s112, %s114
      %p118 = scmp.eq.s32.totalorder %s22, 0
      %p119 = por %p117, %p118
      %p120 = scmp.ne.s32.totalorder %s112, %s114
      %p121 = scmp.eq.s32.totalorder %s27, 1
      %p122 = por %p120, %p121
      %p123 = scmp.ne.s32.totalorder %s114, %s115
      %p124 = scmp.eq.s32.totalorder %s27, 0
      %p125 = por %p123, %p124
      %p126 = scmp.ne.s32.totalorder %s114, %s115
      %p127 = scmp.eq.s32.totalorder %s28, 1
      %p128 = por %p126, %p127
      %p130 = scmp.ne.s32.totalorder %s115, %s129
      %p131 = scmp.eq.s32.totalorder %s28, 0
      %p132 = por %p130, %p131
      %s134 = sadd.s32 %s133, 1
      %p137 = scmp.eq.s32.totalorder %s22, 1
      %p138 = scmp.ne.s32.totalorder %s133, %s135
      %p139 = scmp.eq.s32.totalorder %s22, 0
      %p140 = por %p138, %p139
      %p141 = scmp.ne.s32.totalorder %s133, %s135
      %p142 = scmp.eq.s32.totalorder %s27, 1
      %p143 = por %p141, %p142
      %p144 = scmp.ne.s32.totalorder %s135, %s136
      %p145 = scmp.eq.s32.totalorder %s27, 0
      %p146 = por %p144, %p145
      %p147 = scmp.ne.s32.totalorder %s135, %s136
      %p148 = scmp.eq.s32.totalorder %s28, 1
      %p149 = por %p147, %p148
      %p151 = scmp.ne.s32.totalorder %s136, %s150
      %p152 = scmp.eq.s32.totalorder %s28, 0
      %p153 = por %p151, %p152
      %s155 = sadd.s32 %s154, 1
      %p158 = scmp.eq.s32.totalorder %s22, 1
      %p159 = scmp.ne.s32.totalorder %s154, %s156
      %p160 = scmp.eq.s32.totalorder %s22, 0
      %p161 = por %p159, %p160
      %p162 = scmp.ne.s32.totalorder %s154, %s156
      %p163 = scmp.eq.s32.totalorder %s27, 1
      %p164 = por %p162, %p163
      %p165 = scmp.ne.s32.totalorder %s156, %s157
      %p166 = scmp.eq.s32.totalorder %s27, 0
      %p167 = por %p165, %p166
      %p168 = scmp.ne.s32.totalorder %s156, %s157
      %p169 = scmp.eq.s32.totalorder %s28, 1
      %p170 = por %p168, %p169
      %p172 = scmp.ne.s32.totalorder %s157, %s171
      %p173 = scmp.eq.s32.totalorder %s28, 0
      %p174 = por %p172, %p173
      %s175 = ssub.s32 %s29, %s41
      %p176 = scmp.eq.s32.totalorder %s175, 0
      %s178 = sadd.s32 %s177, 1
      %s179 = scalar_select %p176, %s177, %s178
      %p182 = pneg %p176
      %p183 = scmp.eq.s32.totalorder %s22, 1
      %p184 = por %p182, %p183
      %p185 = scmp.ne.s32.totalorder %s177, %s180
      %p186 = scmp.eq.s32.totalorder %s22, 0
      %p187 = por %p185, %p186
      %p188 = scmp.ne.s32.totalorder %s177, %s180
      %p189 = scmp.eq.s32.totalorder %s27, 1
      %p190 = por %p188, %p189
      %p191 = scmp.ne.s32.totalorder %s180, %s181
      %p192 = scmp.eq.s32.totalorder %s27, 0
      %p193 = por %p191, %p192
      %p194 = scmp.ne.s32.totalorder %s180, %s181
      %p195 = scmp.eq.s32.totalorder %s28, 1
      %p196 = por %p194, %p195
      %p198 = scmp.ne.s32.totalorder %s181, %s197
      %p199 = scmp.eq.s32.totalorder %s28, 0
      %p200 = por %p198, %p199
      %s201 = ssub.s32 %s29, %s41
      %p202 = scmp.eq.s32.totalorder %s201, 0
      %s204 = sadd.s32 %s203, 1
      %s205 = scalar_select %p202, %s203, %s204
      %p208 = pneg %p202
      %p209 = scmp.eq.s32.totalorder %s22, 1
      %p210 = por %p208, %p209
      %p211 = scmp.ne.s32.totalorder %s203, %s206
      %p212 = scmp.eq.s32.totalorder %s22, 0
      %p213 = por %p211, %p212
      %p214 = scmp.ne.s32.totalorder %s203, %s206
      %p215 = scmp.eq.s32.totalorder %s27, 1
      %p216 = por %p214, %p215
      %p217 = scmp.ne.s32.totalorder %s206, %s207
      %p218 = scmp.eq.s32.totalorder %s27, 0
      %p219 = por %p217, %p218
      %p220 = scmp.ne.s32.totalorder %s206, %s207
      %p221 = scmp.eq.s32.totalorder %s28, 1
      %p222 = por %p220, %p221
      %p224 = scmp.ne.s32.totalorder %s207, %s223
      %p225 = scmp.eq.s32.totalorder %s28, 0
      %p226 = por %p224, %p225
      %p227 = scmp.le.s32.totalorder 1, %s22
      %p228 = scmp.lt.s32.totalorder %s22, 3
      %p229 = pnand %p227, %p228
      %p230 = pneg %p229
      // Predicated region
      $region9: #{tpu_custom_call.1} parent=5 // pred_check
        _
      $region10: #{tpu_custom_call.1} parent=5 // pred_check_branch
        %232 = sbr.rel (%p229) target = $region12
      $region11: #{tpu_custom_call.1} parent=5 // pred_region
        %s233 = ssub.s32 %s22, 1
        // Predicated region
        $region13: #{tpu_custom_call.1} parent=11 // pred_check
          %p234 = pneg %p83
        $region14: #{tpu_custom_call.1} parent=11 // pred_check_branch
          %236 = sbr.rel (%p234) target = $region16
        $region15: #{tpu_custom_call.1} parent=11 // pred_region
          %s238 = ssub.s32 32768, 32768
          %239 = vsyncadd [#allocation7], %s238
          %s240 = sshll.u32 [#allocation6], 4
          %s241 = int_to_ptr.vmem [resolvable:$true] %s240
          %246 = dma.hbm_to_vmem [thread:$0]  %s1, 32768, %s241, [#allocation7], 1024, 1024, 64
        $region16: #{tpu_custom_call.1} parent=11 // pred_fallthru
          _
        // Predicated region
        $region17: #{tpu_custom_call.1} parent=11 // pred_check
          %p247 = pneg %p104
        $region18: #{tpu_custom_call.1} parent=11 // pred_check_branch
          %249 = sbr.rel (%p247) target = $region20
        $region19: #{tpu_custom_call.1} parent=11 // pred_region
          %s251 = ssub.s32 262144, 262144
          %252 = vsyncadd [#allocation7], %s251
          %s253 = sshll.u32 [#allocation8], 4
          %s254 = int_to_ptr.vmem [resolvable:$true] %s253
          %259 = dma.hbm_to_vmem [thread:$0]  %s2, 262144, %s254, [#allocation7], 1024, 1024, 64
        $region20: #{tpu_custom_call.1} parent=11 // pred_fallthru
          _
        // Predicated region
        $region21: #{tpu_custom_call.1} parent=11 // pred_check
          %p260 = pneg %p125
        $region22: #{tpu_custom_call.1} parent=11 // pred_check_branch
          %262 = sbr.rel (%p260) target = $region24
        $region23: #{tpu_custom_call.1} parent=11 // pred_region
          %s264 = ssub.s32 128, 128
          %265 = vsyncadd [#allocation10], %s264
          %s267 = sshll.u32 [#allocation9], 4
          %s268 = int_to_ptr.vmem [resolvable:$true] %s267
          %270 = dma.hbm_to_vmem [thread:$0]  %s3, 128, %s268, [#allocation10]
        $region24: #{tpu_custom_call.1} parent=11 // pred_fallthru
          _
        // Predicated region
        $region25: #{tpu_custom_call.1} parent=11 // pred_check
          %p271 = pneg %p146
        $region26: #{tpu_custom_call.1} parent=11 // pred_check_branch
          %273 = sbr.rel (%p271) target = $region28
        $region27: #{tpu_custom_call.1} parent=11 // pred_region
          %s275 = ssub.s32 16384, 16384
          %276 = vsyncadd [#allocation10], %s275
          %s277 = sshll.u32 [#allocation11], 4
          %s278 = int_to_ptr.vmem [resolvable:$true] %s277
          %283 = dma.hbm_to_vmem [thread:$0]  %s4, 16384, %s278, [#allocation10], 128, 128, 8
        $region28: #{tpu_custom_call.1} parent=11 // pred_fallthru
          _
        // Predicated region
        $region29: #{tpu_custom_call.1} parent=11 // pred_check
          %p284 = pneg %p167
        $region30: #{tpu_custom_call.1} parent=11 // pred_check_branch
          %286 = sbr.rel (%p284) target = $region32
        $region31: #{tpu_custom_call.1} parent=11 // pred_region
          %s288 = ssub.s32 16, 16
          %289 = vsyncadd [#allocation13], %s288
          %s291 = sshll.u32 [#allocation12], 4
          %s292 = int_to_ptr.vmem [resolvable:$true] %s291
          %294 = dma.hbm_to_vmem [thread:$0]  %s5, 16, %s292, [#allocation13]
        $region32: #{tpu_custom_call.1} parent=11 // pred_fallthru
          _
      $region12: #{tpu_custom_call.1} parent=5 // pred_fallthru
        _
      %p295 = scmp.lt.s32.totalorder %s22, 2
      // Predicated region
      $region33: #{tpu_custom_call.1} parent=5 // pred_check
        %p296 = pneg %p295
      $region34: #{tpu_custom_call.1} parent=5 // pred_check_branch
        %298 = sbr.rel (%p296) target = $region36
      $region35: #{tpu_custom_call.1} parent=5 // pred_region
        // Predicated region
        $region37: #{tpu_custom_call.1} parent=35 // pred_check
          %p299 = pneg %p56
        $region38: #{tpu_custom_call.1} parent=35 // pred_check_branch
          %301 = sbr.rel (%p299) target = $region40
        $region39: #{tpu_custom_call.1} parent=35 // pred_region
          %s302 = sand.u32 %s46, 1
          %s303 = scalar_lea.sflag [#allocation4], %s302
          %s304 = sand.u32 %s46, 1
          %s305 = smul.addr %s304, 64
          %s306 = scalar_lea.vmem [#allocation3], %s305
          %s307 = smul.u32 8, %s29
          %s309 = ssub.s32 1024, 1024
          %310 = vsyncadd %s303, %s309
          %s311 = smul.addr %s30, 2
          %s312 = smul.addr %s307, 4
          %s313 = sadd.s32 %s311, %s312
          %s314 = smul.addr %s313, 64
          %s315 = scalar_lea.hbm %s0, %s314
          %s316 = sshll.u32 %s306, 4
          %s317 = int_to_ptr.vmem [resolvable:$true] %s316
          %322 = dma.hbm_to_vmem [thread:$0]  %s315, 1024, %s317, %s303, 256, 128, 8
        $region40: #{tpu_custom_call.1} parent=35 // pred_fallthru
          _
      $region36: #{tpu_custom_call.1} parent=5 // pred_fallthru
        _
      %p323 = scmp.le.s32.totalorder 1, %s22
      %p324 = scmp.lt.s32.totalorder %s22, 3
      %p325 = pnand %p323, %p324
      %p326 = pneg %p325
      // Predicated region
      $region41: #{tpu_custom_call.1} parent=5 // pred_check
        _
      $region42: #{tpu_custom_call.1} parent=5 // pred_check_branch
        %328 = sbr.rel (%p325) target = $region44
      $region43: #{tpu_custom_call.1} parent=5 // pred_region
        %s329 = ssub.s32 %s22, 1
        %s330 = sand.u32 %s49, 1
        %s331 = scalar_lea.sflag [#allocation4], %s330
        %s332 = sand.u32 %s49, 1
        %s333 = smul.addr %s332, 64
        %s334 = scalar_lea.vmem [#allocation3], %s333
        // Predicated region
        $region45: #{tpu_custom_call.1} parent=43 // pred_check
          %p335 = pneg %p62
        $region46: #{tpu_custom_call.1} parent=43 // pred_check_branch
          %337 = sbr.rel (%p335) target = $region48
        $region47: #{tpu_custom_call.1} parent=43 // pred_region
          %338 = dma.done %s331, 1024
        $region48: #{tpu_custom_call.1} parent=43 // pred_fallthru
          _
        // Predicated region
        $region49: #{tpu_custom_call.1} parent=43 // pred_check
          %p339 = pneg %p83
        $region50: #{tpu_custom_call.1} parent=43 // pred_check_branch
          %341 = sbr.rel (%p339) target = $region52
        $region51: #{tpu_custom_call.1} parent=43 // pred_region
          %342 = dma.done [#allocation7], 32768
        $region52: #{tpu_custom_call.1} parent=43 // pred_fallthru
          _
        // Predicated region
        $region53: #{tpu_custom_call.1} parent=43 // pred_check
          %p343 = pneg %p104
        $region54: #{tpu_custom_call.1} parent=43 // pred_check_branch
          %345 = sbr.rel (%p343) target = $region56
        $region55: #{tpu_custom_call.1} parent=43 // pred_region
          %346 = dma.done [#allocation7], 262144
        $region56: #{tpu_custom_call.1} parent=43 // pred_fallthru
          _
        // Predicated region
        $region57: #{tpu_custom_call.1} parent=43 // pred_check
          %p347 = pneg %p125
        $region58: #{tpu_custom_call.1} parent=43 // pred_check_branch
          %349 = sbr.rel (%p347) target = $region60
        $region59: #{tpu_custom_call.1} parent=43 // pred_region
          %350 = dma.done [#allocation10], 128
        $region60: #{tpu_custom_call.1} parent=43 // pred_fallthru
          _
        // Predicated region
        $region61: #{tpu_custom_call.1} parent=43 // pred_check
          %p351 = pneg %p146
        $region62: #{tpu_custom_call.1} parent=43 // pred_check_branch
          %353 = sbr.rel (%p351) target = $region64
        $region63: #{tpu_custom_call.1} parent=43 // pred_region
          %354 = dma.done [#allocation10], 16384
        $region64: #{tpu_custom_call.1} parent=43 // pred_fallthru
          _
        // Predicated region
        $region65: #{tpu_custom_call.1} parent=43 // pred_check
          %p355 = pneg %p167
        $region66: #{tpu_custom_call.1} parent=43 // pred_check_branch
          %357 = sbr.rel (%p355) target = $region68
        $region67: #{tpu_custom_call.1} parent=43 // pred_region
          %358 = dma.done [#allocation13], 16
        $region68: #{tpu_custom_call.1} parent=43 // pred_fallthru
          _
        %s359 = sand.u32 %s49, 1
        %s360 = scalar_lea.sflag [#allocation4], %s359
        %s361 = sand.u32 %s49, 1
        %s362 = smul.addr %s361, 64
        %s363 = scalar_lea.vmem [#allocation3], %s362
        %p364 = pneg %p62
        %p365 = pneg %p59
        %p366 = pneg %p83
        %p367 = pneg %p80
        %p368 = pneg %p104
        %p369 = pneg %p101
        %p370 = pneg %p125
        %p371 = pneg %p122
        %p372 = pneg %p146
        %p373 = pneg %p143
        %p374 = pneg %p167
        %p375 = pneg %p164
        %p376 = pneg %p193
        %p377 = pneg %p190
        %p378 = pneg %p219
        %p379 = pneg %p216
        %s380 = smul.u32 8, %s31
        %p381 = scmp.eq.s32.totalorder %s32, 0
        // Predicated region
        $region69: #{tpu_custom_call.1} parent=43 // pred_check
          %p382 = pneg %p381
        $region70: #{tpu_custom_call.1} parent=43 // pred_check_branch
          %384 = sbr.rel (%p382) target = $region72
        $region71: #{tpu_custom_call.1} parent=43 // pred_region
          %385 = vst [vmem:[#allocation2] sm:$0xff] 0.0
          %386 = vst [vmem:[#allocation2 + $0x8] sm:$0xff] 0.0
          %387 = vst [vmem:[#allocation2 + $0x10] sm:$0xff] 0.0
          %388 = vst [vmem:[#allocation2 + $0x18] sm:$0xff] 0.0
          %389 = vst [vmem:[#allocation2 + $0x20] sm:$0xff] 0.0
          %390 = vst [vmem:[#allocation2 + $0x28] sm:$0xff] 0.0
          %391 = vst [vmem:[#allocation2 + $0x30] sm:$0xff] 0.0
          %392 = vst [vmem:[#allocation2 + $0x38] sm:$0xff] 0.0
          %393 = vst [vmem:[#allocation2 + $0x40] sm:$0xff] 0.0
          %394 = vst [vmem:[#allocation2 + $0x48] sm:$0xff] 0.0
          %395 = vst [vmem:[#allocation2 + $0x50] sm:$0xff] 0.0
          %396 = vst [vmem:[#allocation2 + $0x58] sm:$0xff] 0.0
          %397 = vst [vmem:[#allocation2 + $0x60] sm:$0xff] 0.0
          %398 = vst [vmem:[#allocation2 + $0x68] sm:$0xff] 0.0
          %399 = vst [vmem:[#allocation2 + $0x70] sm:$0xff] 0.0
          %400 = vst [vmem:[#allocation2 + $0x78] sm:$0xff] 0.0
        $region72: #{tpu_custom_call.1} parent=43 // pred_fallthru
          _
        %v401 = vld [vmem:[%s334] sm:$0xff]
        %v402 = vld [vmem:[%s334 + $0x8] sm:$0xff]
        %v403 = vld [vmem:[%s334 + $0x10] sm:$0xff]
        %v404 = vld [vmem:[%s334 + $0x18] sm:$0xff]
        %v405 = vld [vmem:[%s334 + $0x20] sm:$0xff]
        %v406 = vld [vmem:[%s334 + $0x28] sm:$0xff]
        %v407 = vld [vmem:[%s334 + $0x30] sm:$0xff]
        %v408 = vld [vmem:[%s334 + $0x38] sm:$0xff]
        %v409 = vld [vmem:[#allocation6] sm:$0xff]
        %v410 = vld [vmem:[#allocation6 + $0x8] sm:$0xff]
        %v411 = vld [vmem:[#allocation6 + $0x10] sm:$0xff]
        %v412 = vld [vmem:[#allocation6 + $0x18] sm:$0xff]
        %v413 = vld [vmem:[#allocation6 + $0x20] sm:$0xff]
        %v414 = vld [vmem:[#allocation6 + $0x28] sm:$0xff]
        %v415 = vld [vmem:[#allocation6 + $0x30] sm:$0xff]
        %v416 = vld [vmem:[#allocation6 + $0x38] sm:$0xff]
        %v417 = vld [vmem:[#allocation6 + $0x40] sm:$0xff]
        %v418 = vld [vmem:[#allocation6 + $0x48] sm:$0xff]
        %v419 = vld [vmem:[#allocation6 + $0x50] sm:$0xff]
        %v420 = vld [vmem:[#allocation6 + $0x58] sm:$0xff]
        %v421 = vld [vmem:[#allocation6 + $0x60] sm:$0xff]
        %v422 = vld [vmem:[#allocation6 + $0x68] sm:$0xff]
        %v423 = vld [vmem:[#allocation6 + $0x70] sm:$0xff]
        %v424 = vld [vmem:[#allocation6 + $0x78] sm:$0xff]
        %v425 = vld [vmem:[#allocation6 + $0x80] sm:$0xff]
        %v426 = vld [vmem:[#allocation6 + $0x88] sm:$0xff]
        %v427 = vld [vmem:[#allocation6 + $0x90] sm:$0xff]
        %v428 = vld [vmem:[#allocation6 + $0x98] sm:$0xff]
        %v429 = vld [vmem:[#allocation6 + $0xa0] sm:$0xff]
        %v430 = vld [vmem:[#allocation6 + $0xa8] sm:$0xff]
        %v431 = vld [vmem:[#allocation6 + $0xb0] sm:$0xff]
        %v432 = vld [vmem:[#allocation6 + $0xb8] sm:$0xff]
        %v433 = vld [vmem:[#allocation6 + $0xc0] sm:$0xff]
        %v434 = vld [vmem:[#allocation6 + $0xc8] sm:$0xff]
        %v435 = vld [vmem:[#allocation6 + $0xd0] sm:$0xff]
        %v436 = vld [vmem:[#allocation6 + $0xd8] sm:$0xff]
        %v437 = vld [vmem:[#allocation6 + $0xe0] sm:$0xff]
        %v438 = vld [vmem:[#allocation6 + $0xe8] sm:$0xff]
        %v439 = vld [vmem:[#allocation6 + $0xf0] sm:$0xff]
        %v440 = vld [vmem:[#allocation6 + $0xf8] sm:$0xff]
        %v441 = vld [vmem:[#allocation6 + $0x100] sm:$0xff]
        %v442 = vld [vmem:[#allocation6 + $0x108] sm:$0xff]
        %v443 = vld [vmem:[#allocation6 + $0x110] sm:$0xff]
        %v444 = vld [vmem:[#allocation6 + $0x118] sm:$0xff]
        %v445 = vld [vmem:[#allocation6 + $0x120] sm:$0xff]
        %v446 = vld [vmem:[#allocation6 + $0x128] sm:$0xff]
        %v447 = vld [vmem:[#allocation6 + $0x130] sm:$0xff]
        %v448 = vld [vmem:[#allocation6 + $0x138] sm:$0xff]
        %v449 = vld [vmem:[#allocation6 + $0x140] sm:$0xff]
        %v450 = vld [vmem:[#allocation6 + $0x148] sm:$0xff]
        %v451 = vld [vmem:[#allocation6 + $0x150] sm:$0xff]
        %v452 = vld [vmem:[#allocation6 + $0x158] sm:$0xff]
        %v453 = vld [vmem:[#allocation6 + $0x160] sm:$0xff]
        %v454 = vld [vmem:[#allocation6 + $0x168] sm:$0xff]
        %v455 = vld [vmem:[#allocation6 + $0x170] sm:$0xff]
        %v456 = vld [vmem:[#allocation6 + $0x178] sm:$0xff]
        %v457 = vld [vmem:[#allocation6 + $0x180] sm:$0xff]
        %v458 = vld [vmem:[#allocation6 + $0x188] sm:$0xff]
        %v459 = vld [vmem:[#allocation6 + $0x190] sm:$0xff]
        %v460 = vld [vmem:[#allocation6 + $0x198] sm:$0xff]
        %v461 = vld [vmem:[#allocation6 + $0x1a0] sm:$0xff]
        %v462 = vld [vmem:[#allocation6 + $0x1a8] sm:$0xff]
        %v463 = vld [vmem:[#allocation6 + $0x1b0] sm:$0xff]
        %v464 = vld [vmem:[#allocation6 + $0x1b8] sm:$0xff]
        %v465 = vld [vmem:[#allocation6 + $0x1c0] sm:$0xff]
        %v466 = vld [vmem:[#allocation6 + $0x1c8] sm:$0xff]
        %v467 = vld [vmem:[#allocation6 + $0x1d0] sm:$0xff]
        %v468 = vld [vmem:[#allocation6 + $0x1d8] sm:$0xff]
        %v469 = vld [vmem:[#allocation6 + $0x1e0] sm:$0xff]
        %v470 = vld [vmem:[#allocation6 + $0x1e8] sm:$0xff]
        %v471 = vld [vmem:[#allocation6 + $0x1f0] sm:$0xff]
        %v472 = vld [vmem:[#allocation6 + $0x1f8] sm:$0xff]
        %v473 = vld [vmem:[#allocation6 + $0x200] sm:$0xff]
        %v474 = vld [vmem:[#allocation6 + $0x208] sm:$0xff]
        %v475 = vld [vmem:[#allocation6 + $0x210] sm:$0xff]
        %v476 = vld [vmem:[#allocation6 + $0x218] sm:$0xff]
        %v477 = vld [vmem:[#allocation6 + $0x220] sm:$0xff]
        %v478 = vld [vmem:[#allocation6 + $0x228] sm:$0xff]
        %v479 = vld [vmem:[#allocation6 + $0x230] sm:$0xff]
        %v480 = vld [vmem:[#allocation6 + $0x238] sm:$0xff]
        %v481 = vld [vmem:[#allocation6 + $0x240] sm:$0xff]
        %v482 = vld [vmem:[#allocation6 + $0x248] sm:$0xff]
        %v483 = vld [vmem:[#allocation6 + $0x250] sm:$0xff]
        %v484 = vld [vmem:[#allocation6 + $0x258] sm:$0xff]
        %v485 = vld [vmem:[#allocation6 + $0x260] sm:$0xff]
        %v486 = vld [vmem:[#allocation6 + $0x268] sm:$0xff]
        %v487 = vld [vmem:[#allocation6 + $0x270] sm:$0xff]
        %v488 = vld [vmem:[#allocation6 + $0x278] sm:$0xff]
        %v489 = vld [vmem:[#allocation6 + $0x280] sm:$0xff]
        %v490 = vld [vmem:[#allocation6 + $0x288] sm:$0xff]
        %v491 = vld [vmem:[#allocation6 + $0x290] sm:$0xff]
        %v492 = vld [vmem:[#allocation6 + $0x298] sm:$0xff]
        %v493 = vld [vmem:[#allocation6 + $0x2a0] sm:$0xff]
        %v494 = vld [vmem:[#allocation6 + $0x2a8] sm:$0xff]
        %v495 = vld [vmem:[#allocation6 + $0x2b0] sm:$0xff]
        %v496 = vld [vmem:[#allocation6 + $0x2b8] sm:$0xff]
        %v497 = vld [vmem:[#allocation6 + $0x2c0] sm:$0xff]
        %v498 = vld [vmem:[#allocation6 + $0x2c8] sm:$0xff]
        %v499 = vld [vmem:[#allocation6 + $0x2d0] sm:$0xff]
        %v500 = vld [vmem:[#allocation6 + $0x2d8] sm:$0xff]
        %v501 = vld [vmem:[#allocation6 + $0x2e0] sm:$0xff]
        %v502 = vld [vmem:[#allocation6 + $0x2e8] sm:$0xff]
        %v503 = vld [vmem:[#allocation6 + $0x2f0] sm:$0xff]
        %v504 = vld [vmem:[#allocation6 + $0x2f8] sm:$0xff]
        %v505 = vld [vmem:[#allocation6 + $0x300] sm:$0xff]
        %v506 = vld [vmem:[#allocation6 + $0x308] sm:$0xff]
        %v507 = vld [vmem:[#allocation6 + $0x310] sm:$0xff]
        %v508 = vld [vmem:[#allocation6 + $0x318] sm:$0xff]
        %v509 = vld [vmem:[#allocation6 + $0x320] sm:$0xff]
        %v510 = vld [vmem:[#allocation6 + $0x328] sm:$0xff]
        %v511 = vld [vmem:[#allocation6 + $0x330] sm:$0xff]
        %v512 = vld [vmem:[#allocation6 + $0x338] sm:$0xff]
        %v513 = vld [vmem:[#allocation6 + $0x340] sm:$0xff]
        %v514 = vld [vmem:[#allocation6 + $0x348] sm:$0xff]
        %v515 = vld [vmem:[#allocation6 + $0x350] sm:$0xff]
        %v516 = vld [vmem:[#allocation6 + $0x358] sm:$0xff]
        %v517 = vld [vmem:[#allocation6 + $0x360] sm:$0xff]
        %v518 = vld [vmem:[#allocation6 + $0x368] sm:$0xff]
        %v519 = vld [vmem:[#allocation6 + $0x370] sm:$0xff]
        %v520 = vld [vmem:[#allocation6 + $0x378] sm:$0xff]
        %v521 = vld [vmem:[#allocation6 + $0x380] sm:$0xff]
        %v522 = vld [vmem:[#allocation6 + $0x388] sm:$0xff]
        %v523 = vld [vmem:[#allocation6 + $0x390] sm:$0xff]
        %v524 = vld [vmem:[#allocation6 + $0x398] sm:$0xff]
        %v525 = vld [vmem:[#allocation6 + $0x3a0] sm:$0xff]
        %v526 = vld [vmem:[#allocation6 + $0x3a8] sm:$0xff]
        %v527 = vld [vmem:[#allocation6 + $0x3b0] sm:$0xff]
        %v528 = vld [vmem:[#allocation6 + $0x3b8] sm:$0xff]
        %v529 = vld [vmem:[#allocation6 + $0x3c0] sm:$0xff]
        %v530 = vld [vmem:[#allocation6 + $0x3c8] sm:$0xff]
        %v531 = vld [vmem:[#allocation6 + $0x3d0] sm:$0xff]
        %v532 = vld [vmem:[#allocation6 + $0x3d8] sm:$0xff]
        %v533 = vld [vmem:[#allocation6 + $0x3e0] sm:$0xff]
        %v534 = vld [vmem:[#allocation6 + $0x3e8] sm:$0xff]
        %v535 = vld [vmem:[#allocation6 + $0x3f0] sm:$0xff]
        %v536 = vld [vmem:[#allocation6 + $0x3f8] sm:$0xff]
        %v537 = vld [vmem:[#allocation6 + $0x400] sm:$0xff]
        %v538 = vld [vmem:[#allocation6 + $0x408] sm:$0xff]
        %v539 = vld [vmem:[#allocation6 + $0x410] sm:$0xff]
        %v540 = vld [vmem:[#allocation6 + $0x418] sm:$0xff]
        %v541 = vld [vmem:[#allocation6 + $0x420] sm:$0xff]
        %v542 = vld [vmem:[#allocation6 + $0x428] sm:$0xff]
        %v543 = vld [vmem:[#allocation6 + $0x430] sm:$0xff]
        %v544 = vld [vmem:[#allocation6 + $0x438] sm:$0xff]
        %v545 = vld [vmem:[#allocation6 + $0x440] sm:$0xff]
        %v546 = vld [vmem:[#allocation6 + $0x448] sm:$0xff]
        %v547 = vld [vmem:[#allocation6 + $0x450] sm:$0xff]
        %v548 = vld [vmem:[#allocation6 + $0x458] sm:$0xff]
        %v549 = vld [vmem:[#allocation6 + $0x460] sm:$0xff]
        %v550 = vld [vmem:[#allocation6 + $0x468] sm:$0xff]
        %v551 = vld [vmem:[#allocation6 + $0x470] sm:$0xff]
        %v552 = vld [vmem:[#allocation6 + $0x478] sm:$0xff]
        %v553 = vld [vmem:[#allocation6 + $0x480] sm:$0xff]
        %v554 = vld [vmem:[#allocation6 + $0x488] sm:$0xff]
        %v555 = vld [vmem:[#allocation6 + $0x490] sm:$0xff]
        %v556 = vld [vmem:[#allocation6 + $0x498] sm:$0xff]
        %v557 = vld [vmem:[#allocation6 + $0x4a0] sm:$0xff]
        %v558 = vld [vmem:[#allocation6 + $0x4a8] sm:$0xff]
        %v559 = vld [vmem:[#allocation6 + $0x4b0] sm:$0xff]
        %v560 = vld [vmem:[#allocation6 + $0x4b8] sm:$0xff]
        %v561 = vld [vmem:[#allocation6 + $0x4c0] sm:$0xff]
        %v562 = vld [vmem:[#allocation6 + $0x4c8] sm:$0xff]
        %v563 = vld [vmem:[#allocation6 + $0x4d0] sm:$0xff]
        %v564 = vld [vmem:[#allocation6 + $0x4d8] sm:$0xff]
        %v565 = vld [vmem:[#allocation6 + $0x4e0] sm:$0xff]
        %v566 = vld [vmem:[#allocation6 + $0x4e8] sm:$0xff]
        %v567 = vld [vmem:[#allocation6 + $0x4f0] sm:$0xff]
        %v568 = vld [vmem:[#allocation6 + $0x4f8] sm:$0xff]
        %v569 = vld [vmem:[#allocation6 + $0x500] sm:$0xff]
        %v570 = vld [vmem:[#allocation6 + $0x508] sm:$0xff]
        %v571 = vld [vmem:[#allocation6 + $0x510] sm:$0xff]
        %v572 = vld [vmem:[#allocation6 + $0x518] sm:$0xff]
        %v573 = vld [vmem:[#allocation6 + $0x520] sm:$0xff]
        %v574 = vld [vmem:[#allocation6 + $0x528] sm:$0xff]
        %v575 = vld [vmem:[#allocation6 + $0x530] sm:$0xff]
        %v576 = vld [vmem:[#allocation6 + $0x538] sm:$0xff]
        %v577 = vld [vmem:[#allocation6 + $0x540] sm:$0xff]
        %v578 = vld [vmem:[#allocation6 + $0x548] sm:$0xff]
        %v579 = vld [vmem:[#allocation6 + $0x550] sm:$0xff]
        %v580 = vld [vmem:[#allocation6 + $0x558] sm:$0xff]
        %v581 = vld [vmem:[#allocation6 + $0x560] sm:$0xff]
        %v582 = vld [vmem:[#allocation6 + $0x568] sm:$0xff]
        %v583 = vld [vmem:[#allocation6 + $0x570] sm:$0xff]
        %v584 = vld [vmem:[#allocation6 + $0x578] sm:$0xff]
        %v585 = vld [vmem:[#allocation6 + $0x580] sm:$0xff]
        %v586 = vld [vmem:[#allocation6 + $0x588] sm:$0xff]
        %v587 = vld [vmem:[#allocation6 + $0x590] sm:$0xff]
        %v588 = vld [vmem:[#allocation6 + $0x598] sm:$0xff]
        %v589 = vld [vmem:[#allocation6 + $0x5a0] sm:$0xff]
        %v590 = vld [vmem:[#allocation6 + $0x5a8] sm:$0xff]
        %v591 = vld [vmem:[#allocation6 + $0x5b0] sm:$0xff]
        %v592 = vld [vmem:[#allocation6 + $0x5b8] sm:$0xff]
        %v593 = vld [vmem:[#allocation6 + $0x5c0] sm:$0xff]
        %v594 = vld [vmem:[#allocation6 + $0x5c8] sm:$0xff]
        %v595 = vld [vmem:[#allocation6 + $0x5d0] sm:$0xff]
        %v596 = vld [vmem:[#allocation6 + $0x5d8] sm:$0xff]
        %v597 = vld [vmem:[#allocation6 + $0x5e0] sm:$0xff]
        %v598 = vld [vmem:[#allocation6 + $0x5e8] sm:$0xff]
        %v599 = vld [vmem:[#allocation6 + $0x5f0] sm:$0xff]
        %v600 = vld [vmem:[#allocation6 + $0x5f8] sm:$0xff]
        %v601 = vld [vmem:[#allocation6 + $0x600] sm:$0xff]
        %v602 = vld [vmem:[#allocation6 + $0x608] sm:$0xff]
        %v603 = vld [vmem:[#allocation6 + $0x610] sm:$0xff]
        %v604 = vld [vmem:[#allocation6 + $0x618] sm:$0xff]
        %v605 = vld [vmem:[#allocation6 + $0x620] sm:$0xff]
        %v606 = vld [vmem:[#allocation6 + $0x628] sm:$0xff]
        %v607 = vld [vmem:[#allocation6 + $0x630] sm:$0xff]
        %v608 = vld [vmem:[#allocation6 + $0x638] sm:$0xff]
        %v609 = vld [vmem:[#allocation6 + $0x640] sm:$0xff]
        %v610 = vld [vmem:[#allocation6 + $0x648] sm:$0xff]
        %v611 = vld [vmem:[#allocation6 + $0x650] sm:$0xff]
        %v612 = vld [vmem:[#allocation6 + $0x658] sm:$0xff]
        %v613 = vld [vmem:[#allocation6 + $0x660] sm:$0xff]
        %v614 = vld [vmem:[#allocation6 + $0x668] sm:$0xff]
        %v615 = vld [vmem:[#allocation6 + $0x670] sm:$0xff]
        %v616 = vld [vmem:[#allocation6 + $0x678] sm:$0xff]
        %v617 = vld [vmem:[#allocation6 + $0x680] sm:$0xff]
        %v618 = vld [vmem:[#allocation6 + $0x688] sm:$0xff]
        %v619 = vld [vmem:[#allocation6 + $0x690] sm:$0xff]
        %v620 = vld [vmem:[#allocation6 + $0x698] sm:$0xff]
        %v621 = vld [vmem:[#allocation6 + $0x6a0] sm:$0xff]
        %v622 = vld [vmem:[#allocation6 + $0x6a8] sm:$0xff]
        %v623 = vld [vmem:[#allocation6 + $0x6b0] sm:$0xff]
        %v624 = vld [vmem:[#allocation6 + $0x6b8] sm:$0xff]
        %v625 = vld [vmem:[#allocation6 + $0x6c0] sm:$0xff]
        %v626 = vld [vmem:[#allocation6 + $0x6c8] sm:$0xff]
        %v627 = vld [vmem:[#allocation6 + $0x6d0] sm:$0xff]
        %v628 = vld [vmem:[#allocation6 + $0x6d8] sm:$0xff]
        %v629 = vld [vmem:[#allocation6 + $0x6e0] sm:$0xff]
        %v630 = vld [vmem:[#allocation6 + $0x6e8] sm:$0xff]
        %v631 = vld [vmem:[#allocation6 + $0x6f0] sm:$0xff]
        %v632 = vld [vmem:[#allocation6 + $0x6f8] sm:$0xff]
        %v633 = vld [vmem:[#allocation6 + $0x700] sm:$0xff]
        %v634 = vld [vmem:[#allocation6 + $0x708] sm:$0xff]
        %v635 = vld [vmem:[#allocation6 + $0x710] sm:$0xff]
        %v636 = vld [vmem:[#allocation6 + $0x718] sm:$0xff]
        %v637 = vld [vmem:[#allocation6 + $0x720] sm:$0xff]
        %v638 = vld [vmem:[#allocation6 + $0x728] sm:$0xff]
        %v639 = vld [vmem:[#allocation6 + $0x730] sm:$0xff]
        %v640 = vld [vmem:[#allocation6 + $0x738] sm:$0xff]
        %v641 = vld [vmem:[#allocation6 + $0x740] sm:$0xff]
        %v642 = vld [vmem:[#allocation6 + $0x748] sm:$0xff]
        %v643 = vld [vmem:[#allocation6 + $0x750] sm:$0xff]
        %v644 = vld [vmem:[#allocation6 + $0x758] sm:$0xff]
        %v645 = vld [vmem:[#allocation6 + $0x760] sm:$0xff]
        %v646 = vld [vmem:[#allocation6 + $0x768] sm:$0xff]
        %v647 = vld [vmem:[#allocation6 + $0x770] sm:$0xff]
        %v648 = vld [vmem:[#allocation6 + $0x778] sm:$0xff]
        %v649 = vld [vmem:[#allocation6 + $0x780] sm:$0xff]
        %v650 = vld [vmem:[#allocation6 + $0x788] sm:$0xff]
        %v651 = vld [vmem:[#allocation6 + $0x790] sm:$0xff]
        %v652 = vld [vmem:[#allocation6 + $0x798] sm:$0xff]
        %v653 = vld [vmem:[#allocation6 + $0x7a0] sm:$0xff]
        %v654 = vld [vmem:[#allocation6 + $0x7a8] sm:$0xff]
        %v655 = vld [vmem:[#allocation6 + $0x7b0] sm:$0xff]
        %v656 = vld [vmem:[#allocation6 + $0x7b8] sm:$0xff]
        %v657 = vld [vmem:[#allocation6 + $0x7c0] sm:$0xff]
        %v658 = vld [vmem:[#allocation6 + $0x7c8] sm:$0xff]
        %v659 = vld [vmem:[#allocation6 + $0x7d0] sm:$0xff]
        %v660 = vld [vmem:[#allocation6 + $0x7d8] sm:$0xff]
        %v661 = vld [vmem:[#allocation6 + $0x7e0] sm:$0xff]
        %v662 = vld [vmem:[#allocation6 + $0x7e8] sm:$0xff]
        %v663 = vld [vmem:[#allocation6 + $0x7f0] sm:$0xff]
        %v664 = vld [vmem:[#allocation6 + $0x7f8] sm:$0xff]
        %v673 = vunpack.c.l.b16 %v401
        %v674 = vunpack.c.h.b16 %v401
        %v675 = vunpack.c.l.b16 %v402
        %v676 = vunpack.c.h.b16 %v402
        %v677 = vunpack.c.l.b16 %v403
        %v678 = vunpack.c.h.b16 %v403
        %v679 = vunpack.c.l.b16 %v404
        %v680 = vunpack.c.h.b16 %v404
        %v681 = vunpack.c.l.b16 %v405
        %v682 = vunpack.c.h.b16 %v405
        %v683 = vunpack.c.l.b16 %v406
        %v684 = vunpack.c.h.b16 %v406
        %v685 = vunpack.c.l.b16 %v407
        %v686 = vunpack.c.h.b16 %v407
        %v687 = vunpack.c.l.b16 %v408
        %v688 = vunpack.c.h.b16 %v408
        %v689 = vpack.c.b16 %v675, %v673
        %v690 = vpack.c.b16 %v676, %v674
        %v691 = vpack.c.b16 %v679, %v677
        %v692 = vpack.c.b16 %v680, %v678
        %v693 = vpack.c.b16 %v683, %v681
        %v694 = vpack.c.b16 %v684, %v682
        %v695 = vpack.c.b16 %v687, %v685
        %v696 = vpack.c.b16 %v688, %v686
        %v961 = vunpack.c.l.b16 %v409
        %v962 = vunpack.c.h.b16 %v409
        %v963 = vunpack.c.l.b16 %v410
        %v964 = vunpack.c.h.b16 %v410
        %v965 = vunpack.c.l.b16 %v411
        %v966 = vunpack.c.h.b16 %v411
        %v967 = vunpack.c.l.b16 %v412
        %v968 = vunpack.c.h.b16 %v412
        %v969 = vunpack.c.l.b16 %v413
        %v970 = vunpack.c.h.b16 %v413
        %v971 = vunpack.c.l.b16 %v414
        %v972 = vunpack.c.h.b16 %v414
        %v973 = vunpack.c.l.b16 %v415
        %v974 = vunpack.c.h.b16 %v415
        %v975 = vunpack.c.l.b16 %v416
        %v976 = vunpack.c.h.b16 %v416
        %v977 = vunpack.c.l.b16 %v417
        %v978 = vunpack.c.h.b16 %v417
        %v979 = vunpack.c.l.b16 %v418
        %v980 = vunpack.c.h.b16 %v418
        %v981 = vunpack.c.l.b16 %v419
        %v982 = vunpack.c.h.b16 %v419
        %v983 = vunpack.c.l.b16 %v420
        %v984 = vunpack.c.h.b16 %v420
        %v985 = vunpack.c.l.b16 %v421
        %v986 = vunpack.c.h.b16 %v421
        %v987 = vunpack.c.l.b16 %v422
        %v988 = vunpack.c.h.b16 %v422
        %v989 = vunpack.c.l.b16 %v423
        %v990 = vunpack.c.h.b16 %v423
        %v991 = vunpack.c.l.b16 %v424
        %v992 = vunpack.c.h.b16 %v424
        %v993 = vunpack.c.l.b16 %v425
        %v994 = vunpack.c.h.b16 %v425
        %v995 = vunpack.c.l.b16 %v426
        %v996 = vunpack.c.h.b16 %v426
        %v997 = vunpack.c.l.b16 %v427
        %v998 = vunpack.c.h.b16 %v427
        %v999 = vunpack.c.l.b16 %v428
        %v1000 = vunpack.c.h.b16 %v428
        %v1001 = vunpack.c.l.b16 %v429
        %v1002 = vunpack.c.h.b16 %v429
        %v1003 = vunpack.c.l.b16 %v430
        %v1004 = vunpack.c.h.b16 %v430
        %v1005 = vunpack.c.l.b16 %v431
        %v1006 = vunpack.c.h.b16 %v431
        %v1007 = vunpack.c.l.b16 %v432
        %v1008 = vunpack.c.h.b16 %v432
        %v1009 = vunpack.c.l.b16 %v433
        %v1010 = vunpack.c.h.b16 %v433
        %v1011 = vunpack.c.l.b16 %v434
        %v1012 = vunpack.c.h.b16 %v434
        %v1013 = vunpack.c.l.b16 %v435
        %v1014 = vunpack.c.h.b16 %v435
        %v1015 = vunpack.c.l.b16 %v436
        %v1016 = vunpack.c.h.b16 %v436
        %v1017 = vunpack.c.l.b16 %v437
        %v1018 = vunpack.c.h.b16 %v437
        %v1019 = vunpack.c.l.b16 %v438
        %v1020 = vunpack.c.h.b16 %v438
        %v1021 = vunpack.c.l.b16 %v439
        %v1022 = vunpack.c.h.b16 %v439
        %v1023 = vunpack.c.l.b16 %v440
        %v1024 = vunpack.c.h.b16 %v440
        %v1025 = vunpack.c.l.b16 %v441
        %v1026 = vunpack.c.h.b16 %v441
        %v1027 = vunpack.c.l.b16 %v442
        %v1028 = vunpack.c.h.b16 %v442
        %v1029 = vunpack.c.l.b16 %v443
        %v1030 = vunpack.c.h.b16 %v443
        %v1031 = vunpack.c.l.b16 %v444
        %v1032 = vunpack.c.h.b16 %v444
        %v1033 = vunpack.c.l.b16 %v445
        %v1034 = vunpack.c.h.b16 %v445
        %v1035 = vunpack.c.l.b16 %v446
        %v1036 = vunpack.c.h.b16 %v446
        %v1037 = vunpack.c.l.b16 %v447
        %v1038 = vunpack.c.h.b16 %v447
        %v1039 = vunpack.c.l.b16 %v448
        %v1040 = vunpack.c.h.b16 %v448
        %v1041 = vunpack.c.l.b16 %v449
        %v1042 = vunpack.c.h.b16 %v449
        %v1043 = vunpack.c.l.b16 %v450
        %v1044 = vunpack.c.h.b16 %v450
        %v1045 = vunpack.c.l.b16 %v451
        %v1046 = vunpack.c.h.b16 %v451
        %v1047 = vunpack.c.l.b16 %v452
        %v1048 = vunpack.c.h.b16 %v452
        %v1049 = vunpack.c.l.b16 %v453
        %v1050 = vunpack.c.h.b16 %v453
        %v1051 = vunpack.c.l.b16 %v454
        %v1052 = vunpack.c.h.b16 %v454
        %v1053 = vunpack.c.l.b16 %v455
        %v1054 = vunpack.c.h.b16 %v455
        %v1055 = vunpack.c.l.b16 %v456
        %v1056 = vunpack.c.h.b16 %v456
        %v1057 = vunpack.c.l.b16 %v457
        %v1058 = vunpack.c.h.b16 %v457
        %v1059 = vunpack.c.l.b16 %v458
        %v1060 = vunpack.c.h.b16 %v458
        %v1061 = vunpack.c.l.b16 %v459
        %v1062 = vunpack.c.h.b16 %v459
        %v1063 = vunpack.c.l.b16 %v460
        %v1064 = vunpack.c.h.b16 %v460
        %v1065 = vunpack.c.l.b16 %v461
        %v1066 = vunpack.c.h.b16 %v461
        %v1067 = vunpack.c.l.b16 %v462
        %v1068 = vunpack.c.h.b16 %v462
        %v1069 = vunpack.c.l.b16 %v463
        %v1070 = vunpack.c.h.b16 %v463
        %v1071 = vunpack.c.l.b16 %v464
        %v1072 = vunpack.c.h.b16 %v464
        %v1073 = vunpack.c.l.b16 %v465
        %v1074 = vunpack.c.h.b16 %v465
        %v1075 = vunpack.c.l.b16 %v466
        %v1076 = vunpack.c.h.b16 %v466
        %v1077 = vunpack.c.l.b16 %v467
        %v1078 = vunpack.c.h.b16 %v467
        %v1079 = vunpack.c.l.b16 %v468
        %v1080 = vunpack.c.h.b16 %v468
        %v1081 = vunpack.c.l.b16 %v469
        %v1082 = vunpack.c.h.b16 %v469
        %v1083 = vunpack.c.l.b16 %v470
        %v1084 = vunpack.c.h.b16 %v470
        %v1085 = vunpack.c.l.b16 %v471
        %v1086 = vunpack.c.h.b16 %v471
        %v1087 = vunpack.c.l.b16 %v472
        %v1088 = vunpack.c.h.b16 %v472
        %v1089 = vunpack.c.l.b16 %v473
        %v1090 = vunpack.c.h.b16 %v473
        %v1091 = vunpack.c.l.b16 %v474
        %v1092 = vunpack.c.h.b16 %v474
        %v1093 = vunpack.c.l.b16 %v475
        %v1094 = vunpack.c.h.b16 %v475
        %v1095 = vunpack.c.l.b16 %v476
        %v1096 = vunpack.c.h.b16 %v476
        %v1097 = vunpack.c.l.b16 %v477
        %v1098 = vunpack.c.h.b16 %v477
        %v1099 = vunpack.c.l.b16 %v478
        %v1100 = vunpack.c.h.b16 %v478
        %v1101 = vunpack.c.l.b16 %v479
        %v1102 = vunpack.c.h.b16 %v479
        %v1103 = vunpack.c.l.b16 %v480
        %v1104 = vunpack.c.h.b16 %v480
        %v1105 = vunpack.c.l.b16 %v481
        %v1106 = vunpack.c.h.b16 %v481
        %v1107 = vunpack.c.l.b16 %v482
        %v1108 = vunpack.c.h.b16 %v482
        %v1109 = vunpack.c.l.b16 %v483
        %v1110 = vunpack.c.h.b16 %v483
        %v1111 = vunpack.c.l.b16 %v484
        %v1112 = vunpack.c.h.b16 %v484
        %v1113 = vunpack.c.l.b16 %v485
        %v1114 = vunpack.c.h.b16 %v485
        %v1115 = vunpack.c.l.b16 %v486
        %v1116 = vunpack.c.h.b16 %v486
        %v1117 = vunpack.c.l.b16 %v487
        %v1118 = vunpack.c.h.b16 %v487
        %v1119 = vunpack.c.l.b16 %v488
        %v1120 = vunpack.c.h.b16 %v488
        %v1121 = vunpack.c.l.b16 %v489
        %v1122 = vunpack.c.h.b16 %v489
        %v1123 = vunpack.c.l.b16 %v490
        %v1124 = vunpack.c.h.b16 %v490
        %v1125 = vunpack.c.l.b16 %v491
        %v1126 = vunpack.c.h.b16 %v491
        %v1127 = vunpack.c.l.b16 %v492
        %v1128 = vunpack.c.h.b16 %v492
        %v1129 = vunpack.c.l.b16 %v493
        %v1130 = vunpack.c.h.b16 %v493
        %v1131 = vunpack.c.l.b16 %v494
        %v1132 = vunpack.c.h.b16 %v494
        %v1133 = vunpack.c.l.b16 %v495
        %v1134 = vunpack.c.h.b16 %v495
        %v1135 = vunpack.c.l.b16 %v496
        %v1136 = vunpack.c.h.b16 %v496
        %v1137 = vunpack.c.l.b16 %v497
        %v1138 = vunpack.c.h.b16 %v497
        %v1139 = vunpack.c.l.b16 %v498
        %v1140 = vunpack.c.h.b16 %v498
        %v1141 = vunpack.c.l.b16 %v499
        %v1142 = vunpack.c.h.b16 %v499
        %v1143 = vunpack.c.l.b16 %v500
        %v1144 = vunpack.c.h.b16 %v500
        %v1145 = vunpack.c.l.b16 %v501
        %v1146 = vunpack.c.h.b16 %v501
        %v1147 = vunpack.c.l.b16 %v502
        %v1148 = vunpack.c.h.b16 %v502
        %v1149 = vunpack.c.l.b16 %v503
        %v1150 = vunpack.c.h.b16 %v503
        %v1151 = vunpack.c.l.b16 %v504
        %v1152 = vunpack.c.h.b16 %v504
        %v1153 = vunpack.c.l.b16 %v505
        %v1154 = vunpack.c.h.b16 %v505
        %v1155 = vunpack.c.l.b16 %v506
        %v1156 = vunpack.c.h.b16 %v506
        %v1157 = vunpack.c.l.b16 %v507
        %v1158 = vunpack.c.h.b16 %v507
        %v1159 = vunpack.c.l.b16 %v508
        %v1160 = vunpack.c.h.b16 %v508
        %v1161 = vunpack.c.l.b16 %v509
        %v1162 = vunpack.c.h.b16 %v509
        %v1163 = vunpack.c.l.b16 %v510
        %v1164 = vunpack.c.h.b16 %v510
        %v1165 = vunpack.c.l.b16 %v511
        %v1166 = vunpack.c.h.b16 %v511
        %v1167 = vunpack.c.l.b16 %v512
        %v1168 = vunpack.c.h.b16 %v512
        %v1169 = vunpack.c.l.b16 %v513
        %v1170 = vunpack.c.h.b16 %v513
        %v1171 = vunpack.c.l.b16 %v514
        %v1172 = vunpack.c.h.b16 %v514
        %v1173 = vunpack.c.l.b16 %v515
        %v1174 = vunpack.c.h.b16 %v515
        %v1175 = vunpack.c.l.b16 %v516
        %v1176 = vunpack.c.h.b16 %v516
        %v1177 = vunpack.c.l.b16 %v517
        %v1178 = vunpack.c.h.b16 %v517
        %v1179 = vunpack.c.l.b16 %v518
        %v1180 = vunpack.c.h.b16 %v518
        %v1181 = vunpack.c.l.b16 %v519
        %v1182 = vunpack.c.h.b16 %v519
        %v1183 = vunpack.c.l.b16 %v520
        %v1184 = vunpack.c.h.b16 %v520
        %v1185 = vunpack.c.l.b16 %v521
        %v1186 = vunpack.c.h.b16 %v521
        %v1187 = vunpack.c.l.b16 %v522
        %v1188 = vunpack.c.h.b16 %v522
        %v1189 = vunpack.c.l.b16 %v523
        %v1190 = vunpack.c.h.b16 %v523
        %v1191 = vunpack.c.l.b16 %v524
        %v1192 = vunpack.c.h.b16 %v524
        %v1193 = vunpack.c.l.b16 %v525
        %v1194 = vunpack.c.h.b16 %v525
        %v1195 = vunpack.c.l.b16 %v526
        %v1196 = vunpack.c.h.b16 %v526
        %v1197 = vunpack.c.l.b16 %v527
        %v1198 = vunpack.c.h.b16 %v527
        %v1199 = vunpack.c.l.b16 %v528
        %v1200 = vunpack.c.h.b16 %v528
        %v1201 = vunpack.c.l.b16 %v529
        %v1202 = vunpack.c.h.b16 %v529
        %v1203 = vunpack.c.l.b16 %v530
        %v1204 = vunpack.c.h.b16 %v530
        %v1205 = vunpack.c.l.b16 %v531
        %v1206 = vunpack.c.h.b16 %v531
        %v1207 = vunpack.c.l.b16 %v532
        %v1208 = vunpack.c.h.b16 %v532
        %v1209 = vunpack.c.l.b16 %v533
        %v1210 = vunpack.c.h.b16 %v533
        %v1211 = vunpack.c.l.b16 %v534
        %v1212 = vunpack.c.h.b16 %v534
        %v1213 = vunpack.c.l.b16 %v535
        %v1214 = vunpack.c.h.b16 %v535
        %v1215 = vunpack.c.l.b16 %v536
        %v1216 = vunpack.c.h.b16 %v536
        %v1217 = vunpack.c.l.b16 %v537
        %v1218 = vunpack.c.h.b16 %v537
        %v1219 = vunpack.c.l.b16 %v538
        %v1220 = vunpack.c.h.b16 %v538
        %v1221 = vunpack.c.l.b16 %v539
        %v1222 = vunpack.c.h.b16 %v539
        %v1223 = vunpack.c.l.b16 %v540
        %v1224 = vunpack.c.h.b16 %v540
        %v1225 = vunpack.c.l.b16 %v541
        %v1226 = vunpack.c.h.b16 %v541
        %v1227 = vunpack.c.l.b16 %v542
        %v1228 = vunpack.c.h.b16 %v542
        %v1229 = vunpack.c.l.b16 %v543
        %v1230 = vunpack.c.h.b16 %v543
        %v1231 = vunpack.c.l.b16 %v544
        %v1232 = vunpack.c.h.b16 %v544
        %v1233 = vunpack.c.l.b16 %v545
        %v1234 = vunpack.c.h.b16 %v545
        %v1235 = vunpack.c.l.b16 %v546
        %v1236 = vunpack.c.h.b16 %v546
        %v1237 = vunpack.c.l.b16 %v547
        %v1238 = vunpack.c.h.b16 %v547
        %v1239 = vunpack.c.l.b16 %v548
        %v1240 = vunpack.c.h.b16 %v548
        %v1241 = vunpack.c.l.b16 %v549
        %v1242 = vunpack.c.h.b16 %v549
        %v1243 = vunpack.c.l.b16 %v550
        %v1244 = vunpack.c.h.b16 %v550
        %v1245 = vunpack.c.l.b16 %v551
        %v1246 = vunpack.c.h.b16 %v551
        %v1247 = vunpack.c.l.b16 %v552
        %v1248 = vunpack.c.h.b16 %v552
        %v1249 = vunpack.c.l.b16 %v553
        %v1250 = vunpack.c.h.b16 %v553
        %v1251 = vunpack.c.l.b16 %v554
        %v1252 = vunpack.c.h.b16 %v554
        %v1253 = vunpack.c.l.b16 %v555
        %v1254 = vunpack.c.h.b16 %v555
        %v1255 = vunpack.c.l.b16 %v556
        %v1256 = vunpack.c.h.b16 %v556
        %v1257 = vunpack.c.l.b16 %v557
        %v1258 = vunpack.c.h.b16 %v557
        %v1259 = vunpack.c.l.b16 %v558
        %v1260 = vunpack.c.h.b16 %v558
        %v1261 = vunpack.c.l.b16 %v559
        %v1262 = vunpack.c.h.b16 %v559
        %v1263 = vunpack.c.l.b16 %v560
        %v1264 = vunpack.c.h.b16 %v560
        %v1265 = vunpack.c.l.b16 %v561
        %v1266 = vunpack.c.h.b16 %v561
        %v1267 = vunpack.c.l.b16 %v562
        %v1268 = vunpack.c.h.b16 %v562
        %v1269 = vunpack.c.l.b16 %v563
        %v1270 = vunpack.c.h.b16 %v563
        %v1271 = vunpack.c.l.b16 %v564
        %v1272 = vunpack.c.h.b16 %v564
        %v1273 = vunpack.c.l.b16 %v565
        %v1274 = vunpack.c.h.b16 %v565
        %v1275 = vunpack.c.l.b16 %v566
        %v1276 = vunpack.c.h.b16 %v566
        %v1277 = vunpack.c.l.b16 %v567
        %v1278 = vunpack.c.h.b16 %v567
        %v1279 = vunpack.c.l.b16 %v568
        %v1280 = vunpack.c.h.b16 %v568
        %v1281 = vunpack.c.l.b16 %v569
        %v1282 = vunpack.c.h.b16 %v569
        %v1283 = vunpack.c.l.b16 %v570
        %v1284 = vunpack.c.h.b16 %v570
        %v1285 = vunpack.c.l.b16 %v571
        %v1286 = vunpack.c.h.b16 %v571
        %v1287 = vunpack.c.l.b16 %v572
        %v1288 = vunpack.c.h.b16 %v572
        %v1289 = vunpack.c.l.b16 %v573
        %v1290 = vunpack.c.h.b16 %v573
        %v1291 = vunpack.c.l.b16 %v574
        %v1292 = vunpack.c.h.b16 %v574
        %v1293 = vunpack.c.l.b16 %v575
        %v1294 = vunpack.c.h.b16 %v575
        %v1295 = vunpack.c.l.b16 %v576
        %v1296 = vunpack.c.h.b16 %v576
        %v1297 = vunpack.c.l.b16 %v577
        %v1298 = vunpack.c.h.b16 %v577
        %v1299 = vunpack.c.l.b16 %v578
        %v1300 = vunpack.c.h.b16 %v578
        %v1301 = vunpack.c.l.b16 %v579
        %v1302 = vunpack.c.h.b16 %v579
        %v1303 = vunpack.c.l.b16 %v580
        %v1304 = vunpack.c.h.b16 %v580
        %v1305 = vunpack.c.l.b16 %v581
        %v1306 = vunpack.c.h.b16 %v581
        %v1307 = vunpack.c.l.b16 %v582
        %v1308 = vunpack.c.h.b16 %v582
        %v1309 = vunpack.c.l.b16 %v583
        %v1310 = vunpack.c.h.b16 %v583
        %v1311 = vunpack.c.l.b16 %v584
        %v1312 = vunpack.c.h.b16 %v584
        %v1313 = vunpack.c.l.b16 %v585
        %v1314 = vunpack.c.h.b16 %v585
        %v1315 = vunpack.c.l.b16 %v586
        %v1316 = vunpack.c.h.b16 %v586
        %v1317 = vunpack.c.l.b16 %v587
        %v1318 = vunpack.c.h.b16 %v587
        %v1319 = vunpack.c.l.b16 %v588
        %v1320 = vunpack.c.h.b16 %v588
        %v1321 = vunpack.c.l.b16 %v589
        %v1322 = vunpack.c.h.b16 %v589
        %v1323 = vunpack.c.l.b16 %v590
        %v1324 = vunpack.c.h.b16 %v590
        %v1325 = vunpack.c.l.b16 %v591
        %v1326 = vunpack.c.h.b16 %v591
        %v1327 = vunpack.c.l.b16 %v592
        %v1328 = vunpack.c.h.b16 %v592
        %v1329 = vunpack.c.l.b16 %v593
        %v1330 = vunpack.c.h.b16 %v593
        %v1331 = vunpack.c.l.b16 %v594
        %v1332 = vunpack.c.h.b16 %v594
        %v1333 = vunpack.c.l.b16 %v595
        %v1334 = vunpack.c.h.b16 %v595
        %v1335 = vunpack.c.l.b16 %v596
        %v1336 = vunpack.c.h.b16 %v596
        %v1337 = vunpack.c.l.b16 %v597
        %v1338 = vunpack.c.h.b16 %v597
        %v1339 = vunpack.c.l.b16 %v598
        %v1340 = vunpack.c.h.b16 %v598
        %v1341 = vunpack.c.l.b16 %v599
        %v1342 = vunpack.c.h.b16 %v599
        %v1343 = vunpack.c.l.b16 %v600
        %v1344 = vunpack.c.h.b16 %v600
        %v1345 = vunpack.c.l.b16 %v601
        %v1346 = vunpack.c.h.b16 %v601
        %v1347 = vunpack.c.l.b16 %v602
        %v1348 = vunpack.c.h.b16 %v602
        %v1349 = vunpack.c.l.b16 %v603
        %v1350 = vunpack.c.h.b16 %v603
        %v1351 = vunpack.c.l.b16 %v604
        %v1352 = vunpack.c.h.b16 %v604
        %v1353 = vunpack.c.l.b16 %v605
        %v1354 = vunpack.c.h.b16 %v605
        %v1355 = vunpack.c.l.b16 %v606
        %v1356 = vunpack.c.h.b16 %v606
        %v1357 = vunpack.c.l.b16 %v607
        %v1358 = vunpack.c.h.b16 %v607
        %v1359 = vunpack.c.l.b16 %v608
        %v1360 = vunpack.c.h.b16 %v608
        %v1361 = vunpack.c.l.b16 %v609
        %v1362 = vunpack.c.h.b16 %v609
        %v1363 = vunpack.c.l.b16 %v610
        %v1364 = vunpack.c.h.b16 %v610
        %v1365 = vunpack.c.l.b16 %v611
        %v1366 = vunpack.c.h.b16 %v611
        %v1367 = vunpack.c.l.b16 %v612
        %v1368 = vunpack.c.h.b16 %v612
        %v1369 = vunpack.c.l.b16 %v613
        %v1370 = vunpack.c.h.b16 %v613
        %v1371 = vunpack.c.l.b16 %v614
        %v1372 = vunpack.c.h.b16 %v614
        %v1373 = vunpack.c.l.b16 %v615
        %v1374 = vunpack.c.h.b16 %v615
        %v1375 = vunpack.c.l.b16 %v616
        %v1376 = vunpack.c.h.b16 %v616
        %v1377 = vunpack.c.l.b16 %v617
        %v1378 = vunpack.c.h.b16 %v617
        %v1379 = vunpack.c.l.b16 %v618
        %v1380 = vunpack.c.h.b16 %v618
        %v1381 = vunpack.c.l.b16 %v619
        %v1382 = vunpack.c.h.b16 %v619
        %v1383 = vunpack.c.l.b16 %v620
        %v1384 = vunpack.c.h.b16 %v620
        %v1385 = vunpack.c.l.b16 %v621
        %v1386 = vunpack.c.h.b16 %v621
        %v1387 = vunpack.c.l.b16 %v622
        %v1388 = vunpack.c.h.b16 %v622
        %v1389 = vunpack.c.l.b16 %v623
        %v1390 = vunpack.c.h.b16 %v623
        %v1391 = vunpack.c.l.b16 %v624
        %v1392 = vunpack.c.h.b16 %v624
        %v1393 = vunpack.c.l.b16 %v625
        %v1394 = vunpack.c.h.b16 %v625
        %v1395 = vunpack.c.l.b16 %v626
        %v1396 = vunpack.c.h.b16 %v626
        %v1397 = vunpack.c.l.b16 %v627
        %v1398 = vunpack.c.h.b16 %v627
        %v1399 = vunpack.c.l.b16 %v628
        %v1400 = vunpack.c.h.b16 %v628
        %v1401 = vunpack.c.l.b16 %v629
        %v1402 = vunpack.c.h.b16 %v629
        %v1403 = vunpack.c.l.b16 %v630
        %v1404 = vunpack.c.h.b16 %v630
        %v1405 = vunpack.c.l.b16 %v631
        %v1406 = vunpack.c.h.b16 %v631
        %v1407 = vunpack.c.l.b16 %v632
        %v1408 = vunpack.c.h.b16 %v632
        %v1409 = vunpack.c.l.b16 %v633
        %v1410 = vunpack.c.h.b16 %v633
        %v1411 = vunpack.c.l.b16 %v634
        %v1412 = vunpack.c.h.b16 %v634
        %v1413 = vunpack.c.l.b16 %v635
        %v1414 = vunpack.c.h.b16 %v635
        %v1415 = vunpack.c.l.b16 %v636
        %v1416 = vunpack.c.h.b16 %v636
        %v1417 = vunpack.c.l.b16 %v637
        %v1418 = vunpack.c.h.b16 %v637
        %v1419 = vunpack.c.l.b16 %v638
        %v1420 = vunpack.c.h.b16 %v638
        %v1421 = vunpack.c.l.b16 %v639
        %v1422 = vunpack.c.h.b16 %v639
        %v1423 = vunpack.c.l.b16 %v640
        %v1424 = vunpack.c.h.b16 %v640
        %v1425 = vunpack.c.l.b16 %v641
        %v1426 = vunpack.c.h.b16 %v641
        %v1427 = vunpack.c.l.b16 %v642
        %v1428 = vunpack.c.h.b16 %v642
        %v1429 = vunpack.c.l.b16 %v643
        %v1430 = vunpack.c.h.b16 %v643
        %v1431 = vunpack.c.l.b16 %v644
        %v1432 = vunpack.c.h.b16 %v644
        %v1433 = vunpack.c.l.b16 %v645
        %v1434 = vunpack.c.h.b16 %v645
        %v1435 = vunpack.c.l.b16 %v646
        %v1436 = vunpack.c.h.b16 %v646
        %v1437 = vunpack.c.l.b16 %v647
        %v1438 = vunpack.c.h.b16 %v647
        %v1439 = vunpack.c.l.b16 %v648
        %v1440 = vunpack.c.h.b16 %v648
        %v1441 = vunpack.c.l.b16 %v649
        %v1442 = vunpack.c.h.b16 %v649
        %v1443 = vunpack.c.l.b16 %v650
        %v1444 = vunpack.c.h.b16 %v650
        %v1445 = vunpack.c.l.b16 %v651
        %v1446 = vunpack.c.h.b16 %v651
        %v1447 = vunpack.c.l.b16 %v652
        %v1448 = vunpack.c.h.b16 %v652
        %v1449 = vunpack.c.l.b16 %v653
        %v1450 = vunpack.c.h.b16 %v653
        %v1451 = vunpack.c.l.b16 %v654
        %v1452 = vunpack.c.h.b16 %v654
        %v1453 = vunpack.c.l.b16 %v655
        %v1454 = vunpack.c.h.b16 %v655
        %v1455 = vunpack.c.l.b16 %v656
        %v1456 = vunpack.c.h.b16 %v656
        %v1457 = vunpack.c.l.b16 %v657
        %v1458 = vunpack.c.h.b16 %v657
        %v1459 = vunpack.c.l.b16 %v658
        %v1460 = vunpack.c.h.b16 %v658
        %v1461 = vunpack.c.l.b16 %v659
        %v1462 = vunpack.c.h.b16 %v659
        %v1463 = vunpack.c.l.b16 %v660
        %v1464 = vunpack.c.h.b16 %v660
        %v1465 = vunpack.c.l.b16 %v661
        %v1466 = vunpack.c.h.b16 %v661
        %v1467 = vunpack.c.l.b16 %v662
        %v1468 = vunpack.c.h.b16 %v662
        %v1469 = vunpack.c.l.b16 %v663
        %v1470 = vunpack.c.h.b16 %v663
        %v1471 = vunpack.c.l.b16 %v664
        %v1472 = vunpack.c.h.b16 %v664
        %v1473 = vpack.c.b16 %v977, %v961
        %v1474 = vpack.c.b16 %v978, %v962
        %v1475 = vpack.c.b16 %v979, %v963
        %v1476 = vpack.c.b16 %v980, %v964
        %v1477 = vpack.c.b16 %v981, %v965
        %v1478 = vpack.c.b16 %v982, %v966
        %v1479 = vpack.c.b16 %v983, %v967
        %v1480 = vpack.c.b16 %v984, %v968
        %v1481 = vpack.c.b16 %v985, %v969
        %v1482 = vpack.c.b16 %v986, %v970
        %v1483 = vpack.c.b16 %v987, %v971
        %v1484 = vpack.c.b16 %v988, %v972
        %v1485 = vpack.c.b16 %v989, %v973
        %v1486 = vpack.c.b16 %v990, %v974
        %v1487 = vpack.c.b16 %v991, %v975
        %v1488 = vpack.c.b16 %v992, %v976
        %v1489 = vpack.c.b16 %v1009, %v993
        %v1490 = vpack.c.b16 %v1010, %v994
        %v1491 = vpack.c.b16 %v1011, %v995
        %v1492 = vpack.c.b16 %v1012, %v996
        %v1493 = vpack.c.b16 %v1013, %v997
        %v1494 = vpack.c.b16 %v1014, %v998
        %v1495 = vpack.c.b16 %v1015, %v999
        %v1496 = vpack.c.b16 %v1016, %v1000
        %v1497 = vpack.c.b16 %v1017, %v1001
        %v1498 = vpack.c.b16 %v1018, %v1002
        %v1499 = vpack.c.b16 %v1019, %v1003
        %v1500 = vpack.c.b16 %v1020, %v1004
        %v1501 = vpack.c.b16 %v1021, %v1005
        %v1502 = vpack.c.b16 %v1022, %v1006
        %v1503 = vpack.c.b16 %v1023, %v1007
        %v1504 = vpack.c.b16 %v1024, %v1008
        %v1505 = vpack.c.b16 %v1041, %v1025
        %v1506 = vpack.c.b16 %v1042, %v1026
        %v1507 = vpack.c.b16 %v1043, %v1027
        %v1508 = vpack.c.b16 %v1044, %v1028
        %v1509 = vpack.c.b16 %v1045, %v1029
        %v1510 = vpack.c.b16 %v1046, %v1030
        %v1511 = vpack.c.b16 %v1047, %v1031
        %v1512 = vpack.c.b16 %v1048, %v1032
        %v1513 = vpack.c.b16 %v1049, %v1033
        %v1514 = vpack.c.b16 %v1050, %v1034
        %v1515 = vpack.c.b16 %v1051, %v1035
        %v1516 = vpack.c.b16 %v1052, %v1036
        %v1517 = vpack.c.b16 %v1053, %v1037
        %v1518 = vpack.c.b16 %v1054, %v1038
        %v1519 = vpack.c.b16 %v1055, %v1039
        %v1520 = vpack.c.b16 %v1056, %v1040
        %v1521 = vpack.c.b16 %v1073, %v1057
        %v1522 = vpack.c.b16 %v1074, %v1058
        %v1523 = vpack.c.b16 %v1075, %v1059
        %v1524 = vpack.c.b16 %v1076, %v1060
        %v1525 = vpack.c.b16 %v1077, %v1061
        %v1526 = vpack.c.b16 %v1078, %v1062
        %v1527 = vpack.c.b16 %v1079, %v1063
        %v1528 = vpack.c.b16 %v1080, %v1064
        %v1529 = vpack.c.b16 %v1081, %v1065
        %v1530 = vpack.c.b16 %v1082, %v1066
        %v1531 = vpack.c.b16 %v1083, %v1067
        %v1532 = vpack.c.b16 %v1084, %v1068
        %v1533 = vpack.c.b16 %v1085, %v1069
        %v1534 = vpack.c.b16 %v1086, %v1070
        %v1535 = vpack.c.b16 %v1087, %v1071
        %v1536 = vpack.c.b16 %v1088, %v1072
        %v1537 = vpack.c.b16 %v1105, %v1089
        %v1538 = vpack.c.b16 %v1106, %v1090
        %v1539 = vpack.c.b16 %v1107, %v1091
        %v1540 = vpack.c.b16 %v1108, %v1092
        %v1541 = vpack.c.b16 %v1109, %v1093
        %v1542 = vpack.c.b16 %v1110, %v1094
        %v1543 = vpack.c.b16 %v1111, %v1095
        %v1544 = vpack.c.b16 %v1112, %v1096
        %v1545 = vpack.c.b16 %v1113, %v1097
        %v1546 = vpack.c.b16 %v1114, %v1098
        %v1547 = vpack.c.b16 %v1115, %v1099
        %v1548 = vpack.c.b16 %v1116, %v1100
        %v1549 = vpack.c.b16 %v1117, %v1101
        %v1550 = vpack.c.b16 %v1118, %v1102
        %v1551 = vpack.c.b16 %v1119, %v1103
        %v1552 = vpack.c.b16 %v1120, %v1104
        %v1553 = vpack.c.b16 %v1137, %v1121
        %v1554 = vpack.c.b16 %v1138, %v1122
        %v1555 = vpack.c.b16 %v1139, %v1123
        %v1556 = vpack.c.b16 %v1140, %v1124
        %v1557 = vpack.c.b16 %v1141, %v1125
        %v1558 = vpack.c.b16 %v1142, %v1126
        %v1559 = vpack.c.b16 %v1143, %v1127
        %v1560 = vpack.c.b16 %v1144, %v1128
        %v1561 = vpack.c.b16 %v1145, %v1129
        %v1562 = vpack.c.b16 %v1146, %v1130
        %v1563 = vpack.c.b16 %v1147, %v1131
        %v1564 = vpack.c.b16 %v1148, %v1132
        %v1565 = vpack.c.b16 %v1149, %v1133
        %v1566 = vpack.c.b16 %v1150, %v1134
        %v1567 = vpack.c.b16 %v1151, %v1135
        %v1568 = vpack.c.b16 %v1152, %v1136
        %v1569 = vpack.c.b16 %v1169, %v1153
        %v1570 = vpack.c.b16 %v1170, %v1154
        %v1571 = vpack.c.b16 %v1171, %v1155
        %v1572 = vpack.c.b16 %v1172, %v1156
        %v1573 = vpack.c.b16 %v1173, %v1157
        %v1574 = vpack.c.b16 %v1174, %v1158
        %v1575 = vpack.c.b16 %v1175, %v1159
        %v1576 = vpack.c.b16 %v1176, %v1160
        %v1577 = vpack.c.b16 %v1177, %v1161
        %v1578 = vpack.c.b16 %v1178, %v1162
        %v1579 = vpack.c.b16 %v1179, %v1163
        %v1580 = vpack.c.b16 %v1180, %v1164
        %v1581 = vpack.c.b16 %v1181, %v1165
        %v1582 = vpack.c.b16 %v1182, %v1166
        %v1583 = vpack.c.b16 %v1183, %v1167
        %v1584 = vpack.c.b16 %v1184, %v1168
        %v1585 = vpack.c.b16 %v1201, %v1185
        %v1586 = vpack.c.b16 %v1202, %v1186
        %v1587 = vpack.c.b16 %v1203, %v1187
        %v1588 = vpack.c.b16 %v1204, %v1188
        %v1589 = vpack.c.b16 %v1205, %v1189
        %v1590 = vpack.c.b16 %v1206, %v1190
        %v1591 = vpack.c.b16 %v1207, %v1191
        %v1592 = vpack.c.b16 %v1208, %v1192
        %v1593 = vpack.c.b16 %v1209, %v1193
        %v1594 = vpack.c.b16 %v1210, %v1194
        %v1595 = vpack.c.b16 %v1211, %v1195
        %v1596 = vpack.c.b16 %v1212, %v1196
        %v1597 = vpack.c.b16 %v1213, %v1197
        %v1598 = vpack.c.b16 %v1214, %v1198
        %v1599 = vpack.c.b16 %v1215, %v1199
        %v1600 = vpack.c.b16 %v1216, %v1200
        %v1601 = vpack.c.b16 %v1233, %v1217
        %v1602 = vpack.c.b16 %v1234, %v1218
        %v1603 = vpack.c.b16 %v1235, %v1219
        %v1604 = vpack.c.b16 %v1236, %v1220
        %v1605 = vpack.c.b16 %v1237, %v1221
        %v1606 = vpack.c.b16 %v1238, %v1222
        %v1607 = vpack.c.b16 %v1239, %v1223
        %v1608 = vpack.c.b16 %v1240, %v1224
        %v1609 = vpack.c.b16 %v1241, %v1225
        %v1610 = vpack.c.b16 %v1242, %v1226
        %v1611 = vpack.c.b16 %v1243, %v1227
        %v1612 = vpack.c.b16 %v1244, %v1228
        %v1613 = vpack.c.b16 %v1245, %v1229
        %v1614 = vpack.c.b16 %v1246, %v1230
        %v1615 = vpack.c.b16 %v1247, %v1231
        %v1616 = vpack.c.b16 %v1248, %v1232
        %v1617 = vpack.c.b16 %v1265, %v1249
        %v1618 = vpack.c.b16 %v1266, %v1250
        %v1619 = vpack.c.b16 %v1267, %v1251
        %v1620 = vpack.c.b16 %v1268, %v1252
        %v1621 = vpack.c.b16 %v1269, %v1253
        %v1622 = vpack.c.b16 %v1270, %v1254
        %v1623 = vpack.c.b16 %v1271, %v1255
        %v1624 = vpack.c.b16 %v1272, %v1256
        %v1625 = vpack.c.b16 %v1273, %v1257
        %v1626 = vpack.c.b16 %v1274, %v1258
        %v1627 = vpack.c.b16 %v1275, %v1259
        %v1628 = vpack.c.b16 %v1276, %v1260
        %v1629 = vpack.c.b16 %v1277, %v1261
        %v1630 = vpack.c.b16 %v1278, %v1262
        %v1631 = vpack.c.b16 %v1279, %v1263
        %v1632 = vpack.c.b16 %v1280, %v1264
        %v1633 = vpack.c.b16 %v1297, %v1281
        %v1634 = vpack.c.b16 %v1298, %v1282
        %v1635 = vpack.c.b16 %v1299, %v1283
        %v1636 = vpack.c.b16 %v1300, %v1284
        %v1637 = vpack.c.b16 %v1301, %v1285
        %v1638 = vpack.c.b16 %v1302, %v1286
        %v1639 = vpack.c.b16 %v1303, %v1287
        %v1640 = vpack.c.b16 %v1304, %v1288
        %v1641 = vpack.c.b16 %v1305, %v1289
        %v1642 = vpack.c.b16 %v1306, %v1290
        %v1643 = vpack.c.b16 %v1307, %v1291
        %v1644 = vpack.c.b16 %v1308, %v1292
        %v1645 = vpack.c.b16 %v1309, %v1293
        %v1646 = vpack.c.b16 %v1310, %v1294
        %v1647 = vpack.c.b16 %v1311, %v1295
        %v1648 = vpack.c.b16 %v1312, %v1296
        %v1649 = vpack.c.b16 %v1329, %v1313
        %v1650 = vpack.c.b16 %v1330, %v1314
        %v1651 = vpack.c.b16 %v1331, %v1315
        %v1652 = vpack.c.b16 %v1332, %v1316
        %v1653 = vpack.c.b16 %v1333, %v1317
        %v1654 = vpack.c.b16 %v1334, %v1318
        %v1655 = vpack.c.b16 %v1335, %v1319
        %v1656 = vpack.c.b16 %v1336, %v1320
        %v1657 = vpack.c.b16 %v1337, %v1321
        %v1658 = vpack.c.b16 %v1338, %v1322
        %v1659 = vpack.c.b16 %v1339, %v1323
        %v1660 = vpack.c.b16 %v1340, %v1324
        %v1661 = vpack.c.b16 %v1341, %v1325
        %v1662 = vpack.c.b16 %v1342, %v1326
        %v1663 = vpack.c.b16 %v1343, %v1327
        %v1664 = vpack.c.b16 %v1344, %v1328
        %v1665 = vpack.c.b16 %v1361, %v1345
        %v1666 = vpack.c.b16 %v1362, %v1346
        %v1667 = vpack.c.b16 %v1363, %v1347
        %v1668 = vpack.c.b16 %v1364, %v1348
        %v1669 = vpack.c.b16 %v1365, %v1349
        %v1670 = vpack.c.b16 %v1366, %v1350
        %v1671 = vpack.c.b16 %v1367, %v1351
        %v1672 = vpack.c.b16 %v1368, %v1352
        %v1673 = vpack.c.b16 %v1369, %v1353
        %v1674 = vpack.c.b16 %v1370, %v1354
        %v1675 = vpack.c.b16 %v1371, %v1355
        %v1676 = vpack.c.b16 %v1372, %v1356
        %v1677 = vpack.c.b16 %v1373, %v1357
        %v1678 = vpack.c.b16 %v1374, %v1358
        %v1679 = vpack.c.b16 %v1375, %v1359
        %v1680 = vpack.c.b16 %v1376, %v1360
        %v1681 = vpack.c.b16 %v1393, %v1377
        %v1682 = vpack.c.b16 %v1394, %v1378
        %v1683 = vpack.c.b16 %v1395, %v1379
        %v1684 = vpack.c.b16 %v1396, %v1380
        %v1685 = vpack.c.b16 %v1397, %v1381
        %v1686 = vpack.c.b16 %v1398, %v1382
        %v1687 = vpack.c.b16 %v1399, %v1383
        %v1688 = vpack.c.b16 %v1400, %v1384
        %v1689 = vpack.c.b16 %v1401, %v1385
        %v1690 = vpack.c.b16 %v1402, %v1386
        %v1691 = vpack.c.b16 %v1403, %v1387
        %v1692 = vpack.c.b16 %v1404, %v1388
        %v1693 = vpack.c.b16 %v1405, %v1389
        %v1694 = vpack.c.b16 %v1406, %v1390
        %v1695 = vpack.c.b16 %v1407, %v1391
        %v1696 = vpack.c.b16 %v1408, %v1392
        %v1697 = vpack.c.b16 %v1425, %v1409
        %v1698 = vpack.c.b16 %v1426, %v1410
        %v1699 = vpack.c.b16 %v1427, %v1411
        %v1700 = vpack.c.b16 %v1428, %v1412
        %v1701 = vpack.c.b16 %v1429, %v1413
        %v1702 = vpack.c.b16 %v1430, %v1414
        %v1703 = vpack.c.b16 %v1431, %v1415
        %v1704 = vpack.c.b16 %v1432, %v1416
        %v1705 = vpack.c.b16 %v1433, %v1417
        %v1706 = vpack.c.b16 %v1434, %v1418
        %v1707 = vpack.c.b16 %v1435, %v1419
        %v1708 = vpack.c.b16 %v1436, %v1420
        %v1709 = vpack.c.b16 %v1437, %v1421
        %v1710 = vpack.c.b16 %v1438, %v1422
        %v1711 = vpack.c.b16 %v1439, %v1423
        %v1712 = vpack.c.b16 %v1440, %v1424
        %v1713 = vpack.c.b16 %v1457, %v1441
        %v1714 = vpack.c.b16 %v1458, %v1442
        %v1715 = vpack.c.b16 %v1459, %v1443
        %v1716 = vpack.c.b16 %v1460, %v1444
        %v1717 = vpack.c.b16 %v1461, %v1445
        %v1718 = vpack.c.b16 %v1462, %v1446
        %v1719 = vpack.c.b16 %v1463, %v1447
        %v1720 = vpack.c.b16 %v1464, %v1448
        %v1721 = vpack.c.b16 %v1465, %v1449
        %v1722 = vpack.c.b16 %v1466, %v1450
        %v1723 = vpack.c.b16 %v1467, %v1451
        %v1724 = vpack.c.b16 %v1468, %v1452
        %v1725 = vpack.c.b16 %v1469, %v1453
        %v1726 = vpack.c.b16 %v1470, %v1454
        %v1727 = vpack.c.b16 %v1471, %v1455
        %v1728 = vpack.c.b16 %v1472, %v1456
        %1985 = vmatprep.subr.bf16.mxu0 %v1474
        %1986 = vmatpush1.bf16.msra.mxu0 %v1473
        %1987 = vmatprep.subr.bf16.mxu0 %v1490
        %1988 = vmatpush1.bf16.msra.mxu0 %v1489
        %1989 = vmatprep.subr.bf16.mxu0 %v1506
        %1990 = vmatpush1.bf16.msra.mxu0 %v1505
        %1991 = vmatprep.subr.bf16.mxu0 %v1522
        %1992 = vmatpush1.bf16.msra.mxu0 %v1521
        %1993 = vmatprep.subr.bf16.mxu0 %v1538
        %1994 = vmatpush1.bf16.msra.mxu0 %v1537
        %1995 = vmatprep.subr.bf16.mxu0 %v1554
        %1996 = vmatpush1.bf16.msra.mxu0 %v1553
        %1997 = vmatprep.subr.bf16.mxu0 %v1570
        %1998 = vmatpush1.bf16.msra.mxu0 %v1569
        %1999 = vmatprep.subr.bf16.mxu0 %v1586
        %2000 = vmatpush1.bf16.msra.mxu0 %v1585
        %2001 = vmatprep.subr.bf16.mxu0 %v1602
        %2002 = vmatpush1.bf16.msra.mxu0 %v1601
        %2003 = vmatprep.subr.bf16.mxu0 %v1618
        %2004 = vmatpush1.bf16.msra.mxu0 %v1617
        %2005 = vmatprep.subr.bf16.mxu0 %v1634
        %2006 = vmatpush1.bf16.msra.mxu0 %v1633
        %2007 = vmatprep.subr.bf16.mxu0 %v1650
        %2008 = vmatpush1.bf16.msra.mxu0 %v1649
        %2009 = vmatprep.subr.bf16.mxu0 %v1666
        %2010 = vmatpush1.bf16.msra.mxu0 %v1665
        %2011 = vmatprep.subr.bf16.mxu0 %v1682
        %2012 = vmatpush1.bf16.msra.mxu0 %v1681
        %2013 = vmatprep.subr.bf16.mxu0 %v1698
        %2014 = vmatpush1.bf16.msra.mxu0 %v1697
        %2015 = vmatprep.subr.bf16.mxu0 %v1714
        %2016 = vmatpush1.bf16.msra.mxu0 %v1713
        %2017 = vmatprep.mubr.bf16.mxu0 %v690
        %2018 = vmatmul.mubr.bf16.gmra.mrb[0].mxu0 %v689
        %v2019 = vpop.f32.mrb[0].mxu0
        %v2020 = vadd.f32 0.0, %v2019
        %v2021 = vpop.f32.mrb[0].mxu0
        %v2022 = vadd.f32 0.0, %v2021
        %v2023 = vpop.f32.mrb[0].mxu0
        %v2024 = vadd.f32 0.0, %v2023
        %v2025 = vpop.f32.mrb[0].mxu0
        %v2026 = vadd.f32 0.0, %v2025
        %2027 = vmatprep.mubr.bf16.mxu0 %v692
        %2028 = vmatmul.mubr.bf16.gmra.mrb[0].mxu0 %v691
        %v2029 = vpop.f32.mrb[0].mxu0
        %v2030 = vadd.f32 0.0, %v2029
        %v2031 = vpop.f32.mrb[0].mxu0
        %v2032 = vadd.f32 0.0, %v2031
        %v2033 = vpop.f32.mrb[0].mxu0
        %v2034 = vadd.f32 0.0, %v2033
        %v2035 = vpop.f32.mrb[0].mxu0
        %v2036 = vadd.f32 0.0, %v2035
        %2037 = vmatprep.mubr.bf16.mxu0 %v694
        %2038 = vmatmul.mubr.bf16.gmra.mrb[0].mxu0 %v693
        %v2039 = vpop.f32.mrb[0].mxu0
        %v2040 = vadd.f32 0.0, %v2039
        %v2041 = vpop.f32.mrb[0].mxu0
        %v2042 = vadd.f32 0.0, %v2041
        %v2043 = vpop.f32.mrb[0].mxu0
        %v2044 = vadd.f32 0.0, %v2043
        %v2045 = vpop.f32.mrb[0].mxu0
        %v2046 = vadd.f32 0.0, %v2045
        %2047 = vmatprep.mubr.bf16.mxu0 %v696
        %2048 = vmatmul.mubr.bf16.gmra.mrb[0].mxu0 %v695
        %v2049 = vpop.f32.mrb[0].mxu0
        %v2050 = vadd.f32 0.0, %v2049
        %v2051 = vpop.f32.mrb[0].mxu0
        %v2052 = vadd.f32 0.0, %v2051
        %v2053 = vpop.f32.mrb[0].mxu0
        %v2054 = vadd.f32 0.0, %v2053
        %v2055 = vpop.f32.mrb[0].mxu0
        %v2056 = vadd.f32 0.0, %v2055
        %2057 = vdwg.mxu0
        %2058 = vmatprep.subr.bf16.mxu0 %v1476
        %2059 = vmatpush1.bf16.msra.mxu0 %v1475
        %2060 = vmatprep.subr.bf16.mxu0 %v1492
        %2061 = vmatpush1.bf16.msra.mxu0 %v1491
        %2062 = vmatprep.subr.bf16.mxu0 %v1508
        %2063 = vmatpush1.bf16.msra.mxu0 %v1507
        %2064 = vmatprep.subr.bf16.mxu0 %v1524
        %2065 = vmatpush1.bf16.msra.mxu0 %v1523
        %2066 = vmatprep.subr.bf16.mxu0 %v1540
        %2067 = vmatpush1.bf16.msra.mxu0 %v1539
        %2068 = vmatprep.subr.bf16.mxu0 %v1556
        %2069 = vmatpush1.bf16.msra.mxu0 %v1555
        %2070 = vmatprep.subr.bf16.mxu0 %v1572
        %2071 = vmatpush1.bf16.msra.mxu0 %v1571
        %2072 = vmatprep.subr.bf16.mxu0 %v1588
        %2073 = vmatpush1.bf16.msra.mxu0 %v1587
        %2074 = vmatprep.subr.bf16.mxu0 %v1604
        %2075 = vmatpush1.bf16.msra.mxu0 %v1603
        %2076 = vmatprep.subr.bf16.mxu0 %v1620
        %2077 = vmatpush1.bf16.msra.mxu0 %v1619
        %2078 = vmatprep.subr.bf16.mxu0 %v1636
        %2079 = vmatpush1.bf16.msra.mxu0 %v1635
        %2080 = vmatprep.subr.bf16.mxu0 %v1652
        %2081 = vmatpush1.bf16.msra.mxu0 %v1651
        %2082 = vmatprep.subr.bf16.mxu0 %v1668
        %2083 = vmatpush1.bf16.msra.mxu0 %v1667
        %2084 = vmatprep.subr.bf16.mxu0 %v1684
        %2085 = vmatpush1.bf16.msra.mxu0 %v1683
        %2086 = vmatprep.subr.bf16.mxu0 %v1700
        %2087 = vmatpush1.bf16.msra.mxu0 %v1699
        %2088 = vmatprep.subr.bf16.mxu0 %v1716
        %2089 = vmatpush1.bf16.msra.mxu0 %v1715
        %2090 = vmatprep.mubr.bf16.mxu0 %v690
        %2091 = vmatmul.mubr.bf16.gmra.mrb[0].mxu0 %v689
        %v2092 = vpop.f32.mrb[0].mxu0
        %v2093 = vadd.f32 0.0, %v2092
        %v2094 = vpop.f32.mrb[0].mxu0
        %v2095 = vadd.f32 0.0, %v2094
        %v2096 = vpop.f32.mrb[0].mxu0
        %v2097 = vadd.f32 0.0, %v2096
        %v2098 = vpop.f32.mrb[0].mxu0
        %v2099 = vadd.f32 0.0, %v2098
        %2100 = vmatprep.mubr.bf16.mxu0 %v692
        %2101 = vmatmul.mubr.bf16.gmra.mrb[0].mxu0 %v691
        %v2102 = vpop.f32.mrb[0].mxu0
        %v2103 = vadd.f32 0.0, %v2102
        %v2104 = vpop.f32.mrb[0].mxu0
        %v2105 = vadd.f32 0.0, %v2104
        %v2106 = vpop.f32.mrb[0].mxu0
        %v2107 = vadd.f32 0.0, %v2106
        %v2108 = vpop.f32.mrb[0].mxu0
        %v2109 = vadd.f32 0.0, %v2108
        %2110 = vmatprep.mubr.bf16.mxu0 %v694
        %2111 = vmatmul.mubr.bf16.gmra.mrb[0].mxu0 %v693
        %v2112 = vpop.f32.mrb[0].mxu0
        %v2113 = vadd.f32 0.0, %v2112
        %v2114 = vpop.f32.mrb[0].mxu0
        %v2115 = vadd.f32 0.0, %v2114
        %v2116 = vpop.f32.mrb[0].mxu0
        %v2117 = vadd.f32 0.0, %v2116
        %v2118 = vpop.f32.mrb[0].mxu0
        %v2119 = vadd.f32 0.0, %v2118
        %2120 = vmatprep.mubr.bf16.mxu0 %v696
        %2121 = vmatmul.mubr.bf16.gmra.mrb[0].mxu0 %v695
        %v2122 = vpop.f32.mrb[0].mxu0
        %v2123 = vadd.f32 0.0, %v2122
        %v2124 = vpop.f32.mrb[0].mxu0
        %v2125 = vadd.f32 0.0, %v2124
        %v2126 = vpop.f32.mrb[0].mxu0
        %v2127 = vadd.f32 0.0, %v2126
        %v2128 = vpop.f32.mrb[0].mxu0
        %v2129 = vadd.f32 0.0, %v2128
        %2130 = vdwg.mxu0
        %2131 = vmatprep.subr.bf16.mxu0 %v1478
        %2132 = vmatpush1.bf16.msra.mxu0 %v1477
        %2133 = vmatprep.subr.bf16.mxu0 %v1494
        %2134 = vmatpush1.bf16.msra.mxu0 %v1493
        %2135 = vmatprep.subr.bf16.mxu0 %v1510
        %2136 = vmatpush1.bf16.msra.mxu0 %v1509
        %2137 = vmatprep.subr.bf16.mxu0 %v1526
        %2138 = vmatpush1.bf16.msra.mxu0 %v1525
        %2139 = vmatprep.subr.bf16.mxu0 %v1542
        %2140 = vmatpush1.bf16.msra.mxu0 %v1541
        %2141 = vmatprep.subr.bf16.mxu0 %v1558
        %2142 = vmatpush1.bf16.msra.mxu0 %v1557
        %2143 = vmatprep.subr.bf16.mxu0 %v1574
        %2144 = vmatpush1.bf16.msra.mxu0 %v1573
        %2145 = vmatprep.subr.bf16.mxu0 %v1590
        %2146 = vmatpush1.bf16.msra.mxu0 %v1589
        %2147 = vmatprep.subr.bf16.mxu0 %v1606
        %2148 = vmatpush1.bf16.msra.mxu0 %v1605
        %2149 = vmatprep.subr.bf16.mxu0 %v1622
        %2150 = vmatpush1.bf16.msra.mxu0 %v1621
        %2151 = vmatprep.subr.bf16.mxu0 %v1638
        %2152 = vmatpush1.bf16.msra.mxu0 %v1637
        %2153 = vmatprep.subr.bf16.mxu0 %v1654
        %2154 = vmatpush1.bf16.msra.mxu0 %v1653
        %2155 = vmatprep.subr.bf16.mxu0 %v1670
        %2156 = vmatpush1.bf16.msra.mxu0 %v1669
        %2157 = vmatprep.subr.bf16.mxu0 %v1686
        %2158 = vmatpush1.bf16.msra.mxu0 %v1685
        %2159 = vmatprep.subr.bf16.mxu0 %v1702
        %2160 = vmatpush1.bf16.msra.mxu0 %v1701
        %2161 = vmatprep.subr.bf16.mxu0 %v1718
        %2162 = vmatpush1.bf16.msra.mxu0 %v1717
        %2163 = vmatprep.mubr.bf16.mxu0 %v690
        %2164 = vmatmul.mubr.bf16.gmra.mrb[0].mxu0 %v689
        %v2165 = vpop.f32.mrb[0].mxu0
        %v2166 = vadd.f32 0.0, %v2165
        %v2167 = vpop.f32.mrb[0].mxu0
        %v2168 = vadd.f32 0.0, %v2167
        %v2169 = vpop.f32.mrb[0].mxu0
        %v2170 = vadd.f32 0.0, %v2169
        %v2171 = vpop.f32.mrb[0].mxu0
        %v2172 = vadd.f32 0.0, %v2171
        %2173 = vmatprep.mubr.bf16.mxu0 %v692
        %2174 = vmatmul.mubr.bf16.gmra.mrb[0].mxu0 %v691
        %v2175 = vpop.f32.mrb[0].mxu0
        %v2176 = vadd.f32 0.0, %v2175
        %v2177 = vpop.f32.mrb[0].mxu0
        %v2178 = vadd.f32 0.0, %v2177
        %v2179 = vpop.f32.mrb[0].mxu0
        %v2180 = vadd.f32 0.0, %v2179
        %v2181 = vpop.f32.mrb[0].mxu0
        %v2182 = vadd.f32 0.0, %v2181
        %2183 = vmatprep.mubr.bf16.mxu0 %v694
        %2184 = vmatmul.mubr.bf16.gmra.mrb[0].mxu0 %v693
        %v2185 = vpop.f32.mrb[0].mxu0
        %v2186 = vadd.f32 0.0, %v2185
        %v2187 = vpop.f32.mrb[0].mxu0
        %v2188 = vadd.f32 0.0, %v2187
        %v2189 = vpop.f32.mrb[0].mxu0
        %v2190 = vadd.f32 0.0, %v2189
        %v2191 = vpop.f32.mrb[0].mxu0
        %v2192 = vadd.f32 0.0, %v2191
        %2193 = vmatprep.mubr.bf16.mxu0 %v696
        %2194 = vmatmul.mubr.bf16.gmra.mrb[0].mxu0 %v695
        %v2195 = vpop.f32.mrb[0].mxu0
        %v2196 = vadd.f32 0.0, %v2195
        %v2197 = vpop.f32.mrb[0].mxu0
        %v2198 = vadd.f32 0.0, %v2197
        %v2199 = vpop.f32.mrb[0].mxu0
        %v2200 = vadd.f32 0.0, %v2199
        %v2201 = vpop.f32.mrb[0].mxu0
        %v2202 = vadd.f32 0.0, %v2201
        %2203 = vdwg.mxu0
        %2204 = vmatprep.subr.bf16.mxu0 %v1480
        %2205 = vmatpush1.bf16.msra.mxu0 %v1479
        %2206 = vmatprep.subr.bf16.mxu0 %v1496
        %2207 = vmatpush1.bf16.msra.mxu0 %v1495
        %2208 = vmatprep.subr.bf16.mxu0 %v1512
        %2209 = vmatpush1.bf16.msra.mxu0 %v1511
        %2210 = vmatprep.subr.bf16.mxu0 %v1528
        %2211 = vmatpush1.bf16.msra.mxu0 %v1527
        %2212 = vmatprep.subr.bf16.mxu0 %v1544
        %2213 = vmatpush1.bf16.msra.mxu0 %v1543
        %2214 = vmatprep.subr.bf16.mxu0 %v1560
        %2215 = vmatpush1.bf16.msra.mxu0 %v1559
        %2216 = vmatprep.subr.bf16.mxu0 %v1576
        %2217 = vmatpush1.bf16.msra.mxu0 %v1575
        %2218 = vmatprep.subr.bf16.mxu0 %v1592
        %2219 = vmatpush1.bf16.msra.mxu0 %v1591
        %2220 = vmatprep.subr.bf16.mxu0 %v1608
        %2221 = vmatpush1.bf16.msra.mxu0 %v1607
        %2222 = vmatprep.subr.bf16.mxu0 %v1624
        %2223 = vmatpush1.bf16.msra.mxu0 %v1623
        %2224 = vmatprep.subr.bf16.mxu0 %v1640
        %2225 = vmatpush1.bf16.msra.mxu0 %v1639
        %2226 = vmatprep.subr.bf16.mxu0 %v1656
        %2227 = vmatpush1.bf16.msra.mxu0 %v1655
        %2228 = vmatprep.subr.bf16.mxu0 %v1672
        %2229 = vmatpush1.bf16.msra.mxu0 %v1671
        %2230 = vmatprep.subr.bf16.mxu0 %v1688
        %2231 = vmatpush1.bf16.msra.mxu0 %v1687
        %2232 = vmatprep.subr.bf16.mxu0 %v1704
        %2233 = vmatpush1.bf16.msra.mxu0 %v1703
        %2234 = vmatprep.subr.bf16.mxu0 %v1720
        %2235 = vmatpush1.bf16.msra.mxu0 %v1719
        %2236 = vmatprep.mubr.bf16.mxu0 %v690
        %2237 = vmatmul.mubr.bf16.gmra.mrb[0].mxu0 %v689
        %v2238 = vpop.f32.mrb[0].mxu0
        %v2239 = vadd.f32 0.0, %v2238
        %v2240 = vpop.f32.mrb[0].mxu0
        %v2241 = vadd.f32 0.0, %v2240
        %v2242 = vpop.f32.mrb[0].mxu0
        %v2243 = vadd.f32 0.0, %v2242
        %v2244 = vpop.f32.mrb[0].mxu0
        %v2245 = vadd.f32 0.0, %v2244
        %2246 = vmatprep.mubr.bf16.mxu0 %v692
        %2247 = vmatmul.mubr.bf16.gmra.mrb[0].mxu0 %v691
        %v2248 = vpop.f32.mrb[0].mxu0
        %v2249 = vadd.f32 0.0, %v2248
        %v2250 = vpop.f32.mrb[0].mxu0
        %v2251 = vadd.f32 0.0, %v2250
        %v2252 = vpop.f32.mrb[0].mxu0
        %v2253 = vadd.f32 0.0, %v2252
        %v2254 = vpop.f32.mrb[0].mxu0
        %v2255 = vadd.f32 0.0, %v2254
        %2256 = vmatprep.mubr.bf16.mxu0 %v694
        %2257 = vmatmul.mubr.bf16.gmra.mrb[0].mxu0 %v693
        %v2258 = vpop.f32.mrb[0].mxu0
        %v2259 = vadd.f32 0.0, %v2258
        %v2260 = vpop.f32.mrb[0].mxu0
        %v2261 = vadd.f32 0.0, %v2260
        %v2262 = vpop.f32.mrb[0].mxu0
        %v2263 = vadd.f32 0.0, %v2262
        %v2264 = vpop.f32.mrb[0].mxu0
        %v2265 = vadd.f32 0.0, %v2264
        %2266 = vmatprep.mubr.bf16.mxu0 %v696
        %2267 = vmatmul.mubr.bf16.gmra.mrb[0].mxu0 %v695
        %v2268 = vpop.f32.mrb[0].mxu0
        %v2269 = vadd.f32 0.0, %v2268
        %v2270 = vpop.f32.mrb[0].mxu0
        %v2271 = vadd.f32 0.0, %v2270
        %v2272 = vpop.f32.mrb[0].mxu0
        %v2273 = vadd.f32 0.0, %v2272
        %v2274 = vpop.f32.mrb[0].mxu0
        %v2275 = vadd.f32 0.0, %v2274
        %2276 = vdwg.mxu0
        %2277 = vmatprep.subr.bf16.mxu0 %v1482
        %2278 = vmatpush1.bf16.msra.mxu0 %v1481
        %2279 = vmatprep.subr.bf16.mxu0 %v1498
        %2280 = vmatpush1.bf16.msra.mxu0 %v1497
        %2281 = vmatprep.subr.bf16.mxu0 %v1514
        %2282 = vmatpush1.bf16.msra.mxu0 %v1513
        %2283 = vmatprep.subr.bf16.mxu0 %v1530
        %2284 = vmatpush1.bf16.msra.mxu0 %v1529
        %2285 = vmatprep.subr.bf16.mxu0 %v1546
        %2286 = vmatpush1.bf16.msra.mxu0 %v1545
        %2287 = vmatprep.subr.bf16.mxu0 %v1562
        %2288 = vmatpush1.bf16.msra.mxu0 %v1561
        %2289 = vmatprep.subr.bf16.mxu0 %v1578
        %2290 = vmatpush1.bf16.msra.mxu0 %v1577
        %2291 = vmatprep.subr.bf16.mxu0 %v1594
        %2292 = vmatpush1.bf16.msra.mxu0 %v1593
        %2293 = vmatprep.subr.bf16.mxu0 %v1610
        %2294 = vmatpush1.bf16.msra.mxu0 %v1609
        %2295 = vmatprep.subr.bf16.mxu0 %v1626
        %2296 = vmatpush1.bf16.msra.mxu0 %v1625
        %2297 = vmatprep.subr.bf16.mxu0 %v1642
        %2298 = vmatpush1.bf16.msra.mxu0 %v1641
        %2299 = vmatprep.subr.bf16.mxu0 %v1658
        %2300 = vmatpush1.bf16.msra.mxu0 %v1657
        %2301 = vmatprep.subr.bf16.mxu0 %v1674
        %2302 = vmatpush1.bf16.msra.mxu0 %v1673
        %2303 = vmatprep.subr.bf16.mxu0 %v1690
        %2304 = vmatpush1.bf16.msra.mxu0 %v1689
        %2305 = vmatprep.subr.bf16.mxu0 %v1706
        %2306 = vmatpush1.bf16.msra.mxu0 %v1705
        %2307 = vmatprep.subr.bf16.mxu0 %v1722
        %2308 = vmatpush1.bf16.msra.mxu0 %v1721
        %2309 = vmatprep.mubr.bf16.mxu0 %v690
        %2310 = vmatmul.mubr.bf16.gmra.mrb[0].mxu0 %v689
        %v2311 = vpop.f32.mrb[0].mxu0
        %v2312 = vadd.f32 0.0, %v2311
        %v2313 = vpop.f32.mrb[0].mxu0
        %v2314 = vadd.f32 0.0, %v2313
        %v2315 = vpop.f32.mrb[0].mxu0
        %v2316 = vadd.f32 0.0, %v2315
        %v2317 = vpop.f32.mrb[0].mxu0
        %v2318 = vadd.f32 0.0, %v2317
        %2319 = vmatprep.mubr.bf16.mxu0 %v692
        %2320 = vmatmul.mubr.bf16.gmra.mrb[0].mxu0 %v691
        %v2321 = vpop.f32.mrb[0].mxu0
        %v2322 = vadd.f32 0.0, %v2321
        %v2323 = vpop.f32.mrb[0].mxu0
        %v2324 = vadd.f32 0.0, %v2323
        %v2325 = vpop.f32.mrb[0].mxu0
        %v2326 = vadd.f32 0.0, %v2325
        %v2327 = vpop.f32.mrb[0].mxu0
        %v2328 = vadd.f32 0.0, %v2327
        %2329 = vmatprep.mubr.bf16.mxu0 %v694
        %2330 = vmatmul.mubr.bf16.gmra.mrb[0].mxu0 %v693
        %v2331 = vpop.f32.mrb[0].mxu0
        %v2332 = vadd.f32 0.0, %v2331
        %v2333 = vpop.f32.mrb[0].mxu0
        %v2334 = vadd.f32 0.0, %v2333
        %v2335 = vpop.f32.mrb[0].mxu0
        %v2336 = vadd.f32 0.0, %v2335
        %v2337 = vpop.f32.mrb[0].mxu0
        %v2338 = vadd.f32 0.0, %v2337
        %2339 = vmatprep.mubr.bf16.mxu0 %v696
        %2340 = vmatmul.mubr.bf16.gmra.mrb[0].mxu0 %v695
        %v2341 = vpop.f32.mrb[0].mxu0
        %v2342 = vadd.f32 0.0, %v2341
        %v2343 = vpop.f32.mrb[0].mxu0
        %v2344 = vadd.f32 0.0, %v2343
        %v2345 = vpop.f32.mrb[0].mxu0
        %v2346 = vadd.f32 0.0, %v2345
        %v2347 = vpop.f32.mrb[0].mxu0
        %v2348 = vadd.f32 0.0, %v2347
        %2349 = vdwg.mxu0
        %2350 = vmatprep.subr.bf16.mxu0 %v1484
        %2351 = vmatpush1.bf16.msra.mxu0 %v1483
        %2352 = vmatprep.subr.bf16.mxu0 %v1500
        %2353 = vmatpush1.bf16.msra.mxu0 %v1499
        %2354 = vmatprep.subr.bf16.mxu0 %v1516
        %2355 = vmatpush1.bf16.msra.mxu0 %v1515
        %2356 = vmatprep.subr.bf16.mxu0 %v1532
        %2357 = vmatpush1.bf16.msra.mxu0 %v1531
        %2358 = vmatprep.subr.bf16.mxu0 %v1548
        %2359 = vmatpush1.bf16.msra.mxu0 %v1547
        %2360 = vmatprep.subr.bf16.mxu0 %v1564
        %2361 = vmatpush1.bf16.msra.mxu0 %v1563
        %2362 = vmatprep.subr.bf16.mxu0 %v1580
        %2363 = vmatpush1.bf16.msra.mxu0 %v1579
        %2364 = vmatprep.subr.bf16.mxu0 %v1596
        %2365 = vmatpush1.bf16.msra.mxu0 %v1595
        %2366 = vmatprep.subr.bf16.mxu0 %v1612
        %2367 = vmatpush1.bf16.msra.mxu0 %v1611
        %2368 = vmatprep.subr.bf16.mxu0 %v1628
        %2369 = vmatpush1.bf16.msra.mxu0 %v1627
        %2370 = vmatprep.subr.bf16.mxu0 %v1644
        %2371 = vmatpush1.bf16.msra.mxu0 %v1643
        %2372 = vmatprep.subr.bf16.mxu0 %v1660
        %2373 = vmatpush1.bf16.msra.mxu0 %v1659
        %2374 = vmatprep.subr.bf16.mxu0 %v1676
        %2375 = vmatpush1.bf16.msra.mxu0 %v1675
        %2376 = vmatprep.subr.bf16.mxu0 %v1692
        %2377 = vmatpush1.bf16.msra.mxu0 %v1691
        %2378 = vmatprep.subr.bf16.mxu0 %v1708
        %2379 = vmatpush1.bf16.msra.mxu0 %v1707
        %2380 = vmatprep.subr.bf16.mxu0 %v1724
        %2381 = vmatpush1.bf16.msra.mxu0 %v1723
        %2382 = vmatprep.mubr.bf16.mxu0 %v690
        %2383 = vmatmul.mubr.bf16.gmra.mrb[0].mxu0 %v689
        %v2384 = vpop.f32.mrb[0].mxu0
        %v2385 = vadd.f32 0.0, %v2384
        %v2386 = vpop.f32.mrb[0].mxu0
        %v2387 = vadd.f32 0.0, %v2386
        %v2388 = vpop.f32.mrb[0].mxu0
        %v2389 = vadd.f32 0.0, %v2388
        %v2390 = vpop.f32.mrb[0].mxu0
        %v2391 = vadd.f32 0.0, %v2390
        %2392 = vmatprep.mubr.bf16.mxu0 %v692
        %2393 = vmatmul.mubr.bf16.gmra.mrb[0].mxu0 %v691
        %v2394 = vpop.f32.mrb[0].mxu0
        %v2395 = vadd.f32 0.0, %v2394
        %v2396 = vpop.f32.mrb[0].mxu0
        %v2397 = vadd.f32 0.0, %v2396
        %v2398 = vpop.f32.mrb[0].mxu0
        %v2399 = vadd.f32 0.0, %v2398
        %v2400 = vpop.f32.mrb[0].mxu0
        %v2401 = vadd.f32 0.0, %v2400
        %2402 = vmatprep.mubr.bf16.mxu0 %v694
        %2403 = vmatmul.mubr.bf16.gmra.mrb[0].mxu0 %v693
        %v2404 = vpop.f32.mrb[0].mxu0
        %v2405 = vadd.f32 0.0, %v2404
        %v2406 = vpop.f32.mrb[0].mxu0
        %v2407 = vadd.f32 0.0, %v2406
        %v2408 = vpop.f32.mrb[0].mxu0
        %v2409 = vadd.f32 0.0, %v2408
        %v2410 = vpop.f32.mrb[0].mxu0
        %v2411 = vadd.f32 0.0, %v2410
        %2412 = vmatprep.mubr.bf16.mxu0 %v696
        %2413 = vmatmul.mubr.bf16.gmra.mrb[0].mxu0 %v695
        %v2414 = vpop.f32.mrb[0].mxu0
        %v2415 = vadd.f32 0.0, %v2414
        %v2416 = vpop.f32.mrb[0].mxu0
        %v2417 = vadd.f32 0.0, %v2416
        %v2418 = vpop.f32.mrb[0].mxu0
        %v2419 = vadd.f32 0.0, %v2418
        %v2420 = vpop.f32.mrb[0].mxu0
        %v2421 = vadd.f32 0.0, %v2420
        %2422 = vdwg.mxu0
        %2423 = vmatprep.subr.bf16.mxu0 %v1486
        %2424 = vmatpush1.bf16.msra.mxu0 %v1485
        %2425 = vmatprep.subr.bf16.mxu0 %v1502
        %2426 = vmatpush1.bf16.msra.mxu0 %v1501
        %2427 = vmatprep.subr.bf16.mxu0 %v1518
        %2428 = vmatpush1.bf16.msra.mxu0 %v1517
        %2429 = vmatprep.subr.bf16.mxu0 %v1534
        %2430 = vmatpush1.bf16.msra.mxu0 %v1533
        %2431 = vmatprep.subr.bf16.mxu0 %v1550
        %2432 = vmatpush1.bf16.msra.mxu0 %v1549
        %2433 = vmatprep.subr.bf16.mxu0 %v1566
        %2434 = vmatpush1.bf16.msra.mxu0 %v1565
        %2435 = vmatprep.subr.bf16.mxu0 %v1582
        %2436 = vmatpush1.bf16.msra.mxu0 %v1581
        %2437 = vmatprep.subr.bf16.mxu0 %v1598
        %2438 = vmatpush1.bf16.msra.mxu0 %v1597
        %2439 = vmatprep.subr.bf16.mxu0 %v1614
        %2440 = vmatpush1.bf16.msra.mxu0 %v1613
        %2441 = vmatprep.subr.bf16.mxu0 %v1630
        %2442 = vmatpush1.bf16.msra.mxu0 %v1629
        %2443 = vmatprep.subr.bf16.mxu0 %v1646
        %2444 = vmatpush1.bf16.msra.mxu0 %v1645
        %2445 = vmatprep.subr.bf16.mxu0 %v1662
        %2446 = vmatpush1.bf16.msra.mxu0 %v1661
        %2447 = vmatprep.subr.bf16.mxu0 %v1678
        %2448 = vmatpush1.bf16.msra.mxu0 %v1677
        %2449 = vmatprep.subr.bf16.mxu0 %v1694
        %2450 = vmatpush1.bf16.msra.mxu0 %v1693
        %2451 = vmatprep.subr.bf16.mxu0 %v1710
        %2452 = vmatpush1.bf16.msra.mxu0 %v1709
        %2453 = vmatprep.subr.bf16.mxu0 %v1726
        %2454 = vmatpush1.bf16.msra.mxu0 %v1725
        %2455 = vmatprep.mubr.bf16.mxu0 %v690
        %2456 = vmatmul.mubr.bf16.gmra.mrb[0].mxu0 %v689
        %v2457 = vpop.f32.mrb[0].mxu0
        %v2458 = vadd.f32 0.0, %v2457
        %v2459 = vpop.f32.mrb[0].mxu0
        %v2460 = vadd.f32 0.0, %v2459
        %v2461 = vpop.f32.mrb[0].mxu0
        %v2462 = vadd.f32 0.0, %v2461
        %v2463 = vpop.f32.mrb[0].mxu0
        %v2464 = vadd.f32 0.0, %v2463
        %2465 = vmatprep.mubr.bf16.mxu0 %v692
        %2466 = vmatmul.mubr.bf16.gmra.mrb[0].mxu0 %v691
        %v2467 = vpop.f32.mrb[0].mxu0
        %v2468 = vadd.f32 0.0, %v2467
        %v2469 = vpop.f32.mrb[0].mxu0
        %v2470 = vadd.f32 0.0, %v2469
        %v2471 = vpop.f32.mrb[0].mxu0
        %v2472 = vadd.f32 0.0, %v2471
        %v2473 = vpop.f32.mrb[0].mxu0
        %v2474 = vadd.f32 0.0, %v2473
        %2475 = vmatprep.mubr.bf16.mxu0 %v694
        %2476 = vmatmul.mubr.bf16.gmra.mrb[0].mxu0 %v693
        %v2477 = vpop.f32.mrb[0].mxu0
        %v2478 = vadd.f32 0.0, %v2477
        %v2479 = vpop.f32.mrb[0].mxu0
        %v2480 = vadd.f32 0.0, %v2479
        %v2481 = vpop.f32.mrb[0].mxu0
        %v2482 = vadd.f32 0.0, %v2481
        %v2483 = vpop.f32.mrb[0].mxu0
        %v2484 = vadd.f32 0.0, %v2483
        %2485 = vmatprep.mubr.bf16.mxu0 %v696
        %2486 = vmatmul.mubr.bf16.gmra.mrb[0].mxu0 %v695
        %v2487 = vpop.f32.mrb[0].mxu0
        %v2488 = vadd.f32 0.0, %v2487
        %v2489 = vpop.f32.mrb[0].mxu0
        %v2490 = vadd.f32 0.0, %v2489
        %v2491 = vpop.f32.mrb[0].mxu0
        %v2492 = vadd.f32 0.0, %v2491
        %v2493 = vpop.f32.mrb[0].mxu0
        %v2494 = vadd.f32 0.0, %v2493
        %2495 = vdwg.mxu0
        %2496 = vmatprep.subr.bf16.mxu0 %v1488
        %2497 = vmatpush1.bf16.msra.mxu0 %v1487
        %2498 = vmatprep.subr.bf16.mxu0 %v1504
        %2499 = vmatpush1.bf16.msra.mxu0 %v1503
        %2500 = vmatprep.subr.bf16.mxu0 %v1520
        %2501 = vmatpush1.bf16.msra.mxu0 %v1519
        %2502 = vmatprep.subr.bf16.mxu0 %v1536
        %2503 = vmatpush1.bf16.msra.mxu0 %v1535
        %2504 = vmatprep.subr.bf16.mxu0 %v1552
        %2505 = vmatpush1.bf16.msra.mxu0 %v1551
        %2506 = vmatprep.subr.bf16.mxu0 %v1568
        %2507 = vmatpush1.bf16.msra.mxu0 %v1567
        %2508 = vmatprep.subr.bf16.mxu0 %v1584
        %2509 = vmatpush1.bf16.msra.mxu0 %v1583
        %2510 = vmatprep.subr.bf16.mxu0 %v1600
        %2511 = vmatpush1.bf16.msra.mxu0 %v1599
        %2512 = vmatprep.subr.bf16.mxu0 %v1616
        %2513 = vmatpush1.bf16.msra.mxu0 %v1615
        %2514 = vmatprep.subr.bf16.mxu0 %v1632
        %2515 = vmatpush1.bf16.msra.mxu0 %v1631
        %2516 = vmatprep.subr.bf16.mxu0 %v1648
        %2517 = vmatpush1.bf16.msra.mxu0 %v1647
        %2518 = vmatprep.subr.bf16.mxu0 %v1664
        %2519 = vmatpush1.bf16.msra.mxu0 %v1663
        %2520 = vmatprep.subr.bf16.mxu0 %v1680
        %2521 = vmatpush1.bf16.msra.mxu0 %v1679
        %2522 = vmatprep.subr.bf16.mxu0 %v1696
        %2523 = vmatpush1.bf16.msra.mxu0 %v1695
        %2524 = vmatprep.subr.bf16.mxu0 %v1712
        %2525 = vmatpush1.bf16.msra.mxu0 %v1711
        %2526 = vmatprep.subr.bf16.mxu0 %v1728
        %2527 = vmatpush1.bf16.msra.mxu0 %v1727
        %2528 = vmatprep.mubr.bf16.mxu0 %v690
        %2529 = vmatmul.mubr.bf16.gmra.mrb[0].mxu0 %v689
        %v2530 = vpop.f32.mrb[0].mxu0
        %v2531 = vadd.f32 0.0, %v2530
        %v2532 = vpop.f32.mrb[0].mxu0
        %v2533 = vadd.f32 0.0, %v2532
        %v2534 = vpop.f32.mrb[0].mxu0
        %v2535 = vadd.f32 0.0, %v2534
        %v2536 = vpop.f32.mrb[0].mxu0
        %v2537 = vadd.f32 0.0, %v2536
        %2538 = vmatprep.mubr.bf16.mxu0 %v692
        %2539 = vmatmul.mubr.bf16.gmra.mrb[0].mxu0 %v691
        %v2540 = vpop.f32.mrb[0].mxu0
        %v2541 = vadd.f32 0.0, %v2540
        %v2542 = vpop.f32.mrb[0].mxu0
        %v2543 = vadd.f32 0.0, %v2542
        %v2544 = vpop.f32.mrb[0].mxu0
        %v2545 = vadd.f32 0.0, %v2544
        %v2546 = vpop.f32.mrb[0].mxu0
        %v2547 = vadd.f32 0.0, %v2546
        %2548 = vmatprep.mubr.bf16.mxu0 %v694
        %2549 = vmatmul.mubr.bf16.gmra.mrb[0].mxu0 %v693
        %v2550 = vpop.f32.mrb[0].mxu0
        %v2551 = vadd.f32 0.0, %v2550
        %v2552 = vpop.f32.mrb[0].mxu0
        %v2553 = vadd.f32 0.0, %v2552
        %v2554 = vpop.f32.mrb[0].mxu0
        %v2555 = vadd.f32 0.0, %v2554
        %v2556 = vpop.f32.mrb[0].mxu0
        %v2557 = vadd.f32 0.0, %v2556
        %2558 = vmatprep.mubr.bf16.mxu0 %v696
        %2559 = vmatmul.mubr.bf16.gmra.mrb[0].mxu0 %v695
        %v2560 = vpop.f32.mrb[0].mxu0
        %v2561 = vadd.f32 0.0, %v2560
        %v2562 = vpop.f32.mrb[0].mxu0
        %v2563 = vadd.f32 0.0, %v2562
        %v2564 = vpop.f32.mrb[0].mxu0
        %v2565 = vadd.f32 0.0, %v2564
        %v2566 = vpop.f32.mrb[0].mxu0
        %v2567 = vadd.f32 0.0, %v2566
        %2568 = vdwg.mxu0
        %v2569 = vmax.f32 %v2020, 0.0
        %v2570 = vmax.f32 %v2022, 0.0
        %v2571 = vmax.f32 %v2093, 0.0
        %v2572 = vmax.f32 %v2095, 0.0
        %v2573 = vmax.f32 %v2166, 0.0
        %v2574 = vmax.f32 %v2168, 0.0
        %v2575 = vmax.f32 %v2239, 0.0
        %v2576 = vmax.f32 %v2241, 0.0
        %v2577 = vmax.f32 %v2312, 0.0
        %v2578 = vmax.f32 %v2314, 0.0
        %v2579 = vmax.f32 %v2385, 0.0
        %v2580 = vmax.f32 %v2387, 0.0
        %v2581 = vmax.f32 %v2458, 0.0
        %v2582 = vmax.f32 %v2460, 0.0
        %v2583 = vmax.f32 %v2531, 0.0
        %v2584 = vmax.f32 %v2533, 0.0
        %v2585 = vmax.f32 %v2024, 0.0
        %v2586 = vmax.f32 %v2026, 0.0
        %v2587 = vmax.f32 %v2097, 0.0
        %v2588 = vmax.f32 %v2099, 0.0
        %v2589 = vmax.f32 %v2170, 0.0
        %v2590 = vmax.f32 %v2172, 0.0
        %v2591 = vmax.f32 %v2243, 0.0
        %v2592 = vmax.f32 %v2245, 0.0
        %v2593 = vmax.f32 %v2316, 0.0
        %v2594 = vmax.f32 %v2318, 0.0
        %v2595 = vmax.f32 %v2389, 0.0
        %v2596 = vmax.f32 %v2391, 0.0
        %v2597 = vmax.f32 %v2462, 0.0
        %v2598 = vmax.f32 %v2464, 0.0
        %v2599 = vmax.f32 %v2535, 0.0
        %v2600 = vmax.f32 %v2537, 0.0
        %v2601 = vmax.f32 %v2030, 0.0
        %v2602 = vmax.f32 %v2032, 0.0
        %v2603 = vmax.f32 %v2103, 0.0
        %v2604 = vmax.f32 %v2105, 0.0
        %v2605 = vmax.f32 %v2176, 0.0
        %v2606 = vmax.f32 %v2178, 0.0
        %v2607 = vmax.f32 %v2249, 0.0
        %v2608 = vmax.f32 %v2251, 0.0
        %v2609 = vmax.f32 %v2322, 0.0
        %v2610 = vmax.f32 %v2324, 0.0
        %v2611 = vmax.f32 %v2395, 0.0
        %v2612 = vmax.f32 %v2397, 0.0
        %v2613 = vmax.f32 %v2468, 0.0
        %v2614 = vmax.f32 %v2470, 0.0
        %v2615 = vmax.f32 %v2541, 0.0
        %v2616 = vmax.f32 %v2543, 0.0
        %v2617 = vmax.f32 %v2034, 0.0
        %v2618 = vmax.f32 %v2036, 0.0
        %v2619 = vmax.f32 %v2107, 0.0
        %v2620 = vmax.f32 %v2109, 0.0
        %v2621 = vmax.f32 %v2180, 0.0
        %v2622 = vmax.f32 %v2182, 0.0
        %v2623 = vmax.f32 %v2253, 0.0
        %v2624 = vmax.f32 %v2255, 0.0
        %v2625 = vmax.f32 %v2326, 0.0
        %v2626 = vmax.f32 %v2328, 0.0
        %v2627 = vmax.f32 %v2399, 0.0
        %v2628 = vmax.f32 %v2401, 0.0
        %v2629 = vmax.f32 %v2472, 0.0
        %v2630 = vmax.f32 %v2474, 0.0
        %v2631 = vmax.f32 %v2545, 0.0
        %v2632 = vmax.f32 %v2547, 0.0
        %v2633 = vmax.f32 %v2040, 0.0
        %v2634 = vmax.f32 %v2042, 0.0
        %v2635 = vmax.f32 %v2113, 0.0
        %v2636 = vmax.f32 %v2115, 0.0
        %v2637 = vmax.f32 %v2186, 0.0
        %v2638 = vmax.f32 %v2188, 0.0
        %v2639 = vmax.f32 %v2259, 0.0
        %v2640 = vmax.f32 %v2261, 0.0
        %v2641 = vmax.f32 %v2332, 0.0
        %v2642 = vmax.f32 %v2334, 0.0
        %v2643 = vmax.f32 %v2405, 0.0
        %v2644 = vmax.f32 %v2407, 0.0
        %v2645 = vmax.f32 %v2478, 0.0
        %v2646 = vmax.f32 %v2480, 0.0
        %v2647 = vmax.f32 %v2551, 0.0
        %v2648 = vmax.f32 %v2553, 0.0
        %v2649 = vmax.f32 %v2044, 0.0
        %v2650 = vmax.f32 %v2046, 0.0
        %v2651 = vmax.f32 %v2117, 0.0
        %v2652 = vmax.f32 %v2119, 0.0
        %v2653 = vmax.f32 %v2190, 0.0
        %v2654 = vmax.f32 %v2192, 0.0
        %v2655 = vmax.f32 %v2263, 0.0
        %v2656 = vmax.f32 %v2265, 0.0
        %v2657 = vmax.f32 %v2336, 0.0
        %v2658 = vmax.f32 %v2338, 0.0
        %v2659 = vmax.f32 %v2409, 0.0
        %v2660 = vmax.f32 %v2411, 0.0
        %v2661 = vmax.f32 %v2482, 0.0
        %v2662 = vmax.f32 %v2484, 0.0
        %v2663 = vmax.f32 %v2555, 0.0
        %v2664 = vmax.f32 %v2557, 0.0
        %v2665 = vmax.f32 %v2050, 0.0
        %v2666 = vmax.f32 %v2052, 0.0
        %v2667 = vmax.f32 %v2123, 0.0
        %v2668 = vmax.f32 %v2125, 0.0
        %v2669 = vmax.f32 %v2196, 0.0
        %v2670 = vmax.f32 %v2198, 0.0
        %v2671 = vmax.f32 %v2269, 0.0
        %v2672 = vmax.f32 %v2271, 0.0
        %v2673 = vmax.f32 %v2342, 0.0
        %v2674 = vmax.f32 %v2344, 0.0
        %v2675 = vmax.f32 %v2415, 0.0
        %v2676 = vmax.f32 %v2417, 0.0
        %v2677 = vmax.f32 %v2488, 0.0
        %v2678 = vmax.f32 %v2490, 0.0
        %v2679 = vmax.f32 %v2561, 0.0
        %v2680 = vmax.f32 %v2563, 0.0
        %v2681 = vmax.f32 %v2054, 0.0
        %v2682 = vmax.f32 %v2056, 0.0
        %v2683 = vmax.f32 %v2127, 0.0
        %v2684 = vmax.f32 %v2129, 0.0
        %v2685 = vmax.f32 %v2200, 0.0
        %v2686 = vmax.f32 %v2202, 0.0
        %v2687 = vmax.f32 %v2273, 0.0
        %v2688 = vmax.f32 %v2275, 0.0
        %v2689 = vmax.f32 %v2346, 0.0
        %v2690 = vmax.f32 %v2348, 0.0
        %v2691 = vmax.f32 %v2419, 0.0
        %v2692 = vmax.f32 %v2421, 0.0
        %v2693 = vmax.f32 %v2492, 0.0
        %v2694 = vmax.f32 %v2494, 0.0
        %v2695 = vmax.f32 %v2565, 0.0
        %v2696 = vmax.f32 %v2567, 0.0
        %v2697 = vld [vmem:[#allocation2] sm:$0xff]
        %v2698 = vld [vmem:[#allocation2 + $0x8] sm:$0xff]
        %v2699 = vld [vmem:[#allocation2 + $0x10] sm:$0xff]
        %v2700 = vld [vmem:[#allocation2 + $0x18] sm:$0xff]
        %v2701 = vld [vmem:[#allocation2 + $0x20] sm:$0xff]
        %v2702 = vld [vmem:[#allocation2 + $0x28] sm:$0xff]
        %v2703 = vld [vmem:[#allocation2 + $0x30] sm:$0xff]
        %v2704 = vld [vmem:[#allocation2 + $0x38] sm:$0xff]
        %v2705 = vld [vmem:[#allocation2 + $0x40] sm:$0xff]
        %v2706 = vld [vmem:[#allocation2 + $0x48] sm:$0xff]
        %v2707 = vld [vmem:[#allocation2 + $0x50] sm:$0xff]
        %v2708 = vld [vmem:[#allocation2 + $0x58] sm:$0xff]
        %v2709 = vld [vmem:[#allocation2 + $0x60] sm:$0xff]
        %v2710 = vld [vmem:[#allocation2 + $0x68] sm:$0xff]
        %v2711 = vld [vmem:[#allocation2 + $0x70] sm:$0xff]
        %v2712 = vld [vmem:[#allocation2 + $0x78] sm:$0xff]
        %v2713 = vrot.slane %v2569, 4
        %v2714 = vadd.f32 %v2569, %v2713
        %v2715 = vrot.slane %v2714, 2
        %v2716 = vadd.f32 %v2714, %v2715
        %v2717 = vrot.slane %v2716, 1
        %v2718 = vadd.f32 %v2716, %v2717
        %v2719 = vrot.slane %v2570, 4
        %v2720 = vadd.f32 %v2570, %v2719
        %v2721 = vrot.slane %v2720, 2
        %v2722 = vadd.f32 %v2720, %v2721
        %v2723 = vrot.slane %v2722, 1
        %v2724 = vadd.f32 %v2722, %v2723
        %v2725 = vrot.slane %v2571, 4
        %v2726 = vadd.f32 %v2571, %v2725
        %v2727 = vrot.slane %v2726, 2
        %v2728 = vadd.f32 %v2726, %v2727
        %v2729 = vrot.slane %v2728, 1
        %v2730 = vadd.f32 %v2728, %v2729
        %v2731 = vrot.slane %v2572, 4
        %v2732 = vadd.f32 %v2572, %v2731
        %v2733 = vrot.slane %v2732, 2
        %v2734 = vadd.f32 %v2732, %v2733
        %v2735 = vrot.slane %v2734, 1
        %v2736 = vadd.f32 %v2734, %v2735
        %v2737 = vrot.slane %v2573, 4
        %v2738 = vadd.f32 %v2573, %v2737
        %v2739 = vrot.slane %v2738, 2
        %v2740 = vadd.f32 %v2738, %v2739
        %v2741 = vrot.slane %v2740, 1
        %v2742 = vadd.f32 %v2740, %v2741
        %v2743 = vrot.slane %v2574, 4
        %v2744 = vadd.f32 %v2574, %v2743
        %v2745 = vrot.slane %v2744, 2
        %v2746 = vadd.f32 %v2744, %v2745
        %v2747 = vrot.slane %v2746, 1
        %v2748 = vadd.f32 %v2746, %v2747
        %v2749 = vrot.slane %v2575, 4
        %v2750 = vadd.f32 %v2575, %v2749
        %v2751 = vrot.slane %v2750, 2
        %v2752 = vadd.f32 %v2750, %v2751
        %v2753 = vrot.slane %v2752, 1
        %v2754 = vadd.f32 %v2752, %v2753
        %v2755 = vrot.slane %v2576, 4
        %v2756 = vadd.f32 %v2576, %v2755
        %v2757 = vrot.slane %v2756, 2
        %v2758 = vadd.f32 %v2756, %v2757
        %v2759 = vrot.slane %v2758, 1
        %v2760 = vadd.f32 %v2758, %v2759
        %v2761 = vrot.slane %v2577, 4
        %v2762 = vadd.f32 %v2577, %v2761
        %v2763 = vrot.slane %v2762, 2
        %v2764 = vadd.f32 %v2762, %v2763
        %v2765 = vrot.slane %v2764, 1
        %v2766 = vadd.f32 %v2764, %v2765
        %v2767 = vrot.slane %v2578, 4
        %v2768 = vadd.f32 %v2578, %v2767
        %v2769 = vrot.slane %v2768, 2
        %v2770 = vadd.f32 %v2768, %v2769
        %v2771 = vrot.slane %v2770, 1
        %v2772 = vadd.f32 %v2770, %v2771
        %v2773 = vrot.slane %v2579, 4
        %v2774 = vadd.f32 %v2579, %v2773
        %v2775 = vrot.slane %v2774, 2
        %v2776 = vadd.f32 %v2774, %v2775
        %v2777 = vrot.slane %v2776, 1
        %v2778 = vadd.f32 %v2776, %v2777
        %v2779 = vrot.slane %v2580, 4
        %v2780 = vadd.f32 %v2580, %v2779
        %v2781 = vrot.slane %v2780, 2
        %v2782 = vadd.f32 %v2780, %v2781
        %v2783 = vrot.slane %v2782, 1
        %v2784 = vadd.f32 %v2782, %v2783
        %v2785 = vrot.slane %v2581, 4
        %v2786 = vadd.f32 %v2581, %v2785
        %v2787 = vrot.slane %v2786, 2
        %v2788 = vadd.f32 %v2786, %v2787
        %v2789 = vrot.slane %v2788, 1
        %v2790 = vadd.f32 %v2788, %v2789
        %v2791 = vrot.slane %v2582, 4
        %v2792 = vadd.f32 %v2582, %v2791
        %v2793 = vrot.slane %v2792, 2
        %v2794 = vadd.f32 %v2792, %v2793
        %v2795 = vrot.slane %v2794, 1
        %v2796 = vadd.f32 %v2794, %v2795
        %v2797 = vrot.slane %v2583, 4
        %v2798 = vadd.f32 %v2583, %v2797
        %v2799 = vrot.slane %v2798, 2
        %v2800 = vadd.f32 %v2798, %v2799
        %v2801 = vrot.slane %v2800, 1
        %v2802 = vadd.f32 %v2800, %v2801
        %v2803 = vrot.slane %v2584, 4
        %v2804 = vadd.f32 %v2584, %v2803
        %v2805 = vrot.slane %v2804, 2
        %v2806 = vadd.f32 %v2804, %v2805
        %v2807 = vrot.slane %v2806, 1
        %v2808 = vadd.f32 %v2806, %v2807
        %v2809 = vrot.slane %v2585, 4
        %v2810 = vadd.f32 %v2585, %v2809
        %v2811 = vrot.slane %v2810, 2
        %v2812 = vadd.f32 %v2810, %v2811
        %v2813 = vrot.slane %v2812, 1
        %v2814 = vadd.f32 %v2812, %v2813
        %v2815 = vrot.slane %v2586, 4
        %v2816 = vadd.f32 %v2586, %v2815
        %v2817 = vrot.slane %v2816, 2
        %v2818 = vadd.f32 %v2816, %v2817
        %v2819 = vrot.slane %v2818, 1
        %v2820 = vadd.f32 %v2818, %v2819
        %v2821 = vrot.slane %v2587, 4
        %v2822 = vadd.f32 %v2587, %v2821
        %v2823 = vrot.slane %v2822, 2
        %v2824 = vadd.f32 %v2822, %v2823
        %v2825 = vrot.slane %v2824, 1
        %v2826 = vadd.f32 %v2824, %v2825
        %v2827 = vrot.slane %v2588, 4
        %v2828 = vadd.f32 %v2588, %v2827
        %v2829 = vrot.slane %v2828, 2
        %v2830 = vadd.f32 %v2828, %v2829
        %v2831 = vrot.slane %v2830, 1
        %v2832 = vadd.f32 %v2830, %v2831
        %v2833 = vrot.slane %v2589, 4
        %v2834 = vadd.f32 %v2589, %v2833
        %v2835 = vrot.slane %v2834, 2
        %v2836 = vadd.f32 %v2834, %v2835
        %v2837 = vrot.slane %v2836, 1
        %v2838 = vadd.f32 %v2836, %v2837
        %v2839 = vrot.slane %v2590, 4
        %v2840 = vadd.f32 %v2590, %v2839
        %v2841 = vrot.slane %v2840, 2
        %v2842 = vadd.f32 %v2840, %v2841
        %v2843 = vrot.slane %v2842, 1
        %v2844 = vadd.f32 %v2842, %v2843
        %v2845 = vrot.slane %v2591, 4
        %v2846 = vadd.f32 %v2591, %v2845
        %v2847 = vrot.slane %v2846, 2
        %v2848 = vadd.f32 %v2846, %v2847
        %v2849 = vrot.slane %v2848, 1
        %v2850 = vadd.f32 %v2848, %v2849
        %v2851 = vrot.slane %v2592, 4
        %v2852 = vadd.f32 %v2592, %v2851
        %v2853 = vrot.slane %v2852, 2
        %v2854 = vadd.f32 %v2852, %v2853
        %v2855 = vrot.slane %v2854, 1
        %v2856 = vadd.f32 %v2854, %v2855
        %v2857 = vrot.slane %v2593, 4
        %v2858 = vadd.f32 %v2593, %v2857
        %v2859 = vrot.slane %v2858, 2
        %v2860 = vadd.f32 %v2858, %v2859
        %v2861 = vrot.slane %v2860, 1
        %v2862 = vadd.f32 %v2860, %v2861
        %v2863 = vrot.slane %v2594, 4
        %v2864 = vadd.f32 %v2594, %v2863
        %v2865 = vrot.slane %v2864, 2
        %v2866 = vadd.f32 %v2864, %v2865
        %v2867 = vrot.slane %v2866, 1
        %v2868 = vadd.f32 %v2866, %v2867
        %v2869 = vrot.slane %v2595, 4
        %v2870 = vadd.f32 %v2595, %v2869
        %v2871 = vrot.slane %v2870, 2
        %v2872 = vadd.f32 %v2870, %v2871
        %v2873 = vrot.slane %v2872, 1
        %v2874 = vadd.f32 %v2872, %v2873
        %v2875 = vrot.slane %v2596, 4
        %v2876 = vadd.f32 %v2596, %v2875
        %v2877 = vrot.slane %v2876, 2
        %v2878 = vadd.f32 %v2876, %v2877
        %v2879 = vrot.slane %v2878, 1
        %v2880 = vadd.f32 %v2878, %v2879
        %v2881 = vrot.slane %v2597, 4
        %v2882 = vadd.f32 %v2597, %v2881
        %v2883 = vrot.slane %v2882, 2
        %v2884 = vadd.f32 %v2882, %v2883
        %v2885 = vrot.slane %v2884, 1
        %v2886 = vadd.f32 %v2884, %v2885
        %v2887 = vrot.slane %v2598, 4
        %v2888 = vadd.f32 %v2598, %v2887
        %v2889 = vrot.slane %v2888, 2
        %v2890 = vadd.f32 %v2888, %v2889
        %v2891 = vrot.slane %v2890, 1
        %v2892 = vadd.f32 %v2890, %v2891
        %v2893 = vrot.slane %v2599, 4
        %v2894 = vadd.f32 %v2599, %v2893
        %v2895 = vrot.slane %v2894, 2
        %v2896 = vadd.f32 %v2894, %v2895
        %v2897 = vrot.slane %v2896, 1
        %v2898 = vadd.f32 %v2896, %v2897
        %v2899 = vrot.slane %v2600, 4
        %v2900 = vadd.f32 %v2600, %v2899
        %v2901 = vrot.slane %v2900, 2
        %v2902 = vadd.f32 %v2900, %v2901
        %v2903 = vrot.slane %v2902, 1
        %v2904 = vadd.f32 %v2902, %v2903
        %v2905 = vrot.slane %v2601, 4
        %v2906 = vadd.f32 %v2601, %v2905
        %v2907 = vrot.slane %v2906, 2
        %v2908 = vadd.f32 %v2906, %v2907
        %v2909 = vrot.slane %v2908, 1
        %v2910 = vadd.f32 %v2908, %v2909
        %v2911 = vrot.slane %v2602, 4
        %v2912 = vadd.f32 %v2602, %v2911
        %v2913 = vrot.slane %v2912, 2
        %v2914 = vadd.f32 %v2912, %v2913
        %v2915 = vrot.slane %v2914, 1
        %v2916 = vadd.f32 %v2914, %v2915
        %v2917 = vrot.slane %v2603, 4
        %v2918 = vadd.f32 %v2603, %v2917
        %v2919 = vrot.slane %v2918, 2
        %v2920 = vadd.f32 %v2918, %v2919
        %v2921 = vrot.slane %v2920, 1
        %v2922 = vadd.f32 %v2920, %v2921
        %v2923 = vrot.slane %v2604, 4
        %v2924 = vadd.f32 %v2604, %v2923
        %v2925 = vrot.slane %v2924, 2
        %v2926 = vadd.f32 %v2924, %v2925
        %v2927 = vrot.slane %v2926, 1
        %v2928 = vadd.f32 %v2926, %v2927
        %v2929 = vrot.slane %v2605, 4
        %v2930 = vadd.f32 %v2605, %v2929
        %v2931 = vrot.slane %v2930, 2
        %v2932 = vadd.f32 %v2930, %v2931
        %v2933 = vrot.slane %v2932, 1
        %v2934 = vadd.f32 %v2932, %v2933
        %v2935 = vrot.slane %v2606, 4
        %v2936 = vadd.f32 %v2606, %v2935
        %v2937 = vrot.slane %v2936, 2
        %v2938 = vadd.f32 %v2936, %v2937
        %v2939 = vrot.slane %v2938, 1
        %v2940 = vadd.f32 %v2938, %v2939
        %v2941 = vrot.slane %v2607, 4
        %v2942 = vadd.f32 %v2607, %v2941
        %v2943 = vrot.slane %v2942, 2
        %v2944 = vadd.f32 %v2942, %v2943
        %v2945 = vrot.slane %v2944, 1
        %v2946 = vadd.f32 %v2944, %v2945
        %v2947 = vrot.slane %v2608, 4
        %v2948 = vadd.f32 %v2608, %v2947
        %v2949 = vrot.slane %v2948, 2
        %v2950 = vadd.f32 %v2948, %v2949
        %v2951 = vrot.slane %v2950, 1
        %v2952 = vadd.f32 %v2950, %v2951
        %v2953 = vrot.slane %v2609, 4
        %v2954 = vadd.f32 %v2609, %v2953
        %v2955 = vrot.slane %v2954, 2
        %v2956 = vadd.f32 %v2954, %v2955
        %v2957 = vrot.slane %v2956, 1
        %v2958 = vadd.f32 %v2956, %v2957
        %v2959 = vrot.slane %v2610, 4
        %v2960 = vadd.f32 %v2610, %v2959
        %v2961 = vrot.slane %v2960, 2
        %v2962 = vadd.f32 %v2960, %v2961
        %v2963 = vrot.slane %v2962, 1
        %v2964 = vadd.f32 %v2962, %v2963
        %v2965 = vrot.slane %v2611, 4
        %v2966 = vadd.f32 %v2611, %v2965
        %v2967 = vrot.slane %v2966, 2
        %v2968 = vadd.f32 %v2966, %v2967
        %v2969 = vrot.slane %v2968, 1
        %v2970 = vadd.f32 %v2968, %v2969
        %v2971 = vrot.slane %v2612, 4
        %v2972 = vadd.f32 %v2612, %v2971
        %v2973 = vrot.slane %v2972, 2
        %v2974 = vadd.f32 %v2972, %v2973
        %v2975 = vrot.slane %v2974, 1
        %v2976 = vadd.f32 %v2974, %v2975
        %v2977 = vrot.slane %v2613, 4
        %v2978 = vadd.f32 %v2613, %v2977
        %v2979 = vrot.slane %v2978, 2
        %v2980 = vadd.f32 %v2978, %v2979
        %v2981 = vrot.slane %v2980, 1
        %v2982 = vadd.f32 %v2980, %v2981
        %v2983 = vrot.slane %v2614, 4
        %v2984 = vadd.f32 %v2614, %v2983
        %v2985 = vrot.slane %v2984, 2
        %v2986 = vadd.f32 %v2984, %v2985
        %v2987 = vrot.slane %v2986, 1
        %v2988 = vadd.f32 %v2986, %v2987
        %v2989 = vrot.slane %v2615, 4
        %v2990 = vadd.f32 %v2615, %v2989
        %v2991 = vrot.slane %v2990, 2
        %v2992 = vadd.f32 %v2990, %v2991
        %v2993 = vrot.slane %v2992, 1
        %v2994 = vadd.f32 %v2992, %v2993
        %v2995 = vrot.slane %v2616, 4
        %v2996 = vadd.f32 %v2616, %v2995
        %v2997 = vrot.slane %v2996, 2
        %v2998 = vadd.f32 %v2996, %v2997
        %v2999 = vrot.slane %v2998, 1
        %v3000 = vadd.f32 %v2998, %v2999
        %v3001 = vrot.slane %v2617, 4
        %v3002 = vadd.f32 %v2617, %v3001
        %v3003 = vrot.slane %v3002, 2
        %v3004 = vadd.f32 %v3002, %v3003
        %v3005 = vrot.slane %v3004, 1
        %v3006 = vadd.f32 %v3004, %v3005
        %v3007 = vrot.slane %v2618, 4
        %v3008 = vadd.f32 %v2618, %v3007
        %v3009 = vrot.slane %v3008, 2
        %v3010 = vadd.f32 %v3008, %v3009
        %v3011 = vrot.slane %v3010, 1
        %v3012 = vadd.f32 %v3010, %v3011
        %v3013 = vrot.slane %v2619, 4
        %v3014 = vadd.f32 %v2619, %v3013
        %v3015 = vrot.slane %v3014, 2
        %v3016 = vadd.f32 %v3014, %v3015
        %v3017 = vrot.slane %v3016, 1
        %v3018 = vadd.f32 %v3016, %v3017
        %v3019 = vrot.slane %v2620, 4
        %v3020 = vadd.f32 %v2620, %v3019
        %v3021 = vrot.slane %v3020, 2
        %v3022 = vadd.f32 %v3020, %v3021
        %v3023 = vrot.slane %v3022, 1
        %v3024 = vadd.f32 %v3022, %v3023
        %v3025 = vrot.slane %v2621, 4
        %v3026 = vadd.f32 %v2621, %v3025
        %v3027 = vrot.slane %v3026, 2
        %v3028 = vadd.f32 %v3026, %v3027
        %v3029 = vrot.slane %v3028, 1
        %v3030 = vadd.f32 %v3028, %v3029
        %v3031 = vrot.slane %v2622, 4
        %v3032 = vadd.f32 %v2622, %v3031
        %v3033 = vrot.slane %v3032, 2
        %v3034 = vadd.f32 %v3032, %v3033
        %v3035 = vrot.slane %v3034, 1
        %v3036 = vadd.f32 %v3034, %v3035
        %v3037 = vrot.slane %v2623, 4
        %v3038 = vadd.f32 %v2623, %v3037
        %v3039 = vrot.slane %v3038, 2
        %v3040 = vadd.f32 %v3038, %v3039
        %v3041 = vrot.slane %v3040, 1
        %v3042 = vadd.f32 %v3040, %v3041
        %v3043 = vrot.slane %v2624, 4
        %v3044 = vadd.f32 %v2624, %v3043
        %v3045 = vrot.slane %v3044, 2
        %v3046 = vadd.f32 %v3044, %v3045
        %v3047 = vrot.slane %v3046, 1
        %v3048 = vadd.f32 %v3046, %v3047
        %v3049 = vrot.slane %v2625, 4
        %v3050 = vadd.f32 %v2625, %v3049
        %v3051 = vrot.slane %v3050, 2
        %v3052 = vadd.f32 %v3050, %v3051
        %v3053 = vrot.slane %v3052, 1
        %v3054 = vadd.f32 %v3052, %v3053
        %v3055 = vrot.slane %v2626, 4
        %v3056 = vadd.f32 %v2626, %v3055
        %v3057 = vrot.slane %v3056, 2
        %v3058 = vadd.f32 %v3056, %v3057
        %v3059 = vrot.slane %v3058, 1
        %v3060 = vadd.f32 %v3058, %v3059
        %v3061 = vrot.slane %v2627, 4
        %v3062 = vadd.f32 %v2627, %v3061
        %v3063 = vrot.slane %v3062, 2
        %v3064 = vadd.f32 %v3062, %v3063
        %v3065 = vrot.slane %v3064, 1
        %v3066 = vadd.f32 %v3064, %v3065
        %v3067 = vrot.slane %v2628, 4
        %v3068 = vadd.f32 %v2628, %v3067
        %v3069 = vrot.slane %v3068, 2
        %v3070 = vadd.f32 %v3068, %v3069
        %v3071 = vrot.slane %v3070, 1
        %v3072 = vadd.f32 %v3070, %v3071
        %v3073 = vrot.slane %v2629, 4
        %v3074 = vadd.f32 %v2629, %v3073
        %v3075 = vrot.slane %v3074, 2
        %v3076 = vadd.f32 %v3074, %v3075
        %v3077 = vrot.slane %v3076, 1
        %v3078 = vadd.f32 %v3076, %v3077
        %v3079 = vrot.slane %v2630, 4
        %v3080 = vadd.f32 %v2630, %v3079
        %v3081 = vrot.slane %v3080, 2
        %v3082 = vadd.f32 %v3080, %v3081
        %v3083 = vrot.slane %v3082, 1
        %v3084 = vadd.f32 %v3082, %v3083
        %v3085 = vrot.slane %v2631, 4
        %v3086 = vadd.f32 %v2631, %v3085
        %v3087 = vrot.slane %v3086, 2
        %v3088 = vadd.f32 %v3086, %v3087
        %v3089 = vrot.slane %v3088, 1
        %v3090 = vadd.f32 %v3088, %v3089
        %v3091 = vrot.slane %v2632, 4
        %v3092 = vadd.f32 %v2632, %v3091
        %v3093 = vrot.slane %v3092, 2
        %v3094 = vadd.f32 %v3092, %v3093
        %v3095 = vrot.slane %v3094, 1
        %v3096 = vadd.f32 %v3094, %v3095
        %v3097 = vrot.slane %v2633, 4
        %v3098 = vadd.f32 %v2633, %v3097
        %v3099 = vrot.slane %v3098, 2
        %v3100 = vadd.f32 %v3098, %v3099
        %v3101 = vrot.slane %v3100, 1
        %v3102 = vadd.f32 %v3100, %v3101
        %v3103 = vrot.slane %v2634, 4
        %v3104 = vadd.f32 %v2634, %v3103
        %v3105 = vrot.slane %v3104, 2
        %v3106 = vadd.f32 %v3104, %v3105
        %v3107 = vrot.slane %v3106, 1
        %v3108 = vadd.f32 %v3106, %v3107
        %v3109 = vrot.slane %v2635, 4
        %v3110 = vadd.f32 %v2635, %v3109
        %v3111 = vrot.slane %v3110, 2
        %v3112 = vadd.f32 %v3110, %v3111
        %v3113 = vrot.slane %v3112, 1
        %v3114 = vadd.f32 %v3112, %v3113
        %v3115 = vrot.slane %v2636, 4
        %v3116 = vadd.f32 %v2636, %v3115
        %v3117 = vrot.slane %v3116, 2
        %v3118 = vadd.f32 %v3116, %v3117
        %v3119 = vrot.slane %v3118, 1
        %v3120 = vadd.f32 %v3118, %v3119
        %v3121 = vrot.slane %v2637, 4
        %v3122 = vadd.f32 %v2637, %v3121
        %v3123 = vrot.slane %v3122, 2
        %v3124 = vadd.f32 %v3122, %v3123
        %v3125 = vrot.slane %v3124, 1
        %v3126 = vadd.f32 %v3124, %v3125
        %v3127 = vrot.slane %v2638, 4
        %v3128 = vadd.f32 %v2638, %v3127
        %v3129 = vrot.slane %v3128, 2
        %v3130 = vadd.f32 %v3128, %v3129
        %v3131 = vrot.slane %v3130, 1
        %v3132 = vadd.f32 %v3130, %v3131
        %v3133 = vrot.slane %v2639, 4
        %v3134 = vadd.f32 %v2639, %v3133
        %v3135 = vrot.slane %v3134, 2
        %v3136 = vadd.f32 %v3134, %v3135
        %v3137 = vrot.slane %v3136, 1
        %v3138 = vadd.f32 %v3136, %v3137
        %v3139 = vrot.slane %v2640, 4
        %v3140 = vadd.f32 %v2640, %v3139
        %v3141 = vrot.slane %v3140, 2
        %v3142 = vadd.f32 %v3140, %v3141
        %v3143 = vrot.slane %v3142, 1
        %v3144 = vadd.f32 %v3142, %v3143
        %v3145 = vrot.slane %v2641, 4
        %v3146 = vadd.f32 %v2641, %v3145
        %v3147 = vrot.slane %v3146, 2
        %v3148 = vadd.f32 %v3146, %v3147
        %v3149 = vrot.slane %v3148, 1
        %v3150 = vadd.f32 %v3148, %v3149
        %v3151 = vrot.slane %v2642, 4
        %v3152 = vadd.f32 %v2642, %v3151
        %v3153 = vrot.slane %v3152, 2
        %v3154 = vadd.f32 %v3152, %v3153
        %v3155 = vrot.slane %v3154, 1
        %v3156 = vadd.f32 %v3154, %v3155
        %v3157 = vrot.slane %v2643, 4
        %v3158 = vadd.f32 %v2643, %v3157
        %v3159 = vrot.slane %v3158, 2
        %v3160 = vadd.f32 %v3158, %v3159
        %v3161 = vrot.slane %v3160, 1
        %v3162 = vadd.f32 %v3160, %v3161
        %v3163 = vrot.slane %v2644, 4
        %v3164 = vadd.f32 %v2644, %v3163
        %v3165 = vrot.slane %v3164, 2
        %v3166 = vadd.f32 %v3164, %v3165
        %v3167 = vrot.slane %v3166, 1
        %v3168 = vadd.f32 %v3166, %v3167
        %v3169 = vrot.slane %v2645, 4
        %v3170 = vadd.f32 %v2645, %v3169
        %v3171 = vrot.slane %v3170, 2
        %v3172 = vadd.f32 %v3170, %v3171
        %v3173 = vrot.slane %v3172, 1
        %v3174 = vadd.f32 %v3172, %v3173
        %v3175 = vrot.slane %v2646, 4
        %v3176 = vadd.f32 %v2646, %v3175
        %v3177 = vrot.slane %v3176, 2
        %v3178 = vadd.f32 %v3176, %v3177
        %v3179 = vrot.slane %v3178, 1
        %v3180 = vadd.f32 %v3178, %v3179
        %v3181 = vrot.slane %v2647, 4
        %v3182 = vadd.f32 %v2647, %v3181
        %v3183 = vrot.slane %v3182, 2
        %v3184 = vadd.f32 %v3182, %v3183
        %v3185 = vrot.slane %v3184, 1
        %v3186 = vadd.f32 %v3184, %v3185
        %v3187 = vrot.slane %v2648, 4
        %v3188 = vadd.f32 %v2648, %v3187
        %v3189 = vrot.slane %v3188, 2
        %v3190 = vadd.f32 %v3188, %v3189
        %v3191 = vrot.slane %v3190, 1
        %v3192 = vadd.f32 %v3190, %v3191
        %v3193 = vrot.slane %v2649, 4
        %v3194 = vadd.f32 %v2649, %v3193
        %v3195 = vrot.slane %v3194, 2
        %v3196 = vadd.f32 %v3194, %v3195
        %v3197 = vrot.slane %v3196, 1
        %v3198 = vadd.f32 %v3196, %v3197
        %v3199 = vrot.slane %v2650, 4
        %v3200 = vadd.f32 %v2650, %v3199
        %v3201 = vrot.slane %v3200, 2
        %v3202 = vadd.f32 %v3200, %v3201
        %v3203 = vrot.slane %v3202, 1
        %v3204 = vadd.f32 %v3202, %v3203
        %v3205 = vrot.slane %v2651, 4
        %v3206 = vadd.f32 %v2651, %v3205
        %v3207 = vrot.slane %v3206, 2
        %v3208 = vadd.f32 %v3206, %v3207
        %v3209 = vrot.slane %v3208, 1
        %v3210 = vadd.f32 %v3208, %v3209
        %v3211 = vrot.slane %v2652, 4
        %v3212 = vadd.f32 %v2652, %v3211
        %v3213 = vrot.slane %v3212, 2
        %v3214 = vadd.f32 %v3212, %v3213
        %v3215 = vrot.slane %v3214, 1
        %v3216 = vadd.f32 %v3214, %v3215
        %v3217 = vrot.slane %v2653, 4
        %v3218 = vadd.f32 %v2653, %v3217
        %v3219 = vrot.slane %v3218, 2
        %v3220 = vadd.f32 %v3218, %v3219
        %v3221 = vrot.slane %v3220, 1
        %v3222 = vadd.f32 %v3220, %v3221
        %v3223 = vrot.slane %v2654, 4
        %v3224 = vadd.f32 %v2654, %v3223
        %v3225 = vrot.slane %v3224, 2
        %v3226 = vadd.f32 %v3224, %v3225
        %v3227 = vrot.slane %v3226, 1
        %v3228 = vadd.f32 %v3226, %v3227
        %v3229 = vrot.slane %v2655, 4
        %v3230 = vadd.f32 %v2655, %v3229
        %v3231 = vrot.slane %v3230, 2
        %v3232 = vadd.f32 %v3230, %v3231
        %v3233 = vrot.slane %v3232, 1
        %v3234 = vadd.f32 %v3232, %v3233
        %v3235 = vrot.slane %v2656, 4
        %v3236 = vadd.f32 %v2656, %v3235
        %v3237 = vrot.slane %v3236, 2
        %v3238 = vadd.f32 %v3236, %v3237
        %v3239 = vrot.slane %v3238, 1
        %v3240 = vadd.f32 %v3238, %v3239
        %v3241 = vrot.slane %v2657, 4
        %v3242 = vadd.f32 %v2657, %v3241
        %v3243 = vrot.slane %v3242, 2
        %v3244 = vadd.f32 %v3242, %v3243
        %v3245 = vrot.slane %v3244, 1
        %v3246 = vadd.f32 %v3244, %v3245
        %v3247 = vrot.slane %v2658, 4
        %v3248 = vadd.f32 %v2658, %v3247
        %v3249 = vrot.slane %v3248, 2
        %v3250 = vadd.f32 %v3248, %v3249
        %v3251 = vrot.slane %v3250, 1
        %v3252 = vadd.f32 %v3250, %v3251
        %v3253 = vrot.slane %v2659, 4
        %v3254 = vadd.f32 %v2659, %v3253
        %v3255 = vrot.slane %v3254, 2
        %v3256 = vadd.f32 %v3254, %v3255
        %v3257 = vrot.slane %v3256, 1
        %v3258 = vadd.f32 %v3256, %v3257
        %v3259 = vrot.slane %v2660, 4
        %v3260 = vadd.f32 %v2660, %v3259
        %v3261 = vrot.slane %v3260, 2
        %v3262 = vadd.f32 %v3260, %v3261
        %v3263 = vrot.slane %v3262, 1
        %v3264 = vadd.f32 %v3262, %v3263
        %v3265 = vrot.slane %v2661, 4
        %v3266 = vadd.f32 %v2661, %v3265
        %v3267 = vrot.slane %v3266, 2
        %v3268 = vadd.f32 %v3266, %v3267
        %v3269 = vrot.slane %v3268, 1
        %v3270 = vadd.f32 %v3268, %v3269
        %v3271 = vrot.slane %v2662, 4
        %v3272 = vadd.f32 %v2662, %v3271
        %v3273 = vrot.slane %v3272, 2
        %v3274 = vadd.f32 %v3272, %v3273
        %v3275 = vrot.slane %v3274, 1
        %v3276 = vadd.f32 %v3274, %v3275
        %v3277 = vrot.slane %v2663, 4
        %v3278 = vadd.f32 %v2663, %v3277
        %v3279 = vrot.slane %v3278, 2
        %v3280 = vadd.f32 %v3278, %v3279
        %v3281 = vrot.slane %v3280, 1
        %v3282 = vadd.f32 %v3280, %v3281
        %v3283 = vrot.slane %v2664, 4
        %v3284 = vadd.f32 %v2664, %v3283
        %v3285 = vrot.slane %v3284, 2
        %v3286 = vadd.f32 %v3284, %v3285
        %v3287 = vrot.slane %v3286, 1
        %v3288 = vadd.f32 %v3286, %v3287
        %v3289 = vrot.slane %v2665, 4
        %v3290 = vadd.f32 %v2665, %v3289
        %v3291 = vrot.slane %v3290, 2
        %v3292 = vadd.f32 %v3290, %v3291
        %v3293 = vrot.slane %v3292, 1
        %v3294 = vadd.f32 %v3292, %v3293
        %v3295 = vrot.slane %v2666, 4
        %v3296 = vadd.f32 %v2666, %v3295
        %v3297 = vrot.slane %v3296, 2
        %v3298 = vadd.f32 %v3296, %v3297
        %v3299 = vrot.slane %v3298, 1
        %v3300 = vadd.f32 %v3298, %v3299
        %v3301 = vrot.slane %v2667, 4
        %v3302 = vadd.f32 %v2667, %v3301
        %v3303 = vrot.slane %v3302, 2
        %v3304 = vadd.f32 %v3302, %v3303
        %v3305 = vrot.slane %v3304, 1
        %v3306 = vadd.f32 %v3304, %v3305
        %v3307 = vrot.slane %v2668, 4
        %v3308 = vadd.f32 %v2668, %v3307
        %v3309 = vrot.slane %v3308, 2
        %v3310 = vadd.f32 %v3308, %v3309
        %v3311 = vrot.slane %v3310, 1
        %v3312 = vadd.f32 %v3310, %v3311
        %v3313 = vrot.slane %v2669, 4
        %v3314 = vadd.f32 %v2669, %v3313
        %v3315 = vrot.slane %v3314, 2
        %v3316 = vadd.f32 %v3314, %v3315
        %v3317 = vrot.slane %v3316, 1
        %v3318 = vadd.f32 %v3316, %v3317
        %v3319 = vrot.slane %v2670, 4
        %v3320 = vadd.f32 %v2670, %v3319
        %v3321 = vrot.slane %v3320, 2
        %v3322 = vadd.f32 %v3320, %v3321
        %v3323 = vrot.slane %v3322, 1
        %v3324 = vadd.f32 %v3322, %v3323
        %v3325 = vrot.slane %v2671, 4
        %v3326 = vadd.f32 %v2671, %v3325
        %v3327 = vrot.slane %v3326, 2
        %v3328 = vadd.f32 %v3326, %v3327
        %v3329 = vrot.slane %v3328, 1
        %v3330 = vadd.f32 %v3328, %v3329
        %v3331 = vrot.slane %v2672, 4
        %v3332 = vadd.f32 %v2672, %v3331
        %v3333 = vrot.slane %v3332, 2
        %v3334 = vadd.f32 %v3332, %v3333
        %v3335 = vrot.slane %v3334, 1
        %v3336 = vadd.f32 %v3334, %v3335
        %v3337 = vrot.slane %v2673, 4
        %v3338 = vadd.f32 %v2673, %v3337
        %v3339 = vrot.slane %v3338, 2
        %v3340 = vadd.f32 %v3338, %v3339
        %v3341 = vrot.slane %v3340, 1
        %v3342 = vadd.f32 %v3340, %v3341
        %v3343 = vrot.slane %v2674, 4
        %v3344 = vadd.f32 %v2674, %v3343
        %v3345 = vrot.slane %v3344, 2
        %v3346 = vadd.f32 %v3344, %v3345
        %v3347 = vrot.slane %v3346, 1
        %v3348 = vadd.f32 %v3346, %v3347
        %v3349 = vrot.slane %v2675, 4
        %v3350 = vadd.f32 %v2675, %v3349
        %v3351 = vrot.slane %v3350, 2
        %v3352 = vadd.f32 %v3350, %v3351
        %v3353 = vrot.slane %v3352, 1
        %v3354 = vadd.f32 %v3352, %v3353
        %v3355 = vrot.slane %v2676, 4
        %v3356 = vadd.f32 %v2676, %v3355
        %v3357 = vrot.slane %v3356, 2
        %v3358 = vadd.f32 %v3356, %v3357
        %v3359 = vrot.slane %v3358, 1
        %v3360 = vadd.f32 %v3358, %v3359
        %v3361 = vrot.slane %v2677, 4
        %v3362 = vadd.f32 %v2677, %v3361
        %v3363 = vrot.slane %v3362, 2
        %v3364 = vadd.f32 %v3362, %v3363
        %v3365 = vrot.slane %v3364, 1
        %v3366 = vadd.f32 %v3364, %v3365
        %v3367 = vrot.slane %v2678, 4
        %v3368 = vadd.f32 %v2678, %v3367
        %v3369 = vrot.slane %v3368, 2
        %v3370 = vadd.f32 %v3368, %v3369
        %v3371 = vrot.slane %v3370, 1
        %v3372 = vadd.f32 %v3370, %v3371
        %v3373 = vrot.slane %v2679, 4
        %v3374 = vadd.f32 %v2679, %v3373
        %v3375 = vrot.slane %v3374, 2
        %v3376 = vadd.f32 %v3374, %v3375
        %v3377 = vrot.slane %v3376, 1
        %v3378 = vadd.f32 %v3376, %v3377
        %v3379 = vrot.slane %v2680, 4
        %v3380 = vadd.f32 %v2680, %v3379
        %v3381 = vrot.slane %v3380, 2
        %v3382 = vadd.f32 %v3380, %v3381
        %v3383 = vrot.slane %v3382, 1
        %v3384 = vadd.f32 %v3382, %v3383
        %v3385 = vrot.slane %v2681, 4
        %v3386 = vadd.f32 %v2681, %v3385
        %v3387 = vrot.slane %v3386, 2
        %v3388 = vadd.f32 %v3386, %v3387
        %v3389 = vrot.slane %v3388, 1
        %v3390 = vadd.f32 %v3388, %v3389
        %v3391 = vrot.slane %v2682, 4
        %v3392 = vadd.f32 %v2682, %v3391
        %v3393 = vrot.slane %v3392, 2
        %v3394 = vadd.f32 %v3392, %v3393
        %v3395 = vrot.slane %v3394, 1
        %v3396 = vadd.f32 %v3394, %v3395
        %v3397 = vrot.slane %v2683, 4
        %v3398 = vadd.f32 %v2683, %v3397
        %v3399 = vrot.slane %v3398, 2
        %v3400 = vadd.f32 %v3398, %v3399
        %v3401 = vrot.slane %v3400, 1
        %v3402 = vadd.f32 %v3400, %v3401
        %v3403 = vrot.slane %v2684, 4
        %v3404 = vadd.f32 %v2684, %v3403
        %v3405 = vrot.slane %v3404, 2
        %v3406 = vadd.f32 %v3404, %v3405
        %v3407 = vrot.slane %v3406, 1
        %v3408 = vadd.f32 %v3406, %v3407
        %v3409 = vrot.slane %v2685, 4
        %v3410 = vadd.f32 %v2685, %v3409
        %v3411 = vrot.slane %v3410, 2
        %v3412 = vadd.f32 %v3410, %v3411
        %v3413 = vrot.slane %v3412, 1
        %v3414 = vadd.f32 %v3412, %v3413
        %v3415 = vrot.slane %v2686, 4
        %v3416 = vadd.f32 %v2686, %v3415
        %v3417 = vrot.slane %v3416, 2
        %v3418 = vadd.f32 %v3416, %v3417
        %v3419 = vrot.slane %v3418, 1
        %v3420 = vadd.f32 %v3418, %v3419
        %v3421 = vrot.slane %v2687, 4
        %v3422 = vadd.f32 %v2687, %v3421
        %v3423 = vrot.slane %v3422, 2
        %v3424 = vadd.f32 %v3422, %v3423
        %v3425 = vrot.slane %v3424, 1
        %v3426 = vadd.f32 %v3424, %v3425
        %v3427 = vrot.slane %v2688, 4
        %v3428 = vadd.f32 %v2688, %v3427
        %v3429 = vrot.slane %v3428, 2
        %v3430 = vadd.f32 %v3428, %v3429
        %v3431 = vrot.slane %v3430, 1
        %v3432 = vadd.f32 %v3430, %v3431
        %v3433 = vrot.slane %v2689, 4
        %v3434 = vadd.f32 %v2689, %v3433
        %v3435 = vrot.slane %v3434, 2
        %v3436 = vadd.f32 %v3434, %v3435
        %v3437 = vrot.slane %v3436, 1
        %v3438 = vadd.f32 %v3436, %v3437
        %v3439 = vrot.slane %v2690, 4
        %v3440 = vadd.f32 %v2690, %v3439
        %v3441 = vrot.slane %v3440, 2
        %v3442 = vadd.f32 %v3440, %v3441
        %v3443 = vrot.slane %v3442, 1
        %v3444 = vadd.f32 %v3442, %v3443
        %v3445 = vrot.slane %v2691, 4
        %v3446 = vadd.f32 %v2691, %v3445
        %v3447 = vrot.slane %v3446, 2
        %v3448 = vadd.f32 %v3446, %v3447
        %v3449 = vrot.slane %v3448, 1
        %v3450 = vadd.f32 %v3448, %v3449
        %v3451 = vrot.slane %v2692, 4
        %v3452 = vadd.f32 %v2692, %v3451
        %v3453 = vrot.slane %v3452, 2
        %v3454 = vadd.f32 %v3452, %v3453
        %v3455 = vrot.slane %v3454, 1
        %v3456 = vadd.f32 %v3454, %v3455
        %v3457 = vrot.slane %v2693, 4
        %v3458 = vadd.f32 %v2693, %v3457
        %v3459 = vrot.slane %v3458, 2
        %v3460 = vadd.f32 %v3458, %v3459
        %v3461 = vrot.slane %v3460, 1
        %v3462 = vadd.f32 %v3460, %v3461
        %v3463 = vrot.slane %v2694, 4
        %v3464 = vadd.f32 %v2694, %v3463
        %v3465 = vrot.slane %v3464, 2
        %v3466 = vadd.f32 %v3464, %v3465
        %v3467 = vrot.slane %v3466, 1
        %v3468 = vadd.f32 %v3466, %v3467
        %v3469 = vrot.slane %v2695, 4
        %v3470 = vadd.f32 %v2695, %v3469
        %v3471 = vrot.slane %v3470, 2
        %v3472 = vadd.f32 %v3470, %v3471
        %v3473 = vrot.slane %v3472, 1
        %v3474 = vadd.f32 %v3472, %v3473
        %v3475 = vrot.slane %v2696, 4
        %v3476 = vadd.f32 %v2696, %v3475
        %v3477 = vrot.slane %v3476, 2
        %v3478 = vadd.f32 %v3476, %v3477
        %v3479 = vrot.slane %v3478, 1
        %v3480 = vadd.f32 %v3478, %v3479
        %vm3609 = vcmask 1041409
        %v3610 = vsel %vm3609, %v2814, %v2718
        %vm3611 = vcmask 1042434
        %v3612 = vsel %vm3611, %v2910, %v3610
        %vm3613 = vcmask 1043459
        %v3614 = vsel %vm3613, %v3006, %v3612
        %vm3615 = vcmask 1044484
        %v3616 = vsel %vm3615, %v3102, %v3614
        %vm3617 = vcmask 1045509
        %v3618 = vsel %vm3617, %v3198, %v3616
        %vm3619 = vcmask 1046534
        %v3620 = vsel %vm3619, %v3294, %v3618
        %vm3621 = vcmask 1047559
        %v3622 = vsel %vm3621, %v3390, %v3620
        %v3623 = vsel %vm3609, %v2820, %v2724
        %v3624 = vsel %vm3611, %v2916, %v3623
        %v3625 = vsel %vm3613, %v3012, %v3624
        %v3626 = vsel %vm3615, %v3108, %v3625
        %v3627 = vsel %vm3617, %v3204, %v3626
        %v3628 = vsel %vm3619, %v3300, %v3627
        %v3629 = vsel %vm3621, %v3396, %v3628
        %v3630 = vsel %vm3609, %v2826, %v2730
        %v3631 = vsel %vm3611, %v2922, %v3630
        %v3632 = vsel %vm3613, %v3018, %v3631
        %v3633 = vsel %vm3615, %v3114, %v3632
        %v3634 = vsel %vm3617, %v3210, %v3633
        %v3635 = vsel %vm3619, %v3306, %v3634
        %v3636 = vsel %vm3621, %v3402, %v3635
        %v3637 = vsel %vm3609, %v2832, %v2736
        %v3638 = vsel %vm3611, %v2928, %v3637
        %v3639 = vsel %vm3613, %v3024, %v3638
        %v3640 = vsel %vm3615, %v3120, %v3639
        %v3641 = vsel %vm3617, %v3216, %v3640
        %v3642 = vsel %vm3619, %v3312, %v3641
        %v3643 = vsel %vm3621, %v3408, %v3642
        %v3644 = vsel %vm3609, %v2838, %v2742
        %v3645 = vsel %vm3611, %v2934, %v3644
        %v3646 = vsel %vm3613, %v3030, %v3645
        %v3647 = vsel %vm3615, %v3126, %v3646
        %v3648 = vsel %vm3617, %v3222, %v3647
        %v3649 = vsel %vm3619, %v3318, %v3648
        %v3650 = vsel %vm3621, %v3414, %v3649
        %v3651 = vsel %vm3609, %v2844, %v2748
        %v3652 = vsel %vm3611, %v2940, %v3651
        %v3653 = vsel %vm3613, %v3036, %v3652
        %v3654 = vsel %vm3615, %v3132, %v3653
        %v3655 = vsel %vm3617, %v3228, %v3654
        %v3656 = vsel %vm3619, %v3324, %v3655
        %v3657 = vsel %vm3621, %v3420, %v3656
        %v3658 = vsel %vm3609, %v2850, %v2754
        %v3659 = vsel %vm3611, %v2946, %v3658
        %v3660 = vsel %vm3613, %v3042, %v3659
        %v3661 = vsel %vm3615, %v3138, %v3660
        %v3662 = vsel %vm3617, %v3234, %v3661
        %v3663 = vsel %vm3619, %v3330, %v3662
        %v3664 = vsel %vm3621, %v3426, %v3663
        %v3665 = vsel %vm3609, %v2856, %v2760
        %v3666 = vsel %vm3611, %v2952, %v3665
        %v3667 = vsel %vm3613, %v3048, %v3666
        %v3668 = vsel %vm3615, %v3144, %v3667
        %v3669 = vsel %vm3617, %v3240, %v3668
        %v3670 = vsel %vm3619, %v3336, %v3669
        %v3671 = vsel %vm3621, %v3432, %v3670
        %v3672 = vsel %vm3609, %v2862, %v2766
        %v3673 = vsel %vm3611, %v2958, %v3672
        %v3674 = vsel %vm3613, %v3054, %v3673
        %v3675 = vsel %vm3615, %v3150, %v3674
        %v3676 = vsel %vm3617, %v3246, %v3675
        %v3677 = vsel %vm3619, %v3342, %v3676
        %v3678 = vsel %vm3621, %v3438, %v3677
        %v3679 = vsel %vm3609, %v2868, %v2772
        %v3680 = vsel %vm3611, %v2964, %v3679
        %v3681 = vsel %vm3613, %v3060, %v3680
        %v3682 = vsel %vm3615, %v3156, %v3681
        %v3683 = vsel %vm3617, %v3252, %v3682
        %v3684 = vsel %vm3619, %v3348, %v3683
        %v3685 = vsel %vm3621, %v3444, %v3684
        %v3686 = vsel %vm3609, %v2874, %v2778
        %v3687 = vsel %vm3611, %v2970, %v3686
        %v3688 = vsel %vm3613, %v3066, %v3687
        %v3689 = vsel %vm3615, %v3162, %v3688
        %v3690 = vsel %vm3617, %v3258, %v3689
        %v3691 = vsel %vm3619, %v3354, %v3690
        %v3692 = vsel %vm3621, %v3450, %v3691
        %v3693 = vsel %vm3609, %v2880, %v2784
        %v3694 = vsel %vm3611, %v2976, %v3693
        %v3695 = vsel %vm3613, %v3072, %v3694
        %v3696 = vsel %vm3615, %v3168, %v3695
        %v3697 = vsel %vm3617, %v3264, %v3696
        %v3698 = vsel %vm3619, %v3360, %v3697
        %v3699 = vsel %vm3621, %v3456, %v3698
        %v3700 = vsel %vm3609, %v2886, %v2790
        %v3701 = vsel %vm3611, %v2982, %v3700
        %v3702 = vsel %vm3613, %v3078, %v3701
        %v3703 = vsel %vm3615, %v3174, %v3702
        %v3704 = vsel %vm3617, %v3270, %v3703
        %v3705 = vsel %vm3619, %v3366, %v3704
        %v3706 = vsel %vm3621, %v3462, %v3705
        %v3707 = vsel %vm3609, %v2892, %v2796
        %v3708 = vsel %vm3611, %v2988, %v3707
        %v3709 = vsel %vm3613, %v3084, %v3708
        %v3710 = vsel %vm3615, %v3180, %v3709
        %v3711 = vsel %vm3617, %v3276, %v3710
        %v3712 = vsel %vm3619, %v3372, %v3711
        %v3713 = vsel %vm3621, %v3468, %v3712
        %v3714 = vsel %vm3609, %v2898, %v2802
        %v3715 = vsel %vm3611, %v2994, %v3714
        %v3716 = vsel %vm3613, %v3090, %v3715
        %v3717 = vsel %vm3615, %v3186, %v3716
        %v3718 = vsel %vm3617, %v3282, %v3717
        %v3719 = vsel %vm3619, %v3378, %v3718
        %v3720 = vsel %vm3621, %v3474, %v3719
        %v3721 = vsel %vm3609, %v2904, %v2808
        %v3722 = vsel %vm3611, %v3000, %v3721
        %v3723 = vsel %vm3613, %v3096, %v3722
        %v3724 = vsel %vm3615, %v3192, %v3723
        %v3725 = vsel %vm3617, %v3288, %v3724
        %v3726 = vsel %vm3619, %v3384, %v3725
        %v3727 = vsel %vm3621, %v3480, %v3726
        %v3744 = vadd.f32 %v2697, %v3622
        %v3745 = vadd.f32 %v2698, %v3629
        %v3746 = vadd.f32 %v2699, %v3636
        %v3747 = vadd.f32 %v2700, %v3643
        %v3748 = vadd.f32 %v2701, %v3650
        %v3749 = vadd.f32 %v2702, %v3657
        %v3750 = vadd.f32 %v2703, %v3664
        %v3751 = vadd.f32 %v2704, %v3671
        %v3752 = vadd.f32 %v2705, %v3678
        %v3753 = vadd.f32 %v2706, %v3685
        %v3754 = vadd.f32 %v2707, %v3692
        %v3755 = vadd.f32 %v2708, %v3699
        %v3756 = vadd.f32 %v2709, %v3706
        %v3757 = vadd.f32 %v2710, %v3713
        %v3758 = vadd.f32 %v2711, %v3720
        %v3759 = vadd.f32 %v2712, %v3727
        %3760 = vst [vmem:[#allocation2] sm:$0xff] %v3744
        %3761 = vst [vmem:[#allocation2 + $0x8] sm:$0xff] %v3745
        %3762 = vst [vmem:[#allocation2 + $0x10] sm:$0xff] %v3746
        %3763 = vst [vmem:[#allocation2 + $0x18] sm:$0xff] %v3747
        %3764 = vst [vmem:[#allocation2 + $0x20] sm:$0xff] %v3748
        %3765 = vst [vmem:[#allocation2 + $0x28] sm:$0xff] %v3749
        %3766 = vst [vmem:[#allocation2 + $0x30] sm:$0xff] %v3750
        %3767 = vst [vmem:[#allocation2 + $0x38] sm:$0xff] %v3751
        %3768 = vst [vmem:[#allocation2 + $0x40] sm:$0xff] %v3752
        %3769 = vst [vmem:[#allocation2 + $0x48] sm:$0xff] %v3753
        %3770 = vst [vmem:[#allocation2 + $0x50] sm:$0xff] %v3754
        %3771 = vst [vmem:[#allocation2 + $0x58] sm:$0xff] %v3755
        %3772 = vst [vmem:[#allocation2 + $0x60] sm:$0xff] %v3756
        %3773 = vst [vmem:[#allocation2 + $0x68] sm:$0xff] %v3757
        %3774 = vst [vmem:[#allocation2 + $0x70] sm:$0xff] %v3758
        %3775 = vst [vmem:[#allocation2 + $0x78] sm:$0xff] %v3759
        %p3776 = scmp.eq.s32.totalorder %s32, 1
        // Predicated region
        $region73: #{tpu_custom_call.1} parent=43 // pred_check
          %p3777 = pneg %p3776
        $region74: #{tpu_custom_call.1} parent=43 // pred_check_branch
          %3779 = sbr.rel (%p3777) target = $region76
        $region75: #{tpu_custom_call.1} parent=43 // pred_region
          %v3780 = vld [vmem:[#allocation2] sm:$0xff]
          %v3781 = vld [vmem:[#allocation2 + $0x8] sm:$0xff]
          %v3782 = vld [vmem:[#allocation2 + $0x10] sm:$0xff]
          %v3783 = vld [vmem:[#allocation2 + $0x18] sm:$0xff]
          %v3784 = vld [vmem:[#allocation2 + $0x20] sm:$0xff]
          %v3785 = vld [vmem:[#allocation2 + $0x28] sm:$0xff]
          %v3786 = vld [vmem:[#allocation2 + $0x30] sm:$0xff]
          %v3787 = vld [vmem:[#allocation2 + $0x38] sm:$0xff]
          %v3788 = vld [vmem:[#allocation2 + $0x40] sm:$0xff]
          %v3789 = vld [vmem:[#allocation2 + $0x48] sm:$0xff]
          %v3790 = vld [vmem:[#allocation2 + $0x50] sm:$0xff]
          %v3791 = vld [vmem:[#allocation2 + $0x58] sm:$0xff]
          %v3792 = vld [vmem:[#allocation2 + $0x60] sm:$0xff]
          %v3793 = vld [vmem:[#allocation2 + $0x68] sm:$0xff]
          %v3794 = vld [vmem:[#allocation2 + $0x70] sm:$0xff]
          %v3795 = vld [vmem:[#allocation2 + $0x78] sm:$0xff]
          %v3796 = vmul.f32 %v3780, 0.0625
          %v3797 = vmul.f32 %v3781, 0.0625
          %v3798 = vmul.f32 %v3782, 0.0625
          %v3799 = vmul.f32 %v3783, 0.0625
          %v3800 = vmul.f32 %v3784, 0.0625
          %v3801 = vmul.f32 %v3785, 0.0625
          %v3802 = vmul.f32 %v3786, 0.0625
          %v3803 = vmul.f32 %v3787, 0.0625
          %v3804 = vmul.f32 %v3788, 0.0625
          %v3805 = vmul.f32 %v3789, 0.0625
          %v3806 = vmul.f32 %v3790, 0.0625
          %v3807 = vmul.f32 %v3791, 0.0625
          %v3808 = vmul.f32 %v3792, 0.0625
          %v3809 = vmul.f32 %v3793, 0.0625
          %v3810 = vmul.f32 %v3794, 0.0625
          %v3811 = vmul.f32 %v3795, 0.0625
          %v3812 = vld [vmem:[#allocation8] sm:$0xff]
          %v3813 = vld [vmem:[#allocation8 + $0x8] sm:$0xff]
          %v3814 = vld [vmem:[#allocation8 + $0x10] sm:$0xff]
          %v3815 = vld [vmem:[#allocation8 + $0x18] sm:$0xff]
          %v3816 = vld [vmem:[#allocation8 + $0x20] sm:$0xff]
          %v3817 = vld [vmem:[#allocation8 + $0x28] sm:$0xff]
          %v3818 = vld [vmem:[#allocation8 + $0x30] sm:$0xff]
          %v3819 = vld [vmem:[#allocation8 + $0x38] sm:$0xff]
          %v3820 = vld [vmem:[#allocation8 + $0x40] sm:$0xff]
          %v3821 = vld [vmem:[#allocation8 + $0x48] sm:$0xff]
          %v3822 = vld [vmem:[#allocation8 + $0x50] sm:$0xff]
          %v3823 = vld [vmem:[#allocation8 + $0x58] sm:$0xff]
          %v3824 = vld [vmem:[#allocation8 + $0x60] sm:$0xff]
          %v3825 = vld [vmem:[#allocation8 + $0x68] sm:$0xff]
          %v3826 = vld [vmem:[#allocation8 + $0x70] sm:$0xff]
          %v3827 = vld [vmem:[#allocation8 + $0x78] sm:$0xff]
          %v3828 = vld [vmem:[#allocation8 + $0x80] sm:$0xff]
          %v3829 = vld [vmem:[#allocation8 + $0x88] sm:$0xff]
          %v3830 = vld [vmem:[#allocation8 + $0x90] sm:$0xff]
          %v3831 = vld [vmem:[#allocation8 + $0x98] sm:$0xff]
          %v3832 = vld [vmem:[#allocation8 + $0xa0] sm:$0xff]
          %v3833 = vld [vmem:[#allocation8 + $0xa8] sm:$0xff]
          %v3834 = vld [vmem:[#allocation8 + $0xb0] sm:$0xff]
          %v3835 = vld [vmem:[#allocation8 + $0xb8] sm:$0xff]
          %v3836 = vld [vmem:[#allocation8 + $0xc0] sm:$0xff]
          %v3837 = vld [vmem:[#allocation8 + $0xc8] sm:$0xff]
          %v3838 = vld [vmem:[#allocation8 + $0xd0] sm:$0xff]
          %v3839 = vld [vmem:[#allocation8 + $0xd8] sm:$0xff]
          %v3840 = vld [vmem:[#allocation8 + $0xe0] sm:$0xff]
          %v3841 = vld [vmem:[#allocation8 + $0xe8] sm:$0xff]
          %v3842 = vld [vmem:[#allocation8 + $0xf0] sm:$0xff]
          %v3843 = vld [vmem:[#allocation8 + $0xf8] sm:$0xff]
          %v3844 = vld [vmem:[#allocation8 + $0x100] sm:$0xff]
          %v3845 = vld [vmem:[#allocation8 + $0x108] sm:$0xff]
          %v3846 = vld [vmem:[#allocation8 + $0x110] sm:$0xff]
          %v3847 = vld [vmem:[#allocation8 + $0x118] sm:$0xff]
          %v3848 = vld [vmem:[#allocation8 + $0x120] sm:$0xff]
          %v3849 = vld [vmem:[#allocation8 + $0x128] sm:$0xff]
          %v3850 = vld [vmem:[#allocation8 + $0x130] sm:$0xff]
          %v3851 = vld [vmem:[#allocation8 + $0x138] sm:$0xff]
          %v3852 = vld [vmem:[#allocation8 + $0x140] sm:$0xff]
          %v3853 = vld [vmem:[#allocation8 + $0x148] sm:$0xff]
          %v3854 = vld [vmem:[#allocation8 + $0x150] sm:$0xff]
          %v3855 = vld [vmem:[#allocation8 + $0x158] sm:$0xff]
          %v3856 = vld [vmem:[#allocation8 + $0x160] sm:$0xff]
          %v3857 = vld [vmem:[#allocation8 + $0x168] sm:$0xff]
          %v3858 = vld [vmem:[#allocation8 + $0x170] sm:$0xff]
          %v3859 = vld [vmem:[#allocation8 + $0x178] sm:$0xff]
          %v3860 = vld [vmem:[#allocation8 + $0x180] sm:$0xff]
          %v3861 = vld [vmem:[#allocation8 + $0x188] sm:$0xff]
          %v3862 = vld [vmem:[#allocation8 + $0x190] sm:$0xff]
          %v3863 = vld [vmem:[#allocation8 + $0x198] sm:$0xff]
          %v3864 = vld [vmem:[#allocation8 + $0x1a0] sm:$0xff]
          %v3865 = vld [vmem:[#allocation8 + $0x1a8] sm:$0xff]
          %v3866 = vld [vmem:[#allocation8 + $0x1b0] sm:$0xff]
          %v3867 = vld [vmem:[#allocation8 + $0x1b8] sm:$0xff]
          %v3868 = vld [vmem:[#allocation8 + $0x1c0] sm:$0xff]
          %v3869 = vld [vmem:[#allocation8 + $0x1c8] sm:$0xff]
          %v3870 = vld [vmem:[#allocation8 + $0x1d0] sm:$0xff]
          %v3871 = vld [vmem:[#allocation8 + $0x1d8] sm:$0xff]
          %v3872 = vld [vmem:[#allocation8 + $0x1e0] sm:$0xff]
          %v3873 = vld [vmem:[#allocation8 + $0x1e8] sm:$0xff]
          %v3874 = vld [vmem:[#allocation8 + $0x1f0] sm:$0xff]
          %v3875 = vld [vmem:[#allocation8 + $0x1f8] sm:$0xff]
          %v3876 = vld [vmem:[#allocation8 + $0x200] sm:$0xff]
          %v3877 = vld [vmem:[#allocation8 + $0x208] sm:$0xff]
          %v3878 = vld [vmem:[#allocation8 + $0x210] sm:$0xff]
          %v3879 = vld [vmem:[#allocation8 + $0x218] sm:$0xff]
          %v3880 = vld [vmem:[#allocation8 + $0x220] sm:$0xff]
          %v3881 = vld [vmem:[#allocation8 + $0x228] sm:$0xff]
          %v3882 = vld [vmem:[#allocation8 + $0x230] sm:$0xff]
          %v3883 = vld [vmem:[#allocation8 + $0x238] sm:$0xff]
          %v3884 = vld [vmem:[#allocation8 + $0x240] sm:$0xff]
          %v3885 = vld [vmem:[#allocation8 + $0x248] sm:$0xff]
          %v3886 = vld [vmem:[#allocation8 + $0x250] sm:$0xff]
          %v3887 = vld [vmem:[#allocation8 + $0x258] sm:$0xff]
          %v3888 = vld [vmem:[#allocation8 + $0x260] sm:$0xff]
          %v3889 = vld [vmem:[#allocation8 + $0x268] sm:$0xff]
          %v3890 = vld [vmem:[#allocation8 + $0x270] sm:$0xff]
          %v3891 = vld [vmem:[#allocation8 + $0x278] sm:$0xff]
          %v3892 = vld [vmem:[#allocation8 + $0x280] sm:$0xff]
          %v3893 = vld [vmem:[#allocation8 + $0x288] sm:$0xff]
          %v3894 = vld [vmem:[#allocation8 + $0x290] sm:$0xff]
          %v3895 = vld [vmem:[#allocation8 + $0x298] sm:$0xff]
          %v3896 = vld [vmem:[#allocation8 + $0x2a0] sm:$0xff]
          %v3897 = vld [vmem:[#allocation8 + $0x2a8] sm:$0xff]
          %v3898 = vld [vmem:[#allocation8 + $0x2b0] sm:$0xff]
          %v3899 = vld [vmem:[#allocation8 + $0x2b8] sm:$0xff]
          %v3900 = vld [vmem:[#allocation8 + $0x2c0] sm:$0xff]
          %v3901 = vld [vmem:[#allocation8 + $0x2c8] sm:$0xff]
          %v3902 = vld [vmem:[#allocation8 + $0x2d0] sm:$0xff]
          %v3903 = vld [vmem:[#allocation8 + $0x2d8] sm:$0xff]
          %v3904 = vld [vmem:[#allocation8 + $0x2e0] sm:$0xff]
          %v3905 = vld [vmem:[#allocation8 + $0x2e8] sm:$0xff]
          %v3906 = vld [vmem:[#allocation8 + $0x2f0] sm:$0xff]
          %v3907 = vld [vmem:[#allocation8 + $0x2f8] sm:$0xff]
          %v3908 = vld [vmem:[#allocation8 + $0x300] sm:$0xff]
          %v3909 = vld [vmem:[#allocation8 + $0x308] sm:$0xff]
          %v3910 = vld [vmem:[#allocation8 + $0x310] sm:$0xff]
          %v3911 = vld [vmem:[#allocation8 + $0x318] sm:$0xff]
          %v3912 = vld [vmem:[#allocation8 + $0x320] sm:$0xff]
          %v3913 = vld [vmem:[#allocation8 + $0x328] sm:$0xff]
          %v3914 = vld [vmem:[#allocation8 + $0x330] sm:$0xff]
          %v3915 = vld [vmem:[#allocation8 + $0x338] sm:$0xff]
          %v3916 = vld [vmem:[#allocation8 + $0x340] sm:$0xff]
          %v3917 = vld [vmem:[#allocation8 + $0x348] sm:$0xff]
          %v3918 = vld [vmem:[#allocation8 + $0x350] sm:$0xff]
          %v3919 = vld [vmem:[#allocation8 + $0x358] sm:$0xff]
          %v3920 = vld [vmem:[#allocation8 + $0x360] sm:$0xff]
          %v3921 = vld [vmem:[#allocation8 + $0x368] sm:$0xff]
          %v3922 = vld [vmem:[#allocation8 + $0x370] sm:$0xff]
          %v3923 = vld [vmem:[#allocation8 + $0x378] sm:$0xff]
          %v3924 = vld [vmem:[#allocation8 + $0x380] sm:$0xff]
          %v3925 = vld [vmem:[#allocation8 + $0x388] sm:$0xff]
          %v3926 = vld [vmem:[#allocation8 + $0x390] sm:$0xff]
          %v3927 = vld [vmem:[#allocation8 + $0x398] sm:$0xff]
          %v3928 = vld [vmem:[#allocation8 + $0x3a0] sm:$0xff]
          %v3929 = vld [vmem:[#allocation8 + $0x3a8] sm:$0xff]
          %v3930 = vld [vmem:[#allocation8 + $0x3b0] sm:$0xff]
          %v3931 = vld [vmem:[#allocation8 + $0x3b8] sm:$0xff]
          %v3932 = vld [vmem:[#allocation8 + $0x3c0] sm:$0xff]
          %v3933 = vld [vmem:[#allocation8 + $0x3c8] sm:$0xff]
          %v3934 = vld [vmem:[#allocation8 + $0x3d0] sm:$0xff]
          %v3935 = vld [vmem:[#allocation8 + $0x3d8] sm:$0xff]
          %v3936 = vld [vmem:[#allocation8 + $0x3e0] sm:$0xff]
          %v3937 = vld [vmem:[#allocation8 + $0x3e8] sm:$0xff]
          %v3938 = vld [vmem:[#allocation8 + $0x3f0] sm:$0xff]
          %v3939 = vld [vmem:[#allocation8 + $0x3f8] sm:$0xff]
          %v3940 = vld [vmem:[#allocation8 + $0x400] sm:$0xff]
          %v3941 = vld [vmem:[#allocation8 + $0x408] sm:$0xff]
          %v3942 = vld [vmem:[#allocation8 + $0x410] sm:$0xff]
          %v3943 = vld [vmem:[#allocation8 + $0x418] sm:$0xff]
          %v3944 = vld [vmem:[#allocation8 + $0x420] sm:$0xff]
          %v3945 = vld [vmem:[#allocation8 + $0x428] sm:$0xff]
          %v3946 = vld [vmem:[#allocation8 + $0x430] sm:$0xff]
          %v3947 = vld [vmem:[#allocation8 + $0x438] sm:$0xff]
          %v3948 = vld [vmem:[#allocation8 + $0x440] sm:$0xff]
          %v3949 = vld [vmem:[#allocation8 + $0x448] sm:$0xff]
          %v3950 = vld [vmem:[#allocation8 + $0x450] sm:$0xff]
          %v3951 = vld [vmem:[#allocation8 + $0x458] sm:$0xff]
          %v3952 = vld [vmem:[#allocation8 + $0x460] sm:$0xff]
          %v3953 = vld [vmem:[#allocation8 + $0x468] sm:$0xff]
          %v3954 = vld [vmem:[#allocation8 + $0x470] sm:$0xff]
          %v3955 = vld [vmem:[#allocation8 + $0x478] sm:$0xff]
          %v3956 = vld [vmem:[#allocation8 + $0x480] sm:$0xff]
          %v3957 = vld [vmem:[#allocation8 + $0x488] sm:$0xff]
          %v3958 = vld [vmem:[#allocation8 + $0x490] sm:$0xff]
          %v3959 = vld [vmem:[#allocation8 + $0x498] sm:$0xff]
          %v3960 = vld [vmem:[#allocation8 + $0x4a0] sm:$0xff]
          %v3961 = vld [vmem:[#allocation8 + $0x4a8] sm:$0xff]
          %v3962 = vld [vmem:[#allocation8 + $0x4b0] sm:$0xff]
          %v3963 = vld [vmem:[#allocation8 + $0x4b8] sm:$0xff]
          %v3964 = vld [vmem:[#allocation8 + $0x4c0] sm:$0xff]
          %v3965 = vld [vmem:[#allocation8 + $0x4c8] sm:$0xff]
          %v3966 = vld [vmem:[#allocation8 + $0x4d0] sm:$0xff]
          %v3967 = vld [vmem:[#allocation8 + $0x4d8] sm:$0xff]
          %v3968 = vld [vmem:[#allocation8 + $0x4e0] sm:$0xff]
          %v3969 = vld [vmem:[#allocation8 + $0x4e8] sm:$0xff]
          %v3970 = vld [vmem:[#allocation8 + $0x4f0] sm:$0xff]
          %v3971 = vld [vmem:[#allocation8 + $0x4f8] sm:$0xff]
          %v3972 = vld [vmem:[#allocation8 + $0x500] sm:$0xff]
          %v3973 = vld [vmem:[#allocation8 + $0x508] sm:$0xff]
          %v3974 = vld [vmem:[#allocation8 + $0x510] sm:$0xff]
          %v3975 = vld [vmem:[#allocation8 + $0x518] sm:$0xff]
          %v3976 = vld [vmem:[#allocation8 + $0x520] sm:$0xff]
          %v3977 = vld [vmem:[#allocation8 + $0x528] sm:$0xff]
          %v3978 = vld [vmem:[#allocation8 + $0x530] sm:$0xff]
          %v3979 = vld [vmem:[#allocation8 + $0x538] sm:$0xff]
          %v3980 = vld [vmem:[#allocation8 + $0x540] sm:$0xff]
          %v3981 = vld [vmem:[#allocation8 + $0x548] sm:$0xff]
          %v3982 = vld [vmem:[#allocation8 + $0x550] sm:$0xff]
          %v3983 = vld [vmem:[#allocation8 + $0x558] sm:$0xff]
          %v3984 = vld [vmem:[#allocation8 + $0x560] sm:$0xff]
          %v3985 = vld [vmem:[#allocation8 + $0x568] sm:$0xff]
          %v3986 = vld [vmem:[#allocation8 + $0x570] sm:$0xff]
          %v3987 = vld [vmem:[#allocation8 + $0x578] sm:$0xff]
          %v3988 = vld [vmem:[#allocation8 + $0x580] sm:$0xff]
          %v3989 = vld [vmem:[#allocation8 + $0x588] sm:$0xff]
          %v3990 = vld [vmem:[#allocation8 + $0x590] sm:$0xff]
          %v3991 = vld [vmem:[#allocation8 + $0x598] sm:$0xff]
          %v3992 = vld [vmem:[#allocation8 + $0x5a0] sm:$0xff]
          %v3993 = vld [vmem:[#allocation8 + $0x5a8] sm:$0xff]
          %v3994 = vld [vmem:[#allocation8 + $0x5b0] sm:$0xff]
          %v3995 = vld [vmem:[#allocation8 + $0x5b8] sm:$0xff]
          %v3996 = vld [vmem:[#allocation8 + $0x5c0] sm:$0xff]
          %v3997 = vld [vmem:[#allocation8 + $0x5c8] sm:$0xff]
          %v3998 = vld [vmem:[#allocation8 + $0x5d0] sm:$0xff]
          %v3999 = vld [vmem:[#allocation8 + $0x5d8] sm:$0xff]
          %v4000 = vld [vmem:[#allocation8 + $0x5e0] sm:$0xff]
          %v4001 = vld [vmem:[#allocation8 + $0x5e8] sm:$0xff]
          %v4002 = vld [vmem:[#allocation8 + $0x5f0] sm:$0xff]
          %v4003 = vld [vmem:[#allocation8 + $0x5f8] sm:$0xff]
          %v4004 = vld [vmem:[#allocation8 + $0x600] sm:$0xff]
          %v4005 = vld [vmem:[#allocation8 + $0x608] sm:$0xff]
          %v4006 = vld [vmem:[#allocation8 + $0x610] sm:$0xff]
          %v4007 = vld [vmem:[#allocation8 + $0x618] sm:$0xff]
          %v4008 = vld [vmem:[#allocation8 + $0x620] sm:$0xff]
          %v4009 = vld [vmem:[#allocation8 + $0x628] sm:$0xff]
          %v4010 = vld [vmem:[#allocation8 + $0x630] sm:$0xff]
          %v4011 = vld [vmem:[#allocation8 + $0x638] sm:$0xff]
          %v4012 = vld [vmem:[#allocation8 + $0x640] sm:$0xff]
          %v4013 = vld [vmem:[#allocation8 + $0x648] sm:$0xff]
          %v4014 = vld [vmem:[#allocation8 + $0x650] sm:$0xff]
          %v4015 = vld [vmem:[#allocation8 + $0x658] sm:$0xff]
          %v4016 = vld [vmem:[#allocation8 + $0x660] sm:$0xff]
          %v4017 = vld [vmem:[#allocation8 + $0x668] sm:$0xff]
          %v4018 = vld [vmem:[#allocation8 + $0x670] sm:$0xff]
          %v4019 = vld [vmem:[#allocation8 + $0x678] sm:$0xff]
          %v4020 = vld [vmem:[#allocation8 + $0x680] sm:$0xff]
          %v4021 = vld [vmem:[#allocation8 + $0x688] sm:$0xff]
          %v4022 = vld [vmem:[#allocation8 + $0x690] sm:$0xff]
          %v4023 = vld [vmem:[#allocation8 + $0x698] sm:$0xff]
          %v4024 = vld [vmem:[#allocation8 + $0x6a0] sm:$0xff]
          %v4025 = vld [vmem:[#allocation8 + $0x6a8] sm:$0xff]
          %v4026 = vld [vmem:[#allocation8 + $0x6b0] sm:$0xff]
          %v4027 = vld [vmem:[#allocation8 + $0x6b8] sm:$0xff]
          %v4028 = vld [vmem:[#allocation8 + $0x6c0] sm:$0xff]
          %v4029 = vld [vmem:[#allocation8 + $0x6c8] sm:$0xff]
          %v4030 = vld [vmem:[#allocation8 + $0x6d0] sm:$0xff]
          %v4031 = vld [vmem:[#allocation8 + $0x6d8] sm:$0xff]
          %v4032 = vld [vmem:[#allocation8 + $0x6e0] sm:$0xff]
          %v4033 = vld [vmem:[#allocation8 + $0x6e8] sm:$0xff]
          %v4034 = vld [vmem:[#allocation8 + $0x6f0] sm:$0xff]
          %v4035 = vld [vmem:[#allocation8 + $0x6f8] sm:$0xff]
          %v4036 = vld [vmem:[#allocation8 + $0x700] sm:$0xff]
          %v4037 = vld [vmem:[#allocation8 + $0x708] sm:$0xff]
          %v4038 = vld [vmem:[#allocation8 + $0x710] sm:$0xff]
          %v4039 = vld [vmem:[#allocation8 + $0x718] sm:$0xff]
          %v4040 = vld [vmem:[#allocation8 + $0x720] sm:$0xff]
          %v4041 = vld [vmem:[#allocation8 + $0x728] sm:$0xff]
          %v4042 = vld [vmem:[#allocation8 + $0x730] sm:$0xff]
          %v4043 = vld [vmem:[#allocation8 + $0x738] sm:$0xff]
          %v4044 = vld [vmem:[#allocation8 + $0x740] sm:$0xff]
          %v4045 = vld [vmem:[#allocation8 + $0x748] sm:$0xff]
          %v4046 = vld [vmem:[#allocation8 + $0x750] sm:$0xff]
          %v4047 = vld [vmem:[#allocation8 + $0x758] sm:$0xff]
          %v4048 = vld [vmem:[#allocation8 + $0x760] sm:$0xff]
          %v4049 = vld [vmem:[#allocation8 + $0x768] sm:$0xff]
          %v4050 = vld [vmem:[#allocation8 + $0x770] sm:$0xff]
          %v4051 = vld [vmem:[#allocation8 + $0x778] sm:$0xff]
          %v4052 = vld [vmem:[#allocation8 + $0x780] sm:$0xff]
          %v4053 = vld [vmem:[#allocation8 + $0x788] sm:$0xff]
          %v4054 = vld [vmem:[#allocation8 + $0x790] sm:$0xff]
          %v4055 = vld [vmem:[#allocation8 + $0x798] sm:$0xff]
          %v4056 = vld [vmem:[#allocation8 + $0x7a0] sm:$0xff]
          %v4057 = vld [vmem:[#allocation8 + $0x7a8] sm:$0xff]
          %v4058 = vld [vmem:[#allocation8 + $0x7b0] sm:$0xff]
          %v4059 = vld [vmem:[#allocation8 + $0x7b8] sm:$0xff]
          %v4060 = vld [vmem:[#allocation8 + $0x7c0] sm:$0xff]
          %v4061 = vld [vmem:[#allocation8 + $0x7c8] sm:$0xff]
          %v4062 = vld [vmem:[#allocation8 + $0x7d0] sm:$0xff]
          %v4063 = vld [vmem:[#allocation8 + $0x7d8] sm:$0xff]
          %v4064 = vld [vmem:[#allocation8 + $0x7e0] sm:$0xff]
          %v4065 = vld [vmem:[#allocation8 + $0x7e8] sm:$0xff]
          %v4066 = vld [vmem:[#allocation8 + $0x7f0] sm:$0xff]
          %v4067 = vld [vmem:[#allocation8 + $0x7f8] sm:$0xff]
          %v4068 = vld [vmem:[#allocation8 + $0x800] sm:$0xff]
          %v4069 = vld [vmem:[#allocation8 + $0x808] sm:$0xff]
          %v4070 = vld [vmem:[#allocation8 + $0x810] sm:$0xff]
          %v4071 = vld [vmem:[#allocation8 + $0x818] sm:$0xff]
          %v4072 = vld [vmem:[#allocation8 + $0x820] sm:$0xff]
          %v4073 = vld [vmem:[#allocation8 + $0x828] sm:$0xff]
          %v4074 = vld [vmem:[#allocation8 + $0x830] sm:$0xff]
          %v4075 = vld [vmem:[#allocation8 + $0x838] sm:$0xff]
          %v4076 = vld [vmem:[#allocation8 + $0x840] sm:$0xff]
          %v4077 = vld [vmem:[#allocation8 + $0x848] sm:$0xff]
          %v4078 = vld [vmem:[#allocation8 + $0x850] sm:$0xff]
          %v4079 = vld [vmem:[#allocation8 + $0x858] sm:$0xff]
          %v4080 = vld [vmem:[#allocation8 + $0x860] sm:$0xff]
          %v4081 = vld [vmem:[#allocation8 + $0x868] sm:$0xff]
          %v4082 = vld [vmem:[#allocation8 + $0x870] sm:$0xff]
          %v4083 = vld [vmem:[#allocation8 + $0x878] sm:$0xff]
          %v4084 = vld [vmem:[#allocation8 + $0x880] sm:$0xff]
          %v4085 = vld [vmem:[#allocation8 + $0x888] sm:$0xff]
          %v4086 = vld [vmem:[#allocation8 + $0x890] sm:$0xff]
          %v4087 = vld [vmem:[#allocation8 + $0x898] sm:$0xff]
          %v4088 = vld [vmem:[#allocation8 + $0x8a0] sm:$0xff]
          %v4089 = vld [vmem:[#allocation8 + $0x8a8] sm:$0xff]
          %v4090 = vld [vmem:[#allocation8 + $0x8b0] sm:$0xff]
          %v4091 = vld [vmem:[#allocation8 + $0x8b8] sm:$0xff]
          %v4092 = vld [vmem:[#allocation8 + $0x8c0] sm:$0xff]
          %v4093 = vld [vmem:[#allocation8 + $0x8c8] sm:$0xff]
          %v4094 = vld [vmem:[#allocation8 + $0x8d0] sm:$0xff]
          %v4095 = vld [vmem:[#allocation8 + $0x8d8] sm:$0xff]
          %v4096 = vld [vmem:[#allocation8 + $0x8e0] sm:$0xff]
          %v4097 = vld [vmem:[#allocation8 + $0x8e8] sm:$0xff]
          %v4098 = vld [vmem:[#allocation8 + $0x8f0] sm:$0xff]
          %v4099 = vld [vmem:[#allocation8 + $0x8f8] sm:$0xff]
          %v4100 = vld [vmem:[#allocation8 + $0x900] sm:$0xff]
          %v4101 = vld [vmem:[#allocation8 + $0x908] sm:$0xff]
          %v4102 = vld [vmem:[#allocation8 + $0x910] sm:$0xff]
          %v4103 = vld [vmem:[#allocation8 + $0x918] sm:$0xff]
          %v4104 = vld [vmem:[#allocation8 + $0x920] sm:$0xff]
          %v4105 = vld [vmem:[#allocation8 + $0x928] sm:$0xff]
          %v4106 = vld [vmem:[#allocation8 + $0x930] sm:$0xff]
          %v4107 = vld [vmem:[#allocation8 + $0x938] sm:$0xff]
          %v4108 = vld [vmem:[#allocation8 + $0x940] sm:$0xff]
          %v4109 = vld [vmem:[#allocation8 + $0x948] sm:$0xff]
          %v4110 = vld [vmem:[#allocation8 + $0x950] sm:$0xff]
          %v4111 = vld [vmem:[#allocation8 + $0x958] sm:$0xff]
          %v4112 = vld [vmem:[#allocation8 + $0x960] sm:$0xff]
          %v4113 = vld [vmem:[#allocation8 + $0x968] sm:$0xff]
          %v4114 = vld [vmem:[#allocation8 + $0x970] sm:$0xff]
          %v4115 = vld [vmem:[#allocation8 + $0x978] sm:$0xff]
          %v4116 = vld [vmem:[#allocation8 + $0x980] sm:$0xff]
          %v4117 = vld [vmem:[#allocation8 + $0x988] sm:$0xff]
          %v4118 = vld [vmem:[#allocation8 + $0x990] sm:$0xff]
          %v4119 = vld [vmem:[#allocation8 + $0x998] sm:$0xff]
          %v4120 = vld [vmem:[#allocation8 + $0x9a0] sm:$0xff]
          %v4121 = vld [vmem:[#allocation8 + $0x9a8] sm:$0xff]
          %v4122 = vld [vmem:[#allocation8 + $0x9b0] sm:$0xff]
          %v4123 = vld [vmem:[#allocation8 + $0x9b8] sm:$0xff]
          %v4124 = vld [vmem:[#allocation8 + $0x9c0] sm:$0xff]
          %v4125 = vld [vmem:[#allocation8 + $0x9c8] sm:$0xff]
          %v4126 = vld [vmem:[#allocation8 + $0x9d0] sm:$0xff]
          %v4127 = vld [vmem:[#allocation8 + $0x9d8] sm:$0xff]
          %v4128 = vld [vmem:[#allocation8 + $0x9e0] sm:$0xff]
          %v4129 = vld [vmem:[#allocation8 + $0x9e8] sm:$0xff]
          %v4130 = vld [vmem:[#allocation8 + $0x9f0] sm:$0xff]
          %v4131 = vld [vmem:[#allocation8 + $0x9f8] sm:$0xff]
          %v4132 = vld [vmem:[#allocation8 + $0xa00] sm:$0xff]
          %v4133 = vld [vmem:[#allocation8 + $0xa08] sm:$0xff]
          %v4134 = vld [vmem:[#allocation8 + $0xa10] sm:$0xff]
          %v4135 = vld [vmem:[#allocation8 + $0xa18] sm:$0xff]
          %v4136 = vld [vmem:[#allocation8 + $0xa20] sm:$0xff]
          %v4137 = vld [vmem:[#allocation8 + $0xa28] sm:$0xff]
          %v4138 = vld [vmem:[#allocation8 + $0xa30] sm:$0xff]
          %v4139 = vld [vmem:[#allocation8 + $0xa38] sm:$0xff]
          %v4140 = vld [vmem:[#allocation8 + $0xa40] sm:$0xff]
          %v4141 = vld [vmem:[#allocation8 + $0xa48] sm:$0xff]
          %v4142 = vld [vmem:[#allocation8 + $0xa50] sm:$0xff]
          %v4143 = vld [vmem:[#allocation8 + $0xa58] sm:$0xff]
          %v4144 = vld [vmem:[#allocation8 + $0xa60] sm:$0xff]
          %v4145 = vld [vmem:[#allocation8 + $0xa68] sm:$0xff]
          %v4146 = vld [vmem:[#allocation8 + $0xa70] sm:$0xff]
          %v4147 = vld [vmem:[#allocation8 + $0xa78] sm:$0xff]
          %v4148 = vld [vmem:[#allocation8 + $0xa80] sm:$0xff]
          %v4149 = vld [vmem:[#allocation8 + $0xa88] sm:$0xff]
          %v4150 = vld [vmem:[#allocation8 + $0xa90] sm:$0xff]
          %v4151 = vld [vmem:[#allocation8 + $0xa98] sm:$0xff]
          %v4152 = vld [vmem:[#allocation8 + $0xaa0] sm:$0xff]
          %v4153 = vld [vmem:[#allocation8 + $0xaa8] sm:$0xff]
          %v4154 = vld [vmem:[#allocation8 + $0xab0] sm:$0xff]
          %v4155 = vld [vmem:[#allocation8 + $0xab8] sm:$0xff]
          %v4156 = vld [vmem:[#allocation8 + $0xac0] sm:$0xff]
          %v4157 = vld [vmem:[#allocation8 + $0xac8] sm:$0xff]
          %v4158 = vld [vmem:[#allocation8 + $0xad0] sm:$0xff]
          %v4159 = vld [vmem:[#allocation8 + $0xad8] sm:$0xff]
          %v4160 = vld [vmem:[#allocation8 + $0xae0] sm:$0xff]
          %v4161 = vld [vmem:[#allocation8 + $0xae8] sm:$0xff]
          %v4162 = vld [vmem:[#allocation8 + $0xaf0] sm:$0xff]
          %v4163 = vld [vmem:[#allocation8 + $0xaf8] sm:$0xff]
          %v4164 = vld [vmem:[#allocation8 + $0xb00] sm:$0xff]
          %v4165 = vld [vmem:[#allocation8 + $0xb08] sm:$0xff]
          %v4166 = vld [vmem:[#allocation8 + $0xb10] sm:$0xff]
          %v4167 = vld [vmem:[#allocation8 + $0xb18] sm:$0xff]
          %v4168 = vld [vmem:[#allocation8 + $0xb20] sm:$0xff]
          %v4169 = vld [vmem:[#allocation8 + $0xb28] sm:$0xff]
          %v4170 = vld [vmem:[#allocation8 + $0xb30] sm:$0xff]
          %v4171 = vld [vmem:[#allocation8 + $0xb38] sm:$0xff]
          %v4172 = vld [vmem:[#allocation8 + $0xb40] sm:$0xff]
          %v4173 = vld [vmem:[#allocation8 + $0xb48] sm:$0xff]
          %v4174 = vld [vmem:[#allocation8 + $0xb50] sm:$0xff]
          %v4175 = vld [vmem:[#allocation8 + $0xb58] sm:$0xff]
          %v4176 = vld [vmem:[#allocation8 + $0xb60] sm:$0xff]
          %v4177 = vld [vmem:[#allocation8 + $0xb68] sm:$0xff]
          %v4178 = vld [vmem:[#allocation8 + $0xb70] sm:$0xff]
          %v4179 = vld [vmem:[#allocation8 + $0xb78] sm:$0xff]
          %v4180 = vld [vmem:[#allocation8 + $0xb80] sm:$0xff]
          %v4181 = vld [vmem:[#allocation8 + $0xb88] sm:$0xff]
          %v4182 = vld [vmem:[#allocation8 + $0xb90] sm:$0xff]
          %v4183 = vld [vmem:[#allocation8 + $0xb98] sm:$0xff]
          %v4184 = vld [vmem:[#allocation8 + $0xba0] sm:$0xff]
          %v4185 = vld [vmem:[#allocation8 + $0xba8] sm:$0xff]
          %v4186 = vld [vmem:[#allocation8 + $0xbb0] sm:$0xff]
          %v4187 = vld [vmem:[#allocation8 + $0xbb8] sm:$0xff]
          %v4188 = vld [vmem:[#allocation8 + $0xbc0] sm:$0xff]
          %v4189 = vld [vmem:[#allocation8 + $0xbc8] sm:$0xff]
          %v4190 = vld [vmem:[#allocation8 + $0xbd0] sm:$0xff]
          %v4191 = vld [vmem:[#allocation8 + $0xbd8] sm:$0xff]
          %v4192 = vld [vmem:[#allocation8 + $0xbe0] sm:$0xff]
          %v4193 = vld [vmem:[#allocation8 + $0xbe8] sm:$0xff]
          %v4194 = vld [vmem:[#allocation8 + $0xbf0] sm:$0xff]
          %v4195 = vld [vmem:[#allocation8 + $0xbf8] sm:$0xff]
          %v4196 = vld [vmem:[#allocation8 + $0xc00] sm:$0xff]
          %v4197 = vld [vmem:[#allocation8 + $0xc08] sm:$0xff]
          %v4198 = vld [vmem:[#allocation8 + $0xc10] sm:$0xff]
          %v4199 = vld [vmem:[#allocation8 + $0xc18] sm:$0xff]
          %v4200 = vld [vmem:[#allocation8 + $0xc20] sm:$0xff]
          %v4201 = vld [vmem:[#allocation8 + $0xc28] sm:$0xff]
          %v4202 = vld [vmem:[#allocation8 + $0xc30] sm:$0xff]
          %v4203 = vld [vmem:[#allocation8 + $0xc38] sm:$0xff]
          %v4204 = vld [vmem:[#allocation8 + $0xc40] sm:$0xff]
          %v4205 = vld [vmem:[#allocation8 + $0xc48] sm:$0xff]
          %v4206 = vld [vmem:[#allocation8 + $0xc50] sm:$0xff]
          %v4207 = vld [vmem:[#allocation8 + $0xc58] sm:$0xff]
          %v4208 = vld [vmem:[#allocation8 + $0xc60] sm:$0xff]
          %v4209 = vld [vmem:[#allocation8 + $0xc68] sm:$0xff]
          %v4210 = vld [vmem:[#allocation8 + $0xc70] sm:$0xff]
          %v4211 = vld [vmem:[#allocation8 + $0xc78] sm:$0xff]
          %v4212 = vld [vmem:[#allocation8 + $0xc80] sm:$0xff]
          %v4213 = vld [vmem:[#allocation8 + $0xc88] sm:$0xff]
          %v4214 = vld [vmem:[#allocation8 + $0xc90] sm:$0xff]
          %v4215 = vld [vmem:[#allocation8 + $0xc98] sm:$0xff]
          %v4216 = vld [vmem:[#allocation8 + $0xca0] sm:$0xff]
          %v4217 = vld [vmem:[#allocation8 + $0xca8] sm:$0xff]
          %v4218 = vld [vmem:[#allocation8 + $0xcb0] sm:$0xff]
          %v4219 = vld [vmem:[#allocation8 + $0xcb8] sm:$0xff]
          %v4220 = vld [vmem:[#allocation8 + $0xcc0] sm:$0xff]
          %v4221 = vld [vmem:[#allocation8 + $0xcc8] sm:$0xff]
          %v4222 = vld [vmem:[#allocation8 + $0xcd0] sm:$0xff]
          %v4223 = vld [vmem:[#allocation8 + $0xcd8] sm:$0xff]
          %v4224 = vld [vmem:[#allocation8 + $0xce0] sm:$0xff]
          %v4225 = vld [vmem:[#allocation8 + $0xce8] sm:$0xff]
          %v4226 = vld [vmem:[#allocation8 + $0xcf0] sm:$0xff]
          %v4227 = vld [vmem:[#allocation8 + $0xcf8] sm:$0xff]
          %v4228 = vld [vmem:[#allocation8 + $0xd00] sm:$0xff]
          %v4229 = vld [vmem:[#allocation8 + $0xd08] sm:$0xff]
          %v4230 = vld [vmem:[#allocation8 + $0xd10] sm:$0xff]
          %v4231 = vld [vmem:[#allocation8 + $0xd18] sm:$0xff]
          %v4232 = vld [vmem:[#allocation8 + $0xd20] sm:$0xff]
          %v4233 = vld [vmem:[#allocation8 + $0xd28] sm:$0xff]
          %v4234 = vld [vmem:[#allocation8 + $0xd30] sm:$0xff]
          %v4235 = vld [vmem:[#allocation8 + $0xd38] sm:$0xff]
          %v4236 = vld [vmem:[#allocation8 + $0xd40] sm:$0xff]
          %v4237 = vld [vmem:[#allocation8 + $0xd48] sm:$0xff]
          %v4238 = vld [vmem:[#allocation8 + $0xd50] sm:$0xff]
          %v4239 = vld [vmem:[#allocation8 + $0xd58] sm:$0xff]
          %v4240 = vld [vmem:[#allocation8 + $0xd60] sm:$0xff]
          %v4241 = vld [vmem:[#allocation8 + $0xd68] sm:$0xff]
          %v4242 = vld [vmem:[#allocation8 + $0xd70] sm:$0xff]
          %v4243 = vld [vmem:[#allocation8 + $0xd78] sm:$0xff]
          %v4244 = vld [vmem:[#allocation8 + $0xd80] sm:$0xff]
          %v4245 = vld [vmem:[#allocation8 + $0xd88] sm:$0xff]
          %v4246 = vld [vmem:[#allocation8 + $0xd90] sm:$0xff]
          %v4247 = vld [vmem:[#allocation8 + $0xd98] sm:$0xff]
          %v4248 = vld [vmem:[#allocation8 + $0xda0] sm:$0xff]
          %v4249 = vld [vmem:[#allocation8 + $0xda8] sm:$0xff]
          %v4250 = vld [vmem:[#allocation8 + $0xdb0] sm:$0xff]
          %v4251 = vld [vmem:[#allocation8 + $0xdb8] sm:$0xff]
          %v4252 = vld [vmem:[#allocation8 + $0xdc0] sm:$0xff]
          %v4253 = vld [vmem:[#allocation8 + $0xdc8] sm:$0xff]
          %v4254 = vld [vmem:[#allocation8 + $0xdd0] sm:$0xff]
          %v4255 = vld [vmem:[#allocation8 + $0xdd8] sm:$0xff]
          %v4256 = vld [vmem:[#allocation8 + $0xde0] sm:$0xff]
          %v4257 = vld [vmem:[#allocation8 + $0xde8] sm:$0xff]
          %v4258 = vld [vmem:[#allocation8 + $0xdf0] sm:$0xff]
          %v4259 = vld [vmem:[#allocation8 + $0xdf8] sm:$0xff]
          %v4260 = vld [vmem:[#allocation8 + $0xe00] sm:$0xff]
          %v4261 = vld [vmem:[#allocation8 + $0xe08] sm:$0xff]
          %v4262 = vld [vmem:[#allocation8 + $0xe10] sm:$0xff]
          %v4263 = vld [vmem:[#allocation8 + $0xe18] sm:$0xff]
          %v4264 = vld [vmem:[#allocation8 + $0xe20] sm:$0xff]
          %v4265 = vld [vmem:[#allocation8 + $0xe28] sm:$0xff]
          %v4266 = vld [vmem:[#allocation8 + $0xe30] sm:$0xff]
          %v4267 = vld [vmem:[#allocation8 + $0xe38] sm:$0xff]
          %v4268 = vld [vmem:[#allocation8 + $0xe40] sm:$0xff]
          %v4269 = vld [vmem:[#allocation8 + $0xe48] sm:$0xff]
          %v4270 = vld [vmem:[#allocation8 + $0xe50] sm:$0xff]
          %v4271 = vld [vmem:[#allocation8 + $0xe58] sm:$0xff]
          %v4272 = vld [vmem:[#allocation8 + $0xe60] sm:$0xff]
          %v4273 = vld [vmem:[#allocation8 + $0xe68] sm:$0xff]
          %v4274 = vld [vmem:[#allocation8 + $0xe70] sm:$0xff]
          %v4275 = vld [vmem:[#allocation8 + $0xe78] sm:$0xff]
          %v4276 = vld [vmem:[#allocation8 + $0xe80] sm:$0xff]
          %v4277 = vld [vmem:[#allocation8 + $0xe88] sm:$0xff]
          %v4278 = vld [vmem:[#allocation8 + $0xe90] sm:$0xff]
          %v4279 = vld [vmem:[#allocation8 + $0xe98] sm:$0xff]
          %v4280 = vld [vmem:[#allocation8 + $0xea0] sm:$0xff]
          %v4281 = vld [vmem:[#allocation8 + $0xea8] sm:$0xff]
          %v4282 = vld [vmem:[#allocation8 + $0xeb0] sm:$0xff]
          %v4283 = vld [vmem:[#allocation8 + $0xeb8] sm:$0xff]
          %v4284 = vld [vmem:[#allocation8 + $0xec0] sm:$0xff]
          %v4285 = vld [vmem:[#allocation8 + $0xec8] sm:$0xff]
          %v4286 = vld [vmem:[#allocation8 + $0xed0] sm:$0xff]
          %v4287 = vld [vmem:[#allocation8 + $0xed8] sm:$0xff]
          %v4288 = vld [vmem:[#allocation8 + $0xee0] sm:$0xff]
          %v4289 = vld [vmem:[#allocation8 + $0xee8] sm:$0xff]
          %v4290 = vld [vmem:[#allocation8 + $0xef0] sm:$0xff]
          %v4291 = vld [vmem:[#allocation8 + $0xef8] sm:$0xff]
          %v4292 = vld [vmem:[#allocation8 + $0xf00] sm:$0xff]
          %v4293 = vld [vmem:[#allocation8 + $0xf08] sm:$0xff]
          %v4294 = vld [vmem:[#allocation8 + $0xf10] sm:$0xff]
          %v4295 = vld [vmem:[#allocation8 + $0xf18] sm:$0xff]
          %v4296 = vld [vmem:[#allocation8 + $0xf20] sm:$0xff]
          %v4297 = vld [vmem:[#allocation8 + $0xf28] sm:$0xff]
          %v4298 = vld [vmem:[#allocation8 + $0xf30] sm:$0xff]
          %v4299 = vld [vmem:[#allocation8 + $0xf38] sm:$0xff]
          %v4300 = vld [vmem:[#allocation8 + $0xf40] sm:$0xff]
          %v4301 = vld [vmem:[#allocation8 + $0xf48] sm:$0xff]
          %v4302 = vld [vmem:[#allocation8 + $0xf50] sm:$0xff]
          %v4303 = vld [vmem:[#allocation8 + $0xf58] sm:$0xff]
          %v4304 = vld [vmem:[#allocation8 + $0xf60] sm:$0xff]
          %v4305 = vld [vmem:[#allocation8 + $0xf68] sm:$0xff]
          %v4306 = vld [vmem:[#allocation8 + $0xf70] sm:$0xff]
          %v4307 = vld [vmem:[#allocation8 + $0xf78] sm:$0xff]
          %v4308 = vld [vmem:[#allocation8 + $0xf80] sm:$0xff]
          %v4309 = vld [vmem:[#allocation8 + $0xf88] sm:$0xff]
          %v4310 = vld [vmem:[#allocation8 + $0xf90] sm:$0xff]
          %v4311 = vld [vmem:[#allocation8 + $0xf98] sm:$0xff]
          %v4312 = vld [vmem:[#allocation8 + $0xfa0] sm:$0xff]
          %v4313 = vld [vmem:[#allocation8 + $0xfa8] sm:$0xff]
          %v4314 = vld [vmem:[#allocation8 + $0xfb0] sm:$0xff]
          %v4315 = vld [vmem:[#allocation8 + $0xfb8] sm:$0xff]
          %v4316 = vld [vmem:[#allocation8 + $0xfc0] sm:$0xff]
          %v4317 = vld [vmem:[#allocation8 + $0xfc8] sm:$0xff]
          %v4318 = vld [vmem:[#allocation8 + $0xfd0] sm:$0xff]
          %v4319 = vld [vmem:[#allocation8 + $0xfd8] sm:$0xff]
          %v4320 = vld [vmem:[#allocation8 + $0xfe0] sm:$0xff]
          %v4321 = vld [vmem:[#allocation8 + $0xfe8] sm:$0xff]
          %v4322 = vld [vmem:[#allocation8 + $0xff0] sm:$0xff]
          %v4323 = vld [vmem:[#allocation8 + $0xff8] sm:$0xff]
          %v4324 = vld [vmem:[#allocation8 + $0x1000] sm:$0xff]
          %v4325 = vld [vmem:[#allocation8 + $0x1008] sm:$0xff]
          %v4326 = vld [vmem:[#allocation8 + $0x1010] sm:$0xff]
          %v4327 = vld [vmem:[#allocation8 + $0x1018] sm:$0xff]
          %v4328 = vld [vmem:[#allocation8 + $0x1020] sm:$0xff]
          %v4329 = vld [vmem:[#allocation8 + $0x1028] sm:$0xff]
          %v4330 = vld [vmem:[#allocation8 + $0x1030] sm:$0xff]
          %v4331 = vld [vmem:[#allocation8 + $0x1038] sm:$0xff]
          %v4332 = vld [vmem:[#allocation8 + $0x1040] sm:$0xff]
          %v4333 = vld [vmem:[#allocation8 + $0x1048] sm:$0xff]
          %v4334 = vld [vmem:[#allocation8 + $0x1050] sm:$0xff]
          %v4335 = vld [vmem:[#allocation8 + $0x1058] sm:$0xff]
          %v4336 = vld [vmem:[#allocation8 + $0x1060] sm:$0xff]
          %v4337 = vld [vmem:[#allocation8 + $0x1068] sm:$0xff]
          %v4338 = vld [vmem:[#allocation8 + $0x1070] sm:$0xff]
          %v4339 = vld [vmem:[#allocation8 + $0x1078] sm:$0xff]
          %v4340 = vld [vmem:[#allocation8 + $0x1080] sm:$0xff]
          %v4341 = vld [vmem:[#allocation8 + $0x1088] sm:$0xff]
          %v4342 = vld [vmem:[#allocation8 + $0x1090] sm:$0xff]
          %v4343 = vld [vmem:[#allocation8 + $0x1098] sm:$0xff]
          %v4344 = vld [vmem:[#allocation8 + $0x10a0] sm:$0xff]
          %v4345 = vld [vmem:[#allocation8 + $0x10a8] sm:$0xff]
          %v4346 = vld [vmem:[#allocation8 + $0x10b0] sm:$0xff]
          %v4347 = vld [vmem:[#allocation8 + $0x10b8] sm:$0xff]
          %v4348 = vld [vmem:[#allocation8 + $0x10c0] sm:$0xff]
          %v4349 = vld [vmem:[#allocation8 + $0x10c8] sm:$0xff]
          %v4350 = vld [vmem:[#allocation8 + $0x10d0] sm:$0xff]
          %v4351 = vld [vmem:[#allocation8 + $0x10d8] sm:$0xff]
          %v4352 = vld [vmem:[#allocation8 + $0x10e0] sm:$0xff]
          %v4353 = vld [vmem:[#allocation8 + $0x10e8] sm:$0xff]
          %v4354 = vld [vmem:[#allocation8 + $0x10f0] sm:$0xff]
          %v4355 = vld [vmem:[#allocation8 + $0x10f8] sm:$0xff]
          %v4356 = vld [vmem:[#allocation8 + $0x1100] sm:$0xff]
          %v4357 = vld [vmem:[#allocation8 + $0x1108] sm:$0xff]
          %v4358 = vld [vmem:[#allocation8 + $0x1110] sm:$0xff]
          %v4359 = vld [vmem:[#allocation8 + $0x1118] sm:$0xff]
          %v4360 = vld [vmem:[#allocation8 + $0x1120] sm:$0xff]
          %v4361 = vld [vmem:[#allocation8 + $0x1128] sm:$0xff]
          %v4362 = vld [vmem:[#allocation8 + $0x1130] sm:$0xff]
          %v4363 = vld [vmem:[#allocation8 + $0x1138] sm:$0xff]
          %v4364 = vld [vmem:[#allocation8 + $0x1140] sm:$0xff]
          %v4365 = vld [vmem:[#allocation8 + $0x1148] sm:$0xff]
          %v4366 = vld [vmem:[#allocation8 + $0x1150] sm:$0xff]
          %v4367 = vld [vmem:[#allocation8 + $0x1158] sm:$0xff]
          %v4368 = vld [vmem:[#allocation8 + $0x1160] sm:$0xff]
          %v4369 = vld [vmem:[#allocation8 + $0x1168] sm:$0xff]
          %v4370 = vld [vmem:[#allocation8 + $0x1170] sm:$0xff]
          %v4371 = vld [vmem:[#allocation8 + $0x1178] sm:$0xff]
          %v4372 = vld [vmem:[#allocation8 + $0x1180] sm:$0xff]
          %v4373 = vld [vmem:[#allocation8 + $0x1188] sm:$0xff]
          %v4374 = vld [vmem:[#allocation8 + $0x1190] sm:$0xff]
          %v4375 = vld [vmem:[#allocation8 + $0x1198] sm:$0xff]
          %v4376 = vld [vmem:[#allocation8 + $0x11a0] sm:$0xff]
          %v4377 = vld [vmem:[#allocation8 + $0x11a8] sm:$0xff]
          %v4378 = vld [vmem:[#allocation8 + $0x11b0] sm:$0xff]
          %v4379 = vld [vmem:[#allocation8 + $0x11b8] sm:$0xff]
          %v4380 = vld [vmem:[#allocation8 + $0x11c0] sm:$0xff]
          %v4381 = vld [vmem:[#allocation8 + $0x11c8] sm:$0xff]
          %v4382 = vld [vmem:[#allocation8 + $0x11d0] sm:$0xff]
          %v4383 = vld [vmem:[#allocation8 + $0x11d8] sm:$0xff]
          %v4384 = vld [vmem:[#allocation8 + $0x11e0] sm:$0xff]
          %v4385 = vld [vmem:[#allocation8 + $0x11e8] sm:$0xff]
          %v4386 = vld [vmem:[#allocation8 + $0x11f0] sm:$0xff]
          %v4387 = vld [vmem:[#allocation8 + $0x11f8] sm:$0xff]
          %v4388 = vld [vmem:[#allocation8 + $0x1200] sm:$0xff]
          %v4389 = vld [vmem:[#allocation8 + $0x1208] sm:$0xff]
          %v4390 = vld [vmem:[#allocation8 + $0x1210] sm:$0xff]
          %v4391 = vld [vmem:[#allocation8 + $0x1218] sm:$0xff]
          %v4392 = vld [vmem:[#allocation8 + $0x1220] sm:$0xff]
          %v4393 = vld [vmem:[#allocation8 + $0x1228] sm:$0xff]
          %v4394 = vld [vmem:[#allocation8 + $0x1230] sm:$0xff]
          %v4395 = vld [vmem:[#allocation8 + $0x1238] sm:$0xff]
          %v4396 = vld [vmem:[#allocation8 + $0x1240] sm:$0xff]
          %v4397 = vld [vmem:[#allocation8 + $0x1248] sm:$0xff]
          %v4398 = vld [vmem:[#allocation8 + $0x1250] sm:$0xff]
          %v4399 = vld [vmem:[#allocation8 + $0x1258] sm:$0xff]
          %v4400 = vld [vmem:[#allocation8 + $0x1260] sm:$0xff]
          %v4401 = vld [vmem:[#allocation8 + $0x1268] sm:$0xff]
          %v4402 = vld [vmem:[#allocation8 + $0x1270] sm:$0xff]
          %v4403 = vld [vmem:[#allocation8 + $0x1278] sm:$0xff]
          %v4404 = vld [vmem:[#allocation8 + $0x1280] sm:$0xff]
          %v4405 = vld [vmem:[#allocation8 + $0x1288] sm:$0xff]
          %v4406 = vld [vmem:[#allocation8 + $0x1290] sm:$0xff]
          %v4407 = vld [vmem:[#allocation8 + $0x1298] sm:$0xff]
          %v4408 = vld [vmem:[#allocation8 + $0x12a0] sm:$0xff]
          %v4409 = vld [vmem:[#allocation8 + $0x12a8] sm:$0xff]
          %v4410 = vld [vmem:[#allocation8 + $0x12b0] sm:$0xff]
          %v4411 = vld [vmem:[#allocation8 + $0x12b8] sm:$0xff]
          %v4412 = vld [vmem:[#allocation8 + $0x12c0] sm:$0xff]
          %v4413 = vld [vmem:[#allocation8 + $0x12c8] sm:$0xff]
          %v4414 = vld [vmem:[#allocation8 + $0x12d0] sm:$0xff]
          %v4415 = vld [vmem:[#allocation8 + $0x12d8] sm:$0xff]
          %v4416 = vld [vmem:[#allocation8 + $0x12e0] sm:$0xff]
          %v4417 = vld [vmem:[#allocation8 + $0x12e8] sm:$0xff]
          %v4418 = vld [vmem:[#allocation8 + $0x12f0] sm:$0xff]
          %v4419 = vld [vmem:[#allocation8 + $0x12f8] sm:$0xff]
          %v4420 = vld [vmem:[#allocation8 + $0x1300] sm:$0xff]
          %v4421 = vld [vmem:[#allocation8 + $0x1308] sm:$0xff]
          %v4422 = vld [vmem:[#allocation8 + $0x1310] sm:$0xff]
          %v4423 = vld [vmem:[#allocation8 + $0x1318] sm:$0xff]
          %v4424 = vld [vmem:[#allocation8 + $0x1320] sm:$0xff]
          %v4425 = vld [vmem:[#allocation8 + $0x1328] sm:$0xff]
          %v4426 = vld [vmem:[#allocation8 + $0x1330] sm:$0xff]
          %v4427 = vld [vmem:[#allocation8 + $0x1338] sm:$0xff]
          %v4428 = vld [vmem:[#allocation8 + $0x1340] sm:$0xff]
          %v4429 = vld [vmem:[#allocation8 + $0x1348] sm:$0xff]
          %v4430 = vld [vmem:[#allocation8 + $0x1350] sm:$0xff]
          %v4431 = vld [vmem:[#allocation8 + $0x1358] sm:$0xff]
          %v4432 = vld [vmem:[#allocation8 + $0x1360] sm:$0xff]
          %v4433 = vld [vmem:[#allocation8 + $0x1368] sm:$0xff]
          %v4434 = vld [vmem:[#allocation8 + $0x1370] sm:$0xff]
          %v4435 = vld [vmem:[#allocation8 + $0x1378] sm:$0xff]
          %v4436 = vld [vmem:[#allocation8 + $0x1380] sm:$0xff]
          %v4437 = vld [vmem:[#allocation8 + $0x1388] sm:$0xff]
          %v4438 = vld [vmem:[#allocation8 + $0x1390] sm:$0xff]
          %v4439 = vld [vmem:[#allocation8 + $0x1398] sm:$0xff]
          %v4440 = vld [vmem:[#allocation8 + $0x13a0] sm:$0xff]
          %v4441 = vld [vmem:[#allocation8 + $0x13a8] sm:$0xff]
          %v4442 = vld [vmem:[#allocation8 + $0x13b0] sm:$0xff]
          %v4443 = vld [vmem:[#allocation8 + $0x13b8] sm:$0xff]
          %v4444 = vld [vmem:[#allocation8 + $0x13c0] sm:$0xff]
          %v4445 = vld [vmem:[#allocation8 + $0x13c8] sm:$0xff]
          %v4446 = vld [vmem:[#allocation8 + $0x13d0] sm:$0xff]
          %v4447 = vld [vmem:[#allocation8 + $0x13d8] sm:$0xff]
          %v4448 = vld [vmem:[#allocation8 + $0x13e0] sm:$0xff]
          %v4449 = vld [vmem:[#allocation8 + $0x13e8] sm:$0xff]
          %v4450 = vld [vmem:[#allocation8 + $0x13f0] sm:$0xff]
          %v4451 = vld [vmem:[#allocation8 + $0x13f8] sm:$0xff]
          %v4452 = vld [vmem:[#allocation8 + $0x1400] sm:$0xff]
          %v4453 = vld [vmem:[#allocation8 + $0x1408] sm:$0xff]
          %v4454 = vld [vmem:[#allocation8 + $0x1410] sm:$0xff]
          %v4455 = vld [vmem:[#allocation8 + $0x1418] sm:$0xff]
          %v4456 = vld [vmem:[#allocation8 + $0x1420] sm:$0xff]
          %v4457 = vld [vmem:[#allocation8 + $0x1428] sm:$0xff]
          %v4458 = vld [vmem:[#allocation8 + $0x1430] sm:$0xff]
          %v4459 = vld [vmem:[#allocation8 + $0x1438] sm:$0xff]
          %v4460 = vld [vmem:[#allocation8 + $0x1440] sm:$0xff]
          %v4461 = vld [vmem:[#allocation8 + $0x1448] sm:$0xff]
          %v4462 = vld [vmem:[#allocation8 + $0x1450] sm:$0xff]
          %v4463 = vld [vmem:[#allocation8 + $0x1458] sm:$0xff]
          %v4464 = vld [vmem:[#allocation8 + $0x1460] sm:$0xff]
          %v4465 = vld [vmem:[#allocation8 + $0x1468] sm:$0xff]
          %v4466 = vld [vmem:[#allocation8 + $0x1470] sm:$0xff]
          %v4467 = vld [vmem:[#allocation8 + $0x1478] sm:$0xff]
          %v4468 = vld [vmem:[#allocation8 + $0x1480] sm:$0xff]
          %v4469 = vld [vmem:[#allocation8 + $0x1488] sm:$0xff]
          %v4470 = vld [vmem:[#allocation8 + $0x1490] sm:$0xff]
          %v4471 = vld [vmem:[#allocation8 + $0x1498] sm:$0xff]
          %v4472 = vld [vmem:[#allocation8 + $0x14a0] sm:$0xff]
          %v4473 = vld [vmem:[#allocation8 + $0x14a8] sm:$0xff]
          %v4474 = vld [vmem:[#allocation8 + $0x14b0] sm:$0xff]
          %v4475 = vld [vmem:[#allocation8 + $0x14b8] sm:$0xff]
          %v4476 = vld [vmem:[#allocation8 + $0x14c0] sm:$0xff]
          %v4477 = vld [vmem:[#allocation8 + $0x14c8] sm:$0xff]
          %v4478 = vld [vmem:[#allocation8 + $0x14d0] sm:$0xff]
          %v4479 = vld [vmem:[#allocation8 + $0x14d8] sm:$0xff]
          %v4480 = vld [vmem:[#allocation8 + $0x14e0] sm:$0xff]
          %v4481 = vld [vmem:[#allocation8 + $0x14e8] sm:$0xff]
          %v4482 = vld [vmem:[#allocation8 + $0x14f0] sm:$0xff]
          %v4483 = vld [vmem:[#allocation8 + $0x14f8] sm:$0xff]
          %v4484 = vld [vmem:[#allocation8 + $0x1500] sm:$0xff]
          %v4485 = vld [vmem:[#allocation8 + $0x1508] sm:$0xff]
          %v4486 = vld [vmem:[#allocation8 + $0x1510] sm:$0xff]
          %v4487 = vld [vmem:[#allocation8 + $0x1518] sm:$0xff]
          %v4488 = vld [vmem:[#allocation8 + $0x1520] sm:$0xff]
          %v4489 = vld [vmem:[#allocation8 + $0x1528] sm:$0xff]
          %v4490 = vld [vmem:[#allocation8 + $0x1530] sm:$0xff]
          %v4491 = vld [vmem:[#allocation8 + $0x1538] sm:$0xff]
          %v4492 = vld [vmem:[#allocation8 + $0x1540] sm:$0xff]
          %v4493 = vld [vmem:[#allocation8 + $0x1548] sm:$0xff]
          %v4494 = vld [vmem:[#allocation8 + $0x1550] sm:$0xff]
          %v4495 = vld [vmem:[#allocation8 + $0x1558] sm:$0xff]
          %v4496 = vld [vmem:[#allocation8 + $0x1560] sm:$0xff]
          %v4497 = vld [vmem:[#allocation8 + $0x1568] sm:$0xff]
          %v4498 = vld [vmem:[#allocation8 + $0x1570] sm:$0xff]
          %v4499 = vld [vmem:[#allocation8 + $0x1578] sm:$0xff]
          %v4500 = vld [vmem:[#allocation8 + $0x1580] sm:$0xff]
          %v4501 = vld [vmem:[#allocation8 + $0x1588] sm:$0xff]
          %v4502 = vld [vmem:[#allocation8 + $0x1590] sm:$0xff]
          %v4503 = vld [vmem:[#allocation8 + $0x1598] sm:$0xff]
          %v4504 = vld [vmem:[#allocation8 + $0x15a0] sm:$0xff]
          %v4505 = vld [vmem:[#allocation8 + $0x15a8] sm:$0xff]
          %v4506 = vld [vmem:[#allocation8 + $0x15b0] sm:$0xff]
          %v4507 = vld [vmem:[#allocation8 + $0x15b8] sm:$0xff]
          %v4508 = vld [vmem:[#allocation8 + $0x15c0] sm:$0xff]
          %v4509 = vld [vmem:[#allocation8 + $0x15c8] sm:$0xff]
          %v4510 = vld [vmem:[#allocation8 + $0x15d0] sm:$0xff]
          %v4511 = vld [vmem:[#allocation8 + $0x15d8] sm:$0xff]
          %v4512 = vld [vmem:[#allocation8 + $0x15e0] sm:$0xff]
          %v4513 = vld [vmem:[#allocation8 + $0x15e8] sm:$0xff]
          %v4514 = vld [vmem:[#allocation8 + $0x15f0] sm:$0xff]
          %v4515 = vld [vmem:[#allocation8 + $0x15f8] sm:$0xff]
          %v4516 = vld [vmem:[#allocation8 + $0x1600] sm:$0xff]
          %v4517 = vld [vmem:[#allocation8 + $0x1608] sm:$0xff]
          %v4518 = vld [vmem:[#allocation8 + $0x1610] sm:$0xff]
          %v4519 = vld [vmem:[#allocation8 + $0x1618] sm:$0xff]
          %v4520 = vld [vmem:[#allocation8 + $0x1620] sm:$0xff]
          %v4521 = vld [vmem:[#allocation8 + $0x1628] sm:$0xff]
          %v4522 = vld [vmem:[#allocation8 + $0x1630] sm:$0xff]
          %v4523 = vld [vmem:[#allocation8 + $0x1638] sm:$0xff]
          %v4524 = vld [vmem:[#allocation8 + $0x1640] sm:$0xff]
          %v4525 = vld [vmem:[#allocation8 + $0x1648] sm:$0xff]
          %v4526 = vld [vmem:[#allocation8 + $0x1650] sm:$0xff]
          %v4527 = vld [vmem:[#allocation8 + $0x1658] sm:$0xff]
          %v4528 = vld [vmem:[#allocation8 + $0x1660] sm:$0xff]
          %v4529 = vld [vmem:[#allocation8 + $0x1668] sm:$0xff]
          %v4530 = vld [vmem:[#allocation8 + $0x1670] sm:$0xff]
          %v4531 = vld [vmem:[#allocation8 + $0x1678] sm:$0xff]
          %v4532 = vld [vmem:[#allocation8 + $0x1680] sm:$0xff]
          %v4533 = vld [vmem:[#allocation8 + $0x1688] sm:$0xff]
          %v4534 = vld [vmem:[#allocation8 + $0x1690] sm:$0xff]
          %v4535 = vld [vmem:[#allocation8 + $0x1698] sm:$0xff]
          %v4536 = vld [vmem:[#allocation8 + $0x16a0] sm:$0xff]
          %v4537 = vld [vmem:[#allocation8 + $0x16a8] sm:$0xff]
          %v4538 = vld [vmem:[#allocation8 + $0x16b0] sm:$0xff]
          %v4539 = vld [vmem:[#allocation8 + $0x16b8] sm:$0xff]
          %v4540 = vld [vmem:[#allocation8 + $0x16c0] sm:$0xff]
          %v4541 = vld [vmem:[#allocation8 + $0x16c8] sm:$0xff]
          %v4542 = vld [vmem:[#allocation8 + $0x16d0] sm:$0xff]
          %v4543 = vld [vmem:[#allocation8 + $0x16d8] sm:$0xff]
          %v4544 = vld [vmem:[#allocation8 + $0x16e0] sm:$0xff]
          %v4545 = vld [vmem:[#allocation8 + $0x16e8] sm:$0xff]
          %v4546 = vld [vmem:[#allocation8 + $0x16f0] sm:$0xff]
          %v4547 = vld [vmem:[#allocation8 + $0x16f8] sm:$0xff]
          %v4548 = vld [vmem:[#allocation8 + $0x1700] sm:$0xff]
          %v4549 = vld [vmem:[#allocation8 + $0x1708] sm:$0xff]
          %v4550 = vld [vmem:[#allocation8 + $0x1710] sm:$0xff]
          %v4551 = vld [vmem:[#allocation8 + $0x1718] sm:$0xff]
          %v4552 = vld [vmem:[#allocation8 + $0x1720] sm:$0xff]
          %v4553 = vld [vmem:[#allocation8 + $0x1728] sm:$0xff]
          %v4554 = vld [vmem:[#allocation8 + $0x1730] sm:$0xff]
          %v4555 = vld [vmem:[#allocation8 + $0x1738] sm:$0xff]
          %v4556 = vld [vmem:[#allocation8 + $0x1740] sm:$0xff]
          %v4557 = vld [vmem:[#allocation8 + $0x1748] sm:$0xff]
          %v4558 = vld [vmem:[#allocation8 + $0x1750] sm:$0xff]
          %v4559 = vld [vmem:[#allocation8 + $0x1758] sm:$0xff]
          %v4560 = vld [vmem:[#allocation8 + $0x1760] sm:$0xff]
          %v4561 = vld [vmem:[#allocation8 + $0x1768] sm:$0xff]
          %v4562 = vld [vmem:[#allocation8 + $0x1770] sm:$0xff]
          %v4563 = vld [vmem:[#allocation8 + $0x1778] sm:$0xff]
          %v4564 = vld [vmem:[#allocation8 + $0x1780] sm:$0xff]
          %v4565 = vld [vmem:[#allocation8 + $0x1788] sm:$0xff]
          %v4566 = vld [vmem:[#allocation8 + $0x1790] sm:$0xff]
          %v4567 = vld [vmem:[#allocation8 + $0x1798] sm:$0xff]
          %v4568 = vld [vmem:[#allocation8 + $0x17a0] sm:$0xff]
          %v4569 = vld [vmem:[#allocation8 + $0x17a8] sm:$0xff]
          %v4570 = vld [vmem:[#allocation8 + $0x17b0] sm:$0xff]
          %v4571 = vld [vmem:[#allocation8 + $0x17b8] sm:$0xff]
          %v4572 = vld [vmem:[#allocation8 + $0x17c0] sm:$0xff]
          %v4573 = vld [vmem:[#allocation8 + $0x17c8] sm:$0xff]
          %v4574 = vld [vmem:[#allocation8 + $0x17d0] sm:$0xff]
          %v4575 = vld [vmem:[#allocation8 + $0x17d8] sm:$0xff]
          %v4576 = vld [vmem:[#allocation8 + $0x17e0] sm:$0xff]
          %v4577 = vld [vmem:[#allocation8 + $0x17e8] sm:$0xff]
          %v4578 = vld [vmem:[#allocation8 + $0x17f0] sm:$0xff]
          %v4579 = vld [vmem:[#allocation8 + $0x17f8] sm:$0xff]
          %v4580 = vld [vmem:[#allocation8 + $0x1800] sm:$0xff]
          %v4581 = vld [vmem:[#allocation8 + $0x1808] sm:$0xff]
          %v4582 = vld [vmem:[#allocation8 + $0x1810] sm:$0xff]
          %v4583 = vld [vmem:[#allocation8 + $0x1818] sm:$0xff]
          %v4584 = vld [vmem:[#allocation8 + $0x1820] sm:$0xff]
          %v4585 = vld [vmem:[#allocation8 + $0x1828] sm:$0xff]
          %v4586 = vld [vmem:[#allocation8 + $0x1830] sm:$0xff]
          %v4587 = vld [vmem:[#allocation8 + $0x1838] sm:$0xff]
          %v4588 = vld [vmem:[#allocation8 + $0x1840] sm:$0xff]
          %v4589 = vld [vmem:[#allocation8 + $0x1848] sm:$0xff]
          %v4590 = vld [vmem:[#allocation8 + $0x1850] sm:$0xff]
          %v4591 = vld [vmem:[#allocation8 + $0x1858] sm:$0xff]
          %v4592 = vld [vmem:[#allocation8 + $0x1860] sm:$0xff]
          %v4593 = vld [vmem:[#allocation8 + $0x1868] sm:$0xff]
          %v4594 = vld [vmem:[#allocation8 + $0x1870] sm:$0xff]
          %v4595 = vld [vmem:[#allocation8 + $0x1878] sm:$0xff]
          %v4596 = vld [vmem:[#allocation8 + $0x1880] sm:$0xff]
          %v4597 = vld [vmem:[#allocation8 + $0x1888] sm:$0xff]
          %v4598 = vld [vmem:[#allocation8 + $0x1890] sm:$0xff]
          %v4599 = vld [vmem:[#allocation8 + $0x1898] sm:$0xff]
          %v4600 = vld [vmem:[#allocation8 + $0x18a0] sm:$0xff]
          %v4601 = vld [vmem:[#allocation8 + $0x18a8] sm:$0xff]
          %v4602 = vld [vmem:[#allocation8 + $0x18b0] sm:$0xff]
          %v4603 = vld [vmem:[#allocation8 + $0x18b8] sm:$0xff]
          %v4604 = vld [vmem:[#allocation8 + $0x18c0] sm:$0xff]
          %v4605 = vld [vmem:[#allocation8 + $0x18c8] sm:$0xff]
          %v4606 = vld [vmem:[#allocation8 + $0x18d0] sm:$0xff]
          %v4607 = vld [vmem:[#allocation8 + $0x18d8] sm:$0xff]
          %v4608 = vld [vmem:[#allocation8 + $0x18e0] sm:$0xff]
          %v4609 = vld [vmem:[#allocation8 + $0x18e8] sm:$0xff]
          %v4610 = vld [vmem:[#allocation8 + $0x18f0] sm:$0xff]
          %v4611 = vld [vmem:[#allocation8 + $0x18f8] sm:$0xff]
          %v4612 = vld [vmem:[#allocation8 + $0x1900] sm:$0xff]
          %v4613 = vld [vmem:[#allocation8 + $0x1908] sm:$0xff]
          %v4614 = vld [vmem:[#allocation8 + $0x1910] sm:$0xff]
          %v4615 = vld [vmem:[#allocation8 + $0x1918] sm:$0xff]
          %v4616 = vld [vmem:[#allocation8 + $0x1920] sm:$0xff]
          %v4617 = vld [vmem:[#allocation8 + $0x1928] sm:$0xff]
          %v4618 = vld [vmem:[#allocation8 + $0x1930] sm:$0xff]
          %v4619 = vld [vmem:[#allocation8 + $0x1938] sm:$0xff]
          %v4620 = vld [vmem:[#allocation8 + $0x1940] sm:$0xff]
          %v4621 = vld [vmem:[#allocation8 + $0x1948] sm:$0xff]
          %v4622 = vld [vmem:[#allocation8 + $0x1950] sm:$0xff]
          %v4623 = vld [vmem:[#allocation8 + $0x1958] sm:$0xff]
          %v4624 = vld [vmem:[#allocation8 + $0x1960] sm:$0xff]
          %v4625 = vld [vmem:[#allocation8 + $0x1968] sm:$0xff]
          %v4626 = vld [vmem:[#allocation8 + $0x1970] sm:$0xff]
          %v4627 = vld [vmem:[#allocation8 + $0x1978] sm:$0xff]
          %v4628 = vld [vmem:[#allocation8 + $0x1980] sm:$0xff]
          %v4629 = vld [vmem:[#allocation8 + $0x1988] sm:$0xff]
          %v4630 = vld [vmem:[#allocation8 + $0x1990] sm:$0xff]
          %v4631 = vld [vmem:[#allocation8 + $0x1998] sm:$0xff]
          %v4632 = vld [vmem:[#allocation8 + $0x19a0] sm:$0xff]
          %v4633 = vld [vmem:[#allocation8 + $0x19a8] sm:$0xff]
          %v4634 = vld [vmem:[#allocation8 + $0x19b0] sm:$0xff]
          %v4635 = vld [vmem:[#allocation8 + $0x19b8] sm:$0xff]
          %v4636 = vld [vmem:[#allocation8 + $0x19c0] sm:$0xff]
          %v4637 = vld [vmem:[#allocation8 + $0x19c8] sm:$0xff]
          %v4638 = vld [vmem:[#allocation8 + $0x19d0] sm:$0xff]
          %v4639 = vld [vmem:[#allocation8 + $0x19d8] sm:$0xff]
          %v4640 = vld [vmem:[#allocation8 + $0x19e0] sm:$0xff]
          %v4641 = vld [vmem:[#allocation8 + $0x19e8] sm:$0xff]
          %v4642 = vld [vmem:[#allocation8 + $0x19f0] sm:$0xff]
          %v4643 = vld [vmem:[#allocation8 + $0x19f8] sm:$0xff]
          %v4644 = vld [vmem:[#allocation8 + $0x1a00] sm:$0xff]
          %v4645 = vld [vmem:[#allocation8 + $0x1a08] sm:$0xff]
          %v4646 = vld [vmem:[#allocation8 + $0x1a10] sm:$0xff]
          %v4647 = vld [vmem:[#allocation8 + $0x1a18] sm:$0xff]
          %v4648 = vld [vmem:[#allocation8 + $0x1a20] sm:$0xff]
          %v4649 = vld [vmem:[#allocation8 + $0x1a28] sm:$0xff]
          %v4650 = vld [vmem:[#allocation8 + $0x1a30] sm:$0xff]
          %v4651 = vld [vmem:[#allocation8 + $0x1a38] sm:$0xff]
          %v4652 = vld [vmem:[#allocation8 + $0x1a40] sm:$0xff]
          %v4653 = vld [vmem:[#allocation8 + $0x1a48] sm:$0xff]
          %v4654 = vld [vmem:[#allocation8 + $0x1a50] sm:$0xff]
          %v4655 = vld [vmem:[#allocation8 + $0x1a58] sm:$0xff]
          %v4656 = vld [vmem:[#allocation8 + $0x1a60] sm:$0xff]
          %v4657 = vld [vmem:[#allocation8 + $0x1a68] sm:$0xff]
          %v4658 = vld [vmem:[#allocation8 + $0x1a70] sm:$0xff]
          %v4659 = vld [vmem:[#allocation8 + $0x1a78] sm:$0xff]
          %v4660 = vld [vmem:[#allocation8 + $0x1a80] sm:$0xff]
          %v4661 = vld [vmem:[#allocation8 + $0x1a88] sm:$0xff]
          %v4662 = vld [vmem:[#allocation8 + $0x1a90] sm:$0xff]
          %v4663 = vld [vmem:[#allocation8 + $0x1a98] sm:$0xff]
          %v4664 = vld [vmem:[#allocation8 + $0x1aa0] sm:$0xff]
          %v4665 = vld [vmem:[#allocation8 + $0x1aa8] sm:$0xff]
          %v4666 = vld [vmem:[#allocation8 + $0x1ab0] sm:$0xff]
          %v4667 = vld [vmem:[#allocation8 + $0x1ab8] sm:$0xff]
          %v4668 = vld [vmem:[#allocation8 + $0x1ac0] sm:$0xff]
          %v4669 = vld [vmem:[#allocation8 + $0x1ac8] sm:$0xff]
          %v4670 = vld [vmem:[#allocation8 + $0x1ad0] sm:$0xff]
          %v4671 = vld [vmem:[#allocation8 + $0x1ad8] sm:$0xff]
          %v4672 = vld [vmem:[#allocation8 + $0x1ae0] sm:$0xff]
          %v4673 = vld [vmem:[#allocation8 + $0x1ae8] sm:$0xff]
          %v4674 = vld [vmem:[#allocation8 + $0x1af0] sm:$0xff]
          %v4675 = vld [vmem:[#allocation8 + $0x1af8] sm:$0xff]
          %v4676 = vld [vmem:[#allocation8 + $0x1b00] sm:$0xff]
          %v4677 = vld [vmem:[#allocation8 + $0x1b08] sm:$0xff]
          %v4678 = vld [vmem:[#allocation8 + $0x1b10] sm:$0xff]
          %v4679 = vld [vmem:[#allocation8 + $0x1b18] sm:$0xff]
          %v4680 = vld [vmem:[#allocation8 + $0x1b20] sm:$0xff]
          %v4681 = vld [vmem:[#allocation8 + $0x1b28] sm:$0xff]
          %v4682 = vld [vmem:[#allocation8 + $0x1b30] sm:$0xff]
          %v4683 = vld [vmem:[#allocation8 + $0x1b38] sm:$0xff]
          %v4684 = vld [vmem:[#allocation8 + $0x1b40] sm:$0xff]
          %v4685 = vld [vmem:[#allocation8 + $0x1b48] sm:$0xff]
          %v4686 = vld [vmem:[#allocation8 + $0x1b50] sm:$0xff]
          %v4687 = vld [vmem:[#allocation8 + $0x1b58] sm:$0xff]
          %v4688 = vld [vmem:[#allocation8 + $0x1b60] sm:$0xff]
          %v4689 = vld [vmem:[#allocation8 + $0x1b68] sm:$0xff]
          %v4690 = vld [vmem:[#allocation8 + $0x1b70] sm:$0xff]
          %v4691 = vld [vmem:[#allocation8 + $0x1b78] sm:$0xff]
          %v4692 = vld [vmem:[#allocation8 + $0x1b80] sm:$0xff]
          %v4693 = vld [vmem:[#allocation8 + $0x1b88] sm:$0xff]
          %v4694 = vld [vmem:[#allocation8 + $0x1b90] sm:$0xff]
          %v4695 = vld [vmem:[#allocation8 + $0x1b98] sm:$0xff]
          %v4696 = vld [vmem:[#allocation8 + $0x1ba0] sm:$0xff]
          %v4697 = vld [vmem:[#allocation8 + $0x1ba8] sm:$0xff]
          %v4698 = vld [vmem:[#allocation8 + $0x1bb0] sm:$0xff]
          %v4699 = vld [vmem:[#allocation8 + $0x1bb8] sm:$0xff]
          %v4700 = vld [vmem:[#allocation8 + $0x1bc0] sm:$0xff]
          %v4701 = vld [vmem:[#allocation8 + $0x1bc8] sm:$0xff]
          %v4702 = vld [vmem:[#allocation8 + $0x1bd0] sm:$0xff]
          %v4703 = vld [vmem:[#allocation8 + $0x1bd8] sm:$0xff]
          %v4704 = vld [vmem:[#allocation8 + $0x1be0] sm:$0xff]
          %v4705 = vld [vmem:[#allocation8 + $0x1be8] sm:$0xff]
          %v4706 = vld [vmem:[#allocation8 + $0x1bf0] sm:$0xff]
          %v4707 = vld [vmem:[#allocation8 + $0x1bf8] sm:$0xff]
          %v4708 = vld [vmem:[#allocation8 + $0x1c00] sm:$0xff]
          %v4709 = vld [vmem:[#allocation8 + $0x1c08] sm:$0xff]
          %v4710 = vld [vmem:[#allocation8 + $0x1c10] sm:$0xff]
          %v4711 = vld [vmem:[#allocation8 + $0x1c18] sm:$0xff]
          %v4712 = vld [vmem:[#allocation8 + $0x1c20] sm:$0xff]
          %v4713 = vld [vmem:[#allocation8 + $0x1c28] sm:$0xff]
          %v4714 = vld [vmem:[#allocation8 + $0x1c30] sm:$0xff]
          %v4715 = vld [vmem:[#allocation8 + $0x1c38] sm:$0xff]
          %v4716 = vld [vmem:[#allocation8 + $0x1c40] sm:$0xff]
          %v4717 = vld [vmem:[#allocation8 + $0x1c48] sm:$0xff]
          %v4718 = vld [vmem:[#allocation8 + $0x1c50] sm:$0xff]
          %v4719 = vld [vmem:[#allocation8 + $0x1c58] sm:$0xff]
          %v4720 = vld [vmem:[#allocation8 + $0x1c60] sm:$0xff]
          %v4721 = vld [vmem:[#allocation8 + $0x1c68] sm:$0xff]
          %v4722 = vld [vmem:[#allocation8 + $0x1c70] sm:$0xff]
          %v4723 = vld [vmem:[#allocation8 + $0x1c78] sm:$0xff]
          %v4724 = vld [vmem:[#allocation8 + $0x1c80] sm:$0xff]
          %v4725 = vld [vmem:[#allocation8 + $0x1c88] sm:$0xff]
          %v4726 = vld [vmem:[#allocation8 + $0x1c90] sm:$0xff]
          %v4727 = vld [vmem:[#allocation8 + $0x1c98] sm:$0xff]
          %v4728 = vld [vmem:[#allocation8 + $0x1ca0] sm:$0xff]
          %v4729 = vld [vmem:[#allocation8 + $0x1ca8] sm:$0xff]
          %v4730 = vld [vmem:[#allocation8 + $0x1cb0] sm:$0xff]
          %v4731 = vld [vmem:[#allocation8 + $0x1cb8] sm:$0xff]
          %v4732 = vld [vmem:[#allocation8 + $0x1cc0] sm:$0xff]
          %v4733 = vld [vmem:[#allocation8 + $0x1cc8] sm:$0xff]
          %v4734 = vld [vmem:[#allocation8 + $0x1cd0] sm:$0xff]
          %v4735 = vld [vmem:[#allocation8 + $0x1cd8] sm:$0xff]
          %v4736 = vld [vmem:[#allocation8 + $0x1ce0] sm:$0xff]
          %v4737 = vld [vmem:[#allocation8 + $0x1ce8] sm:$0xff]
          %v4738 = vld [vmem:[#allocation8 + $0x1cf0] sm:$0xff]
          %v4739 = vld [vmem:[#allocation8 + $0x1cf8] sm:$0xff]
          %v4740 = vld [vmem:[#allocation8 + $0x1d00] sm:$0xff]
          %v4741 = vld [vmem:[#allocation8 + $0x1d08] sm:$0xff]
          %v4742 = vld [vmem:[#allocation8 + $0x1d10] sm:$0xff]
          %v4743 = vld [vmem:[#allocation8 + $0x1d18] sm:$0xff]
          %v4744 = vld [vmem:[#allocation8 + $0x1d20] sm:$0xff]
          %v4745 = vld [vmem:[#allocation8 + $0x1d28] sm:$0xff]
          %v4746 = vld [vmem:[#allocation8 + $0x1d30] sm:$0xff]
          %v4747 = vld [vmem:[#allocation8 + $0x1d38] sm:$0xff]
          %v4748 = vld [vmem:[#allocation8 + $0x1d40] sm:$0xff]
          %v4749 = vld [vmem:[#allocation8 + $0x1d48] sm:$0xff]
          %v4750 = vld [vmem:[#allocation8 + $0x1d50] sm:$0xff]
          %v4751 = vld [vmem:[#allocation8 + $0x1d58] sm:$0xff]
          %v4752 = vld [vmem:[#allocation8 + $0x1d60] sm:$0xff]
          %v4753 = vld [vmem:[#allocation8 + $0x1d68] sm:$0xff]
          %v4754 = vld [vmem:[#allocation8 + $0x1d70] sm:$0xff]
          %v4755 = vld [vmem:[#allocation8 + $0x1d78] sm:$0xff]
          %v4756 = vld [vmem:[#allocation8 + $0x1d80] sm:$0xff]
          %v4757 = vld [vmem:[#allocation8 + $0x1d88] sm:$0xff]
          %v4758 = vld [vmem:[#allocation8 + $0x1d90] sm:$0xff]
          %v4759 = vld [vmem:[#allocation8 + $0x1d98] sm:$0xff]
          %v4760 = vld [vmem:[#allocation8 + $0x1da0] sm:$0xff]
          %v4761 = vld [vmem:[#allocation8 + $0x1da8] sm:$0xff]
          %v4762 = vld [vmem:[#allocation8 + $0x1db0] sm:$0xff]
          %v4763 = vld [vmem:[#allocation8 + $0x1db8] sm:$0xff]
          %v4764 = vld [vmem:[#allocation8 + $0x1dc0] sm:$0xff]
          %v4765 = vld [vmem:[#allocation8 + $0x1dc8] sm:$0xff]
          %v4766 = vld [vmem:[#allocation8 + $0x1dd0] sm:$0xff]
          %v4767 = vld [vmem:[#allocation8 + $0x1dd8] sm:$0xff]
          %v4768 = vld [vmem:[#allocation8 + $0x1de0] sm:$0xff]
          %v4769 = vld [vmem:[#allocation8 + $0x1de8] sm:$0xff]
          %v4770 = vld [vmem:[#allocation8 + $0x1df0] sm:$0xff]
          %v4771 = vld [vmem:[#allocation8 + $0x1df8] sm:$0xff]
          %v4772 = vld [vmem:[#allocation8 + $0x1e00] sm:$0xff]
          %v4773 = vld [vmem:[#allocation8 + $0x1e08] sm:$0xff]
          %v4774 = vld [vmem:[#allocation8 + $0x1e10] sm:$0xff]
          %v4775 = vld [vmem:[#allocation8 + $0x1e18] sm:$0xff]
          %v4776 = vld [vmem:[#allocation8 + $0x1e20] sm:$0xff]
          %v4777 = vld [vmem:[#allocation8 + $0x1e28] sm:$0xff]
          %v4778 = vld [vmem:[#allocation8 + $0x1e30] sm:$0xff]
          %v4779 = vld [vmem:[#allocation8 + $0x1e38] sm:$0xff]
          %v4780 = vld [vmem:[#allocation8 + $0x1e40] sm:$0xff]
          %v4781 = vld [vmem:[#allocation8 + $0x1e48] sm:$0xff]
          %v4782 = vld [vmem:[#allocation8 + $0x1e50] sm:$0xff]
          %v4783 = vld [vmem:[#allocation8 + $0x1e58] sm:$0xff]
          %v4784 = vld [vmem:[#allocation8 + $0x1e60] sm:$0xff]
          %v4785 = vld [vmem:[#allocation8 + $0x1e68] sm:$0xff]
          %v4786 = vld [vmem:[#allocation8 + $0x1e70] sm:$0xff]
          %v4787 = vld [vmem:[#allocation8 + $0x1e78] sm:$0xff]
          %v4788 = vld [vmem:[#allocation8 + $0x1e80] sm:$0xff]
          %v4789 = vld [vmem:[#allocation8 + $0x1e88] sm:$0xff]
          %v4790 = vld [vmem:[#allocation8 + $0x1e90] sm:$0xff]
          %v4791 = vld [vmem:[#allocation8 + $0x1e98] sm:$0xff]
          %v4792 = vld [vmem:[#allocation8 + $0x1ea0] sm:$0xff]
          %v4793 = vld [vmem:[#allocation8 + $0x1ea8] sm:$0xff]
          %v4794 = vld [vmem:[#allocation8 + $0x1eb0] sm:$0xff]
          %v4795 = vld [vmem:[#allocation8 + $0x1eb8] sm:$0xff]
          %v4796 = vld [vmem:[#allocation8 + $0x1ec0] sm:$0xff]
          %v4797 = vld [vmem:[#allocation8 + $0x1ec8] sm:$0xff]
          %v4798 = vld [vmem:[#allocation8 + $0x1ed0] sm:$0xff]
          %v4799 = vld [vmem:[#allocation8 + $0x1ed8] sm:$0xff]
          %v4800 = vld [vmem:[#allocation8 + $0x1ee0] sm:$0xff]
          %v4801 = vld [vmem:[#allocation8 + $0x1ee8] sm:$0xff]
          %v4802 = vld [vmem:[#allocation8 + $0x1ef0] sm:$0xff]
          %v4803 = vld [vmem:[#allocation8 + $0x1ef8] sm:$0xff]
          %v4804 = vld [vmem:[#allocation8 + $0x1f00] sm:$0xff]
          %v4805 = vld [vmem:[#allocation8 + $0x1f08] sm:$0xff]
          %v4806 = vld [vmem:[#allocation8 + $0x1f10] sm:$0xff]
          %v4807 = vld [vmem:[#allocation8 + $0x1f18] sm:$0xff]
          %v4808 = vld [vmem:[#allocation8 + $0x1f20] sm:$0xff]
          %v4809 = vld [vmem:[#allocation8 + $0x1f28] sm:$0xff]
          %v4810 = vld [vmem:[#allocation8 + $0x1f30] sm:$0xff]
          %v4811 = vld [vmem:[#allocation8 + $0x1f38] sm:$0xff]
          %v4812 = vld [vmem:[#allocation8 + $0x1f40] sm:$0xff]
          %v4813 = vld [vmem:[#allocation8 + $0x1f48] sm:$0xff]
          %v4814 = vld [vmem:[#allocation8 + $0x1f50] sm:$0xff]
          %v4815 = vld [vmem:[#allocation8 + $0x1f58] sm:$0xff]
          %v4816 = vld [vmem:[#allocation8 + $0x1f60] sm:$0xff]
          %v4817 = vld [vmem:[#allocation8 + $0x1f68] sm:$0xff]
          %v4818 = vld [vmem:[#allocation8 + $0x1f70] sm:$0xff]
          %v4819 = vld [vmem:[#allocation8 + $0x1f78] sm:$0xff]
          %v4820 = vld [vmem:[#allocation8 + $0x1f80] sm:$0xff]
          %v4821 = vld [vmem:[#allocation8 + $0x1f88] sm:$0xff]
          %v4822 = vld [vmem:[#allocation8 + $0x1f90] sm:$0xff]
          %v4823 = vld [vmem:[#allocation8 + $0x1f98] sm:$0xff]
          %v4824 = vld [vmem:[#allocation8 + $0x1fa0] sm:$0xff]
          %v4825 = vld [vmem:[#allocation8 + $0x1fa8] sm:$0xff]
          %v4826 = vld [vmem:[#allocation8 + $0x1fb0] sm:$0xff]
          %v4827 = vld [vmem:[#allocation8 + $0x1fb8] sm:$0xff]
          %v4828 = vld [vmem:[#allocation8 + $0x1fc0] sm:$0xff]
          %v4829 = vld [vmem:[#allocation8 + $0x1fc8] sm:$0xff]
          %v4830 = vld [vmem:[#allocation8 + $0x1fd0] sm:$0xff]
          %v4831 = vld [vmem:[#allocation8 + $0x1fd8] sm:$0xff]
          %v4832 = vld [vmem:[#allocation8 + $0x1fe0] sm:$0xff]
          %v4833 = vld [vmem:[#allocation8 + $0x1fe8] sm:$0xff]
          %v4834 = vld [vmem:[#allocation8 + $0x1ff0] sm:$0xff]
          %v4835 = vld [vmem:[#allocation8 + $0x1ff8] sm:$0xff]
          %v4836 = vld [vmem:[#allocation8 + $0x2000] sm:$0xff]
          %v4837 = vld [vmem:[#allocation8 + $0x2008] sm:$0xff]
          %v4838 = vld [vmem:[#allocation8 + $0x2010] sm:$0xff]
          %v4839 = vld [vmem:[#allocation8 + $0x2018] sm:$0xff]
          %v4840 = vld [vmem:[#allocation8 + $0x2020] sm:$0xff]
          %v4841 = vld [vmem:[#allocation8 + $0x2028] sm:$0xff]
          %v4842 = vld [vmem:[#allocation8 + $0x2030] sm:$0xff]
          %v4843 = vld [vmem:[#allocation8 + $0x2038] sm:$0xff]
          %v4844 = vld [vmem:[#allocation8 + $0x2040] sm:$0xff]
          %v4845 = vld [vmem:[#allocation8 + $0x2048] sm:$0xff]
          %v4846 = vld [vmem:[#allocation8 + $0x2050] sm:$0xff]
          %v4847 = vld [vmem:[#allocation8 + $0x2058] sm:$0xff]
          %v4848 = vld [vmem:[#allocation8 + $0x2060] sm:$0xff]
          %v4849 = vld [vmem:[#allocation8 + $0x2068] sm:$0xff]
          %v4850 = vld [vmem:[#allocation8 + $0x2070] sm:$0xff]
          %v4851 = vld [vmem:[#allocation8 + $0x2078] sm:$0xff]
          %v4852 = vld [vmem:[#allocation8 + $0x2080] sm:$0xff]
          %v4853 = vld [vmem:[#allocation8 + $0x2088] sm:$0xff]
          %v4854 = vld [vmem:[#allocation8 + $0x2090] sm:$0xff]
          %v4855 = vld [vmem:[#allocation8 + $0x2098] sm:$0xff]
          %v4856 = vld [vmem:[#allocation8 + $0x20a0] sm:$0xff]
          %v4857 = vld [vmem:[#allocation8 + $0x20a8] sm:$0xff]
          %v4858 = vld [vmem:[#allocation8 + $0x20b0] sm:$0xff]
          %v4859 = vld [vmem:[#allocation8 + $0x20b8] sm:$0xff]
          %v4860 = vld [vmem:[#allocation8 + $0x20c0] sm:$0xff]
          %v4861 = vld [vmem:[#allocation8 + $0x20c8] sm:$0xff]
          %v4862 = vld [vmem:[#allocation8 + $0x20d0] sm:$0xff]
          %v4863 = vld [vmem:[#allocation8 + $0x20d8] sm:$0xff]
          %v4864 = vld [vmem:[#allocation8 + $0x20e0] sm:$0xff]
          %v4865 = vld [vmem:[#allocation8 + $0x20e8] sm:$0xff]
          %v4866 = vld [vmem:[#allocation8 + $0x20f0] sm:$0xff]
          %v4867 = vld [vmem:[#allocation8 + $0x20f8] sm:$0xff]
          %v4868 = vld [vmem:[#allocation8 + $0x2100] sm:$0xff]
          %v4869 = vld [vmem:[#allocation8 + $0x2108] sm:$0xff]
          %v4870 = vld [vmem:[#allocation8 + $0x2110] sm:$0xff]
          %v4871 = vld [vmem:[#allocation8 + $0x2118] sm:$0xff]
          %v4872 = vld [vmem:[#allocation8 + $0x2120] sm:$0xff]
          %v4873 = vld [vmem:[#allocation8 + $0x2128] sm:$0xff]
          %v4874 = vld [vmem:[#allocation8 + $0x2130] sm:$0xff]
          %v4875 = vld [vmem:[#allocation8 + $0x2138] sm:$0xff]
          %v4876 = vld [vmem:[#allocation8 + $0x2140] sm:$0xff]
          %v4877 = vld [vmem:[#allocation8 + $0x2148] sm:$0xff]
          %v4878 = vld [vmem:[#allocation8 + $0x2150] sm:$0xff]
          %v4879 = vld [vmem:[#allocation8 + $0x2158] sm:$0xff]
          %v4880 = vld [vmem:[#allocation8 + $0x2160] sm:$0xff]
          %v4881 = vld [vmem:[#allocation8 + $0x2168] sm:$0xff]
          %v4882 = vld [vmem:[#allocation8 + $0x2170] sm:$0xff]
          %v4883 = vld [vmem:[#allocation8 + $0x2178] sm:$0xff]
          %v4884 = vld [vmem:[#allocation8 + $0x2180] sm:$0xff]
          %v4885 = vld [vmem:[#allocation8 + $0x2188] sm:$0xff]
          %v4886 = vld [vmem:[#allocation8 + $0x2190] sm:$0xff]
          %v4887 = vld [vmem:[#allocation8 + $0x2198] sm:$0xff]
          %v4888 = vld [vmem:[#allocation8 + $0x21a0] sm:$0xff]
          %v4889 = vld [vmem:[#allocation8 + $0x21a8] sm:$0xff]
          %v4890 = vld [vmem:[#allocation8 + $0x21b0] sm:$0xff]
          %v4891 = vld [vmem:[#allocation8 + $0x21b8] sm:$0xff]
          %v4892 = vld [vmem:[#allocation8 + $0x21c0] sm:$0xff]
          %v4893 = vld [vmem:[#allocation8 + $0x21c8] sm:$0xff]
          %v4894 = vld [vmem:[#allocation8 + $0x21d0] sm:$0xff]
          %v4895 = vld [vmem:[#allocation8 + $0x21d8] sm:$0xff]
          %v4896 = vld [vmem:[#allocation8 + $0x21e0] sm:$0xff]
          %v4897 = vld [vmem:[#allocation8 + $0x21e8] sm:$0xff]
          %v4898 = vld [vmem:[#allocation8 + $0x21f0] sm:$0xff]
          %v4899 = vld [vmem:[#allocation8 + $0x21f8] sm:$0xff]
          %v4900 = vld [vmem:[#allocation8 + $0x2200] sm:$0xff]
          %v4901 = vld [vmem:[#allocation8 + $0x2208] sm:$0xff]
          %v4902 = vld [vmem:[#allocation8 + $0x2210] sm:$0xff]
          %v4903 = vld [vmem:[#allocation8 + $0x2218] sm:$0xff]
          %v4904 = vld [vmem:[#allocation8 + $0x2220] sm:$0xff]
          %v4905 = vld [vmem:[#allocation8 + $0x2228] sm:$0xff]
          %v4906 = vld [vmem:[#allocation8 + $0x2230] sm:$0xff]
          %v4907 = vld [vmem:[#allocation8 + $0x2238] sm:$0xff]
          %v4908 = vld [vmem:[#allocation8 + $0x2240] sm:$0xff]
          %v4909 = vld [vmem:[#allocation8 + $0x2248] sm:$0xff]
          %v4910 = vld [vmem:[#allocation8 + $0x2250] sm:$0xff]
          %v4911 = vld [vmem:[#allocation8 + $0x2258] sm:$0xff]
          %v4912 = vld [vmem:[#allocation8 + $0x2260] sm:$0xff]
          %v4913 = vld [vmem:[#allocation8 + $0x2268] sm:$0xff]
          %v4914 = vld [vmem:[#allocation8 + $0x2270] sm:$0xff]
          %v4915 = vld [vmem:[#allocation8 + $0x2278] sm:$0xff]
          %v4916 = vld [vmem:[#allocation8 + $0x2280] sm:$0xff]
          %v4917 = vld [vmem:[#allocation8 + $0x2288] sm:$0xff]
          %v4918 = vld [vmem:[#allocation8 + $0x2290] sm:$0xff]
          %v4919 = vld [vmem:[#allocation8 + $0x2298] sm:$0xff]
          %v4920 = vld [vmem:[#allocation8 + $0x22a0] sm:$0xff]
          %v4921 = vld [vmem:[#allocation8 + $0x22a8] sm:$0xff]
          %v4922 = vld [vmem:[#allocation8 + $0x22b0] sm:$0xff]
          %v4923 = vld [vmem:[#allocation8 + $0x22b8] sm:$0xff]
          %v4924 = vld [vmem:[#allocation8 + $0x22c0] sm:$0xff]
          %v4925 = vld [vmem:[#allocation8 + $0x22c8] sm:$0xff]
          %v4926 = vld [vmem:[#allocation8 + $0x22d0] sm:$0xff]
          %v4927 = vld [vmem:[#allocation8 + $0x22d8] sm:$0xff]
          %v4928 = vld [vmem:[#allocation8 + $0x22e0] sm:$0xff]
          %v4929 = vld [vmem:[#allocation8 + $0x22e8] sm:$0xff]
          %v4930 = vld [vmem:[#allocation8 + $0x22f0] sm:$0xff]
          %v4931 = vld [vmem:[#allocation8 + $0x22f8] sm:$0xff]
          %v4932 = vld [vmem:[#allocation8 + $0x2300] sm:$0xff]
          %v4933 = vld [vmem:[#allocation8 + $0x2308] sm:$0xff]
          %v4934 = vld [vmem:[#allocation8 + $0x2310] sm:$0xff]
          %v4935 = vld [vmem:[#allocation8 + $0x2318] sm:$0xff]
          %v4936 = vld [vmem:[#allocation8 + $0x2320] sm:$0xff]
          %v4937 = vld [vmem:[#allocation8 + $0x2328] sm:$0xff]
          %v4938 = vld [vmem:[#allocation8 + $0x2330] sm:$0xff]
          %v4939 = vld [vmem:[#allocation8 + $0x2338] sm:$0xff]
          %v4940 = vld [vmem:[#allocation8 + $0x2340] sm:$0xff]
          %v4941 = vld [vmem:[#allocation8 + $0x2348] sm:$0xff]
          %v4942 = vld [vmem:[#allocation8 + $0x2350] sm:$0xff]
          %v4943 = vld [vmem:[#allocation8 + $0x2358] sm:$0xff]
          %v4944 = vld [vmem:[#allocation8 + $0x2360] sm:$0xff]
          %v4945 = vld [vmem:[#allocation8 + $0x2368] sm:$0xff]
          %v4946 = vld [vmem:[#allocation8 + $0x2370] sm:$0xff]
          %v4947 = vld [vmem:[#allocation8 + $0x2378] sm:$0xff]
          %v4948 = vld [vmem:[#allocation8 + $0x2380] sm:$0xff]
          %v4949 = vld [vmem:[#allocation8 + $0x2388] sm:$0xff]
          %v4950 = vld [vmem:[#allocation8 + $0x2390] sm:$0xff]
          %v4951 = vld [vmem:[#allocation8 + $0x2398] sm:$0xff]
          %v4952 = vld [vmem:[#allocation8 + $0x23a0] sm:$0xff]
          %v4953 = vld [vmem:[#allocation8 + $0x23a8] sm:$0xff]
          %v4954 = vld [vmem:[#allocation8 + $0x23b0] sm:$0xff]
          %v4955 = vld [vmem:[#allocation8 + $0x23b8] sm:$0xff]
          %v4956 = vld [vmem:[#allocation8 + $0x23c0] sm:$0xff]
          %v4957 = vld [vmem:[#allocation8 + $0x23c8] sm:$0xff]
          %v4958 = vld [vmem:[#allocation8 + $0x23d0] sm:$0xff]
          %v4959 = vld [vmem:[#allocation8 + $0x23d8] sm:$0xff]
          %v4960 = vld [vmem:[#allocation8 + $0x23e0] sm:$0xff]
          %v4961 = vld [vmem:[#allocation8 + $0x23e8] sm:$0xff]
          %v4962 = vld [vmem:[#allocation8 + $0x23f0] sm:$0xff]
          %v4963 = vld [vmem:[#allocation8 + $0x23f8] sm:$0xff]
          %v4964 = vld [vmem:[#allocation8 + $0x2400] sm:$0xff]
          %v4965 = vld [vmem:[#allocation8 + $0x2408] sm:$0xff]
          %v4966 = vld [vmem:[#allocation8 + $0x2410] sm:$0xff]
          %v4967 = vld [vmem:[#allocation8 + $0x2418] sm:$0xff]
          %v4968 = vld [vmem:[#allocation8 + $0x2420] sm:$0xff]
          %v4969 = vld [vmem:[#allocation8 + $0x2428] sm:$0xff]
          %v4970 = vld [vmem:[#allocation8 + $0x2430] sm:$0xff]
          %v4971 = vld [vmem:[#allocation8 + $0x2438] sm:$0xff]
          %v4972 = vld [vmem:[#allocation8 + $0x2440] sm:$0xff]
          %v4973 = vld [vmem:[#allocation8 + $0x2448] sm:$0xff]
          %v4974 = vld [vmem:[#allocation8 + $0x2450] sm:$0xff]
          %v4975 = vld [vmem:[#allocation8 + $0x2458] sm:$0xff]
          %v4976 = vld [vmem:[#allocation8 + $0x2460] sm:$0xff]
          %v4977 = vld [vmem:[#allocation8 + $0x2468] sm:$0xff]
          %v4978 = vld [vmem:[#allocation8 + $0x2470] sm:$0xff]
          %v4979 = vld [vmem:[#allocation8 + $0x2478] sm:$0xff]
          %v4980 = vld [vmem:[#allocation8 + $0x2480] sm:$0xff]
          %v4981 = vld [vmem:[#allocation8 + $0x2488] sm:$0xff]
          %v4982 = vld [vmem:[#allocation8 + $0x2490] sm:$0xff]
          %v4983 = vld [vmem:[#allocation8 + $0x2498] sm:$0xff]
          %v4984 = vld [vmem:[#allocation8 + $0x24a0] sm:$0xff]
          %v4985 = vld [vmem:[#allocation8 + $0x24a8] sm:$0xff]
          %v4986 = vld [vmem:[#allocation8 + $0x24b0] sm:$0xff]
          %v4987 = vld [vmem:[#allocation8 + $0x24b8] sm:$0xff]
          %v4988 = vld [vmem:[#allocation8 + $0x24c0] sm:$0xff]
          %v4989 = vld [vmem:[#allocation8 + $0x24c8] sm:$0xff]
          %v4990 = vld [vmem:[#allocation8 + $0x24d0] sm:$0xff]
          %v4991 = vld [vmem:[#allocation8 + $0x24d8] sm:$0xff]
          %v4992 = vld [vmem:[#allocation8 + $0x24e0] sm:$0xff]
          %v4993 = vld [vmem:[#allocation8 + $0x24e8] sm:$0xff]
          %v4994 = vld [vmem:[#allocation8 + $0x24f0] sm:$0xff]
          %v4995 = vld [vmem:[#allocation8 + $0x24f8] sm:$0xff]
          %v4996 = vld [vmem:[#allocation8 + $0x2500] sm:$0xff]
          %v4997 = vld [vmem:[#allocation8 + $0x2508] sm:$0xff]
          %v4998 = vld [vmem:[#allocation8 + $0x2510] sm:$0xff]
          %v4999 = vld [vmem:[#allocation8 + $0x2518] sm:$0xff]
          %v5000 = vld [vmem:[#allocation8 + $0x2520] sm:$0xff]
          %v5001 = vld [vmem:[#allocation8 + $0x2528] sm:$0xff]
          %v5002 = vld [vmem:[#allocation8 + $0x2530] sm:$0xff]
          %v5003 = vld [vmem:[#allocation8 + $0x2538] sm:$0xff]
          %v5004 = vld [vmem:[#allocation8 + $0x2540] sm:$0xff]
          %v5005 = vld [vmem:[#allocation8 + $0x2548] sm:$0xff]
          %v5006 = vld [vmem:[#allocation8 + $0x2550] sm:$0xff]
          %v5007 = vld [vmem:[#allocation8 + $0x2558] sm:$0xff]
          %v5008 = vld [vmem:[#allocation8 + $0x2560] sm:$0xff]
          %v5009 = vld [vmem:[#allocation8 + $0x2568] sm:$0xff]
          %v5010 = vld [vmem:[#allocation8 + $0x2570] sm:$0xff]
          %v5011 = vld [vmem:[#allocation8 + $0x2578] sm:$0xff]
          %v5012 = vld [vmem:[#allocation8 + $0x2580] sm:$0xff]
          %v5013 = vld [vmem:[#allocation8 + $0x2588] sm:$0xff]
          %v5014 = vld [vmem:[#allocation8 + $0x2590] sm:$0xff]
          %v5015 = vld [vmem:[#allocation8 + $0x2598] sm:$0xff]
          %v5016 = vld [vmem:[#allocation8 + $0x25a0] sm:$0xff]
          %v5017 = vld [vmem:[#allocation8 + $0x25a8] sm:$0xff]
          %v5018 = vld [vmem:[#allocation8 + $0x25b0] sm:$0xff]
          %v5019 = vld [vmem:[#allocation8 + $0x25b8] sm:$0xff]
          %v5020 = vld [vmem:[#allocation8 + $0x25c0] sm:$0xff]
          %v5021 = vld [vmem:[#allocation8 + $0x25c8] sm:$0xff]
          %v5022 = vld [vmem:[#allocation8 + $0x25d0] sm:$0xff]
          %v5023 = vld [vmem:[#allocation8 + $0x25d8] sm:$0xff]
          %v5024 = vld [vmem:[#allocation8 + $0x25e0] sm:$0xff]
          %v5025 = vld [vmem:[#allocation8 + $0x25e8] sm:$0xff]
          %v5026 = vld [vmem:[#allocation8 + $0x25f0] sm:$0xff]
          %v5027 = vld [vmem:[#allocation8 + $0x25f8] sm:$0xff]
          %v5028 = vld [vmem:[#allocation8 + $0x2600] sm:$0xff]
          %v5029 = vld [vmem:[#allocation8 + $0x2608] sm:$0xff]
          %v5030 = vld [vmem:[#allocation8 + $0x2610] sm:$0xff]
          %v5031 = vld [vmem:[#allocation8 + $0x2618] sm:$0xff]
          %v5032 = vld [vmem:[#allocation8 + $0x2620] sm:$0xff]
          %v5033 = vld [vmem:[#allocation8 + $0x2628] sm:$0xff]
          %v5034 = vld [vmem:[#allocation8 + $0x2630] sm:$0xff]
          %v5035 = vld [vmem:[#allocation8 + $0x2638] sm:$0xff]
          %v5036 = vld [vmem:[#allocation8 + $0x2640] sm:$0xff]
          %v5037 = vld [vmem:[#allocation8 + $0x2648] sm:$0xff]
          %v5038 = vld [vmem:[#allocation8 + $0x2650] sm:$0xff]
          %v5039 = vld [vmem:[#allocation8 + $0x2658] sm:$0xff]
          %v5040 = vld [vmem:[#allocation8 + $0x2660] sm:$0xff]
          %v5041 = vld [vmem:[#allocation8 + $0x2668] sm:$0xff]
          %v5042 = vld [vmem:[#allocation8 + $0x2670] sm:$0xff]
          %v5043 = vld [vmem:[#allocation8 + $0x2678] sm:$0xff]
          %v5044 = vld [vmem:[#allocation8 + $0x2680] sm:$0xff]
          %v5045 = vld [vmem:[#allocation8 + $0x2688] sm:$0xff]
          %v5046 = vld [vmem:[#allocation8 + $0x2690] sm:$0xff]
          %v5047 = vld [vmem:[#allocation8 + $0x2698] sm:$0xff]
          %v5048 = vld [vmem:[#allocation8 + $0x26a0] sm:$0xff]
          %v5049 = vld [vmem:[#allocation8 + $0x26a8] sm:$0xff]
          %v5050 = vld [vmem:[#allocation8 + $0x26b0] sm:$0xff]
          %v5051 = vld [vmem:[#allocation8 + $0x26b8] sm:$0xff]
          %v5052 = vld [vmem:[#allocation8 + $0x26c0] sm:$0xff]
          %v5053 = vld [vmem:[#allocation8 + $0x26c8] sm:$0xff]
          %v5054 = vld [vmem:[#allocation8 + $0x26d0] sm:$0xff]
          %v5055 = vld [vmem:[#allocation8 + $0x26d8] sm:$0xff]
          %v5056 = vld [vmem:[#allocation8 + $0x26e0] sm:$0xff]
          %v5057 = vld [vmem:[#allocation8 + $0x26e8] sm:$0xff]
          %v5058 = vld [vmem:[#allocation8 + $0x26f0] sm:$0xff]
          %v5059 = vld [vmem:[#allocation8 + $0x26f8] sm:$0xff]
          %v5060 = vld [vmem:[#allocation8 + $0x2700] sm:$0xff]
          %v5061 = vld [vmem:[#allocation8 + $0x2708] sm:$0xff]
          %v5062 = vld [vmem:[#allocation8 + $0x2710] sm:$0xff]
          %v5063 = vld [vmem:[#allocation8 + $0x2718] sm:$0xff]
          %v5064 = vld [vmem:[#allocation8 + $0x2720] sm:$0xff]
          %v5065 = vld [vmem:[#allocation8 + $0x2728] sm:$0xff]
          %v5066 = vld [vmem:[#allocation8 + $0x2730] sm:$0xff]
          %v5067 = vld [vmem:[#allocation8 + $0x2738] sm:$0xff]
          %v5068 = vld [vmem:[#allocation8 + $0x2740] sm:$0xff]
          %v5069 = vld [vmem:[#allocation8 + $0x2748] sm:$0xff]
          %v5070 = vld [vmem:[#allocation8 + $0x2750] sm:$0xff]
          %v5071 = vld [vmem:[#allocation8 + $0x2758] sm:$0xff]
          %v5072 = vld [vmem:[#allocation8 + $0x2760] sm:$0xff]
          %v5073 = vld [vmem:[#allocation8 + $0x2768] sm:$0xff]
          %v5074 = vld [vmem:[#allocation8 + $0x2770] sm:$0xff]
          %v5075 = vld [vmem:[#allocation8 + $0x2778] sm:$0xff]
          %v5076 = vld [vmem:[#allocation8 + $0x2780] sm:$0xff]
          %v5077 = vld [vmem:[#allocation8 + $0x2788] sm:$0xff]
          %v5078 = vld [vmem:[#allocation8 + $0x2790] sm:$0xff]
          %v5079 = vld [vmem:[#allocation8 + $0x2798] sm:$0xff]
          %v5080 = vld [vmem:[#allocation8 + $0x27a0] sm:$0xff]
          %v5081 = vld [vmem:[#allocation8 + $0x27a8] sm:$0xff]
          %v5082 = vld [vmem:[#allocation8 + $0x27b0] sm:$0xff]
          %v5083 = vld [vmem:[#allocation8 + $0x27b8] sm:$0xff]
          %v5084 = vld [vmem:[#allocation8 + $0x27c0] sm:$0xff]
          %v5085 = vld [vmem:[#allocation8 + $0x27c8] sm:$0xff]
          %v5086 = vld [vmem:[#allocation8 + $0x27d0] sm:$0xff]
          %v5087 = vld [vmem:[#allocation8 + $0x27d8] sm:$0xff]
          %v5088 = vld [vmem:[#allocation8 + $0x27e0] sm:$0xff]
          %v5089 = vld [vmem:[#allocation8 + $0x27e8] sm:$0xff]
          %v5090 = vld [vmem:[#allocation8 + $0x27f0] sm:$0xff]
          %v5091 = vld [vmem:[#allocation8 + $0x27f8] sm:$0xff]
          %v5092 = vld [vmem:[#allocation8 + $0x2800] sm:$0xff]
          %v5093 = vld [vmem:[#allocation8 + $0x2808] sm:$0xff]
          %v5094 = vld [vmem:[#allocation8 + $0x2810] sm:$0xff]
          %v5095 = vld [vmem:[#allocation8 + $0x2818] sm:$0xff]
          %v5096 = vld [vmem:[#allocation8 + $0x2820] sm:$0xff]
          %v5097 = vld [vmem:[#allocation8 + $0x2828] sm:$0xff]
          %v5098 = vld [vmem:[#allocation8 + $0x2830] sm:$0xff]
          %v5099 = vld [vmem:[#allocation8 + $0x2838] sm:$0xff]
          %v5100 = vld [vmem:[#allocation8 + $0x2840] sm:$0xff]
          %v5101 = vld [vmem:[#allocation8 + $0x2848] sm:$0xff]
          %v5102 = vld [vmem:[#allocation8 + $0x2850] sm:$0xff]
          %v5103 = vld [vmem:[#allocation8 + $0x2858] sm:$0xff]
          %v5104 = vld [vmem:[#allocation8 + $0x2860] sm:$0xff]
          %v5105 = vld [vmem:[#allocation8 + $0x2868] sm:$0xff]
          %v5106 = vld [vmem:[#allocation8 + $0x2870] sm:$0xff]
          %v5107 = vld [vmem:[#allocation8 + $0x2878] sm:$0xff]
          %v5108 = vld [vmem:[#allocation8 + $0x2880] sm:$0xff]
          %v5109 = vld [vmem:[#allocation8 + $0x2888] sm:$0xff]
          %v5110 = vld [vmem:[#allocation8 + $0x2890] sm:$0xff]
          %v5111 = vld [vmem:[#allocation8 + $0x2898] sm:$0xff]
          %v5112 = vld [vmem:[#allocation8 + $0x28a0] sm:$0xff]
          %v5113 = vld [vmem:[#allocation8 + $0x28a8] sm:$0xff]
          %v5114 = vld [vmem:[#allocation8 + $0x28b0] sm:$0xff]
          %v5115 = vld [vmem:[#allocation8 + $0x28b8] sm:$0xff]
          %v5116 = vld [vmem:[#allocation8 + $0x28c0] sm:$0xff]
          %v5117 = vld [vmem:[#allocation8 + $0x28c8] sm:$0xff]
          %v5118 = vld [vmem:[#allocation8 + $0x28d0] sm:$0xff]
          %v5119 = vld [vmem:[#allocation8 + $0x28d8] sm:$0xff]
          %v5120 = vld [vmem:[#allocation8 + $0x28e0] sm:$0xff]
          %v5121 = vld [vmem:[#allocation8 + $0x28e8] sm:$0xff]
          %v5122 = vld [vmem:[#allocation8 + $0x28f0] sm:$0xff]
          %v5123 = vld [vmem:[#allocation8 + $0x28f8] sm:$0xff]
          %v5124 = vld [vmem:[#allocation8 + $0x2900] sm:$0xff]
          %v5125 = vld [vmem:[#allocation8 + $0x2908] sm:$0xff]
          %v5126 = vld [vmem:[#allocation8 + $0x2910] sm:$0xff]
          %v5127 = vld [vmem:[#allocation8 + $0x2918] sm:$0xff]
          %v5128 = vld [vmem:[#allocation8 + $0x2920] sm:$0xff]
          %v5129 = vld [vmem:[#allocation8 + $0x2928] sm:$0xff]
          %v5130 = vld [vmem:[#allocation8 + $0x2930] sm:$0xff]
          %v5131 = vld [vmem:[#allocation8 + $0x2938] sm:$0xff]
          %v5132 = vld [vmem:[#allocation8 + $0x2940] sm:$0xff]
          %v5133 = vld [vmem:[#allocation8 + $0x2948] sm:$0xff]
          %v5134 = vld [vmem:[#allocation8 + $0x2950] sm:$0xff]
          %v5135 = vld [vmem:[#allocation8 + $0x2958] sm:$0xff]
          %v5136 = vld [vmem:[#allocation8 + $0x2960] sm:$0xff]
          %v5137 = vld [vmem:[#allocation8 + $0x2968] sm:$0xff]
          %v5138 = vld [vmem:[#allocation8 + $0x2970] sm:$0xff]
          %v5139 = vld [vmem:[#allocation8 + $0x2978] sm:$0xff]
          %v5140 = vld [vmem:[#allocation8 + $0x2980] sm:$0xff]
          %v5141 = vld [vmem:[#allocation8 + $0x2988] sm:$0xff]
          %v5142 = vld [vmem:[#allocation8 + $0x2990] sm:$0xff]
          %v5143 = vld [vmem:[#allocation8 + $0x2998] sm:$0xff]
          %v5144 = vld [vmem:[#allocation8 + $0x29a0] sm:$0xff]
          %v5145 = vld [vmem:[#allocation8 + $0x29a8] sm:$0xff]
          %v5146 = vld [vmem:[#allocation8 + $0x29b0] sm:$0xff]
          %v5147 = vld [vmem:[#allocation8 + $0x29b8] sm:$0xff]
          %v5148 = vld [vmem:[#allocation8 + $0x29c0] sm:$0xff]
          %v5149 = vld [vmem:[#allocation8 + $0x29c8] sm:$0xff]
          %v5150 = vld [vmem:[#allocation8 + $0x29d0] sm:$0xff]
          %v5151 = vld [vmem:[#allocation8 + $0x29d8] sm:$0xff]
          %v5152 = vld [vmem:[#allocation8 + $0x29e0] sm:$0xff]
          %v5153 = vld [vmem:[#allocation8 + $0x29e8] sm:$0xff]
          %v5154 = vld [vmem:[#allocation8 + $0x29f0] sm:$0xff]
          %v5155 = vld [vmem:[#allocation8 + $0x29f8] sm:$0xff]
          %v5156 = vld [vmem:[#allocation8 + $0x2a00] sm:$0xff]
          %v5157 = vld [vmem:[#allocation8 + $0x2a08] sm:$0xff]
          %v5158 = vld [vmem:[#allocation8 + $0x2a10] sm:$0xff]
          %v5159 = vld [vmem:[#allocation8 + $0x2a18] sm:$0xff]
          %v5160 = vld [vmem:[#allocation8 + $0x2a20] sm:$0xff]
          %v5161 = vld [vmem:[#allocation8 + $0x2a28] sm:$0xff]
          %v5162 = vld [vmem:[#allocation8 + $0x2a30] sm:$0xff]
          %v5163 = vld [vmem:[#allocation8 + $0x2a38] sm:$0xff]
          %v5164 = vld [vmem:[#allocation8 + $0x2a40] sm:$0xff]
          %v5165 = vld [vmem:[#allocation8 + $0x2a48] sm:$0xff]
          %v5166 = vld [vmem:[#allocation8 + $0x2a50] sm:$0xff]
          %v5167 = vld [vmem:[#allocation8 + $0x2a58] sm:$0xff]
          %v5168 = vld [vmem:[#allocation8 + $0x2a60] sm:$0xff]
          %v5169 = vld [vmem:[#allocation8 + $0x2a68] sm:$0xff]
          %v5170 = vld [vmem:[#allocation8 + $0x2a70] sm:$0xff]
          %v5171 = vld [vmem:[#allocation8 + $0x2a78] sm:$0xff]
          %v5172 = vld [vmem:[#allocation8 + $0x2a80] sm:$0xff]
          %v5173 = vld [vmem:[#allocation8 + $0x2a88] sm:$0xff]
          %v5174 = vld [vmem:[#allocation8 + $0x2a90] sm:$0xff]
          %v5175 = vld [vmem:[#allocation8 + $0x2a98] sm:$0xff]
          %v5176 = vld [vmem:[#allocation8 + $0x2aa0] sm:$0xff]
          %v5177 = vld [vmem:[#allocation8 + $0x2aa8] sm:$0xff]
          %v5178 = vld [vmem:[#allocation8 + $0x2ab0] sm:$0xff]
          %v5179 = vld [vmem:[#allocation8 + $0x2ab8] sm:$0xff]
          %v5180 = vld [vmem:[#allocation8 + $0x2ac0] sm:$0xff]
          %v5181 = vld [vmem:[#allocation8 + $0x2ac8] sm:$0xff]
          %v5182 = vld [vmem:[#allocation8 + $0x2ad0] sm:$0xff]
          %v5183 = vld [vmem:[#allocation8 + $0x2ad8] sm:$0xff]
          %v5184 = vld [vmem:[#allocation8 + $0x2ae0] sm:$0xff]
          %v5185 = vld [vmem:[#allocation8 + $0x2ae8] sm:$0xff]
          %v5186 = vld [vmem:[#allocation8 + $0x2af0] sm:$0xff]
          %v5187 = vld [vmem:[#allocation8 + $0x2af8] sm:$0xff]
          %v5188 = vld [vmem:[#allocation8 + $0x2b00] sm:$0xff]
          %v5189 = vld [vmem:[#allocation8 + $0x2b08] sm:$0xff]
          %v5190 = vld [vmem:[#allocation8 + $0x2b10] sm:$0xff]
          %v5191 = vld [vmem:[#allocation8 + $0x2b18] sm:$0xff]
          %v5192 = vld [vmem:[#allocation8 + $0x2b20] sm:$0xff]
          %v5193 = vld [vmem:[#allocation8 + $0x2b28] sm:$0xff]
          %v5194 = vld [vmem:[#allocation8 + $0x2b30] sm:$0xff]
          %v5195 = vld [vmem:[#allocation8 + $0x2b38] sm:$0xff]
          %v5196 = vld [vmem:[#allocation8 + $0x2b40] sm:$0xff]
          %v5197 = vld [vmem:[#allocation8 + $0x2b48] sm:$0xff]
          %v5198 = vld [vmem:[#allocation8 + $0x2b50] sm:$0xff]
          %v5199 = vld [vmem:[#allocation8 + $0x2b58] sm:$0xff]
          %v5200 = vld [vmem:[#allocation8 + $0x2b60] sm:$0xff]
          %v5201 = vld [vmem:[#allocation8 + $0x2b68] sm:$0xff]
          %v5202 = vld [vmem:[#allocation8 + $0x2b70] sm:$0xff]
          %v5203 = vld [vmem:[#allocation8 + $0x2b78] sm:$0xff]
          %v5204 = vld [vmem:[#allocation8 + $0x2b80] sm:$0xff]
          %v5205 = vld [vmem:[#allocation8 + $0x2b88] sm:$0xff]
          %v5206 = vld [vmem:[#allocation8 + $0x2b90] sm:$0xff]
          %v5207 = vld [vmem:[#allocation8 + $0x2b98] sm:$0xff]
          %v5208 = vld [vmem:[#allocation8 + $0x2ba0] sm:$0xff]
          %v5209 = vld [vmem:[#allocation8 + $0x2ba8] sm:$0xff]
          %v5210 = vld [vmem:[#allocation8 + $0x2bb0] sm:$0xff]
          %v5211 = vld [vmem:[#allocation8 + $0x2bb8] sm:$0xff]
          %v5212 = vld [vmem:[#allocation8 + $0x2bc0] sm:$0xff]
          %v5213 = vld [vmem:[#allocation8 + $0x2bc8] sm:$0xff]
          %v5214 = vld [vmem:[#allocation8 + $0x2bd0] sm:$0xff]
          %v5215 = vld [vmem:[#allocation8 + $0x2bd8] sm:$0xff]
          %v5216 = vld [vmem:[#allocation8 + $0x2be0] sm:$0xff]
          %v5217 = vld [vmem:[#allocation8 + $0x2be8] sm:$0xff]
          %v5218 = vld [vmem:[#allocation8 + $0x2bf0] sm:$0xff]
          %v5219 = vld [vmem:[#allocation8 + $0x2bf8] sm:$0xff]
          %v5220 = vld [vmem:[#allocation8 + $0x2c00] sm:$0xff]
          %v5221 = vld [vmem:[#allocation8 + $0x2c08] sm:$0xff]
          %v5222 = vld [vmem:[#allocation8 + $0x2c10] sm:$0xff]
          %v5223 = vld [vmem:[#allocation8 + $0x2c18] sm:$0xff]
          %v5224 = vld [vmem:[#allocation8 + $0x2c20] sm:$0xff]
          %v5225 = vld [vmem:[#allocation8 + $0x2c28] sm:$0xff]
          %v5226 = vld [vmem:[#allocation8 + $0x2c30] sm:$0xff]
          %v5227 = vld [vmem:[#allocation8 + $0x2c38] sm:$0xff]
          %v5228 = vld [vmem:[#allocation8 + $0x2c40] sm:$0xff]
          %v5229 = vld [vmem:[#allocation8 + $0x2c48] sm:$0xff]
          %v5230 = vld [vmem:[#allocation8 + $0x2c50] sm:$0xff]
          %v5231 = vld [vmem:[#allocation8 + $0x2c58] sm:$0xff]
          %v5232 = vld [vmem:[#allocation8 + $0x2c60] sm:$0xff]
          %v5233 = vld [vmem:[#allocation8 + $0x2c68] sm:$0xff]
          %v5234 = vld [vmem:[#allocation8 + $0x2c70] sm:$0xff]
          %v5235 = vld [vmem:[#allocation8 + $0x2c78] sm:$0xff]
          %v5236 = vld [vmem:[#allocation8 + $0x2c80] sm:$0xff]
          %v5237 = vld [vmem:[#allocation8 + $0x2c88] sm:$0xff]
          %v5238 = vld [vmem:[#allocation8 + $0x2c90] sm:$0xff]
          %v5239 = vld [vmem:[#allocation8 + $0x2c98] sm:$0xff]
          %v5240 = vld [vmem:[#allocation8 + $0x2ca0] sm:$0xff]
          %v5241 = vld [vmem:[#allocation8 + $0x2ca8] sm:$0xff]
          %v5242 = vld [vmem:[#allocation8 + $0x2cb0] sm:$0xff]
          %v5243 = vld [vmem:[#allocation8 + $0x2cb8] sm:$0xff]
          %v5244 = vld [vmem:[#allocation8 + $0x2cc0] sm:$0xff]
          %v5245 = vld [vmem:[#allocation8 + $0x2cc8] sm:$0xff]
          %v5246 = vld [vmem:[#allocation8 + $0x2cd0] sm:$0xff]
          %v5247 = vld [vmem:[#allocation8 + $0x2cd8] sm:$0xff]
          %v5248 = vld [vmem:[#allocation8 + $0x2ce0] sm:$0xff]
          %v5249 = vld [vmem:[#allocation8 + $0x2ce8] sm:$0xff]
          %v5250 = vld [vmem:[#allocation8 + $0x2cf0] sm:$0xff]
          %v5251 = vld [vmem:[#allocation8 + $0x2cf8] sm:$0xff]
          %v5252 = vld [vmem:[#allocation8 + $0x2d00] sm:$0xff]
          %v5253 = vld [vmem:[#allocation8 + $0x2d08] sm:$0xff]
          %v5254 = vld [vmem:[#allocation8 + $0x2d10] sm:$0xff]
          %v5255 = vld [vmem:[#allocation8 + $0x2d18] sm:$0xff]
          %v5256 = vld [vmem:[#allocation8 + $0x2d20] sm:$0xff]
          %v5257 = vld [vmem:[#allocation8 + $0x2d28] sm:$0xff]
          %v5258 = vld [vmem:[#allocation8 + $0x2d30] sm:$0xff]
          %v5259 = vld [vmem:[#allocation8 + $0x2d38] sm:$0xff]
          %v5260 = vld [vmem:[#allocation8 + $0x2d40] sm:$0xff]
          %v5261 = vld [vmem:[#allocation8 + $0x2d48] sm:$0xff]
          %v5262 = vld [vmem:[#allocation8 + $0x2d50] sm:$0xff]
          %v5263 = vld [vmem:[#allocation8 + $0x2d58] sm:$0xff]
          %v5264 = vld [vmem:[#allocation8 + $0x2d60] sm:$0xff]
          %v5265 = vld [vmem:[#allocation8 + $0x2d68] sm:$0xff]
          %v5266 = vld [vmem:[#allocation8 + $0x2d70] sm:$0xff]
          %v5267 = vld [vmem:[#allocation8 + $0x2d78] sm:$0xff]
          %v5268 = vld [vmem:[#allocation8 + $0x2d80] sm:$0xff]
          %v5269 = vld [vmem:[#allocation8 + $0x2d88] sm:$0xff]
          %v5270 = vld [vmem:[#allocation8 + $0x2d90] sm:$0xff]
          %v5271 = vld [vmem:[#allocation8 + $0x2d98] sm:$0xff]
          %v5272 = vld [vmem:[#allocation8 + $0x2da0] sm:$0xff]
          %v5273 = vld [vmem:[#allocation8 + $0x2da8] sm:$0xff]
          %v5274 = vld [vmem:[#allocation8 + $0x2db0] sm:$0xff]
          %v5275 = vld [vmem:[#allocation8 + $0x2db8] sm:$0xff]
          %v5276 = vld [vmem:[#allocation8 + $0x2dc0] sm:$0xff]
          %v5277 = vld [vmem:[#allocation8 + $0x2dc8] sm:$0xff]
          %v5278 = vld [vmem:[#allocation8 + $0x2dd0] sm:$0xff]
          %v5279 = vld [vmem:[#allocation8 + $0x2dd8] sm:$0xff]
          %v5280 = vld [vmem:[#allocation8 + $0x2de0] sm:$0xff]
          %v5281 = vld [vmem:[#allocation8 + $0x2de8] sm:$0xff]
          %v5282 = vld [vmem:[#allocation8 + $0x2df0] sm:$0xff]
          %v5283 = vld [vmem:[#allocation8 + $0x2df8] sm:$0xff]
          %v5284 = vld [vmem:[#allocation8 + $0x2e00] sm:$0xff]
          %v5285 = vld [vmem:[#allocation8 + $0x2e08] sm:$0xff]
          %v5286 = vld [vmem:[#allocation8 + $0x2e10] sm:$0xff]
          %v5287 = vld [vmem:[#allocation8 + $0x2e18] sm:$0xff]
          %v5288 = vld [vmem:[#allocation8 + $0x2e20] sm:$0xff]
          %v5289 = vld [vmem:[#allocation8 + $0x2e28] sm:$0xff]
          %v5290 = vld [vmem:[#allocation8 + $0x2e30] sm:$0xff]
          %v5291 = vld [vmem:[#allocation8 + $0x2e38] sm:$0xff]
          %v5292 = vld [vmem:[#allocation8 + $0x2e40] sm:$0xff]
          %v5293 = vld [vmem:[#allocation8 + $0x2e48] sm:$0xff]
          %v5294 = vld [vmem:[#allocation8 + $0x2e50] sm:$0xff]
          %v5295 = vld [vmem:[#allocation8 + $0x2e58] sm:$0xff]
          %v5296 = vld [vmem:[#allocation8 + $0x2e60] sm:$0xff]
          %v5297 = vld [vmem:[#allocation8 + $0x2e68] sm:$0xff]
          %v5298 = vld [vmem:[#allocation8 + $0x2e70] sm:$0xff]
          %v5299 = vld [vmem:[#allocation8 + $0x2e78] sm:$0xff]
          %v5300 = vld [vmem:[#allocation8 + $0x2e80] sm:$0xff]
          %v5301 = vld [vmem:[#allocation8 + $0x2e88] sm:$0xff]
          %v5302 = vld [vmem:[#allocation8 + $0x2e90] sm:$0xff]
          %v5303 = vld [vmem:[#allocation8 + $0x2e98] sm:$0xff]
          %v5304 = vld [vmem:[#allocation8 + $0x2ea0] sm:$0xff]
          %v5305 = vld [vmem:[#allocation8 + $0x2ea8] sm:$0xff]
          %v5306 = vld [vmem:[#allocation8 + $0x2eb0] sm:$0xff]
          %v5307 = vld [vmem:[#allocation8 + $0x2eb8] sm:$0xff]
          %v5308 = vld [vmem:[#allocation8 + $0x2ec0] sm:$0xff]
          %v5309 = vld [vmem:[#allocation8 + $0x2ec8] sm:$0xff]
          %v5310 = vld [vmem:[#allocation8 + $0x2ed0] sm:$0xff]
          %v5311 = vld [vmem:[#allocation8 + $0x2ed8] sm:$0xff]
          %v5312 = vld [vmem:[#allocation8 + $0x2ee0] sm:$0xff]
          %v5313 = vld [vmem:[#allocation8 + $0x2ee8] sm:$0xff]
          %v5314 = vld [vmem:[#allocation8 + $0x2ef0] sm:$0xff]
          %v5315 = vld [vmem:[#allocation8 + $0x2ef8] sm:$0xff]
          %v5316 = vld [vmem:[#allocation8 + $0x2f00] sm:$0xff]
          %v5317 = vld [vmem:[#allocation8 + $0x2f08] sm:$0xff]
          %v5318 = vld [vmem:[#allocation8 + $0x2f10] sm:$0xff]
          %v5319 = vld [vmem:[#allocation8 + $0x2f18] sm:$0xff]
          %v5320 = vld [vmem:[#allocation8 + $0x2f20] sm:$0xff]
          %v5321 = vld [vmem:[#allocation8 + $0x2f28] sm:$0xff]
          %v5322 = vld [vmem:[#allocation8 + $0x2f30] sm:$0xff]
          %v5323 = vld [vmem:[#allocation8 + $0x2f38] sm:$0xff]
          %v5324 = vld [vmem:[#allocation8 + $0x2f40] sm:$0xff]
          %v5325 = vld [vmem:[#allocation8 + $0x2f48] sm:$0xff]
          %v5326 = vld [vmem:[#allocation8 + $0x2f50] sm:$0xff]
          %v5327 = vld [vmem:[#allocation8 + $0x2f58] sm:$0xff]
          %v5328 = vld [vmem:[#allocation8 + $0x2f60] sm:$0xff]
          %v5329 = vld [vmem:[#allocation8 + $0x2f68] sm:$0xff]
          %v5330 = vld [vmem:[#allocation8 + $0x2f70] sm:$0xff]
          %v5331 = vld [vmem:[#allocation8 + $0x2f78] sm:$0xff]
          %v5332 = vld [vmem:[#allocation8 + $0x2f80] sm:$0xff]
          %v5333 = vld [vmem:[#allocation8 + $0x2f88] sm:$0xff]
          %v5334 = vld [vmem:[#allocation8 + $0x2f90] sm:$0xff]
          %v5335 = vld [vmem:[#allocation8 + $0x2f98] sm:$0xff]
          %v5336 = vld [vmem:[#allocation8 + $0x2fa0] sm:$0xff]
          %v5337 = vld [vmem:[#allocation8 + $0x2fa8] sm:$0xff]
          %v5338 = vld [vmem:[#allocation8 + $0x2fb0] sm:$0xff]
          %v5339 = vld [vmem:[#allocation8 + $0x2fb8] sm:$0xff]
          %v5340 = vld [vmem:[#allocation8 + $0x2fc0] sm:$0xff]
          %v5341 = vld [vmem:[#allocation8 + $0x2fc8] sm:$0xff]
          %v5342 = vld [vmem:[#allocation8 + $0x2fd0] sm:$0xff]
          %v5343 = vld [vmem:[#allocation8 + $0x2fd8] sm:$0xff]
          %v5344 = vld [vmem:[#allocation8 + $0x2fe0] sm:$0xff]
          %v5345 = vld [vmem:[#allocation8 + $0x2fe8] sm:$0xff]
          %v5346 = vld [vmem:[#allocation8 + $0x2ff0] sm:$0xff]
          %v5347 = vld [vmem:[#allocation8 + $0x2ff8] sm:$0xff]
          %v5348 = vld [vmem:[#allocation8 + $0x3000] sm:$0xff]
          %v5349 = vld [vmem:[#allocation8 + $0x3008] sm:$0xff]
          %v5350 = vld [vmem:[#allocation8 + $0x3010] sm:$0xff]
          %v5351 = vld [vmem:[#allocation8 + $0x3018] sm:$0xff]
          %v5352 = vld [vmem:[#allocation8 + $0x3020] sm:$0xff]
          %v5353 = vld [vmem:[#allocation8 + $0x3028] sm:$0xff]
          %v5354 = vld [vmem:[#allocation8 + $0x3030] sm:$0xff]
          %v5355 = vld [vmem:[#allocation8 + $0x3038] sm:$0xff]
          %v5356 = vld [vmem:[#allocation8 + $0x3040] sm:$0xff]
          %v5357 = vld [vmem:[#allocation8 + $0x3048] sm:$0xff]
          %v5358 = vld [vmem:[#allocation8 + $0x3050] sm:$0xff]
          %v5359 = vld [vmem:[#allocation8 + $0x3058] sm:$0xff]
          %v5360 = vld [vmem:[#allocation8 + $0x3060] sm:$0xff]
          %v5361 = vld [vmem:[#allocation8 + $0x3068] sm:$0xff]
          %v5362 = vld [vmem:[#allocation8 + $0x3070] sm:$0xff]
          %v5363 = vld [vmem:[#allocation8 + $0x3078] sm:$0xff]
          %v5364 = vld [vmem:[#allocation8 + $0x3080] sm:$0xff]
          %v5365 = vld [vmem:[#allocation8 + $0x3088] sm:$0xff]
          %v5366 = vld [vmem:[#allocation8 + $0x3090] sm:$0xff]
          %v5367 = vld [vmem:[#allocation8 + $0x3098] sm:$0xff]
          %v5368 = vld [vmem:[#allocation8 + $0x30a0] sm:$0xff]
          %v5369 = vld [vmem:[#allocation8 + $0x30a8] sm:$0xff]
          %v5370 = vld [vmem:[#allocation8 + $0x30b0] sm:$0xff]
          %v5371 = vld [vmem:[#allocation8 + $0x30b8] sm:$0xff]
          %v5372 = vld [vmem:[#allocation8 + $0x30c0] sm:$0xff]
          %v5373 = vld [vmem:[#allocation8 + $0x30c8] sm:$0xff]
          %v5374 = vld [vmem:[#allocation8 + $0x30d0] sm:$0xff]
          %v5375 = vld [vmem:[#allocation8 + $0x30d8] sm:$0xff]
          %v5376 = vld [vmem:[#allocation8 + $0x30e0] sm:$0xff]
          %v5377 = vld [vmem:[#allocation8 + $0x30e8] sm:$0xff]
          %v5378 = vld [vmem:[#allocation8 + $0x30f0] sm:$0xff]
          %v5379 = vld [vmem:[#allocation8 + $0x30f8] sm:$0xff]
          %v5380 = vld [vmem:[#allocation8 + $0x3100] sm:$0xff]
          %v5381 = vld [vmem:[#allocation8 + $0x3108] sm:$0xff]
          %v5382 = vld [vmem:[#allocation8 + $0x3110] sm:$0xff]
          %v5383 = vld [vmem:[#allocation8 + $0x3118] sm:$0xff]
          %v5384 = vld [vmem:[#allocation8 + $0x3120] sm:$0xff]
          %v5385 = vld [vmem:[#allocation8 + $0x3128] sm:$0xff]
          %v5386 = vld [vmem:[#allocation8 + $0x3130] sm:$0xff]
          %v5387 = vld [vmem:[#allocation8 + $0x3138] sm:$0xff]
          %v5388 = vld [vmem:[#allocation8 + $0x3140] sm:$0xff]
          %v5389 = vld [vmem:[#allocation8 + $0x3148] sm:$0xff]
          %v5390 = vld [vmem:[#allocation8 + $0x3150] sm:$0xff]
          %v5391 = vld [vmem:[#allocation8 + $0x3158] sm:$0xff]
          %v5392 = vld [vmem:[#allocation8 + $0x3160] sm:$0xff]
          %v5393 = vld [vmem:[#allocation8 + $0x3168] sm:$0xff]
          %v5394 = vld [vmem:[#allocation8 + $0x3170] sm:$0xff]
          %v5395 = vld [vmem:[#allocation8 + $0x3178] sm:$0xff]
          %v5396 = vld [vmem:[#allocation8 + $0x3180] sm:$0xff]
          %v5397 = vld [vmem:[#allocation8 + $0x3188] sm:$0xff]
          %v5398 = vld [vmem:[#allocation8 + $0x3190] sm:$0xff]
          %v5399 = vld [vmem:[#allocation8 + $0x3198] sm:$0xff]
          %v5400 = vld [vmem:[#allocation8 + $0x31a0] sm:$0xff]
          %v5401 = vld [vmem:[#allocation8 + $0x31a8] sm:$0xff]
          %v5402 = vld [vmem:[#allocation8 + $0x31b0] sm:$0xff]
          %v5403 = vld [vmem:[#allocation8 + $0x31b8] sm:$0xff]
          %v5404 = vld [vmem:[#allocation8 + $0x31c0] sm:$0xff]
          %v5405 = vld [vmem:[#allocation8 + $0x31c8] sm:$0xff]
          %v5406 = vld [vmem:[#allocation8 + $0x31d0] sm:$0xff]
          %v5407 = vld [vmem:[#allocation8 + $0x31d8] sm:$0xff]
          %v5408 = vld [vmem:[#allocation8 + $0x31e0] sm:$0xff]
          %v5409 = vld [vmem:[#allocation8 + $0x31e8] sm:$0xff]
          %v5410 = vld [vmem:[#allocation8 + $0x31f0] sm:$0xff]
          %v5411 = vld [vmem:[#allocation8 + $0x31f8] sm:$0xff]
          %v5412 = vld [vmem:[#allocation8 + $0x3200] sm:$0xff]
          %v5413 = vld [vmem:[#allocation8 + $0x3208] sm:$0xff]
          %v5414 = vld [vmem:[#allocation8 + $0x3210] sm:$0xff]
          %v5415 = vld [vmem:[#allocation8 + $0x3218] sm:$0xff]
          %v5416 = vld [vmem:[#allocation8 + $0x3220] sm:$0xff]
          %v5417 = vld [vmem:[#allocation8 + $0x3228] sm:$0xff]
          %v5418 = vld [vmem:[#allocation8 + $0x3230] sm:$0xff]
          %v5419 = vld [vmem:[#allocation8 + $0x3238] sm:$0xff]
          %v5420 = vld [vmem:[#allocation8 + $0x3240] sm:$0xff]
          %v5421 = vld [vmem:[#allocation8 + $0x3248] sm:$0xff]
          %v5422 = vld [vmem:[#allocation8 + $0x3250] sm:$0xff]
          %v5423 = vld [vmem:[#allocation8 + $0x3258] sm:$0xff]
          %v5424 = vld [vmem:[#allocation8 + $0x3260] sm:$0xff]
          %v5425 = vld [vmem:[#allocation8 + $0x3268] sm:$0xff]
          %v5426 = vld [vmem:[#allocation8 + $0x3270] sm:$0xff]
          %v5427 = vld [vmem:[#allocation8 + $0x3278] sm:$0xff]
          %v5428 = vld [vmem:[#allocation8 + $0x3280] sm:$0xff]
          %v5429 = vld [vmem:[#allocation8 + $0x3288] sm:$0xff]
          %v5430 = vld [vmem:[#allocation8 + $0x3290] sm:$0xff]
          %v5431 = vld [vmem:[#allocation8 + $0x3298] sm:$0xff]
          %v5432 = vld [vmem:[#allocation8 + $0x32a0] sm:$0xff]
          %v5433 = vld [vmem:[#allocation8 + $0x32a8] sm:$0xff]
          %v5434 = vld [vmem:[#allocation8 + $0x32b0] sm:$0xff]
          %v5435 = vld [vmem:[#allocation8 + $0x32b8] sm:$0xff]
          %v5436 = vld [vmem:[#allocation8 + $0x32c0] sm:$0xff]
          %v5437 = vld [vmem:[#allocation8 + $0x32c8] sm:$0xff]
          %v5438 = vld [vmem:[#allocation8 + $0x32d0] sm:$0xff]
          %v5439 = vld [vmem:[#allocation8 + $0x32d8] sm:$0xff]
          %v5440 = vld [vmem:[#allocation8 + $0x32e0] sm:$0xff]
          %v5441 = vld [vmem:[#allocation8 + $0x32e8] sm:$0xff]
          %v5442 = vld [vmem:[#allocation8 + $0x32f0] sm:$0xff]
          %v5443 = vld [vmem:[#allocation8 + $0x32f8] sm:$0xff]
          %v5444 = vld [vmem:[#allocation8 + $0x3300] sm:$0xff]
          %v5445 = vld [vmem:[#allocation8 + $0x3308] sm:$0xff]
          %v5446 = vld [vmem:[#allocation8 + $0x3310] sm:$0xff]
          %v5447 = vld [vmem:[#allocation8 + $0x3318] sm:$0xff]
          %v5448 = vld [vmem:[#allocation8 + $0x3320] sm:$0xff]
          %v5449 = vld [vmem:[#allocation8 + $0x3328] sm:$0xff]
          %v5450 = vld [vmem:[#allocation8 + $0x3330] sm:$0xff]
          %v5451 = vld [vmem:[#allocation8 + $0x3338] sm:$0xff]
          %v5452 = vld [vmem:[#allocation8 + $0x3340] sm:$0xff]
          %v5453 = vld [vmem:[#allocation8 + $0x3348] sm:$0xff]
          %v5454 = vld [vmem:[#allocation8 + $0x3350] sm:$0xff]
          %v5455 = vld [vmem:[#allocation8 + $0x3358] sm:$0xff]
          %v5456 = vld [vmem:[#allocation8 + $0x3360] sm:$0xff]
          %v5457 = vld [vmem:[#allocation8 + $0x3368] sm:$0xff]
          %v5458 = vld [vmem:[#allocation8 + $0x3370] sm:$0xff]
          %v5459 = vld [vmem:[#allocation8 + $0x3378] sm:$0xff]
          %v5460 = vld [vmem:[#allocation8 + $0x3380] sm:$0xff]
          %v5461 = vld [vmem:[#allocation8 + $0x3388] sm:$0xff]
          %v5462 = vld [vmem:[#allocation8 + $0x3390] sm:$0xff]
          %v5463 = vld [vmem:[#allocation8 + $0x3398] sm:$0xff]
          %v5464 = vld [vmem:[#allocation8 + $0x33a0] sm:$0xff]
          %v5465 = vld [vmem:[#allocation8 + $0x33a8] sm:$0xff]
          %v5466 = vld [vmem:[#allocation8 + $0x33b0] sm:$0xff]
          %v5467 = vld [vmem:[#allocation8 + $0x33b8] sm:$0xff]
          %v5468 = vld [vmem:[#allocation8 + $0x33c0] sm:$0xff]
          %v5469 = vld [vmem:[#allocation8 + $0x33c8] sm:$0xff]
          %v5470 = vld [vmem:[#allocation8 + $0x33d0] sm:$0xff]
          %v5471 = vld [vmem:[#allocation8 + $0x33d8] sm:$0xff]
          %v5472 = vld [vmem:[#allocation8 + $0x33e0] sm:$0xff]
          %v5473 = vld [vmem:[#allocation8 + $0x33e8] sm:$0xff]
          %v5474 = vld [vmem:[#allocation8 + $0x33f0] sm:$0xff]
          %v5475 = vld [vmem:[#allocation8 + $0x33f8] sm:$0xff]
          %v5476 = vld [vmem:[#allocation8 + $0x3400] sm:$0xff]
          %v5477 = vld [vmem:[#allocation8 + $0x3408] sm:$0xff]
          %v5478 = vld [vmem:[#allocation8 + $0x3410] sm:$0xff]
          %v5479 = vld [vmem:[#allocation8 + $0x3418] sm:$0xff]
          %v5480 = vld [vmem:[#allocation8 + $0x3420] sm:$0xff]
          %v5481 = vld [vmem:[#allocation8 + $0x3428] sm:$0xff]
          %v5482 = vld [vmem:[#allocation8 + $0x3430] sm:$0xff]
          %v5483 = vld [vmem:[#allocation8 + $0x3438] sm:$0xff]
          %v5484 = vld [vmem:[#allocation8 + $0x3440] sm:$0xff]
          %v5485 = vld [vmem:[#allocation8 + $0x3448] sm:$0xff]
          %v5486 = vld [vmem:[#allocation8 + $0x3450] sm:$0xff]
          %v5487 = vld [vmem:[#allocation8 + $0x3458] sm:$0xff]
          %v5488 = vld [vmem:[#allocation8 + $0x3460] sm:$0xff]
          %v5489 = vld [vmem:[#allocation8 + $0x3468] sm:$0xff]
          %v5490 = vld [vmem:[#allocation8 + $0x3470] sm:$0xff]
          %v5491 = vld [vmem:[#allocation8 + $0x3478] sm:$0xff]
          %v5492 = vld [vmem:[#allocation8 + $0x3480] sm:$0xff]
          %v5493 = vld [vmem:[#allocation8 + $0x3488] sm:$0xff]
          %v5494 = vld [vmem:[#allocation8 + $0x3490] sm:$0xff]
          %v5495 = vld [vmem:[#allocation8 + $0x3498] sm:$0xff]
          %v5496 = vld [vmem:[#allocation8 + $0x34a0] sm:$0xff]
          %v5497 = vld [vmem:[#allocation8 + $0x34a8] sm:$0xff]
          %v5498 = vld [vmem:[#allocation8 + $0x34b0] sm:$0xff]
          %v5499 = vld [vmem:[#allocation8 + $0x34b8] sm:$0xff]
          %v5500 = vld [vmem:[#allocation8 + $0x34c0] sm:$0xff]
          %v5501 = vld [vmem:[#allocation8 + $0x34c8] sm:$0xff]
          %v5502 = vld [vmem:[#allocation8 + $0x34d0] sm:$0xff]
          %v5503 = vld [vmem:[#allocation8 + $0x34d8] sm:$0xff]
          %v5504 = vld [vmem:[#allocation8 + $0x34e0] sm:$0xff]
          %v5505 = vld [vmem:[#allocation8 + $0x34e8] sm:$0xff]
          %v5506 = vld [vmem:[#allocation8 + $0x34f0] sm:$0xff]
          %v5507 = vld [vmem:[#allocation8 + $0x34f8] sm:$0xff]
          %v5508 = vld [vmem:[#allocation8 + $0x3500] sm:$0xff]
          %v5509 = vld [vmem:[#allocation8 + $0x3508] sm:$0xff]
          %v5510 = vld [vmem:[#allocation8 + $0x3510] sm:$0xff]
          %v5511 = vld [vmem:[#allocation8 + $0x3518] sm:$0xff]
          %v5512 = vld [vmem:[#allocation8 + $0x3520] sm:$0xff]
          %v5513 = vld [vmem:[#allocation8 + $0x3528] sm:$0xff]
          %v5514 = vld [vmem:[#allocation8 + $0x3530] sm:$0xff]
          %v5515 = vld [vmem:[#allocation8 + $0x3538] sm:$0xff]
          %v5516 = vld [vmem:[#allocation8 + $0x3540] sm:$0xff]
          %v5517 = vld [vmem:[#allocation8 + $0x3548] sm:$0xff]
          %v5518 = vld [vmem:[#allocation8 + $0x3550] sm:$0xff]
          %v5519 = vld [vmem:[#allocation8 + $0x3558] sm:$0xff]
          %v5520 = vld [vmem:[#allocation8 + $0x3560] sm:$0xff]
          %v5521 = vld [vmem:[#allocation8 + $0x3568] sm:$0xff]
          %v5522 = vld [vmem:[#allocation8 + $0x3570] sm:$0xff]
          %v5523 = vld [vmem:[#allocation8 + $0x3578] sm:$0xff]
          %v5524 = vld [vmem:[#allocation8 + $0x3580] sm:$0xff]
          %v5525 = vld [vmem:[#allocation8 + $0x3588] sm:$0xff]
          %v5526 = vld [vmem:[#allocation8 + $0x3590] sm:$0xff]
          %v5527 = vld [vmem:[#allocation8 + $0x3598] sm:$0xff]
          %v5528 = vld [vmem:[#allocation8 + $0x35a0] sm:$0xff]
          %v5529 = vld [vmem:[#allocation8 + $0x35a8] sm:$0xff]
          %v5530 = vld [vmem:[#allocation8 + $0x35b0] sm:$0xff]
          %v5531 = vld [vmem:[#allocation8 + $0x35b8] sm:$0xff]
          %v5532 = vld [vmem:[#allocation8 + $0x35c0] sm:$0xff]
          %v5533 = vld [vmem:[#allocation8 + $0x35c8] sm:$0xff]
          %v5534 = vld [vmem:[#allocation8 + $0x35d0] sm:$0xff]
          %v5535 = vld [vmem:[#allocation8 + $0x35d8] sm:$0xff]
          %v5536 = vld [vmem:[#allocation8 + $0x35e0] sm:$0xff]
          %v5537 = vld [vmem:[#allocation8 + $0x35e8] sm:$0xff]
          %v5538 = vld [vmem:[#allocation8 + $0x35f0] sm:$0xff]
          %v5539 = vld [vmem:[#allocation8 + $0x35f8] sm:$0xff]
          %v5540 = vld [vmem:[#allocation8 + $0x3600] sm:$0xff]
          %v5541 = vld [vmem:[#allocation8 + $0x3608] sm:$0xff]
          %v5542 = vld [vmem:[#allocation8 + $0x3610] sm:$0xff]
          %v5543 = vld [vmem:[#allocation8 + $0x3618] sm:$0xff]
          %v5544 = vld [vmem:[#allocation8 + $0x3620] sm:$0xff]
          %v5545 = vld [vmem:[#allocation8 + $0x3628] sm:$0xff]
          %v5546 = vld [vmem:[#allocation8 + $0x3630] sm:$0xff]
          %v5547 = vld [vmem:[#allocation8 + $0x3638] sm:$0xff]
          %v5548 = vld [vmem:[#allocation8 + $0x3640] sm:$0xff]
          %v5549 = vld [vmem:[#allocation8 + $0x3648] sm:$0xff]
          %v5550 = vld [vmem:[#allocation8 + $0x3650] sm:$0xff]
          %v5551 = vld [vmem:[#allocation8 + $0x3658] sm:$0xff]
          %v5552 = vld [vmem:[#allocation8 + $0x3660] sm:$0xff]
          %v5553 = vld [vmem:[#allocation8 + $0x3668] sm:$0xff]
          %v5554 = vld [vmem:[#allocation8 + $0x3670] sm:$0xff]
          %v5555 = vld [vmem:[#allocation8 + $0x3678] sm:$0xff]
          %v5556 = vld [vmem:[#allocation8 + $0x3680] sm:$0xff]
          %v5557 = vld [vmem:[#allocation8 + $0x3688] sm:$0xff]
          %v5558 = vld [vmem:[#allocation8 + $0x3690] sm:$0xff]
          %v5559 = vld [vmem:[#allocation8 + $0x3698] sm:$0xff]
          %v5560 = vld [vmem:[#allocation8 + $0x36a0] sm:$0xff]
          %v5561 = vld [vmem:[#allocation8 + $0x36a8] sm:$0xff]
          %v5562 = vld [vmem:[#allocation8 + $0x36b0] sm:$0xff]
          %v5563 = vld [vmem:[#allocation8 + $0x36b8] sm:$0xff]
          %v5564 = vld [vmem:[#allocation8 + $0x36c0] sm:$0xff]
          %v5565 = vld [vmem:[#allocation8 + $0x36c8] sm:$0xff]
          %v5566 = vld [vmem:[#allocation8 + $0x36d0] sm:$0xff]
          %v5567 = vld [vmem:[#allocation8 + $0x36d8] sm:$0xff]
          %v5568 = vld [vmem:[#allocation8 + $0x36e0] sm:$0xff]
          %v5569 = vld [vmem:[#allocation8 + $0x36e8] sm:$0xff]
          %v5570 = vld [vmem:[#allocation8 + $0x36f0] sm:$0xff]
          %v5571 = vld [vmem:[#allocation8 + $0x36f8] sm:$0xff]
          %v5572 = vld [vmem:[#allocation8 + $0x3700] sm:$0xff]
          %v5573 = vld [vmem:[#allocation8 + $0x3708] sm:$0xff]
          %v5574 = vld [vmem:[#allocation8 + $0x3710] sm:$0xff]
          %v5575 = vld [vmem:[#allocation8 + $0x3718] sm:$0xff]
          %v5576 = vld [vmem:[#allocation8 + $0x3720] sm:$0xff]
          %v5577 = vld [vmem:[#allocation8 + $0x3728] sm:$0xff]
          %v5578 = vld [vmem:[#allocation8 + $0x3730] sm:$0xff]
          %v5579 = vld [vmem:[#allocation8 + $0x3738] sm:$0xff]
          %v5580 = vld [vmem:[#allocation8 + $0x3740] sm:$0xff]
          %v5581 = vld [vmem:[#allocation8 + $0x3748] sm:$0xff]
          %v5582 = vld [vmem:[#allocation8 + $0x3750] sm:$0xff]
          %v5583 = vld [vmem:[#allocation8 + $0x3758] sm:$0xff]
          %v5584 = vld [vmem:[#allocation8 + $0x3760] sm:$0xff]
          %v5585 = vld [vmem:[#allocation8 + $0x3768] sm:$0xff]
          %v5586 = vld [vmem:[#allocation8 + $0x3770] sm:$0xff]
          %v5587 = vld [vmem:[#allocation8 + $0x3778] sm:$0xff]
          %v5588 = vld [vmem:[#allocation8 + $0x3780] sm:$0xff]
          %v5589 = vld [vmem:[#allocation8 + $0x3788] sm:$0xff]
          %v5590 = vld [vmem:[#allocation8 + $0x3790] sm:$0xff]
          %v5591 = vld [vmem:[#allocation8 + $0x3798] sm:$0xff]
          %v5592 = vld [vmem:[#allocation8 + $0x37a0] sm:$0xff]
          %v5593 = vld [vmem:[#allocation8 + $0x37a8] sm:$0xff]
          %v5594 = vld [vmem:[#allocation8 + $0x37b0] sm:$0xff]
          %v5595 = vld [vmem:[#allocation8 + $0x37b8] sm:$0xff]
          %v5596 = vld [vmem:[#allocation8 + $0x37c0] sm:$0xff]
          %v5597 = vld [vmem:[#allocation8 + $0x37c8] sm:$0xff]
          %v5598 = vld [vmem:[#allocation8 + $0x37d0] sm:$0xff]
          %v5599 = vld [vmem:[#allocation8 + $0x37d8] sm:$0xff]
          %v5600 = vld [vmem:[#allocation8 + $0x37e0] sm:$0xff]
          %v5601 = vld [vmem:[#allocation8 + $0x37e8] sm:$0xff]
          %v5602 = vld [vmem:[#allocation8 + $0x37f0] sm:$0xff]
          %v5603 = vld [vmem:[#allocation8 + $0x37f8] sm:$0xff]
          %v5604 = vld [vmem:[#allocation8 + $0x3800] sm:$0xff]
          %v5605 = vld [vmem:[#allocation8 + $0x3808] sm:$0xff]
          %v5606 = vld [vmem:[#allocation8 + $0x3810] sm:$0xff]
          %v5607 = vld [vmem:[#allocation8 + $0x3818] sm:$0xff]
          %v5608 = vld [vmem:[#allocation8 + $0x3820] sm:$0xff]
          %v5609 = vld [vmem:[#allocation8 + $0x3828] sm:$0xff]
          %v5610 = vld [vmem:[#allocation8 + $0x3830] sm:$0xff]
          %v5611 = vld [vmem:[#allocation8 + $0x3838] sm:$0xff]
          %v5612 = vld [vmem:[#allocation8 + $0x3840] sm:$0xff]
          %v5613 = vld [vmem:[#allocation8 + $0x3848] sm:$0xff]
          %v5614 = vld [vmem:[#allocation8 + $0x3850] sm:$0xff]
          %v5615 = vld [vmem:[#allocation8 + $0x3858] sm:$0xff]
          %v5616 = vld [vmem:[#allocation8 + $0x3860] sm:$0xff]
          %v5617 = vld [vmem:[#allocation8 + $0x3868] sm:$0xff]
          %v5618 = vld [vmem:[#allocation8 + $0x3870] sm:$0xff]
          %v5619 = vld [vmem:[#allocation8 + $0x3878] sm:$0xff]
          %v5620 = vld [vmem:[#allocation8 + $0x3880] sm:$0xff]
          %v5621 = vld [vmem:[#allocation8 + $0x3888] sm:$0xff]
          %v5622 = vld [vmem:[#allocation8 + $0x3890] sm:$0xff]
          %v5623 = vld [vmem:[#allocation8 + $0x3898] sm:$0xff]
          %v5624 = vld [vmem:[#allocation8 + $0x38a0] sm:$0xff]
          %v5625 = vld [vmem:[#allocation8 + $0x38a8] sm:$0xff]
          %v5626 = vld [vmem:[#allocation8 + $0x38b0] sm:$0xff]
          %v5627 = vld [vmem:[#allocation8 + $0x38b8] sm:$0xff]
          %v5628 = vld [vmem:[#allocation8 + $0x38c0] sm:$0xff]
          %v5629 = vld [vmem:[#allocation8 + $0x38c8] sm:$0xff]
          %v5630 = vld [vmem:[#allocation8 + $0x38d0] sm:$0xff]
          %v5631 = vld [vmem:[#allocation8 + $0x38d8] sm:$0xff]
          %v5632 = vld [vmem:[#allocation8 + $0x38e0] sm:$0xff]
          %v5633 = vld [vmem:[#allocation8 + $0x38e8] sm:$0xff]
          %v5634 = vld [vmem:[#allocation8 + $0x38f0] sm:$0xff]
          %v5635 = vld [vmem:[#allocation8 + $0x38f8] sm:$0xff]
          %v5636 = vld [vmem:[#allocation8 + $0x3900] sm:$0xff]
          %v5637 = vld [vmem:[#allocation8 + $0x3908] sm:$0xff]
          %v5638 = vld [vmem:[#allocation8 + $0x3910] sm:$0xff]
          %v5639 = vld [vmem:[#allocation8 + $0x3918] sm:$0xff]
          %v5640 = vld [vmem:[#allocation8 + $0x3920] sm:$0xff]
          %v5641 = vld [vmem:[#allocation8 + $0x3928] sm:$0xff]
          %v5642 = vld [vmem:[#allocation8 + $0x3930] sm:$0xff]
          %v5643 = vld [vmem:[#allocation8 + $0x3938] sm:$0xff]
          %v5644 = vld [vmem:[#allocation8 + $0x3940] sm:$0xff]
          %v5645 = vld [vmem:[#allocation8 + $0x3948] sm:$0xff]
          %v5646 = vld [vmem:[#allocation8 + $0x3950] sm:$0xff]
          %v5647 = vld [vmem:[#allocation8 + $0x3958] sm:$0xff]
          %v5648 = vld [vmem:[#allocation8 + $0x3960] sm:$0xff]
          %v5649 = vld [vmem:[#allocation8 + $0x3968] sm:$0xff]
          %v5650 = vld [vmem:[#allocation8 + $0x3970] sm:$0xff]
          %v5651 = vld [vmem:[#allocation8 + $0x3978] sm:$0xff]
          %v5652 = vld [vmem:[#allocation8 + $0x3980] sm:$0xff]
          %v5653 = vld [vmem:[#allocation8 + $0x3988] sm:$0xff]
          %v5654 = vld [vmem:[#allocation8 + $0x3990] sm:$0xff]
          %v5655 = vld [vmem:[#allocation8 + $0x3998] sm:$0xff]
          %v5656 = vld [vmem:[#allocation8 + $0x39a0] sm:$0xff]
          %v5657 = vld [vmem:[#allocation8 + $0x39a8] sm:$0xff]
          %v5658 = vld [vmem:[#allocation8 + $0x39b0] sm:$0xff]
          %v5659 = vld [vmem:[#allocation8 + $0x39b8] sm:$0xff]
          %v5660 = vld [vmem:[#allocation8 + $0x39c0] sm:$0xff]
          %v5661 = vld [vmem:[#allocation8 + $0x39c8] sm:$0xff]
          %v5662 = vld [vmem:[#allocation8 + $0x39d0] sm:$0xff]
          %v5663 = vld [vmem:[#allocation8 + $0x39d8] sm:$0xff]
          %v5664 = vld [vmem:[#allocation8 + $0x39e0] sm:$0xff]
          %v5665 = vld [vmem:[#allocation8 + $0x39e8] sm:$0xff]
          %v5666 = vld [vmem:[#allocation8 + $0x39f0] sm:$0xff]
          %v5667 = vld [vmem:[#allocation8 + $0x39f8] sm:$0xff]
          %v5668 = vld [vmem:[#allocation8 + $0x3a00] sm:$0xff]
          %v5669 = vld [vmem:[#allocation8 + $0x3a08] sm:$0xff]
          %v5670 = vld [vmem:[#allocation8 + $0x3a10] sm:$0xff]
          %v5671 = vld [vmem:[#allocation8 + $0x3a18] sm:$0xff]
          %v5672 = vld [vmem:[#allocation8 + $0x3a20] sm:$0xff]
          %v5673 = vld [vmem:[#allocation8 + $0x3a28] sm:$0xff]
          %v5674 = vld [vmem:[#allocation8 + $0x3a30] sm:$0xff]
          %v5675 = vld [vmem:[#allocation8 + $0x3a38] sm:$0xff]
          %v5676 = vld [vmem:[#allocation8 + $0x3a40] sm:$0xff]
          %v5677 = vld [vmem:[#allocation8 + $0x3a48] sm:$0xff]
          %v5678 = vld [vmem:[#allocation8 + $0x3a50] sm:$0xff]
          %v5679 = vld [vmem:[#allocation8 + $0x3a58] sm:$0xff]
          %v5680 = vld [vmem:[#allocation8 + $0x3a60] sm:$0xff]
          %v5681 = vld [vmem:[#allocation8 + $0x3a68] sm:$0xff]
          %v5682 = vld [vmem:[#allocation8 + $0x3a70] sm:$0xff]
          %v5683 = vld [vmem:[#allocation8 + $0x3a78] sm:$0xff]
          %v5684 = vld [vmem:[#allocation8 + $0x3a80] sm:$0xff]
          %v5685 = vld [vmem:[#allocation8 + $0x3a88] sm:$0xff]
          %v5686 = vld [vmem:[#allocation8 + $0x3a90] sm:$0xff]
          %v5687 = vld [vmem:[#allocation8 + $0x3a98] sm:$0xff]
          %v5688 = vld [vmem:[#allocation8 + $0x3aa0] sm:$0xff]
          %v5689 = vld [vmem:[#allocation8 + $0x3aa8] sm:$0xff]
          %v5690 = vld [vmem:[#allocation8 + $0x3ab0] sm:$0xff]
          %v5691 = vld [vmem:[#allocation8 + $0x3ab8] sm:$0xff]
          %v5692 = vld [vmem:[#allocation8 + $0x3ac0] sm:$0xff]
          %v5693 = vld [vmem:[#allocation8 + $0x3ac8] sm:$0xff]
          %v5694 = vld [vmem:[#allocation8 + $0x3ad0] sm:$0xff]
          %v5695 = vld [vmem:[#allocation8 + $0x3ad8] sm:$0xff]
          %v5696 = vld [vmem:[#allocation8 + $0x3ae0] sm:$0xff]
          %v5697 = vld [vmem:[#allocation8 + $0x3ae8] sm:$0xff]
          %v5698 = vld [vmem:[#allocation8 + $0x3af0] sm:$0xff]
          %v5699 = vld [vmem:[#allocation8 + $0x3af8] sm:$0xff]
          %v5700 = vld [vmem:[#allocation8 + $0x3b00] sm:$0xff]
          %v5701 = vld [vmem:[#allocation8 + $0x3b08] sm:$0xff]
          %v5702 = vld [vmem:[#allocation8 + $0x3b10] sm:$0xff]
          %v5703 = vld [vmem:[#allocation8 + $0x3b18] sm:$0xff]
          %v5704 = vld [vmem:[#allocation8 + $0x3b20] sm:$0xff]
          %v5705 = vld [vmem:[#allocation8 + $0x3b28] sm:$0xff]
          %v5706 = vld [vmem:[#allocation8 + $0x3b30] sm:$0xff]
          %v5707 = vld [vmem:[#allocation8 + $0x3b38] sm:$0xff]
          %v5708 = vld [vmem:[#allocation8 + $0x3b40] sm:$0xff]
          %v5709 = vld [vmem:[#allocation8 + $0x3b48] sm:$0xff]
          %v5710 = vld [vmem:[#allocation8 + $0x3b50] sm:$0xff]
          %v5711 = vld [vmem:[#allocation8 + $0x3b58] sm:$0xff]
          %v5712 = vld [vmem:[#allocation8 + $0x3b60] sm:$0xff]
          %v5713 = vld [vmem:[#allocation8 + $0x3b68] sm:$0xff]
          %v5714 = vld [vmem:[#allocation8 + $0x3b70] sm:$0xff]
          %v5715 = vld [vmem:[#allocation8 + $0x3b78] sm:$0xff]
          %v5716 = vld [vmem:[#allocation8 + $0x3b80] sm:$0xff]
          %v5717 = vld [vmem:[#allocation8 + $0x3b88] sm:$0xff]
          %v5718 = vld [vmem:[#allocation8 + $0x3b90] sm:$0xff]
          %v5719 = vld [vmem:[#allocation8 + $0x3b98] sm:$0xff]
          %v5720 = vld [vmem:[#allocation8 + $0x3ba0] sm:$0xff]
          %v5721 = vld [vmem:[#allocation8 + $0x3ba8] sm:$0xff]
          %v5722 = vld [vmem:[#allocation8 + $0x3bb0] sm:$0xff]
          %v5723 = vld [vmem:[#allocation8 + $0x3bb8] sm:$0xff]
          %v5724 = vld [vmem:[#allocation8 + $0x3bc0] sm:$0xff]
          %v5725 = vld [vmem:[#allocation8 + $0x3bc8] sm:$0xff]
          %v5726 = vld [vmem:[#allocation8 + $0x3bd0] sm:$0xff]
          %v5727 = vld [vmem:[#allocation8 + $0x3bd8] sm:$0xff]
          %v5728 = vld [vmem:[#allocation8 + $0x3be0] sm:$0xff]
          %v5729 = vld [vmem:[#allocation8 + $0x3be8] sm:$0xff]
          %v5730 = vld [vmem:[#allocation8 + $0x3bf0] sm:$0xff]
          %v5731 = vld [vmem:[#allocation8 + $0x3bf8] sm:$0xff]
          %v5732 = vld [vmem:[#allocation8 + $0x3c00] sm:$0xff]
          %v5733 = vld [vmem:[#allocation8 + $0x3c08] sm:$0xff]
          %v5734 = vld [vmem:[#allocation8 + $0x3c10] sm:$0xff]
          %v5735 = vld [vmem:[#allocation8 + $0x3c18] sm:$0xff]
          %v5736 = vld [vmem:[#allocation8 + $0x3c20] sm:$0xff]
          %v5737 = vld [vmem:[#allocation8 + $0x3c28] sm:$0xff]
          %v5738 = vld [vmem:[#allocation8 + $0x3c30] sm:$0xff]
          %v5739 = vld [vmem:[#allocation8 + $0x3c38] sm:$0xff]
          %v5740 = vld [vmem:[#allocation8 + $0x3c40] sm:$0xff]
          %v5741 = vld [vmem:[#allocation8 + $0x3c48] sm:$0xff]
          %v5742 = vld [vmem:[#allocation8 + $0x3c50] sm:$0xff]
          %v5743 = vld [vmem:[#allocation8 + $0x3c58] sm:$0xff]
          %v5744 = vld [vmem:[#allocation8 + $0x3c60] sm:$0xff]
          %v5745 = vld [vmem:[#allocation8 + $0x3c68] sm:$0xff]
          %v5746 = vld [vmem:[#allocation8 + $0x3c70] sm:$0xff]
          %v5747 = vld [vmem:[#allocation8 + $0x3c78] sm:$0xff]
          %v5748 = vld [vmem:[#allocation8 + $0x3c80] sm:$0xff]
          %v5749 = vld [vmem:[#allocation8 + $0x3c88] sm:$0xff]
          %v5750 = vld [vmem:[#allocation8 + $0x3c90] sm:$0xff]
          %v5751 = vld [vmem:[#allocation8 + $0x3c98] sm:$0xff]
          %v5752 = vld [vmem:[#allocation8 + $0x3ca0] sm:$0xff]
          %v5753 = vld [vmem:[#allocation8 + $0x3ca8] sm:$0xff]
          %v5754 = vld [vmem:[#allocation8 + $0x3cb0] sm:$0xff]
          %v5755 = vld [vmem:[#allocation8 + $0x3cb8] sm:$0xff]
          %v5756 = vld [vmem:[#allocation8 + $0x3cc0] sm:$0xff]
          %v5757 = vld [vmem:[#allocation8 + $0x3cc8] sm:$0xff]
          %v5758 = vld [vmem:[#allocation8 + $0x3cd0] sm:$0xff]
          %v5759 = vld [vmem:[#allocation8 + $0x3cd8] sm:$0xff]
          %v5760 = vld [vmem:[#allocation8 + $0x3ce0] sm:$0xff]
          %v5761 = vld [vmem:[#allocation8 + $0x3ce8] sm:$0xff]
          %v5762 = vld [vmem:[#allocation8 + $0x3cf0] sm:$0xff]
          %v5763 = vld [vmem:[#allocation8 + $0x3cf8] sm:$0xff]
          %v5764 = vld [vmem:[#allocation8 + $0x3d00] sm:$0xff]
          %v5765 = vld [vmem:[#allocation8 + $0x3d08] sm:$0xff]
          %v5766 = vld [vmem:[#allocation8 + $0x3d10] sm:$0xff]
          %v5767 = vld [vmem:[#allocation8 + $0x3d18] sm:$0xff]
          %v5768 = vld [vmem:[#allocation8 + $0x3d20] sm:$0xff]
          %v5769 = vld [vmem:[#allocation8 + $0x3d28] sm:$0xff]
          %v5770 = vld [vmem:[#allocation8 + $0x3d30] sm:$0xff]
          %v5771 = vld [vmem:[#allocation8 + $0x3d38] sm:$0xff]
          %v5772 = vld [vmem:[#allocation8 + $0x3d40] sm:$0xff]
          %v5773 = vld [vmem:[#allocation8 + $0x3d48] sm:$0xff]
          %v5774 = vld [vmem:[#allocation8 + $0x3d50] sm:$0xff]
          %v5775 = vld [vmem:[#allocation8 + $0x3d58] sm:$0xff]
          %v5776 = vld [vmem:[#allocation8 + $0x3d60] sm:$0xff]
          %v5777 = vld [vmem:[#allocation8 + $0x3d68] sm:$0xff]
          %v5778 = vld [vmem:[#allocation8 + $0x3d70] sm:$0xff]
          %v5779 = vld [vmem:[#allocation8 + $0x3d78] sm:$0xff]
          %v5780 = vld [vmem:[#allocation8 + $0x3d80] sm:$0xff]
          %v5781 = vld [vmem:[#allocation8 + $0x3d88] sm:$0xff]
          %v5782 = vld [vmem:[#allocation8 + $0x3d90] sm:$0xff]
          %v5783 = vld [vmem:[#allocation8 + $0x3d98] sm:$0xff]
          %v5784 = vld [vmem:[#allocation8 + $0x3da0] sm:$0xff]
          %v5785 = vld [vmem:[#allocation8 + $0x3da8] sm:$0xff]
          %v5786 = vld [vmem:[#allocation8 + $0x3db0] sm:$0xff]
          %v5787 = vld [vmem:[#allocation8 + $0x3db8] sm:$0xff]
          %v5788 = vld [vmem:[#allocation8 + $0x3dc0] sm:$0xff]
          %v5789 = vld [vmem:[#allocation8 + $0x3dc8] sm:$0xff]
          %v5790 = vld [vmem:[#allocation8 + $0x3dd0] sm:$0xff]
          %v5791 = vld [vmem:[#allocation8 + $0x3dd8] sm:$0xff]
          %v5792 = vld [vmem:[#allocation8 + $0x3de0] sm:$0xff]
          %v5793 = vld [vmem:[#allocation8 + $0x3de8] sm:$0xff]
          %v5794 = vld [vmem:[#allocation8 + $0x3df0] sm:$0xff]
          %v5795 = vld [vmem:[#allocation8 + $0x3df8] sm:$0xff]
          %v5796 = vld [vmem:[#allocation8 + $0x3e00] sm:$0xff]
          %v5797 = vld [vmem:[#allocation8 + $0x3e08] sm:$0xff]
          %v5798 = vld [vmem:[#allocation8 + $0x3e10] sm:$0xff]
          %v5799 = vld [vmem:[#allocation8 + $0x3e18] sm:$0xff]
          %v5800 = vld [vmem:[#allocation8 + $0x3e20] sm:$0xff]
          %v5801 = vld [vmem:[#allocation8 + $0x3e28] sm:$0xff]
          %v5802 = vld [vmem:[#allocation8 + $0x3e30] sm:$0xff]
          %v5803 = vld [vmem:[#allocation8 + $0x3e38] sm:$0xff]
          %v5804 = vld [vmem:[#allocation8 + $0x3e40] sm:$0xff]
          %v5805 = vld [vmem:[#allocation8 + $0x3e48] sm:$0xff]
          %v5806 = vld [vmem:[#allocation8 + $0x3e50] sm:$0xff]
          %v5807 = vld [vmem:[#allocation8 + $0x3e58] sm:$0xff]
          %v5808 = vld [vmem:[#allocation8 + $0x3e60] sm:$0xff]
          %v5809 = vld [vmem:[#allocation8 + $0x3e68] sm:$0xff]
          %v5810 = vld [vmem:[#allocation8 + $0x3e70] sm:$0xff]
          %v5811 = vld [vmem:[#allocation8 + $0x3e78] sm:$0xff]
          %v5812 = vld [vmem:[#allocation8 + $0x3e80] sm:$0xff]
          %v5813 = vld [vmem:[#allocation8 + $0x3e88] sm:$0xff]
          %v5814 = vld [vmem:[#allocation8 + $0x3e90] sm:$0xff]
          %v5815 = vld [vmem:[#allocation8 + $0x3e98] sm:$0xff]
          %v5816 = vld [vmem:[#allocation8 + $0x3ea0] sm:$0xff]
          %v5817 = vld [vmem:[#allocation8 + $0x3ea8] sm:$0xff]
          %v5818 = vld [vmem:[#allocation8 + $0x3eb0] sm:$0xff]
          %v5819 = vld [vmem:[#allocation8 + $0x3eb8] sm:$0xff]
          %v5820 = vld [vmem:[#allocation8 + $0x3ec0] sm:$0xff]
          %v5821 = vld [vmem:[#allocation8 + $0x3ec8] sm:$0xff]
          %v5822 = vld [vmem:[#allocation8 + $0x3ed0] sm:$0xff]
          %v5823 = vld [vmem:[#allocation8 + $0x3ed8] sm:$0xff]
          %v5824 = vld [vmem:[#allocation8 + $0x3ee0] sm:$0xff]
          %v5825 = vld [vmem:[#allocation8 + $0x3ee8] sm:$0xff]
          %v5826 = vld [vmem:[#allocation8 + $0x3ef0] sm:$0xff]
          %v5827 = vld [vmem:[#allocation8 + $0x3ef8] sm:$0xff]
          %v5828 = vld [vmem:[#allocation8 + $0x3f00] sm:$0xff]
          %v5829 = vld [vmem:[#allocation8 + $0x3f08] sm:$0xff]
          %v5830 = vld [vmem:[#allocation8 + $0x3f10] sm:$0xff]
          %v5831 = vld [vmem:[#allocation8 + $0x3f18] sm:$0xff]
          %v5832 = vld [vmem:[#allocation8 + $0x3f20] sm:$0xff]
          %v5833 = vld [vmem:[#allocation8 + $0x3f28] sm:$0xff]
          %v5834 = vld [vmem:[#allocation8 + $0x3f30] sm:$0xff]
          %v5835 = vld [vmem:[#allocation8 + $0x3f38] sm:$0xff]
          %v5836 = vld [vmem:[#allocation8 + $0x3f40] sm:$0xff]
          %v5837 = vld [vmem:[#allocation8 + $0x3f48] sm:$0xff]
          %v5838 = vld [vmem:[#allocation8 + $0x3f50] sm:$0xff]
          %v5839 = vld [vmem:[#allocation8 + $0x3f58] sm:$0xff]
          %v5840 = vld [vmem:[#allocation8 + $0x3f60] sm:$0xff]
          %v5841 = vld [vmem:[#allocation8 + $0x3f68] sm:$0xff]
          %v5842 = vld [vmem:[#allocation8 + $0x3f70] sm:$0xff]
          %v5843 = vld [vmem:[#allocation8 + $0x3f78] sm:$0xff]
          %v5844 = vld [vmem:[#allocation8 + $0x3f80] sm:$0xff]
          %v5845 = vld [vmem:[#allocation8 + $0x3f88] sm:$0xff]
          %v5846 = vld [vmem:[#allocation8 + $0x3f90] sm:$0xff]
          %v5847 = vld [vmem:[#allocation8 + $0x3f98] sm:$0xff]
          %v5848 = vld [vmem:[#allocation8 + $0x3fa0] sm:$0xff]
          %v5849 = vld [vmem:[#allocation8 + $0x3fa8] sm:$0xff]
          %v5850 = vld [vmem:[#allocation8 + $0x3fb0] sm:$0xff]
          %v5851 = vld [vmem:[#allocation8 + $0x3fb8] sm:$0xff]
          %v5852 = vld [vmem:[#allocation8 + $0x3fc0] sm:$0xff]
          %v5853 = vld [vmem:[#allocation8 + $0x3fc8] sm:$0xff]
          %v5854 = vld [vmem:[#allocation8 + $0x3fd0] sm:$0xff]
          %v5855 = vld [vmem:[#allocation8 + $0x3fd8] sm:$0xff]
          %v5856 = vld [vmem:[#allocation8 + $0x3fe0] sm:$0xff]
          %v5857 = vld [vmem:[#allocation8 + $0x3fe8] sm:$0xff]
          %v5858 = vld [vmem:[#allocation8 + $0x3ff0] sm:$0xff]
          %v5859 = vld [vmem:[#allocation8 + $0x3ff8] sm:$0xff]
          %v5860 = vld [vmem:[#allocation9] sm:$0xff]
          %v5862 = vlaneseq
          %v5863 = vshrl.u32 %v5862, 7
          %v5864 = vsub.s32 0, %v5863
          %v5865 = vrot.slane %v5860, %v5864
          %v5866 = vlaneseq
          %v5867 = vshrl.u32 %v5866, 7
          %v5868 = vsub.s32 1, %v5867
          %v5869 = vrot.slane %v5860, %v5868
          %v5870 = vlaneseq
          %v5871 = vshrl.u32 %v5870, 7
          %v5872 = vsub.s32 2, %v5871
          %v5873 = vrot.slane %v5860, %v5872
          %v5874 = vlaneseq
          %v5875 = vshrl.u32 %v5874, 7
          %v5876 = vsub.s32 3, %v5875
          %v5877 = vrot.slane %v5860, %v5876
          %v5878 = vlaneseq
          %v5879 = vshrl.u32 %v5878, 7
          %v5880 = vsub.s32 4, %v5879
          %v5881 = vrot.slane %v5860, %v5880
          %v5882 = vlaneseq
          %v5883 = vshrl.u32 %v5882, 7
          %v5884 = vsub.s32 5, %v5883
          %v5885 = vrot.slane %v5860, %v5884
          %v5886 = vlaneseq
          %v5887 = vshrl.u32 %v5886, 7
          %v5888 = vsub.s32 6, %v5887
          %v5889 = vrot.slane %v5860, %v5888
          %v5890 = vlaneseq
          %v5891 = vshrl.u32 %v5890, 7
          %v5892 = vsub.s32 7, %v5891
          %v5893 = vrot.slane %v5860, %v5892
          %5902 = vmatprep.subr.mxu0 %v3813
          %5903 = vmatpush1.msra.mxu0 %v3812
          %5904 = vmatprep.subr.mxu0 %v3821
          %5905 = vmatpush1.msra.mxu0 %v3820
          %5906 = vmatprep.subr.mxu0 %v3829
          %5907 = vmatpush1.msra.mxu0 %v3828
          %5908 = vmatprep.subr.mxu0 %v3837
          %5909 = vmatpush1.msra.mxu0 %v3836
          %5910 = vmatprep.subr.mxu0 %v3845
          %5911 = vmatpush1.msra.mxu0 %v3844
          %5912 = vmatprep.subr.mxu0 %v3853
          %5913 = vmatpush1.msra.mxu0 %v3852
          %5914 = vmatprep.subr.mxu0 %v3861
          %5915 = vmatpush1.msra.mxu0 %v3860
          %5916 = vmatprep.subr.mxu0 %v3869
          %5917 = vmatpush1.msra.mxu0 %v3868
          %5918 = vmatprep.subr.mxu0 %v3877
          %5919 = vmatpush1.msra.mxu0 %v3876
          %5920 = vmatprep.subr.mxu0 %v3885
          %5921 = vmatpush1.msra.mxu0 %v3884
          %5922 = vmatprep.subr.mxu0 %v3893
          %5923 = vmatpush1.msra.mxu0 %v3892
          %5924 = vmatprep.subr.mxu0 %v3901
          %5925 = vmatpush1.msra.mxu0 %v3900
          %5926 = vmatprep.subr.mxu0 %v3909
          %5927 = vmatpush1.msra.mxu0 %v3908
          %5928 = vmatprep.subr.mxu0 %v3917
          %5929 = vmatpush1.msra.mxu0 %v3916
          %5930 = vmatprep.subr.mxu0 %v3925
          %5931 = vmatpush1.msra.mxu0 %v3924
          %5932 = vmatprep.subr.mxu0 %v3933
          %5933 = vmatpush1.msra.mxu0 %v3932
          %5934 = vmatprep.subr.mxu0 %v3941
          %5935 = vmatpush1.msra.mxu0 %v3940
          %5936 = vmatprep.subr.mxu0 %v3949
          %5937 = vmatpush1.msra.mxu0 %v3948
          %5938 = vmatprep.subr.mxu0 %v3957
          %5939 = vmatpush1.msra.mxu0 %v3956
          %5940 = vmatprep.subr.mxu0 %v3965
          %5941 = vmatpush1.msra.mxu0 %v3964
          %5942 = vmatprep.subr.mxu0 %v3973
          %5943 = vmatpush1.msra.mxu0 %v3972
          %5944 = vmatprep.subr.mxu0 %v3981
          %5945 = vmatpush1.msra.mxu0 %v3980
          %5946 = vmatprep.subr.mxu0 %v3989
          %5947 = vmatpush1.msra.mxu0 %v3988
          %5948 = vmatprep.subr.mxu0 %v3997
          %5949 = vmatpush1.msra.mxu0 %v3996
          %5950 = vmatprep.subr.mxu0 %v4005
          %5951 = vmatpush1.msra.mxu0 %v4004
          %5952 = vmatprep.subr.mxu0 %v4013
          %5953 = vmatpush1.msra.mxu0 %v4012
          %5954 = vmatprep.subr.mxu0 %v4021
          %5955 = vmatpush1.msra.mxu0 %v4020
          %5956 = vmatprep.subr.mxu0 %v4029
          %5957 = vmatpush1.msra.mxu0 %v4028
          %5958 = vmatprep.subr.mxu0 %v4037
          %5959 = vmatpush1.msra.mxu0 %v4036
          %5960 = vmatprep.subr.mxu0 %v4045
          %5961 = vmatpush1.msra.mxu0 %v4044
          %5962 = vmatprep.subr.mxu0 %v4053
          %5963 = vmatpush1.msra.mxu0 %v4052
          %5964 = vmatprep.subr.mxu0 %v4061
          %5965 = vmatpush1.msra.mxu0 %v4060
          %5966 = vmatprep.mubr.f32.mxu0 %v3797
          %5967 = vmatmul.mubr.f32.gmra.mrb[0].mxu0 %v3796
          %v5968 = vpop.f32.mrb[0].mxu0
          %v5969 = vadd.f32 %v5865, %v5968
          %v5970 = vpop.f32.mrb[0].mxu0
          %v5971 = vadd.f32 %v5869, %v5970
          %5972 = vdwg.mxu0
          %5973 = vmatprep.subr.mxu0 %v4069
          %5974 = vmatpush1.msra.mxu0 %v4068
          %5975 = vmatprep.subr.mxu0 %v4077
          %5976 = vmatpush1.msra.mxu0 %v4076
          %5977 = vmatprep.subr.mxu0 %v4085
          %5978 = vmatpush1.msra.mxu0 %v4084
          %5979 = vmatprep.subr.mxu0 %v4093
          %5980 = vmatpush1.msra.mxu0 %v4092
          %5981 = vmatprep.subr.mxu0 %v4101
          %5982 = vmatpush1.msra.mxu0 %v4100
          %5983 = vmatprep.subr.mxu0 %v4109
          %5984 = vmatpush1.msra.mxu0 %v4108
          %5985 = vmatprep.subr.mxu0 %v4117
          %5986 = vmatpush1.msra.mxu0 %v4116
          %5987 = vmatprep.subr.mxu0 %v4125
          %5988 = vmatpush1.msra.mxu0 %v4124
          %5989 = vmatprep.subr.mxu0 %v4133
          %5990 = vmatpush1.msra.mxu0 %v4132
          %5991 = vmatprep.subr.mxu0 %v4141
          %5992 = vmatpush1.msra.mxu0 %v4140
          %5993 = vmatprep.subr.mxu0 %v4149
          %5994 = vmatpush1.msra.mxu0 %v4148
          %5995 = vmatprep.subr.mxu0 %v4157
          %5996 = vmatpush1.msra.mxu0 %v4156
          %5997 = vmatprep.subr.mxu0 %v4165
          %5998 = vmatpush1.msra.mxu0 %v4164
          %5999 = vmatprep.subr.mxu0 %v4173
          %6000 = vmatpush1.msra.mxu0 %v4172
          %6001 = vmatprep.subr.mxu0 %v4181
          %6002 = vmatpush1.msra.mxu0 %v4180
          %6003 = vmatprep.subr.mxu0 %v4189
          %6004 = vmatpush1.msra.mxu0 %v4188
          %6005 = vmatprep.subr.mxu0 %v4197
          %6006 = vmatpush1.msra.mxu0 %v4196
          %6007 = vmatprep.subr.mxu0 %v4205
          %6008 = vmatpush1.msra.mxu0 %v4204
          %6009 = vmatprep.subr.mxu0 %v4213
          %6010 = vmatpush1.msra.mxu0 %v4212
          %6011 = vmatprep.subr.mxu0 %v4221
          %6012 = vmatpush1.msra.mxu0 %v4220
          %6013 = vmatprep.subr.mxu0 %v4229
          %6014 = vmatpush1.msra.mxu0 %v4228
          %6015 = vmatprep.subr.mxu0 %v4237
          %6016 = vmatpush1.msra.mxu0 %v4236
          %6017 = vmatprep.subr.mxu0 %v4245
          %6018 = vmatpush1.msra.mxu0 %v4244
          %6019 = vmatprep.subr.mxu0 %v4253
          %6020 = vmatpush1.msra.mxu0 %v4252
          %6021 = vmatprep.subr.mxu0 %v4261
          %6022 = vmatpush1.msra.mxu0 %v4260
          %6023 = vmatprep.subr.mxu0 %v4269
          %6024 = vmatpush1.msra.mxu0 %v4268
          %6025 = vmatprep.subr.mxu0 %v4277
          %6026 = vmatpush1.msra.mxu0 %v4276
          %6027 = vmatprep.subr.mxu0 %v4285
          %6028 = vmatpush1.msra.mxu0 %v4284
          %6029 = vmatprep.subr.mxu0 %v4293
          %6030 = vmatpush1.msra.mxu0 %v4292
          %6031 = vmatprep.subr.mxu0 %v4301
          %6032 = vmatpush1.msra.mxu0 %v4300
          %6033 = vmatprep.subr.mxu0 %v4309
          %6034 = vmatpush1.msra.mxu0 %v4308
          %6035 = vmatprep.subr.mxu0 %v4317
          %6036 = vmatpush1.msra.mxu0 %v4316
          %6037 = vmatprep.mubr.f32.mxu0 %v3799
          %6038 = vmatmul.mubr.f32.gmra.mrb[0].mxu0 %v3798
          %v6039 = vpop.f32.mrb[0].mxu0
          %v6040 = vadd.f32 %v5969, %v6039
          %v6041 = vpop.f32.mrb[0].mxu0
          %v6042 = vadd.f32 %v5971, %v6041
          %6043 = vdwg.mxu0
          %6044 = vmatprep.subr.mxu0 %v4325
          %6045 = vmatpush1.msra.mxu0 %v4324
          %6046 = vmatprep.subr.mxu0 %v4333
          %6047 = vmatpush1.msra.mxu0 %v4332
          %6048 = vmatprep.subr.mxu0 %v4341
          %6049 = vmatpush1.msra.mxu0 %v4340
          %6050 = vmatprep.subr.mxu0 %v4349
          %6051 = vmatpush1.msra.mxu0 %v4348
          %6052 = vmatprep.subr.mxu0 %v4357
          %6053 = vmatpush1.msra.mxu0 %v4356
          %6054 = vmatprep.subr.mxu0 %v4365
          %6055 = vmatpush1.msra.mxu0 %v4364
          %6056 = vmatprep.subr.mxu0 %v4373
          %6057 = vmatpush1.msra.mxu0 %v4372
          %6058 = vmatprep.subr.mxu0 %v4381
          %6059 = vmatpush1.msra.mxu0 %v4380
          %6060 = vmatprep.subr.mxu0 %v4389
          %6061 = vmatpush1.msra.mxu0 %v4388
          %6062 = vmatprep.subr.mxu0 %v4397
          %6063 = vmatpush1.msra.mxu0 %v4396
          %6064 = vmatprep.subr.mxu0 %v4405
          %6065 = vmatpush1.msra.mxu0 %v4404
          %6066 = vmatprep.subr.mxu0 %v4413
          %6067 = vmatpush1.msra.mxu0 %v4412
          %6068 = vmatprep.subr.mxu0 %v4421
          %6069 = vmatpush1.msra.mxu0 %v4420
          %6070 = vmatprep.subr.mxu0 %v4429
          %6071 = vmatpush1.msra.mxu0 %v4428
          %6072 = vmatprep.subr.mxu0 %v4437
          %6073 = vmatpush1.msra.mxu0 %v4436
          %6074 = vmatprep.subr.mxu0 %v4445
          %6075 = vmatpush1.msra.mxu0 %v4444
          %6076 = vmatprep.subr.mxu0 %v4453
          %6077 = vmatpush1.msra.mxu0 %v4452
          %6078 = vmatprep.subr.mxu0 %v4461
          %6079 = vmatpush1.msra.mxu0 %v4460
          %6080 = vmatprep.subr.mxu0 %v4469
          %6081 = vmatpush1.msra.mxu0 %v4468
          %6082 = vmatprep.subr.mxu0 %v4477
          %6083 = vmatpush1.msra.mxu0 %v4476
          %6084 = vmatprep.subr.mxu0 %v4485
          %6085 = vmatpush1.msra.mxu0 %v4484
          %6086 = vmatprep.subr.mxu0 %v4493
          %6087 = vmatpush1.msra.mxu0 %v4492
          %6088 = vmatprep.subr.mxu0 %v4501
          %6089 = vmatpush1.msra.mxu0 %v4500
          %6090 = vmatprep.subr.mxu0 %v4509
          %6091 = vmatpush1.msra.mxu0 %v4508
          %6092 = vmatprep.subr.mxu0 %v4517
          %6093 = vmatpush1.msra.mxu0 %v4516
          %6094 = vmatprep.subr.mxu0 %v4525
          %6095 = vmatpush1.msra.mxu0 %v4524
          %6096 = vmatprep.subr.mxu0 %v4533
          %6097 = vmatpush1.msra.mxu0 %v4532
          %6098 = vmatprep.subr.mxu0 %v4541
          %6099 = vmatpush1.msra.mxu0 %v4540
          %6100 = vmatprep.subr.mxu0 %v4549
          %6101 = vmatpush1.msra.mxu0 %v4548
          %6102 = vmatprep.subr.mxu0 %v4557
          %6103 = vmatpush1.msra.mxu0 %v4556
          %6104 = vmatprep.subr.mxu0 %v4565
          %6105 = vmatpush1.msra.mxu0 %v4564
          %6106 = vmatprep.subr.mxu0 %v4573
          %6107 = vmatpush1.msra.mxu0 %v4572
          %6108 = vmatprep.mubr.f32.mxu0 %v3801
          %6109 = vmatmul.mubr.f32.gmra.mrb[0].mxu0 %v3800
          %v6110 = vpop.f32.mrb[0].mxu0
          %v6111 = vadd.f32 %v6040, %v6110
          %v6112 = vpop.f32.mrb[0].mxu0
          %v6113 = vadd.f32 %v6042, %v6112
          %6114 = vdwg.mxu0
          %6115 = vmatprep.subr.mxu0 %v4581
          %6116 = vmatpush1.msra.mxu0 %v4580
          %6117 = vmatprep.subr.mxu0 %v4589
          %6118 = vmatpush1.msra.mxu0 %v4588
          %6119 = vmatprep.subr.mxu0 %v4597
          %6120 = vmatpush1.msra.mxu0 %v4596
          %6121 = vmatprep.subr.mxu0 %v4605
          %6122 = vmatpush1.msra.mxu0 %v4604
          %6123 = vmatprep.subr.mxu0 %v4613
          %6124 = vmatpush1.msra.mxu0 %v4612
          %6125 = vmatprep.subr.mxu0 %v4621
          %6126 = vmatpush1.msra.mxu0 %v4620
          %6127 = vmatprep.subr.mxu0 %v4629
          %6128 = vmatpush1.msra.mxu0 %v4628
          %6129 = vmatprep.subr.mxu0 %v4637
          %6130 = vmatpush1.msra.mxu0 %v4636
          %6131 = vmatprep.subr.mxu0 %v4645
          %6132 = vmatpush1.msra.mxu0 %v4644
          %6133 = vmatprep.subr.mxu0 %v4653
          %6134 = vmatpush1.msra.mxu0 %v4652
          %6135 = vmatprep.subr.mxu0 %v4661
          %6136 = vmatpush1.msra.mxu0 %v4660
          %6137 = vmatprep.subr.mxu0 %v4669
          %6138 = vmatpush1.msra.mxu0 %v4668
          %6139 = vmatprep.subr.mxu0 %v4677
          %6140 = vmatpush1.msra.mxu0 %v4676
          %6141 = vmatprep.subr.mxu0 %v4685
          %6142 = vmatpush1.msra.mxu0 %v4684
          %6143 = vmatprep.subr.mxu0 %v4693
          %6144 = vmatpush1.msra.mxu0 %v4692
          %6145 = vmatprep.subr.mxu0 %v4701
          %6146 = vmatpush1.msra.mxu0 %v4700
          %6147 = vmatprep.subr.mxu0 %v4709
          %6148 = vmatpush1.msra.mxu0 %v4708
          %6149 = vmatprep.subr.mxu0 %v4717
          %6150 = vmatpush1.msra.mxu0 %v4716
          %6151 = vmatprep.subr.mxu0 %v4725
          %6152 = vmatpush1.msra.mxu0 %v4724
          %6153 = vmatprep.subr.mxu0 %v4733
          %6154 = vmatpush1.msra.mxu0 %v4732
          %6155 = vmatprep.subr.mxu0 %v4741
          %6156 = vmatpush1.msra.mxu0 %v4740
          %6157 = vmatprep.subr.mxu0 %v4749
          %6158 = vmatpush1.msra.mxu0 %v4748
          %6159 = vmatprep.subr.mxu0 %v4757
          %6160 = vmatpush1.msra.mxu0 %v4756
          %6161 = vmatprep.subr.mxu0 %v4765
          %6162 = vmatpush1.msra.mxu0 %v4764
          %6163 = vmatprep.subr.mxu0 %v4773
          %6164 = vmatpush1.msra.mxu0 %v4772
          %6165 = vmatprep.subr.mxu0 %v4781
          %6166 = vmatpush1.msra.mxu0 %v4780
          %6167 = vmatprep.subr.mxu0 %v4789
          %6168 = vmatpush1.msra.mxu0 %v4788
          %6169 = vmatprep.subr.mxu0 %v4797
          %6170 = vmatpush1.msra.mxu0 %v4796
          %6171 = vmatprep.subr.mxu0 %v4805
          %6172 = vmatpush1.msra.mxu0 %v4804
          %6173 = vmatprep.subr.mxu0 %v4813
          %6174 = vmatpush1.msra.mxu0 %v4812
          %6175 = vmatprep.subr.mxu0 %v4821
          %6176 = vmatpush1.msra.mxu0 %v4820
          %6177 = vmatprep.subr.mxu0 %v4829
          %6178 = vmatpush1.msra.mxu0 %v4828
          %6179 = vmatprep.mubr.f32.mxu0 %v3803
          %6180 = vmatmul.mubr.f32.gmra.mrb[0].mxu0 %v3802
          %v6181 = vpop.f32.mrb[0].mxu0
          %v6182 = vadd.f32 %v6111, %v6181
          %v6183 = vpop.f32.mrb[0].mxu0
          %v6184 = vadd.f32 %v6113, %v6183
          %6185 = vdwg.mxu0
          %6186 = vmatprep.subr.mxu0 %v4837
          %6187 = vmatpush1.msra.mxu0 %v4836
          %6188 = vmatprep.subr.mxu0 %v4845
          %6189 = vmatpush1.msra.mxu0 %v4844
          %6190 = vmatprep.subr.mxu0 %v4853
          %6191 = vmatpush1.msra.mxu0 %v4852
          %6192 = vmatprep.subr.mxu0 %v4861
          %6193 = vmatpush1.msra.mxu0 %v4860
          %6194 = vmatprep.subr.mxu0 %v4869
          %6195 = vmatpush1.msra.mxu0 %v4868
          %6196 = vmatprep.subr.mxu0 %v4877
          %6197 = vmatpush1.msra.mxu0 %v4876
          %6198 = vmatprep.subr.mxu0 %v4885
          %6199 = vmatpush1.msra.mxu0 %v4884
          %6200 = vmatprep.subr.mxu0 %v4893
          %6201 = vmatpush1.msra.mxu0 %v4892
          %6202 = vmatprep.subr.mxu0 %v4901
          %6203 = vmatpush1.msra.mxu0 %v4900
          %6204 = vmatprep.subr.mxu0 %v4909
          %6205 = vmatpush1.msra.mxu0 %v4908
          %6206 = vmatprep.subr.mxu0 %v4917
          %6207 = vmatpush1.msra.mxu0 %v4916
          %6208 = vmatprep.subr.mxu0 %v4925
          %6209 = vmatpush1.msra.mxu0 %v4924
          %6210 = vmatprep.subr.mxu0 %v4933
          %6211 = vmatpush1.msra.mxu0 %v4932
          %6212 = vmatprep.subr.mxu0 %v4941
          %6213 = vmatpush1.msra.mxu0 %v4940
          %6214 = vmatprep.subr.mxu0 %v4949
          %6215 = vmatpush1.msra.mxu0 %v4948
          %6216 = vmatprep.subr.mxu0 %v4957
          %6217 = vmatpush1.msra.mxu0 %v4956
          %6218 = vmatprep.subr.mxu0 %v4965
          %6219 = vmatpush1.msra.mxu0 %v4964
          %6220 = vmatprep.subr.mxu0 %v4973
          %6221 = vmatpush1.msra.mxu0 %v4972
          %6222 = vmatprep.subr.mxu0 %v4981
          %6223 = vmatpush1.msra.mxu0 %v4980
          %6224 = vmatprep.subr.mxu0 %v4989
          %6225 = vmatpush1.msra.mxu0 %v4988
          %6226 = vmatprep.subr.mxu0 %v4997
          %6227 = vmatpush1.msra.mxu0 %v4996
          %6228 = vmatprep.subr.mxu0 %v5005
          %6229 = vmatpush1.msra.mxu0 %v5004
          %6230 = vmatprep.subr.mxu0 %v5013
          %6231 = vmatpush1.msra.mxu0 %v5012
          %6232 = vmatprep.subr.mxu0 %v5021
          %6233 = vmatpush1.msra.mxu0 %v5020
          %6234 = vmatprep.subr.mxu0 %v5029
          %6235 = vmatpush1.msra.mxu0 %v5028
          %6236 = vmatprep.subr.mxu0 %v5037
          %6237 = vmatpush1.msra.mxu0 %v5036
          %6238 = vmatprep.subr.mxu0 %v5045
          %6239 = vmatpush1.msra.mxu0 %v5044
          %6240 = vmatprep.subr.mxu0 %v5053
          %6241 = vmatpush1.msra.mxu0 %v5052
          %6242 = vmatprep.subr.mxu0 %v5061
          %6243 = vmatpush1.msra.mxu0 %v5060
          %6244 = vmatprep.subr.mxu0 %v5069
          %6245 = vmatpush1.msra.mxu0 %v5068
          %6246 = vmatprep.subr.mxu0 %v5077
          %6247 = vmatpush1.msra.mxu0 %v5076
          %6248 = vmatprep.subr.mxu0 %v5085
          %6249 = vmatpush1.msra.mxu0 %v5084
          %6250 = vmatprep.mubr.f32.mxu0 %v3805
          %6251 = vmatmul.mubr.f32.gmra.mrb[0].mxu0 %v3804
          %v6252 = vpop.f32.mrb[0].mxu0
          %v6253 = vadd.f32 %v6182, %v6252
          %v6254 = vpop.f32.mrb[0].mxu0
          %v6255 = vadd.f32 %v6184, %v6254
          %6256 = vdwg.mxu0
          %6257 = vmatprep.subr.mxu0 %v5093
          %6258 = vmatpush1.msra.mxu0 %v5092
          %6259 = vmatprep.subr.mxu0 %v5101
          %6260 = vmatpush1.msra.mxu0 %v5100
          %6261 = vmatprep.subr.mxu0 %v5109
          %6262 = vmatpush1.msra.mxu0 %v5108
          %6263 = vmatprep.subr.mxu0 %v5117
          %6264 = vmatpush1.msra.mxu0 %v5116
          %6265 = vmatprep.subr.mxu0 %v5125
          %6266 = vmatpush1.msra.mxu0 %v5124
          %6267 = vmatprep.subr.mxu0 %v5133
          %6268 = vmatpush1.msra.mxu0 %v5132
          %6269 = vmatprep.subr.mxu0 %v5141
          %6270 = vmatpush1.msra.mxu0 %v5140
          %6271 = vmatprep.subr.mxu0 %v5149
          %6272 = vmatpush1.msra.mxu0 %v5148
          %6273 = vmatprep.subr.mxu0 %v5157
          %6274 = vmatpush1.msra.mxu0 %v5156
          %6275 = vmatprep.subr.mxu0 %v5165
          %6276 = vmatpush1.msra.mxu0 %v5164
          %6277 = vmatprep.subr.mxu0 %v5173
          %6278 = vmatpush1.msra.mxu0 %v5172
          %6279 = vmatprep.subr.mxu0 %v5181
          %6280 = vmatpush1.msra.mxu0 %v5180
          %6281 = vmatprep.subr.mxu0 %v5189
          %6282 = vmatpush1.msra.mxu0 %v5188
          %6283 = vmatprep.subr.mxu0 %v5197
          %6284 = vmatpush1.msra.mxu0 %v5196
          %6285 = vmatprep.subr.mxu0 %v5205
          %6286 = vmatpush1.msra.mxu0 %v5204
          %6287 = vmatprep.subr.mxu0 %v5213
          %6288 = vmatpush1.msra.mxu0 %v5212
          %6289 = vmatprep.subr.mxu0 %v5221
          %6290 = vmatpush1.msra.mxu0 %v5220
          %6291 = vmatprep.subr.mxu0 %v5229
          %6292 = vmatpush1.msra.mxu0 %v5228
          %6293 = vmatprep.subr.mxu0 %v5237
          %6294 = vmatpush1.msra.mxu0 %v5236
          %6295 = vmatprep.subr.mxu0 %v5245
          %6296 = vmatpush1.msra.mxu0 %v5244
          %6297 = vmatprep.subr.mxu0 %v5253
          %6298 = vmatpush1.msra.mxu0 %v5252
          %6299 = vmatprep.subr.mxu0 %v5261
          %6300 = vmatpush1.msra.mxu0 %v5260
          %6301 = vmatprep.subr.mxu0 %v5269
          %6302 = vmatpush1.msra.mxu0 %v5268
          %6303 = vmatprep.subr.mxu0 %v5277
          %6304 = vmatpush1.msra.mxu0 %v5276
          %6305 = vmatprep.subr.mxu0 %v5285
          %6306 = vmatpush1.msra.mxu0 %v5284
          %6307 = vmatprep.subr.mxu0 %v5293
          %6308 = vmatpush1.msra.mxu0 %v5292
          %6309 = vmatprep.subr.mxu0 %v5301
          %6310 = vmatpush1.msra.mxu0 %v5300
          %6311 = vmatprep.subr.mxu0 %v5309
          %6312 = vmatpush1.msra.mxu0 %v5308
          %6313 = vmatprep.subr.mxu0 %v5317
          %6314 = vmatpush1.msra.mxu0 %v5316
          %6315 = vmatprep.subr.mxu0 %v5325
          %6316 = vmatpush1.msra.mxu0 %v5324
          %6317 = vmatprep.subr.mxu0 %v5333
          %6318 = vmatpush1.msra.mxu0 %v5332
          %6319 = vmatprep.subr.mxu0 %v5341
          %6320 = vmatpush1.msra.mxu0 %v5340
          %6321 = vmatprep.mubr.f32.mxu0 %v3807
          %6322 = vmatmul.mubr.f32.gmra.mrb[0].mxu0 %v3806
          %v6323 = vpop.f32.mrb[0].mxu0
          %v6324 = vadd.f32 %v6253, %v6323
          %v6325 = vpop.f32.mrb[0].mxu0
          %v6326 = vadd.f32 %v6255, %v6325
          %6327 = vdwg.mxu0
          %6328 = vmatprep.subr.mxu0 %v5349
          %6329 = vmatpush1.msra.mxu0 %v5348
          %6330 = vmatprep.subr.mxu0 %v5357
          %6331 = vmatpush1.msra.mxu0 %v5356
          %6332 = vmatprep.subr.mxu0 %v5365
          %6333 = vmatpush1.msra.mxu0 %v5364
          %6334 = vmatprep.subr.mxu0 %v5373
          %6335 = vmatpush1.msra.mxu0 %v5372
          %6336 = vmatprep.subr.mxu0 %v5381
          %6337 = vmatpush1.msra.mxu0 %v5380
          %6338 = vmatprep.subr.mxu0 %v5389
          %6339 = vmatpush1.msra.mxu0 %v5388
          %6340 = vmatprep.subr.mxu0 %v5397
          %6341 = vmatpush1.msra.mxu0 %v5396
          %6342 = vmatprep.subr.mxu0 %v5405
          %6343 = vmatpush1.msra.mxu0 %v5404
          %6344 = vmatprep.subr.mxu0 %v5413
          %6345 = vmatpush1.msra.mxu0 %v5412
          %6346 = vmatprep.subr.mxu0 %v5421
          %6347 = vmatpush1.msra.mxu0 %v5420
          %6348 = vmatprep.subr.mxu0 %v5429
          %6349 = vmatpush1.msra.mxu0 %v5428
          %6350 = vmatprep.subr.mxu0 %v5437
          %6351 = vmatpush1.msra.mxu0 %v5436
          %6352 = vmatprep.subr.mxu0 %v5445
          %6353 = vmatpush1.msra.mxu0 %v5444
          %6354 = vmatprep.subr.mxu0 %v5453
          %6355 = vmatpush1.msra.mxu0 %v5452
          %6356 = vmatprep.subr.mxu0 %v5461
          %6357 = vmatpush1.msra.mxu0 %v5460
          %6358 = vmatprep.subr.mxu0 %v5469
          %6359 = vmatpush1.msra.mxu0 %v5468
          %6360 = vmatprep.subr.mxu0 %v5477
          %6361 = vmatpush1.msra.mxu0 %v5476
          %6362 = vmatprep.subr.mxu0 %v5485
          %6363 = vmatpush1.msra.mxu0 %v5484
          %6364 = vmatprep.subr.mxu0 %v5493
          %6365 = vmatpush1.msra.mxu0 %v5492
          %6366 = vmatprep.subr.mxu0 %v5501
          %6367 = vmatpush1.msra.mxu0 %v5500
          %6368 = vmatprep.subr.mxu0 %v5509
          %6369 = vmatpush1.msra.mxu0 %v5508
          %6370 = vmatprep.subr.mxu0 %v5517
          %6371 = vmatpush1.msra.mxu0 %v5516
          %6372 = vmatprep.subr.mxu0 %v5525
          %6373 = vmatpush1.msra.mxu0 %v5524
          %6374 = vmatprep.subr.mxu0 %v5533
          %6375 = vmatpush1.msra.mxu0 %v5532
          %6376 = vmatprep.subr.mxu0 %v5541
          %6377 = vmatpush1.msra.mxu0 %v5540
          %6378 = vmatprep.subr.mxu0 %v5549
          %6379 = vmatpush1.msra.mxu0 %v5548
          %6380 = vmatprep.subr.mxu0 %v5557
          %6381 = vmatpush1.msra.mxu0 %v5556
          %6382 = vmatprep.subr.mxu0 %v5565
          %6383 = vmatpush1.msra.mxu0 %v5564
          %6384 = vmatprep.subr.mxu0 %v5573
          %6385 = vmatpush1.msra.mxu0 %v5572
          %6386 = vmatprep.subr.mxu0 %v5581
          %6387 = vmatpush1.msra.mxu0 %v5580
          %6388 = vmatprep.subr.mxu0 %v5589
          %6389 = vmatpush1.msra.mxu0 %v5588
          %6390 = vmatprep.subr.mxu0 %v5597
          %6391 = vmatpush1.msra.mxu0 %v5596
          %6392 = vmatprep.mubr.f32.mxu0 %v3809
          %6393 = vmatmul.mubr.f32.gmra.mrb[0].mxu0 %v3808
          %v6394 = vpop.f32.mrb[0].mxu0
          %v6395 = vadd.f32 %v6324, %v6394
          %v6396 = vpop.f32.mrb[0].mxu0
          %v6397 = vadd.f32 %v6326, %v6396
          %6398 = vdwg.mxu0
          %6399 = vmatprep.subr.mxu0 %v5605
          %6400 = vmatpush1.msra.mxu0 %v5604
          %6401 = vmatprep.subr.mxu0 %v5613
          %6402 = vmatpush1.msra.mxu0 %v5612
          %6403 = vmatprep.subr.mxu0 %v5621
          %6404 = vmatpush1.msra.mxu0 %v5620
          %6405 = vmatprep.subr.mxu0 %v5629
          %6406 = vmatpush1.msra.mxu0 %v5628
          %6407 = vmatprep.subr.mxu0 %v5637
          %6408 = vmatpush1.msra.mxu0 %v5636
          %6409 = vmatprep.subr.mxu0 %v5645
          %6410 = vmatpush1.msra.mxu0 %v5644
          %6411 = vmatprep.subr.mxu0 %v5653
          %6412 = vmatpush1.msra.mxu0 %v5652
          %6413 = vmatprep.subr.mxu0 %v5661
          %6414 = vmatpush1.msra.mxu0 %v5660
          %6415 = vmatprep.subr.mxu0 %v5669
          %6416 = vmatpush1.msra.mxu0 %v5668
          %6417 = vmatprep.subr.mxu0 %v5677
          %6418 = vmatpush1.msra.mxu0 %v5676
          %6419 = vmatprep.subr.mxu0 %v5685
          %6420 = vmatpush1.msra.mxu0 %v5684
          %6421 = vmatprep.subr.mxu0 %v5693
          %6422 = vmatpush1.msra.mxu0 %v5692
          %6423 = vmatprep.subr.mxu0 %v5701
          %6424 = vmatpush1.msra.mxu0 %v5700
          %6425 = vmatprep.subr.mxu0 %v5709
          %6426 = vmatpush1.msra.mxu0 %v5708
          %6427 = vmatprep.subr.mxu0 %v5717
          %6428 = vmatpush1.msra.mxu0 %v5716
          %6429 = vmatprep.subr.mxu0 %v5725
          %6430 = vmatpush1.msra.mxu0 %v5724
          %6431 = vmatprep.subr.mxu0 %v5733
          %6432 = vmatpush1.msra.mxu0 %v5732
          %6433 = vmatprep.subr.mxu0 %v5741
          %6434 = vmatpush1.msra.mxu0 %v5740
          %6435 = vmatprep.subr.mxu0 %v5749
          %6436 = vmatpush1.msra.mxu0 %v5748
          %6437 = vmatprep.subr.mxu0 %v5757
          %6438 = vmatpush1.msra.mxu0 %v5756
          %6439 = vmatprep.subr.mxu0 %v5765
          %6440 = vmatpush1.msra.mxu0 %v5764
          %6441 = vmatprep.subr.mxu0 %v5773
          %6442 = vmatpush1.msra.mxu0 %v5772
          %6443 = vmatprep.subr.mxu0 %v5781
          %6444 = vmatpush1.msra.mxu0 %v5780
          %6445 = vmatprep.subr.mxu0 %v5789
          %6446 = vmatpush1.msra.mxu0 %v5788
          %6447 = vmatprep.subr.mxu0 %v5797
          %6448 = vmatpush1.msra.mxu0 %v5796
          %6449 = vmatprep.subr.mxu0 %v5805
          %6450 = vmatpush1.msra.mxu0 %v5804
          %6451 = vmatprep.subr.mxu0 %v5813
          %6452 = vmatpush1.msra.mxu0 %v5812
          %6453 = vmatprep.subr.mxu0 %v5821
          %6454 = vmatpush1.msra.mxu0 %v5820
          %6455 = vmatprep.subr.mxu0 %v5829
          %6456 = vmatpush1.msra.mxu0 %v5828
          %6457 = vmatprep.subr.mxu0 %v5837
          %6458 = vmatpush1.msra.mxu0 %v5836
          %6459 = vmatprep.subr.mxu0 %v5845
          %6460 = vmatpush1.msra.mxu0 %v5844
          %6461 = vmatprep.subr.mxu0 %v5853
          %6462 = vmatpush1.msra.mxu0 %v5852
          %6463 = vmatprep.mubr.f32.mxu0 %v3811
          %6464 = vmatmul.mubr.f32.gmra.mrb[0].mxu0 %v3810
          %v6465 = vpop.f32.mrb[0].mxu0
          %v6466 = vadd.f32 %v6395, %v6465
          %v6467 = vpop.f32.mrb[0].mxu0
          %v6468 = vadd.f32 %v6397, %v6467
          %6469 = vdwg.mxu0
          %6470 = vmatprep.subr.mxu0 %v3815
          %6471 = vmatpush1.msra.mxu0 %v3814
          %6472 = vmatprep.subr.mxu0 %v3823
          %6473 = vmatpush1.msra.mxu0 %v3822
          %6474 = vmatprep.subr.mxu0 %v3831
          %6475 = vmatpush1.msra.mxu0 %v3830
          %6476 = vmatprep.subr.mxu0 %v3839
          %6477 = vmatpush1.msra.mxu0 %v3838
          %6478 = vmatprep.subr.mxu0 %v3847
          %6479 = vmatpush1.msra.mxu0 %v3846
          %6480 = vmatprep.subr.mxu0 %v3855
          %6481 = vmatpush1.msra.mxu0 %v3854
          %6482 = vmatprep.subr.mxu0 %v3863
          %6483 = vmatpush1.msra.mxu0 %v3862
          %6484 = vmatprep.subr.mxu0 %v3871
          %6485 = vmatpush1.msra.mxu0 %v3870
          %6486 = vmatprep.subr.mxu0 %v3879
          %6487 = vmatpush1.msra.mxu0 %v3878
          %6488 = vmatprep.subr.mxu0 %v3887
          %6489 = vmatpush1.msra.mxu0 %v3886
          %6490 = vmatprep.subr.mxu0 %v3895
          %6491 = vmatpush1.msra.mxu0 %v3894
          %6492 = vmatprep.subr.mxu0 %v3903
          %6493 = vmatpush1.msra.mxu0 %v3902
          %6494 = vmatprep.subr.mxu0 %v3911
          %6495 = vmatpush1.msra.mxu0 %v3910
          %6496 = vmatprep.subr.mxu0 %v3919
          %6497 = vmatpush1.msra.mxu0 %v3918
          %6498 = vmatprep.subr.mxu0 %v3927
          %6499 = vmatpush1.msra.mxu0 %v3926
          %6500 = vmatprep.subr.mxu0 %v3935
          %6501 = vmatpush1.msra.mxu0 %v3934
          %6502 = vmatprep.subr.mxu0 %v3943
          %6503 = vmatpush1.msra.mxu0 %v3942
          %6504 = vmatprep.subr.mxu0 %v3951
          %6505 = vmatpush1.msra.mxu0 %v3950
          %6506 = vmatprep.subr.mxu0 %v3959
          %6507 = vmatpush1.msra.mxu0 %v3958
          %6508 = vmatprep.subr.mxu0 %v3967
          %6509 = vmatpush1.msra.mxu0 %v3966
          %6510 = vmatprep.subr.mxu0 %v3975
          %6511 = vmatpush1.msra.mxu0 %v3974
          %6512 = vmatprep.subr.mxu0 %v3983
          %6513 = vmatpush1.msra.mxu0 %v3982
          %6514 = vmatprep.subr.mxu0 %v3991
          %6515 = vmatpush1.msra.mxu0 %v3990
          %6516 = vmatprep.subr.mxu0 %v3999
          %6517 = vmatpush1.msra.mxu0 %v3998
          %6518 = vmatprep.subr.mxu0 %v4007
          %6519 = vmatpush1.msra.mxu0 %v4006
          %6520 = vmatprep.subr.mxu0 %v4015
          %6521 = vmatpush1.msra.mxu0 %v4014
          %6522 = vmatprep.subr.mxu0 %v4023
          %6523 = vmatpush1.msra.mxu0 %v4022
          %6524 = vmatprep.subr.mxu0 %v4031
          %6525 = vmatpush1.msra.mxu0 %v4030
          %6526 = vmatprep.subr.mxu0 %v4039
          %6527 = vmatpush1.msra.mxu0 %v4038
          %6528 = vmatprep.subr.mxu0 %v4047
          %6529 = vmatpush1.msra.mxu0 %v4046
          %6530 = vmatprep.subr.mxu0 %v4055
          %6531 = vmatpush1.msra.mxu0 %v4054
          %6532 = vmatprep.subr.mxu0 %v4063
          %6533 = vmatpush1.msra.mxu0 %v4062
          %6534 = vmatprep.mubr.f32.mxu0 %v3797
          %6535 = vmatmul.mubr.f32.gmra.mrb[0].mxu0 %v3796
          %v6536 = vpop.f32.mrb[0].mxu0
          %v6537 = vadd.f32 %v5873, %v6536
          %v6538 = vpop.f32.mrb[0].mxu0
          %v6539 = vadd.f32 %v5877, %v6538
          %6540 = vdwg.mxu0
          %6541 = vmatprep.subr.mxu0 %v4071
          %6542 = vmatpush1.msra.mxu0 %v4070
          %6543 = vmatprep.subr.mxu0 %v4079
          %6544 = vmatpush1.msra.mxu0 %v4078
          %6545 = vmatprep.subr.mxu0 %v4087
          %6546 = vmatpush1.msra.mxu0 %v4086
          %6547 = vmatprep.subr.mxu0 %v4095
          %6548 = vmatpush1.msra.mxu0 %v4094
          %6549 = vmatprep.subr.mxu0 %v4103
          %6550 = vmatpush1.msra.mxu0 %v4102
          %6551 = vmatprep.subr.mxu0 %v4111
          %6552 = vmatpush1.msra.mxu0 %v4110
          %6553 = vmatprep.subr.mxu0 %v4119
          %6554 = vmatpush1.msra.mxu0 %v4118
          %6555 = vmatprep.subr.mxu0 %v4127
          %6556 = vmatpush1.msra.mxu0 %v4126
          %6557 = vmatprep.subr.mxu0 %v4135
          %6558 = vmatpush1.msra.mxu0 %v4134
          %6559 = vmatprep.subr.mxu0 %v4143
          %6560 = vmatpush1.msra.mxu0 %v4142
          %6561 = vmatprep.subr.mxu0 %v4151
          %6562 = vmatpush1.msra.mxu0 %v4150
          %6563 = vmatprep.subr.mxu0 %v4159
          %6564 = vmatpush1.msra.mxu0 %v4158
          %6565 = vmatprep.subr.mxu0 %v4167
          %6566 = vmatpush1.msra.mxu0 %v4166
          %6567 = vmatprep.subr.mxu0 %v4175
          %6568 = vmatpush1.msra.mxu0 %v4174
          %6569 = vmatprep.subr.mxu0 %v4183
          %6570 = vmatpush1.msra.mxu0 %v4182
          %6571 = vmatprep.subr.mxu0 %v4191
          %6572 = vmatpush1.msra.mxu0 %v4190
          %6573 = vmatprep.subr.mxu0 %v4199
          %6574 = vmatpush1.msra.mxu0 %v4198
          %6575 = vmatprep.subr.mxu0 %v4207
          %6576 = vmatpush1.msra.mxu0 %v4206
          %6577 = vmatprep.subr.mxu0 %v4215
          %6578 = vmatpush1.msra.mxu0 %v4214
          %6579 = vmatprep.subr.mxu0 %v4223
          %6580 = vmatpush1.msra.mxu0 %v4222
          %6581 = vmatprep.subr.mxu0 %v4231
          %6582 = vmatpush1.msra.mxu0 %v4230
          %6583 = vmatprep.subr.mxu0 %v4239
          %6584 = vmatpush1.msra.mxu0 %v4238
          %6585 = vmatprep.subr.mxu0 %v4247
          %6586 = vmatpush1.msra.mxu0 %v4246
          %6587 = vmatprep.subr.mxu0 %v4255
          %6588 = vmatpush1.msra.mxu0 %v4254
          %6589 = vmatprep.subr.mxu0 %v4263
          %6590 = vmatpush1.msra.mxu0 %v4262
          %6591 = vmatprep.subr.mxu0 %v4271
          %6592 = vmatpush1.msra.mxu0 %v4270
          %6593 = vmatprep.subr.mxu0 %v4279
          %6594 = vmatpush1.msra.mxu0 %v4278
          %6595 = vmatprep.subr.mxu0 %v4287
          %6596 = vmatpush1.msra.mxu0 %v4286
          %6597 = vmatprep.subr.mxu0 %v4295
          %6598 = vmatpush1.msra.mxu0 %v4294
          %6599 = vmatprep.subr.mxu0 %v4303
          %6600 = vmatpush1.msra.mxu0 %v4302
          %6601 = vmatprep.subr.mxu0 %v4311
          %6602 = vmatpush1.msra.mxu0 %v4310
          %6603 = vmatprep.subr.mxu0 %v4319
          %6604 = vmatpush1.msra.mxu0 %v4318
          %6605 = vmatprep.mubr.f32.mxu0 %v3799
          %6606 = vmatmul.mubr.f32.gmra.mrb[0].mxu0 %v3798
          %v6607 = vpop.f32.mrb[0].mxu0
          %v6608 = vadd.f32 %v6537, %v6607
          %v6609 = vpop.f32.mrb[0].mxu0
          %v6610 = vadd.f32 %v6539, %v6609
          %6611 = vdwg.mxu0
          %6612 = vmatprep.subr.mxu0 %v4327
          %6613 = vmatpush1.msra.mxu0 %v4326
          %6614 = vmatprep.subr.mxu0 %v4335
          %6615 = vmatpush1.msra.mxu0 %v4334
          %6616 = vmatprep.subr.mxu0 %v4343
          %6617 = vmatpush1.msra.mxu0 %v4342
          %6618 = vmatprep.subr.mxu0 %v4351
          %6619 = vmatpush1.msra.mxu0 %v4350
          %6620 = vmatprep.subr.mxu0 %v4359
          %6621 = vmatpush1.msra.mxu0 %v4358
          %6622 = vmatprep.subr.mxu0 %v4367
          %6623 = vmatpush1.msra.mxu0 %v4366
          %6624 = vmatprep.subr.mxu0 %v4375
          %6625 = vmatpush1.msra.mxu0 %v4374
          %6626 = vmatprep.subr.mxu0 %v4383
          %6627 = vmatpush1.msra.mxu0 %v4382
          %6628 = vmatprep.subr.mxu0 %v4391
          %6629 = vmatpush1.msra.mxu0 %v4390
          %6630 = vmatprep.subr.mxu0 %v4399
          %6631 = vmatpush1.msra.mxu0 %v4398
          %6632 = vmatprep.subr.mxu0 %v4407
          %6633 = vmatpush1.msra.mxu0 %v4406
          %6634 = vmatprep.subr.mxu0 %v4415
          %6635 = vmatpush1.msra.mxu0 %v4414
          %6636 = vmatprep.subr.mxu0 %v4423
          %6637 = vmatpush1.msra.mxu0 %v4422
          %6638 = vmatprep.subr.mxu0 %v4431
          %6639 = vmatpush1.msra.mxu0 %v4430
          %6640 = vmatprep.subr.mxu0 %v4439
          %6641 = vmatpush1.msra.mxu0 %v4438
          %6642 = vmatprep.subr.mxu0 %v4447
          %6643 = vmatpush1.msra.mxu0 %v4446
          %6644 = vmatprep.subr.mxu0 %v4455
          %6645 = vmatpush1.msra.mxu0 %v4454
          %6646 = vmatprep.subr.mxu0 %v4463
          %6647 = vmatpush1.msra.mxu0 %v4462
          %6648 = vmatprep.subr.mxu0 %v4471
          %6649 = vmatpush1.msra.mxu0 %v4470
          %6650 = vmatprep.subr.mxu0 %v4479
          %6651 = vmatpush1.msra.mxu0 %v4478
          %6652 = vmatprep.subr.mxu0 %v4487
          %6653 = vmatpush1.msra.mxu0 %v4486
          %6654 = vmatprep.subr.mxu0 %v4495
          %6655 = vmatpush1.msra.mxu0 %v4494
          %6656 = vmatprep.subr.mxu0 %v4503
          %6657 = vmatpush1.msra.mxu0 %v4502
          %6658 = vmatprep.subr.mxu0 %v4511
          %6659 = vmatpush1.msra.mxu0 %v4510
          %6660 = vmatprep.subr.mxu0 %v4519
          %6661 = vmatpush1.msra.mxu0 %v4518
          %6662 = vmatprep.subr.mxu0 %v4527
          %6663 = vmatpush1.msra.mxu0 %v4526
          %6664 = vmatprep.subr.mxu0 %v4535
          %6665 = vmatpush1.msra.mxu0 %v4534
          %6666 = vmatprep.subr.mxu0 %v4543
          %6667 = vmatpush1.msra.mxu0 %v4542
          %6668 = vmatprep.subr.mxu0 %v4551
          %6669 = vmatpush1.msra.mxu0 %v4550
          %6670 = vmatprep.subr.mxu0 %v4559
          %6671 = vmatpush1.msra.mxu0 %v4558
          %6672 = vmatprep.subr.mxu0 %v4567
          %6673 = vmatpush1.msra.mxu0 %v4566
          %6674 = vmatprep.subr.mxu0 %v4575
          %6675 = vmatpush1.msra.mxu0 %v4574
          %6676 = vmatprep.mubr.f32.mxu0 %v3801
          %6677 = vmatmul.mubr.f32.gmra.mrb[0].mxu0 %v3800
          %v6678 = vpop.f32.mrb[0].mxu0
          %v6679 = vadd.f32 %v6608, %v6678
          %v6680 = vpop.f32.mrb[0].mxu0
          %v6681 = vadd.f32 %v6610, %v6680
          %6682 = vdwg.mxu0
          %6683 = vmatprep.subr.mxu0 %v4583
          %6684 = vmatpush1.msra.mxu0 %v4582
          %6685 = vmatprep.subr.mxu0 %v4591
          %6686 = vmatpush1.msra.mxu0 %v4590
          %6687 = vmatprep.subr.mxu0 %v4599
          %6688 = vmatpush1.msra.mxu0 %v4598
          %6689 = vmatprep.subr.mxu0 %v4607
          %6690 = vmatpush1.msra.mxu0 %v4606
          %6691 = vmatprep.subr.mxu0 %v4615
          %6692 = vmatpush1.msra.mxu0 %v4614
          %6693 = vmatprep.subr.mxu0 %v4623
          %6694 = vmatpush1.msra.mxu0 %v4622
          %6695 = vmatprep.subr.mxu0 %v4631
          %6696 = vmatpush1.msra.mxu0 %v4630
          %6697 = vmatprep.subr.mxu0 %v4639
          %6698 = vmatpush1.msra.mxu0 %v4638
          %6699 = vmatprep.subr.mxu0 %v4647
          %6700 = vmatpush1.msra.mxu0 %v4646
          %6701 = vmatprep.subr.mxu0 %v4655
          %6702 = vmatpush1.msra.mxu0 %v4654
          %6703 = vmatprep.subr.mxu0 %v4663
          %6704 = vmatpush1.msra.mxu0 %v4662
          %6705 = vmatprep.subr.mxu0 %v4671
          %6706 = vmatpush1.msra.mxu0 %v4670
          %6707 = vmatprep.subr.mxu0 %v4679
          %6708 = vmatpush1.msra.mxu0 %v4678
          %6709 = vmatprep.subr.mxu0 %v4687
          %6710 = vmatpush1.msra.mxu0 %v4686
          %6711 = vmatprep.subr.mxu0 %v4695
          %6712 = vmatpush1.msra.mxu0 %v4694
          %6713 = vmatprep.subr.mxu0 %v4703
          %6714 = vmatpush1.msra.mxu0 %v4702
          %6715 = vmatprep.subr.mxu0 %v4711
          %6716 = vmatpush1.msra.mxu0 %v4710
          %6717 = vmatprep.subr.mxu0 %v4719
          %6718 = vmatpush1.msra.mxu0 %v4718
          %6719 = vmatprep.subr.mxu0 %v4727
          %6720 = vmatpush1.msra.mxu0 %v4726
          %6721 = vmatprep.subr.mxu0 %v4735
          %6722 = vmatpush1.msra.mxu0 %v4734
          %6723 = vmatprep.subr.mxu0 %v4743
          %6724 = vmatpush1.msra.mxu0 %v4742
          %6725 = vmatprep.subr.mxu0 %v4751
          %6726 = vmatpush1.msra.mxu0 %v4750
          %6727 = vmatprep.subr.mxu0 %v4759
          %6728 = vmatpush1.msra.mxu0 %v4758
          %6729 = vmatprep.subr.mxu0 %v4767
          %6730 = vmatpush1.msra.mxu0 %v4766
          %6731 = vmatprep.subr.mxu0 %v4775
          %6732 = vmatpush1.msra.mxu0 %v4774
          %6733 = vmatprep.subr.mxu0 %v4783
          %6734 = vmatpush1.msra.mxu0 %v4782
          %6735 = vmatprep.subr.mxu0 %v4791
          %6736 = vmatpush1.msra.mxu0 %v4790
          %6737 = vmatprep.subr.mxu0 %v4799
          %6738 = vmatpush1.msra.mxu0 %v4798
          %6739 = vmatprep.subr.mxu0 %v4807
          %6740 = vmatpush1.msra.mxu0 %v4806
          %6741 = vmatprep.subr.mxu0 %v4815
          %6742 = vmatpush1.msra.mxu0 %v4814
          %6743 = vmatprep.subr.mxu0 %v4823
          %6744 = vmatpush1.msra.mxu0 %v4822
          %6745 = vmatprep.subr.mxu0 %v4831
          %6746 = vmatpush1.msra.mxu0 %v4830
          %6747 = vmatprep.mubr.f32.mxu0 %v3803
          %6748 = vmatmul.mubr.f32.gmra.mrb[0].mxu0 %v3802
          %v6749 = vpop.f32.mrb[0].mxu0
          %v6750 = vadd.f32 %v6679, %v6749
          %v6751 = vpop.f32.mrb[0].mxu0
          %v6752 = vadd.f32 %v6681, %v6751
          %6753 = vdwg.mxu0
          %6754 = vmatprep.subr.mxu0 %v4839
          %6755 = vmatpush1.msra.mxu0 %v4838
          %6756 = vmatprep.subr.mxu0 %v4847
          %6757 = vmatpush1.msra.mxu0 %v4846
          %6758 = vmatprep.subr.mxu0 %v4855
          %6759 = vmatpush1.msra.mxu0 %v4854
          %6760 = vmatprep.subr.mxu0 %v4863
          %6761 = vmatpush1.msra.mxu0 %v4862
          %6762 = vmatprep.subr.mxu0 %v4871
          %6763 = vmatpush1.msra.mxu0 %v4870
          %6764 = vmatprep.subr.mxu0 %v4879
          %6765 = vmatpush1.msra.mxu0 %v4878
          %6766 = vmatprep.subr.mxu0 %v4887
          %6767 = vmatpush1.msra.mxu0 %v4886
          %6768 = vmatprep.subr.mxu0 %v4895
          %6769 = vmatpush1.msra.mxu0 %v4894
          %6770 = vmatprep.subr.mxu0 %v4903
          %6771 = vmatpush1.msra.mxu0 %v4902
          %6772 = vmatprep.subr.mxu0 %v4911
          %6773 = vmatpush1.msra.mxu0 %v4910
          %6774 = vmatprep.subr.mxu0 %v4919
          %6775 = vmatpush1.msra.mxu0 %v4918
          %6776 = vmatprep.subr.mxu0 %v4927
          %6777 = vmatpush1.msra.mxu0 %v4926
          %6778 = vmatprep.subr.mxu0 %v4935
          %6779 = vmatpush1.msra.mxu0 %v4934
          %6780 = vmatprep.subr.mxu0 %v4943
          %6781 = vmatpush1.msra.mxu0 %v4942
          %6782 = vmatprep.subr.mxu0 %v4951
          %6783 = vmatpush1.msra.mxu0 %v4950
          %6784 = vmatprep.subr.mxu0 %v4959
          %6785 = vmatpush1.msra.mxu0 %v4958
          %6786 = vmatprep.subr.mxu0 %v4967
          %6787 = vmatpush1.msra.mxu0 %v4966
          %6788 = vmatprep.subr.mxu0 %v4975
          %6789 = vmatpush1.msra.mxu0 %v4974
          %6790 = vmatprep.subr.mxu0 %v4983
          %6791 = vmatpush1.msra.mxu0 %v4982
          %6792 = vmatprep.subr.mxu0 %v4991
          %6793 = vmatpush1.msra.mxu0 %v4990
          %6794 = vmatprep.subr.mxu0 %v4999
          %6795 = vmatpush1.msra.mxu0 %v4998
          %6796 = vmatprep.subr.mxu0 %v5007
          %6797 = vmatpush1.msra.mxu0 %v5006
          %6798 = vmatprep.subr.mxu0 %v5015
          %6799 = vmatpush1.msra.mxu0 %v5014
          %6800 = vmatprep.subr.mxu0 %v5023
          %6801 = vmatpush1.msra.mxu0 %v5022
          %6802 = vmatprep.subr.mxu0 %v5031
          %6803 = vmatpush1.msra.mxu0 %v5030
          %6804 = vmatprep.subr.mxu0 %v5039
          %6805 = vmatpush1.msra.mxu0 %v5038
          %6806 = vmatprep.subr.mxu0 %v5047
          %6807 = vmatpush1.msra.mxu0 %v5046
          %6808 = vmatprep.subr.mxu0 %v5055
          %6809 = vmatpush1.msra.mxu0 %v5054
          %6810 = vmatprep.subr.mxu0 %v5063
          %6811 = vmatpush1.msra.mxu0 %v5062
          %6812 = vmatprep.subr.mxu0 %v5071
          %6813 = vmatpush1.msra.mxu0 %v5070
          %6814 = vmatprep.subr.mxu0 %v5079
          %6815 = vmatpush1.msra.mxu0 %v5078
          %6816 = vmatprep.subr.mxu0 %v5087
          %6817 = vmatpush1.msra.mxu0 %v5086
          %6818 = vmatprep.mubr.f32.mxu0 %v3805
          %6819 = vmatmul.mubr.f32.gmra.mrb[0].mxu0 %v3804
          %v6820 = vpop.f32.mrb[0].mxu0
          %v6821 = vadd.f32 %v6750, %v6820
          %v6822 = vpop.f32.mrb[0].mxu0
          %v6823 = vadd.f32 %v6752, %v6822
          %6824 = vdwg.mxu0
          %6825 = vmatprep.subr.mxu0 %v5095
          %6826 = vmatpush1.msra.mxu0 %v5094
          %6827 = vmatprep.subr.mxu0 %v5103
          %6828 = vmatpush1.msra.mxu0 %v5102
          %6829 = vmatprep.subr.mxu0 %v5111
          %6830 = vmatpush1.msra.mxu0 %v5110
          %6831 = vmatprep.subr.mxu0 %v5119
          %6832 = vmatpush1.msra.mxu0 %v5118
          %6833 = vmatprep.subr.mxu0 %v5127
          %6834 = vmatpush1.msra.mxu0 %v5126
          %6835 = vmatprep.subr.mxu0 %v5135
          %6836 = vmatpush1.msra.mxu0 %v5134
          %6837 = vmatprep.subr.mxu0 %v5143
          %6838 = vmatpush1.msra.mxu0 %v5142
          %6839 = vmatprep.subr.mxu0 %v5151
          %6840 = vmatpush1.msra.mxu0 %v5150
          %6841 = vmatprep.subr.mxu0 %v5159
          %6842 = vmatpush1.msra.mxu0 %v5158
          %6843 = vmatprep.subr.mxu0 %v5167
          %6844 = vmatpush1.msra.mxu0 %v5166
          %6845 = vmatprep.subr.mxu0 %v5175
          %6846 = vmatpush1.msra.mxu0 %v5174
          %6847 = vmatprep.subr.mxu0 %v5183
          %6848 = vmatpush1.msra.mxu0 %v5182
          %6849 = vmatprep.subr.mxu0 %v5191
          %6850 = vmatpush1.msra.mxu0 %v5190
          %6851 = vmatprep.subr.mxu0 %v5199
          %6852 = vmatpush1.msra.mxu0 %v5198
          %6853 = vmatprep.subr.mxu0 %v5207
          %6854 = vmatpush1.msra.mxu0 %v5206
          %6855 = vmatprep.subr.mxu0 %v5215
          %6856 = vmatpush1.msra.mxu0 %v5214
          %6857 = vmatprep.subr.mxu0 %v5223
          %6858 = vmatpush1.msra.mxu0 %v5222
          %6859 = vmatprep.subr.mxu0 %v5231
          %6860 = vmatpush1.msra.mxu0 %v5230
          %6861 = vmatprep.subr.mxu0 %v5239
          %6862 = vmatpush1.msra.mxu0 %v5238
          %6863 = vmatprep.subr.mxu0 %v5247
          %6864 = vmatpush1.msra.mxu0 %v5246
          %6865 = vmatprep.subr.mxu0 %v5255
          %6866 = vmatpush1.msra.mxu0 %v5254
          %6867 = vmatprep.subr.mxu0 %v5263
          %6868 = vmatpush1.msra.mxu0 %v5262
          %6869 = vmatprep.subr.mxu0 %v5271
          %6870 = vmatpush1.msra.mxu0 %v5270
          %6871 = vmatprep.subr.mxu0 %v5279
          %6872 = vmatpush1.msra.mxu0 %v5278
          %6873 = vmatprep.subr.mxu0 %v5287
          %6874 = vmatpush1.msra.mxu0 %v5286
          %6875 = vmatprep.subr.mxu0 %v5295
          %6876 = vmatpush1.msra.mxu0 %v5294
          %6877 = vmatprep.subr.mxu0 %v5303
          %6878 = vmatpush1.msra.mxu0 %v5302
          %6879 = vmatprep.subr.mxu0 %v5311
          %6880 = vmatpush1.msra.mxu0 %v5310
          %6881 = vmatprep.subr.mxu0 %v5319
          %6882 = vmatpush1.msra.mxu0 %v5318
          %6883 = vmatprep.subr.mxu0 %v5327
          %6884 = vmatpush1.msra.mxu0 %v5326
          %6885 = vmatprep.subr.mxu0 %v5335
          %6886 = vmatpush1.msra.mxu0 %v5334
          %6887 = vmatprep.subr.mxu0 %v5343
          %6888 = vmatpush1.msra.mxu0 %v5342
          %6889 = vmatprep.mubr.f32.mxu0 %v3807
          %6890 = vmatmul.mubr.f32.gmra.mrb[0].mxu0 %v3806
          %v6891 = vpop.f32.mrb[0].mxu0
          %v6892 = vadd.f32 %v6821, %v6891
          %v6893 = vpop.f32.mrb[0].mxu0
          %v6894 = vadd.f32 %v6823, %v6893
          %6895 = vdwg.mxu0
          %6896 = vmatprep.subr.mxu0 %v5351
          %6897 = vmatpush1.msra.mxu0 %v5350
          %6898 = vmatprep.subr.mxu0 %v5359
          %6899 = vmatpush1.msra.mxu0 %v5358
          %6900 = vmatprep.subr.mxu0 %v5367
          %6901 = vmatpush1.msra.mxu0 %v5366
          %6902 = vmatprep.subr.mxu0 %v5375
          %6903 = vmatpush1.msra.mxu0 %v5374
          %6904 = vmatprep.subr.mxu0 %v5383
          %6905 = vmatpush1.msra.mxu0 %v5382
          %6906 = vmatprep.subr.mxu0 %v5391
          %6907 = vmatpush1.msra.mxu0 %v5390
          %6908 = vmatprep.subr.mxu0 %v5399
          %6909 = vmatpush1.msra.mxu0 %v5398
          %6910 = vmatprep.subr.mxu0 %v5407
          %6911 = vmatpush1.msra.mxu0 %v5406
          %6912 = vmatprep.subr.mxu0 %v5415
          %6913 = vmatpush1.msra.mxu0 %v5414
          %6914 = vmatprep.subr.mxu0 %v5423
          %6915 = vmatpush1.msra.mxu0 %v5422
          %6916 = vmatprep.subr.mxu0 %v5431
          %6917 = vmatpush1.msra.mxu0 %v5430
          %6918 = vmatprep.subr.mxu0 %v5439
          %6919 = vmatpush1.msra.mxu0 %v5438
          %6920 = vmatprep.subr.mxu0 %v5447
          %6921 = vmatpush1.msra.mxu0 %v5446
          %6922 = vmatprep.subr.mxu0 %v5455
          %6923 = vmatpush1.msra.mxu0 %v5454
          %6924 = vmatprep.subr.mxu0 %v5463
          %6925 = vmatpush1.msra.mxu0 %v5462
          %6926 = vmatprep.subr.mxu0 %v5471
          %6927 = vmatpush1.msra.mxu0 %v5470
          %6928 = vmatprep.subr.mxu0 %v5479
          %6929 = vmatpush1.msra.mxu0 %v5478
          %6930 = vmatprep.subr.mxu0 %v5487
          %6931 = vmatpush1.msra.mxu0 %v5486
          %6932 = vmatprep.subr.mxu0 %v5495
          %6933 = vmatpush1.msra.mxu0 %v5494
          %6934 = vmatprep.subr.mxu0 %v5503
          %6935 = vmatpush1.msra.mxu0 %v5502
          %6936 = vmatprep.subr.mxu0 %v5511
          %6937 = vmatpush1.msra.mxu0 %v5510
          %6938 = vmatprep.subr.mxu0 %v5519
          %6939 = vmatpush1.msra.mxu0 %v5518
          %6940 = vmatprep.subr.mxu0 %v5527
          %6941 = vmatpush1.msra.mxu0 %v5526
          %6942 = vmatprep.subr.mxu0 %v5535
          %6943 = vmatpush1.msra.mxu0 %v5534
          %6944 = vmatprep.subr.mxu0 %v5543
          %6945 = vmatpush1.msra.mxu0 %v5542
          %6946 = vmatprep.subr.mxu0 %v5551
          %6947 = vmatpush1.msra.mxu0 %v5550
          %6948 = vmatprep.subr.mxu0 %v5559
          %6949 = vmatpush1.msra.mxu0 %v5558
          %6950 = vmatprep.subr.mxu0 %v5567
          %6951 = vmatpush1.msra.mxu0 %v5566
          %6952 = vmatprep.subr.mxu0 %v5575
          %6953 = vmatpush1.msra.mxu0 %v5574
          %6954 = vmatprep.subr.mxu0 %v5583
          %6955 = vmatpush1.msra.mxu0 %v5582
          %6956 = vmatprep.subr.mxu0 %v5591
          %6957 = vmatpush1.msra.mxu0 %v5590
          %6958 = vmatprep.subr.mxu0 %v5599
          %6959 = vmatpush1.msra.mxu0 %v5598
          %6960 = vmatprep.mubr.f32.mxu0 %v3809
          %6961 = vmatmul.mubr.f32.gmra.mrb[0].mxu0 %v3808
          %v6962 = vpop.f32.mrb[0].mxu0
          %v6963 = vadd.f32 %v6892, %v6962
          %v6964 = vpop.f32.mrb[0].mxu0
          %v6965 = vadd.f32 %v6894, %v6964
          %6966 = vdwg.mxu0
          %6967 = vmatprep.subr.mxu0 %v5607
          %6968 = vmatpush1.msra.mxu0 %v5606
          %6969 = vmatprep.subr.mxu0 %v5615
          %6970 = vmatpush1.msra.mxu0 %v5614
          %6971 = vmatprep.subr.mxu0 %v5623
          %6972 = vmatpush1.msra.mxu0 %v5622
          %6973 = vmatprep.subr.mxu0 %v5631
          %6974 = vmatpush1.msra.mxu0 %v5630
          %6975 = vmatprep.subr.mxu0 %v5639
          %6976 = vmatpush1.msra.mxu0 %v5638
          %6977 = vmatprep.subr.mxu0 %v5647
          %6978 = vmatpush1.msra.mxu0 %v5646
          %6979 = vmatprep.subr.mxu0 %v5655
          %6980 = vmatpush1.msra.mxu0 %v5654
          %6981 = vmatprep.subr.mxu0 %v5663
          %6982 = vmatpush1.msra.mxu0 %v5662
          %6983 = vmatprep.subr.mxu0 %v5671
          %6984 = vmatpush1.msra.mxu0 %v5670
          %6985 = vmatprep.subr.mxu0 %v5679
          %6986 = vmatpush1.msra.mxu0 %v5678
          %6987 = vmatprep.subr.mxu0 %v5687
          %6988 = vmatpush1.msra.mxu0 %v5686
          %6989 = vmatprep.subr.mxu0 %v5695
          %6990 = vmatpush1.msra.mxu0 %v5694
          %6991 = vmatprep.subr.mxu0 %v5703
          %6992 = vmatpush1.msra.mxu0 %v5702
          %6993 = vmatprep.subr.mxu0 %v5711
          %6994 = vmatpush1.msra.mxu0 %v5710
          %6995 = vmatprep.subr.mxu0 %v5719
          %6996 = vmatpush1.msra.mxu0 %v5718
          %6997 = vmatprep.subr.mxu0 %v5727
          %6998 = vmatpush1.msra.mxu0 %v5726
          %6999 = vmatprep.subr.mxu0 %v5735
          %7000 = vmatpush1.msra.mxu0 %v5734
          %7001 = vmatprep.subr.mxu0 %v5743
          %7002 = vmatpush1.msra.mxu0 %v5742
          %7003 = vmatprep.subr.mxu0 %v5751
          %7004 = vmatpush1.msra.mxu0 %v5750
          %7005 = vmatprep.subr.mxu0 %v5759
          %7006 = vmatpush1.msra.mxu0 %v5758
          %7007 = vmatprep.subr.mxu0 %v5767
          %7008 = vmatpush1.msra.mxu0 %v5766
          %7009 = vmatprep.subr.mxu0 %v5775
          %7010 = vmatpush1.msra.mxu0 %v5774
          %7011 = vmatprep.subr.mxu0 %v5783
          %7012 = vmatpush1.msra.mxu0 %v5782
          %7013 = vmatprep.subr.mxu0 %v5791
          %7014 = vmatpush1.msra.mxu0 %v5790
          %7015 = vmatprep.subr.mxu0 %v5799
          %7016 = vmatpush1.msra.mxu0 %v5798
          %7017 = vmatprep.subr.mxu0 %v5807
          %7018 = vmatpush1.msra.mxu0 %v5806
          %7019 = vmatprep.subr.mxu0 %v5815
          %7020 = vmatpush1.msra.mxu0 %v5814
          %7021 = vmatprep.subr.mxu0 %v5823
          %7022 = vmatpush1.msra.mxu0 %v5822
          %7023 = vmatprep.subr.mxu0 %v5831
          %7024 = vmatpush1.msra.mxu0 %v5830
          %7025 = vmatprep.subr.mxu0 %v5839
          %7026 = vmatpush1.msra.mxu0 %v5838
          %7027 = vmatprep.subr.mxu0 %v5847
          %7028 = vmatpush1.msra.mxu0 %v5846
          %7029 = vmatprep.subr.mxu0 %v5855
          %7030 = vmatpush1.msra.mxu0 %v5854
          %7031 = vmatprep.mubr.f32.mxu0 %v3811
          %7032 = vmatmul.mubr.f32.gmra.mrb[0].mxu0 %v3810
          %v7033 = vpop.f32.mrb[0].mxu0
          %v7034 = vadd.f32 %v6963, %v7033
          %v7035 = vpop.f32.mrb[0].mxu0
          %v7036 = vadd.f32 %v6965, %v7035
          %7037 = vdwg.mxu0
          %7038 = vmatprep.subr.mxu0 %v3817
          %7039 = vmatpush1.msra.mxu0 %v3816
          %7040 = vmatprep.subr.mxu0 %v3825
          %7041 = vmatpush1.msra.mxu0 %v3824
          %7042 = vmatprep.subr.mxu0 %v3833
          %7043 = vmatpush1.msra.mxu0 %v3832
          %7044 = vmatprep.subr.mxu0 %v3841
          %7045 = vmatpush1.msra.mxu0 %v3840
          %7046 = vmatprep.subr.mxu0 %v3849
          %7047 = vmatpush1.msra.mxu0 %v3848
          %7048 = vmatprep.subr.mxu0 %v3857
          %7049 = vmatpush1.msra.mxu0 %v3856
          %7050 = vmatprep.subr.mxu0 %v3865
          %7051 = vmatpush1.msra.mxu0 %v3864
          %7052 = vmatprep.subr.mxu0 %v3873
          %7053 = vmatpush1.msra.mxu0 %v3872
          %7054 = vmatprep.subr.mxu0 %v3881
          %7055 = vmatpush1.msra.mxu0 %v3880
          %7056 = vmatprep.subr.mxu0 %v3889
          %7057 = vmatpush1.msra.mxu0 %v3888
          %7058 = vmatprep.subr.mxu0 %v3897
          %7059 = vmatpush1.msra.mxu0 %v3896
          %7060 = vmatprep.subr.mxu0 %v3905
          %7061 = vmatpush1.msra.mxu0 %v3904
          %7062 = vmatprep.subr.mxu0 %v3913
          %7063 = vmatpush1.msra.mxu0 %v3912
          %7064 = vmatprep.subr.mxu0 %v3921
          %7065 = vmatpush1.msra.mxu0 %v3920
          %7066 = vmatprep.subr.mxu0 %v3929
          %7067 = vmatpush1.msra.mxu0 %v3928
          %7068 = vmatprep.subr.mxu0 %v3937
          %7069 = vmatpush1.msra.mxu0 %v3936
          %7070 = vmatprep.subr.mxu0 %v3945
          %7071 = vmatpush1.msra.mxu0 %v3944
          %7072 = vmatprep.subr.mxu0 %v3953
          %7073 = vmatpush1.msra.mxu0 %v3952
          %7074 = vmatprep.subr.mxu0 %v3961
          %7075 = vmatpush1.msra.mxu0 %v3960
          %7076 = vmatprep.subr.mxu0 %v3969
          %7077 = vmatpush1.msra.mxu0 %v3968
          %7078 = vmatprep.subr.mxu0 %v3977
          %7079 = vmatpush1.msra.mxu0 %v3976
          %7080 = vmatprep.subr.mxu0 %v3985
          %7081 = vmatpush1.msra.mxu0 %v3984
          %7082 = vmatprep.subr.mxu0 %v3993
          %7083 = vmatpush1.msra.mxu0 %v3992
          %7084 = vmatprep.subr.mxu0 %v4001
          %7085 = vmatpush1.msra.mxu0 %v4000
          %7086 = vmatprep.subr.mxu0 %v4009
          %7087 = vmatpush1.msra.mxu0 %v4008
          %7088 = vmatprep.subr.mxu0 %v4017
          %7089 = vmatpush1.msra.mxu0 %v4016
          %7090 = vmatprep.subr.mxu0 %v4025
          %7091 = vmatpush1.msra.mxu0 %v4024
          %7092 = vmatprep.subr.mxu0 %v4033
          %7093 = vmatpush1.msra.mxu0 %v4032
          %7094 = vmatprep.subr.mxu0 %v4041
          %7095 = vmatpush1.msra.mxu0 %v4040
          %7096 = vmatprep.subr.mxu0 %v4049
          %7097 = vmatpush1.msra.mxu0 %v4048
          %7098 = vmatprep.subr.mxu0 %v4057
          %7099 = vmatpush1.msra.mxu0 %v4056
          %7100 = vmatprep.subr.mxu0 %v4065
          %7101 = vmatpush1.msra.mxu0 %v4064
          %7102 = vmatprep.mubr.f32.mxu0 %v3797
          %7103 = vmatmul.mubr.f32.gmra.mrb[0].mxu0 %v3796
          %v7104 = vpop.f32.mrb[0].mxu0
          %v7105 = vadd.f32 %v5881, %v7104
          %v7106 = vpop.f32.mrb[0].mxu0
          %v7107 = vadd.f32 %v5885, %v7106
          %7108 = vdwg.mxu0
          %7109 = vmatprep.subr.mxu0 %v4073
          %7110 = vmatpush1.msra.mxu0 %v4072
          %7111 = vmatprep.subr.mxu0 %v4081
          %7112 = vmatpush1.msra.mxu0 %v4080
          %7113 = vmatprep.subr.mxu0 %v4089
          %7114 = vmatpush1.msra.mxu0 %v4088
          %7115 = vmatprep.subr.mxu0 %v4097
          %7116 = vmatpush1.msra.mxu0 %v4096
          %7117 = vmatprep.subr.mxu0 %v4105
          %7118 = vmatpush1.msra.mxu0 %v4104
          %7119 = vmatprep.subr.mxu0 %v4113
          %7120 = vmatpush1.msra.mxu0 %v4112
          %7121 = vmatprep.subr.mxu0 %v4121
          %7122 = vmatpush1.msra.mxu0 %v4120
          %7123 = vmatprep.subr.mxu0 %v4129
          %7124 = vmatpush1.msra.mxu0 %v4128
          %7125 = vmatprep.subr.mxu0 %v4137
          %7126 = vmatpush1.msra.mxu0 %v4136
          %7127 = vmatprep.subr.mxu0 %v4145
          %7128 = vmatpush1.msra.mxu0 %v4144
          %7129 = vmatprep.subr.mxu0 %v4153
          %7130 = vmatpush1.msra.mxu0 %v4152
          %7131 = vmatprep.subr.mxu0 %v4161
          %7132 = vmatpush1.msra.mxu0 %v4160
          %7133 = vmatprep.subr.mxu0 %v4169
          %7134 = vmatpush1.msra.mxu0 %v4168
          %7135 = vmatprep.subr.mxu0 %v4177
          %7136 = vmatpush1.msra.mxu0 %v4176
          %7137 = vmatprep.subr.mxu0 %v4185
          %7138 = vmatpush1.msra.mxu0 %v4184
          %7139 = vmatprep.subr.mxu0 %v4193
          %7140 = vmatpush1.msra.mxu0 %v4192
          %7141 = vmatprep.subr.mxu0 %v4201
          %7142 = vmatpush1.msra.mxu0 %v4200
          %7143 = vmatprep.subr.mxu0 %v4209
          %7144 = vmatpush1.msra.mxu0 %v4208
          %7145 = vmatprep.subr.mxu0 %v4217
          %7146 = vmatpush1.msra.mxu0 %v4216
          %7147 = vmatprep.subr.mxu0 %v4225
          %7148 = vmatpush1.msra.mxu0 %v4224
          %7149 = vmatprep.subr.mxu0 %v4233
          %7150 = vmatpush1.msra.mxu0 %v4232
          %7151 = vmatprep.subr.mxu0 %v4241
          %7152 = vmatpush1.msra.mxu0 %v4240
          %7153 = vmatprep.subr.mxu0 %v4249
          %7154 = vmatpush1.msra.mxu0 %v4248
          %7155 = vmatprep.subr.mxu0 %v4257
          %7156 = vmatpush1.msra.mxu0 %v4256
          %7157 = vmatprep.subr.mxu0 %v4265
          %7158 = vmatpush1.msra.mxu0 %v4264
          %7159 = vmatprep.subr.mxu0 %v4273
          %7160 = vmatpush1.msra.mxu0 %v4272
          %7161 = vmatprep.subr.mxu0 %v4281
          %7162 = vmatpush1.msra.mxu0 %v4280
          %7163 = vmatprep.subr.mxu0 %v4289
          %7164 = vmatpush1.msra.mxu0 %v4288
          %7165 = vmatprep.subr.mxu0 %v4297
          %7166 = vmatpush1.msra.mxu0 %v4296
          %7167 = vmatprep.subr.mxu0 %v4305
          %7168 = vmatpush1.msra.mxu0 %v4304
          %7169 = vmatprep.subr.mxu0 %v4313
          %7170 = vmatpush1.msra.mxu0 %v4312
          %7171 = vmatprep.subr.mxu0 %v4321
          %7172 = vmatpush1.msra.mxu0 %v4320
          %7173 = vmatprep.mubr.f32.mxu0 %v3799
          %7174 = vmatmul.mubr.f32.gmra.mrb[0].mxu0 %v3798
          %v7175 = vpop.f32.mrb[0].mxu0
          %v7176 = vadd.f32 %v7105, %v7175
          %v7177 = vpop.f32.mrb[0].mxu0
          %v7178 = vadd.f32 %v7107, %v7177
          %7179 = vdwg.mxu0
          %7180 = vmatprep.subr.mxu0 %v4329
          %7181 = vmatpush1.msra.mxu0 %v4328
          %7182 = vmatprep.subr.mxu0 %v4337
          %7183 = vmatpush1.msra.mxu0 %v4336
          %7184 = vmatprep.subr.mxu0 %v4345
          %7185 = vmatpush1.msra.mxu0 %v4344
          %7186 = vmatprep.subr.mxu0 %v4353
          %7187 = vmatpush1.msra.mxu0 %v4352
          %7188 = vmatprep.subr.mxu0 %v4361
          %7189 = vmatpush1.msra.mxu0 %v4360
          %7190 = vmatprep.subr.mxu0 %v4369
          %7191 = vmatpush1.msra.mxu0 %v4368
          %7192 = vmatprep.subr.mxu0 %v4377
          %7193 = vmatpush1.msra.mxu0 %v4376
          %7194 = vmatprep.subr.mxu0 %v4385
          %7195 = vmatpush1.msra.mxu0 %v4384
          %7196 = vmatprep.subr.mxu0 %v4393
          %7197 = vmatpush1.msra.mxu0 %v4392
          %7198 = vmatprep.subr.mxu0 %v4401
          %7199 = vmatpush1.msra.mxu0 %v4400
          %7200 = vmatprep.subr.mxu0 %v4409
          %7201 = vmatpush1.msra.mxu0 %v4408
          %7202 = vmatprep.subr.mxu0 %v4417
          %7203 = vmatpush1.msra.mxu0 %v4416
          %7204 = vmatprep.subr.mxu0 %v4425
          %7205 = vmatpush1.msra.mxu0 %v4424
          %7206 = vmatprep.subr.mxu0 %v4433
          %7207 = vmatpush1.msra.mxu0 %v4432
          %7208 = vmatprep.subr.mxu0 %v4441
          %7209 = vmatpush1.msra.mxu0 %v4440
          %7210 = vmatprep.subr.mxu0 %v4449
          %7211 = vmatpush1.msra.mxu0 %v4448
          %7212 = vmatprep.subr.mxu0 %v4457
          %7213 = vmatpush1.msra.mxu0 %v4456
          %7214 = vmatprep.subr.mxu0 %v4465
          %7215 = vmatpush1.msra.mxu0 %v4464
          %7216 = vmatprep.subr.mxu0 %v4473
          %7217 = vmatpush1.msra.mxu0 %v4472
          %7218 = vmatprep.subr.mxu0 %v4481
          %7219 = vmatpush1.msra.mxu0 %v4480
          %7220 = vmatprep.subr.mxu0 %v4489
          %7221 = vmatpush1.msra.mxu0 %v4488
          %7222 = vmatprep.subr.mxu0 %v4497
          %7223 = vmatpush1.msra.mxu0 %v4496
          %7224 = vmatprep.subr.mxu0 %v4505
          %7225 = vmatpush1.msra.mxu0 %v4504
          %7226 = vmatprep.subr.mxu0 %v4513
          %7227 = vmatpush1.msra.mxu0 %v4512
          %7228 = vmatprep.subr.mxu0 %v4521
          %7229 = vmatpush1.msra.mxu0 %v4520
          %7230 = vmatprep.subr.mxu0 %v4529
          %7231 = vmatpush1.msra.mxu0 %v4528
          %7232 = vmatprep.subr.mxu0 %v4537
          %7233 = vmatpush1.msra.mxu0 %v4536
          %7234 = vmatprep.subr.mxu0 %v4545
          %7235 = vmatpush1.msra.mxu0 %v4544
          %7236 = vmatprep.subr.mxu0 %v4553
          %7237 = vmatpush1.msra.mxu0 %v4552
          %7238 = vmatprep.subr.mxu0 %v4561
          %7239 = vmatpush1.msra.mxu0 %v4560
          %7240 = vmatprep.subr.mxu0 %v4569
          %7241 = vmatpush1.msra.mxu0 %v4568
          %7242 = vmatprep.subr.mxu0 %v4577
          %7243 = vmatpush1.msra.mxu0 %v4576
          %7244 = vmatprep.mubr.f32.mxu0 %v3801
          %7245 = vmatmul.mubr.f32.gmra.mrb[0].mxu0 %v3800
          %v7246 = vpop.f32.mrb[0].mxu0
          %v7247 = vadd.f32 %v7176, %v7246
          %v7248 = vpop.f32.mrb[0].mxu0
          %v7249 = vadd.f32 %v7178, %v7248
          %7250 = vdwg.mxu0
          %7251 = vmatprep.subr.mxu0 %v4585
          %7252 = vmatpush1.msra.mxu0 %v4584
          %7253 = vmatprep.subr.mxu0 %v4593
          %7254 = vmatpush1.msra.mxu0 %v4592
          %7255 = vmatprep.subr.mxu0 %v4601
          %7256 = vmatpush1.msra.mxu0 %v4600
          %7257 = vmatprep.subr.mxu0 %v4609
          %7258 = vmatpush1.msra.mxu0 %v4608
          %7259 = vmatprep.subr.mxu0 %v4617
          %7260 = vmatpush1.msra.mxu0 %v4616
          %7261 = vmatprep.subr.mxu0 %v4625
          %7262 = vmatpush1.msra.mxu0 %v4624
          %7263 = vmatprep.subr.mxu0 %v4633
          %7264 = vmatpush1.msra.mxu0 %v4632
          %7265 = vmatprep.subr.mxu0 %v4641
          %7266 = vmatpush1.msra.mxu0 %v4640
          %7267 = vmatprep.subr.mxu0 %v4649
          %7268 = vmatpush1.msra.mxu0 %v4648
          %7269 = vmatprep.subr.mxu0 %v4657
          %7270 = vmatpush1.msra.mxu0 %v4656
          %7271 = vmatprep.subr.mxu0 %v4665
          %7272 = vmatpush1.msra.mxu0 %v4664
          %7273 = vmatprep.subr.mxu0 %v4673
          %7274 = vmatpush1.msra.mxu0 %v4672
          %7275 = vmatprep.subr.mxu0 %v4681
          %7276 = vmatpush1.msra.mxu0 %v4680
          %7277 = vmatprep.subr.mxu0 %v4689
          %7278 = vmatpush1.msra.mxu0 %v4688
          %7279 = vmatprep.subr.mxu0 %v4697
          %7280 = vmatpush1.msra.mxu0 %v4696
          %7281 = vmatprep.subr.mxu0 %v4705
          %7282 = vmatpush1.msra.mxu0 %v4704
          %7283 = vmatprep.subr.mxu0 %v4713
          %7284 = vmatpush1.msra.mxu0 %v4712
          %7285 = vmatprep.subr.mxu0 %v4721
          %7286 = vmatpush1.msra.mxu0 %v4720
          %7287 = vmatprep.subr.mxu0 %v4729
          %7288 = vmatpush1.msra.mxu0 %v4728
          %7289 = vmatprep.subr.mxu0 %v4737
          %7290 = vmatpush1.msra.mxu0 %v4736
          %7291 = vmatprep.subr.mxu0 %v4745
          %7292 = vmatpush1.msra.mxu0 %v4744
          %7293 = vmatprep.subr.mxu0 %v4753
          %7294 = vmatpush1.msra.mxu0 %v4752
          %7295 = vmatprep.subr.mxu0 %v4761
          %7296 = vmatpush1.msra.mxu0 %v4760
          %7297 = vmatprep.subr.mxu0 %v4769
          %7298 = vmatpush1.msra.mxu0 %v4768
          %7299 = vmatprep.subr.mxu0 %v4777
          %7300 = vmatpush1.msra.mxu0 %v4776
          %7301 = vmatprep.subr.mxu0 %v4785
          %7302 = vmatpush1.msra.mxu0 %v4784
          %7303 = vmatprep.subr.mxu0 %v4793
          %7304 = vmatpush1.msra.mxu0 %v4792
          %7305 = vmatprep.subr.mxu0 %v4801
          %7306 = vmatpush1.msra.mxu0 %v4800
          %7307 = vmatprep.subr.mxu0 %v4809
          %7308 = vmatpush1.msra.mxu0 %v4808
          %7309 = vmatprep.subr.mxu0 %v4817
          %7310 = vmatpush1.msra.mxu0 %v4816
          %7311 = vmatprep.subr.mxu0 %v4825
          %7312 = vmatpush1.msra.mxu0 %v4824
          %7313 = vmatprep.subr.mxu0 %v4833
          %7314 = vmatpush1.msra.mxu0 %v4832
          %7315 = vmatprep.mubr.f32.mxu0 %v3803
          %7316 = vmatmul.mubr.f32.gmra.mrb[0].mxu0 %v3802
          %v7317 = vpop.f32.mrb[0].mxu0
          %v7318 = vadd.f32 %v7247, %v7317
          %v7319 = vpop.f32.mrb[0].mxu0
          %v7320 = vadd.f32 %v7249, %v7319
          %7321 = vdwg.mxu0
          %7322 = vmatprep.subr.mxu0 %v4841
          %7323 = vmatpush1.msra.mxu0 %v4840
          %7324 = vmatprep.subr.mxu0 %v4849
          %7325 = vmatpush1.msra.mxu0 %v4848
          %7326 = vmatprep.subr.mxu0 %v4857
          %7327 = vmatpush1.msra.mxu0 %v4856
          %7328 = vmatprep.subr.mxu0 %v4865
          %7329 = vmatpush1.msra.mxu0 %v4864
          %7330 = vmatprep.subr.mxu0 %v4873
          %7331 = vmatpush1.msra.mxu0 %v4872
          %7332 = vmatprep.subr.mxu0 %v4881
          %7333 = vmatpush1.msra.mxu0 %v4880
          %7334 = vmatprep.subr.mxu0 %v4889
          %7335 = vmatpush1.msra.mxu0 %v4888
          %7336 = vmatprep.subr.mxu0 %v4897
          %7337 = vmatpush1.msra.mxu0 %v4896
          %7338 = vmatprep.subr.mxu0 %v4905
          %7339 = vmatpush1.msra.mxu0 %v4904
          %7340 = vmatprep.subr.mxu0 %v4913
          %7341 = vmatpush1.msra.mxu0 %v4912
          %7342 = vmatprep.subr.mxu0 %v4921
          %7343 = vmatpush1.msra.mxu0 %v4920
          %7344 = vmatprep.subr.mxu0 %v4929
          %7345 = vmatpush1.msra.mxu0 %v4928
          %7346 = vmatprep.subr.mxu0 %v4937
          %7347 = vmatpush1.msra.mxu0 %v4936
          %7348 = vmatprep.subr.mxu0 %v4945
          %7349 = vmatpush1.msra.mxu0 %v4944
          %7350 = vmatprep.subr.mxu0 %v4953
          %7351 = vmatpush1.msra.mxu0 %v4952
          %7352 = vmatprep.subr.mxu0 %v4961
          %7353 = vmatpush1.msra.mxu0 %v4960
          %7354 = vmatprep.subr.mxu0 %v4969
          %7355 = vmatpush1.msra.mxu0 %v4968
          %7356 = vmatprep.subr.mxu0 %v4977
          %7357 = vmatpush1.msra.mxu0 %v4976
          %7358 = vmatprep.subr.mxu0 %v4985
          %7359 = vmatpush1.msra.mxu0 %v4984
          %7360 = vmatprep.subr.mxu0 %v4993
          %7361 = vmatpush1.msra.mxu0 %v4992
          %7362 = vmatprep.subr.mxu0 %v5001
          %7363 = vmatpush1.msra.mxu0 %v5000
          %7364 = vmatprep.subr.mxu0 %v5009
          %7365 = vmatpush1.msra.mxu0 %v5008
          %7366 = vmatprep.subr.mxu0 %v5017
          %7367 = vmatpush1.msra.mxu0 %v5016
          %7368 = vmatprep.subr.mxu0 %v5025
          %7369 = vmatpush1.msra.mxu0 %v5024
          %7370 = vmatprep.subr.mxu0 %v5033
          %7371 = vmatpush1.msra.mxu0 %v5032
          %7372 = vmatprep.subr.mxu0 %v5041
          %7373 = vmatpush1.msra.mxu0 %v5040
          %7374 = vmatprep.subr.mxu0 %v5049
          %7375 = vmatpush1.msra.mxu0 %v5048
          %7376 = vmatprep.subr.mxu0 %v5057
          %7377 = vmatpush1.msra.mxu0 %v5056
          %7378 = vmatprep.subr.mxu0 %v5065
          %7379 = vmatpush1.msra.mxu0 %v5064
          %7380 = vmatprep.subr.mxu0 %v5073
          %7381 = vmatpush1.msra.mxu0 %v5072
          %7382 = vmatprep.subr.mxu0 %v5081
          %7383 = vmatpush1.msra.mxu0 %v5080
          %7384 = vmatprep.subr.mxu0 %v5089
          %7385 = vmatpush1.msra.mxu0 %v5088
          %7386 = vmatprep.mubr.f32.mxu0 %v3805
          %7387 = vmatmul.mubr.f32.gmra.mrb[0].mxu0 %v3804
          %v7388 = vpop.f32.mrb[0].mxu0
          %v7389 = vadd.f32 %v7318, %v7388
          %v7390 = vpop.f32.mrb[0].mxu0
          %v7391 = vadd.f32 %v7320, %v7390
          %7392 = vdwg.mxu0
          %7393 = vmatprep.subr.mxu0 %v5097
          %7394 = vmatpush1.msra.mxu0 %v5096
          %7395 = vmatprep.subr.mxu0 %v5105
          %7396 = vmatpush1.msra.mxu0 %v5104
          %7397 = vmatprep.subr.mxu0 %v5113
          %7398 = vmatpush1.msra.mxu0 %v5112
          %7399 = vmatprep.subr.mxu0 %v5121
          %7400 = vmatpush1.msra.mxu0 %v5120
          %7401 = vmatprep.subr.mxu0 %v5129
          %7402 = vmatpush1.msra.mxu0 %v5128
          %7403 = vmatprep.subr.mxu0 %v5137
          %7404 = vmatpush1.msra.mxu0 %v5136
          %7405 = vmatprep.subr.mxu0 %v5145
          %7406 = vmatpush1.msra.mxu0 %v5144
          %7407 = vmatprep.subr.mxu0 %v5153
          %7408 = vmatpush1.msra.mxu0 %v5152
          %7409 = vmatprep.subr.mxu0 %v5161
          %7410 = vmatpush1.msra.mxu0 %v5160
          %7411 = vmatprep.subr.mxu0 %v5169
          %7412 = vmatpush1.msra.mxu0 %v5168
          %7413 = vmatprep.subr.mxu0 %v5177
          %7414 = vmatpush1.msra.mxu0 %v5176
          %7415 = vmatprep.subr.mxu0 %v5185
          %7416 = vmatpush1.msra.mxu0 %v5184
          %7417 = vmatprep.subr.mxu0 %v5193
          %7418 = vmatpush1.msra.mxu0 %v5192
          %7419 = vmatprep.subr.mxu0 %v5201
          %7420 = vmatpush1.msra.mxu0 %v5200
          %7421 = vmatprep.subr.mxu0 %v5209
          %7422 = vmatpush1.msra.mxu0 %v5208
          %7423 = vmatprep.subr.mxu0 %v5217
          %7424 = vmatpush1.msra.mxu0 %v5216
          %7425 = vmatprep.subr.mxu0 %v5225
          %7426 = vmatpush1.msra.mxu0 %v5224
          %7427 = vmatprep.subr.mxu0 %v5233
          %7428 = vmatpush1.msra.mxu0 %v5232
          %7429 = vmatprep.subr.mxu0 %v5241
          %7430 = vmatpush1.msra.mxu0 %v5240
          %7431 = vmatprep.subr.mxu0 %v5249
          %7432 = vmatpush1.msra.mxu0 %v5248
          %7433 = vmatprep.subr.mxu0 %v5257
          %7434 = vmatpush1.msra.mxu0 %v5256
          %7435 = vmatprep.subr.mxu0 %v5265
          %7436 = vmatpush1.msra.mxu0 %v5264
          %7437 = vmatprep.subr.mxu0 %v5273
          %7438 = vmatpush1.msra.mxu0 %v5272
          %7439 = vmatprep.subr.mxu0 %v5281
          %7440 = vmatpush1.msra.mxu0 %v5280
          %7441 = vmatprep.subr.mxu0 %v5289
          %7442 = vmatpush1.msra.mxu0 %v5288
          %7443 = vmatprep.subr.mxu0 %v5297
          %7444 = vmatpush1.msra.mxu0 %v5296
          %7445 = vmatprep.subr.mxu0 %v5305
          %7446 = vmatpush1.msra.mxu0 %v5304
          %7447 = vmatprep.subr.mxu0 %v5313
          %7448 = vmatpush1.msra.mxu0 %v5312
          %7449 = vmatprep.subr.mxu0 %v5321
          %7450 = vmatpush1.msra.mxu0 %v5320
          %7451 = vmatprep.subr.mxu0 %v5329
          %7452 = vmatpush1.msra.mxu0 %v5328
          %7453 = vmatprep.subr.mxu0 %v5337
          %7454 = vmatpush1.msra.mxu0 %v5336
          %7455 = vmatprep.subr.mxu0 %v5345
          %7456 = vmatpush1.msra.mxu0 %v5344
          %7457 = vmatprep.mubr.f32.mxu0 %v3807
          %7458 = vmatmul.mubr.f32.gmra.mrb[0].mxu0 %v3806
          %v7459 = vpop.f32.mrb[0].mxu0
          %v7460 = vadd.f32 %v7389, %v7459
          %v7461 = vpop.f32.mrb[0].mxu0
          %v7462 = vadd.f32 %v7391, %v7461
          %7463 = vdwg.mxu0
          %7464 = vmatprep.subr.mxu0 %v5353
          %7465 = vmatpush1.msra.mxu0 %v5352
          %7466 = vmatprep.subr.mxu0 %v5361
          %7467 = vmatpush1.msra.mxu0 %v5360
          %7468 = vmatprep.subr.mxu0 %v5369
          %7469 = vmatpush1.msra.mxu0 %v5368
          %7470 = vmatprep.subr.mxu0 %v5377
          %7471 = vmatpush1.msra.mxu0 %v5376
          %7472 = vmatprep.subr.mxu0 %v5385
          %7473 = vmatpush1.msra.mxu0 %v5384
          %7474 = vmatprep.subr.mxu0 %v5393
          %7475 = vmatpush1.msra.mxu0 %v5392
          %7476 = vmatprep.subr.mxu0 %v5401
          %7477 = vmatpush1.msra.mxu0 %v5400
          %7478 = vmatprep.subr.mxu0 %v5409
          %7479 = vmatpush1.msra.mxu0 %v5408
          %7480 = vmatprep.subr.mxu0 %v5417
          %7481 = vmatpush1.msra.mxu0 %v5416
          %7482 = vmatprep.subr.mxu0 %v5425
          %7483 = vmatpush1.msra.mxu0 %v5424
          %7484 = vmatprep.subr.mxu0 %v5433
          %7485 = vmatpush1.msra.mxu0 %v5432
          %7486 = vmatprep.subr.mxu0 %v5441
          %7487 = vmatpush1.msra.mxu0 %v5440
          %7488 = vmatprep.subr.mxu0 %v5449
          %7489 = vmatpush1.msra.mxu0 %v5448
          %7490 = vmatprep.subr.mxu0 %v5457
          %7491 = vmatpush1.msra.mxu0 %v5456
          %7492 = vmatprep.subr.mxu0 %v5465
          %7493 = vmatpush1.msra.mxu0 %v5464
          %7494 = vmatprep.subr.mxu0 %v5473
          %7495 = vmatpush1.msra.mxu0 %v5472
          %7496 = vmatprep.subr.mxu0 %v5481
          %7497 = vmatpush1.msra.mxu0 %v5480
          %7498 = vmatprep.subr.mxu0 %v5489
          %7499 = vmatpush1.msra.mxu0 %v5488
          %7500 = vmatprep.subr.mxu0 %v5497
          %7501 = vmatpush1.msra.mxu0 %v5496
          %7502 = vmatprep.subr.mxu0 %v5505
          %7503 = vmatpush1.msra.mxu0 %v5504
          %7504 = vmatprep.subr.mxu0 %v5513
          %7505 = vmatpush1.msra.mxu0 %v5512
          %7506 = vmatprep.subr.mxu0 %v5521
          %7507 = vmatpush1.msra.mxu0 %v5520
          %7508 = vmatprep.subr.mxu0 %v5529
          %7509 = vmatpush1.msra.mxu0 %v5528
          %7510 = vmatprep.subr.mxu0 %v5537
          %7511 = vmatpush1.msra.mxu0 %v5536
          %7512 = vmatprep.subr.mxu0 %v5545
          %7513 = vmatpush1.msra.mxu0 %v5544
          %7514 = vmatprep.subr.mxu0 %v5553
          %7515 = vmatpush1.msra.mxu0 %v5552
          %7516 = vmatprep.subr.mxu0 %v5561
          %7517 = vmatpush1.msra.mxu0 %v5560
          %7518 = vmatprep.subr.mxu0 %v5569
          %7519 = vmatpush1.msra.mxu0 %v5568
          %7520 = vmatprep.subr.mxu0 %v5577
          %7521 = vmatpush1.msra.mxu0 %v5576
          %7522 = vmatprep.subr.mxu0 %v5585
          %7523 = vmatpush1.msra.mxu0 %v5584
          %7524 = vmatprep.subr.mxu0 %v5593
          %7525 = vmatpush1.msra.mxu0 %v5592
          %7526 = vmatprep.subr.mxu0 %v5601
          %7527 = vmatpush1.msra.mxu0 %v5600
          %7528 = vmatprep.mubr.f32.mxu0 %v3809
          %7529 = vmatmul.mubr.f32.gmra.mrb[0].mxu0 %v3808
          %v7530 = vpop.f32.mrb[0].mxu0
          %v7531 = vadd.f32 %v7460, %v7530
          %v7532 = vpop.f32.mrb[0].mxu0
          %v7533 = vadd.f32 %v7462, %v7532
          %7534 = vdwg.mxu0
          %7535 = vmatprep.subr.mxu0 %v5609
          %7536 = vmatpush1.msra.mxu0 %v5608
          %7537 = vmatprep.subr.mxu0 %v5617
          %7538 = vmatpush1.msra.mxu0 %v5616
          %7539 = vmatprep.subr.mxu0 %v5625
          %7540 = vmatpush1.msra.mxu0 %v5624
          %7541 = vmatprep.subr.mxu0 %v5633
          %7542 = vmatpush1.msra.mxu0 %v5632
          %7543 = vmatprep.subr.mxu0 %v5641
          %7544 = vmatpush1.msra.mxu0 %v5640
          %7545 = vmatprep.subr.mxu0 %v5649
          %7546 = vmatpush1.msra.mxu0 %v5648
          %7547 = vmatprep.subr.mxu0 %v5657
          %7548 = vmatpush1.msra.mxu0 %v5656
          %7549 = vmatprep.subr.mxu0 %v5665
          %7550 = vmatpush1.msra.mxu0 %v5664
          %7551 = vmatprep.subr.mxu0 %v5673
          %7552 = vmatpush1.msra.mxu0 %v5672
          %7553 = vmatprep.subr.mxu0 %v5681
          %7554 = vmatpush1.msra.mxu0 %v5680
          %7555 = vmatprep.subr.mxu0 %v5689
          %7556 = vmatpush1.msra.mxu0 %v5688
          %7557 = vmatprep.subr.mxu0 %v5697
          %7558 = vmatpush1.msra.mxu0 %v5696
          %7559 = vmatprep.subr.mxu0 %v5705
          %7560 = vmatpush1.msra.mxu0 %v5704
          %7561 = vmatprep.subr.mxu0 %v5713
          %7562 = vmatpush1.msra.mxu0 %v5712
          %7563 = vmatprep.subr.mxu0 %v5721
          %7564 = vmatpush1.msra.mxu0 %v5720
          %7565 = vmatprep.subr.mxu0 %v5729
          %7566 = vmatpush1.msra.mxu0 %v5728
          %7567 = vmatprep.subr.mxu0 %v5737
          %7568 = vmatpush1.msra.mxu0 %v5736
          %7569 = vmatprep.subr.mxu0 %v5745
          %7570 = vmatpush1.msra.mxu0 %v5744
          %7571 = vmatprep.subr.mxu0 %v5753
          %7572 = vmatpush1.msra.mxu0 %v5752
          %7573 = vmatprep.subr.mxu0 %v5761
          %7574 = vmatpush1.msra.mxu0 %v5760
          %7575 = vmatprep.subr.mxu0 %v5769
          %7576 = vmatpush1.msra.mxu0 %v5768
          %7577 = vmatprep.subr.mxu0 %v5777
          %7578 = vmatpush1.msra.mxu0 %v5776
          %7579 = vmatprep.subr.mxu0 %v5785
          %7580 = vmatpush1.msra.mxu0 %v5784
          %7581 = vmatprep.subr.mxu0 %v5793
          %7582 = vmatpush1.msra.mxu0 %v5792
          %7583 = vmatprep.subr.mxu0 %v5801
          %7584 = vmatpush1.msra.mxu0 %v5800
          %7585 = vmatprep.subr.mxu0 %v5809
          %7586 = vmatpush1.msra.mxu0 %v5808
          %7587 = vmatprep.subr.mxu0 %v5817
          %7588 = vmatpush1.msra.mxu0 %v5816
          %7589 = vmatprep.subr.mxu0 %v5825
          %7590 = vmatpush1.msra.mxu0 %v5824
          %7591 = vmatprep.subr.mxu0 %v5833
          %7592 = vmatpush1.msra.mxu0 %v5832
          %7593 = vmatprep.subr.mxu0 %v5841
          %7594 = vmatpush1.msra.mxu0 %v5840
          %7595 = vmatprep.subr.mxu0 %v5849
          %7596 = vmatpush1.msra.mxu0 %v5848
          %7597 = vmatprep.subr.mxu0 %v5857
          %7598 = vmatpush1.msra.mxu0 %v5856
          %7599 = vmatprep.mubr.f32.mxu0 %v3811
          %7600 = vmatmul.mubr.f32.gmra.mrb[0].mxu0 %v3810
          %v7601 = vpop.f32.mrb[0].mxu0
          %v7602 = vadd.f32 %v7531, %v7601
          %v7603 = vpop.f32.mrb[0].mxu0
          %v7604 = vadd.f32 %v7533, %v7603
          %7605 = vdwg.mxu0
          %7606 = vmatprep.subr.mxu0 %v3819
          %7607 = vmatpush1.msra.mxu0 %v3818
          %7608 = vmatprep.subr.mxu0 %v3827
          %7609 = vmatpush1.msra.mxu0 %v3826
          %7610 = vmatprep.subr.mxu0 %v3835
          %7611 = vmatpush1.msra.mxu0 %v3834
          %7612 = vmatprep.subr.mxu0 %v3843
          %7613 = vmatpush1.msra.mxu0 %v3842
          %7614 = vmatprep.subr.mxu0 %v3851
          %7615 = vmatpush1.msra.mxu0 %v3850
          %7616 = vmatprep.subr.mxu0 %v3859
          %7617 = vmatpush1.msra.mxu0 %v3858
          %7618 = vmatprep.subr.mxu0 %v3867
          %7619 = vmatpush1.msra.mxu0 %v3866
          %7620 = vmatprep.subr.mxu0 %v3875
          %7621 = vmatpush1.msra.mxu0 %v3874
          %7622 = vmatprep.subr.mxu0 %v3883
          %7623 = vmatpush1.msra.mxu0 %v3882
          %7624 = vmatprep.subr.mxu0 %v3891
          %7625 = vmatpush1.msra.mxu0 %v3890
          %7626 = vmatprep.subr.mxu0 %v3899
          %7627 = vmatpush1.msra.mxu0 %v3898
          %7628 = vmatprep.subr.mxu0 %v3907
          %7629 = vmatpush1.msra.mxu0 %v3906
          %7630 = vmatprep.subr.mxu0 %v3915
          %7631 = vmatpush1.msra.mxu0 %v3914
          %7632 = vmatprep.subr.mxu0 %v3923
          %7633 = vmatpush1.msra.mxu0 %v3922
          %7634 = vmatprep.subr.mxu0 %v3931
          %7635 = vmatpush1.msra.mxu0 %v3930
          %7636 = vmatprep.subr.mxu0 %v3939
          %7637 = vmatpush1.msra.mxu0 %v3938
          %7638 = vmatprep.subr.mxu0 %v3947
          %7639 = vmatpush1.msra.mxu0 %v3946
          %7640 = vmatprep.subr.mxu0 %v3955
          %7641 = vmatpush1.msra.mxu0 %v3954
          %7642 = vmatprep.subr.mxu0 %v3963
          %7643 = vmatpush1.msra.mxu0 %v3962
          %7644 = vmatprep.subr.mxu0 %v3971
          %7645 = vmatpush1.msra.mxu0 %v3970
          %7646 = vmatprep.subr.mxu0 %v3979
          %7647 = vmatpush1.msra.mxu0 %v3978
          %7648 = vmatprep.subr.mxu0 %v3987
          %7649 = vmatpush1.msra.mxu0 %v3986
          %7650 = vmatprep.subr.mxu0 %v3995
          %7651 = vmatpush1.msra.mxu0 %v3994
          %7652 = vmatprep.subr.mxu0 %v4003
          %7653 = vmatpush1.msra.mxu0 %v4002
          %7654 = vmatprep.subr.mxu0 %v4011
          %7655 = vmatpush1.msra.mxu0 %v4010
          %7656 = vmatprep.subr.mxu0 %v4019
          %7657 = vmatpush1.msra.mxu0 %v4018
          %7658 = vmatprep.subr.mxu0 %v4027
          %7659 = vmatpush1.msra.mxu0 %v4026
          %7660 = vmatprep.subr.mxu0 %v4035
          %7661 = vmatpush1.msra.mxu0 %v4034
          %7662 = vmatprep.subr.mxu0 %v4043
          %7663 = vmatpush1.msra.mxu0 %v4042
          %7664 = vmatprep.subr.mxu0 %v4051
          %7665 = vmatpush1.msra.mxu0 %v4050
          %7666 = vmatprep.subr.mxu0 %v4059
          %7667 = vmatpush1.msra.mxu0 %v4058
          %7668 = vmatprep.subr.mxu0 %v4067
          %7669 = vmatpush1.msra.mxu0 %v4066
          %7670 = vmatprep.mubr.f32.mxu0 %v3797
          %7671 = vmatmul.mubr.f32.gmra.mrb[0].mxu0 %v3796
          %v7672 = vpop.f32.mrb[0].mxu0
          %v7673 = vadd.f32 %v5889, %v7672
          %v7674 = vpop.f32.mrb[0].mxu0
          %v7675 = vadd.f32 %v5893, %v7674
          %7676 = vdwg.mxu0
          %7677 = vmatprep.subr.mxu0 %v4075
          %7678 = vmatpush1.msra.mxu0 %v4074
          %7679 = vmatprep.subr.mxu0 %v4083
          %7680 = vmatpush1.msra.mxu0 %v4082
          %7681 = vmatprep.subr.mxu0 %v4091
          %7682 = vmatpush1.msra.mxu0 %v4090
          %7683 = vmatprep.subr.mxu0 %v4099
          %7684 = vmatpush1.msra.mxu0 %v4098
          %7685 = vmatprep.subr.mxu0 %v4107
          %7686 = vmatpush1.msra.mxu0 %v4106
          %7687 = vmatprep.subr.mxu0 %v4115
          %7688 = vmatpush1.msra.mxu0 %v4114
          %7689 = vmatprep.subr.mxu0 %v4123
          %7690 = vmatpush1.msra.mxu0 %v4122
          %7691 = vmatprep.subr.mxu0 %v4131
          %7692 = vmatpush1.msra.mxu0 %v4130
          %7693 = vmatprep.subr.mxu0 %v4139
          %7694 = vmatpush1.msra.mxu0 %v4138
          %7695 = vmatprep.subr.mxu0 %v4147
          %7696 = vmatpush1.msra.mxu0 %v4146
          %7697 = vmatprep.subr.mxu0 %v4155
          %7698 = vmatpush1.msra.mxu0 %v4154
          %7699 = vmatprep.subr.mxu0 %v4163
          %7700 = vmatpush1.msra.mxu0 %v4162
          %7701 = vmatprep.subr.mxu0 %v4171
          %7702 = vmatpush1.msra.mxu0 %v4170
          %7703 = vmatprep.subr.mxu0 %v4179
          %7704 = vmatpush1.msra.mxu0 %v4178
          %7705 = vmatprep.subr.mxu0 %v4187
          %7706 = vmatpush1.msra.mxu0 %v4186
          %7707 = vmatprep.subr.mxu0 %v4195
          %7708 = vmatpush1.msra.mxu0 %v4194
          %7709 = vmatprep.subr.mxu0 %v4203
          %7710 = vmatpush1.msra.mxu0 %v4202
          %7711 = vmatprep.subr.mxu0 %v4211
          %7712 = vmatpush1.msra.mxu0 %v4210
          %7713 = vmatprep.subr.mxu0 %v4219
          %7714 = vmatpush1.msra.mxu0 %v4218
          %7715 = vmatprep.subr.mxu0 %v4227
          %7716 = vmatpush1.msra.mxu0 %v4226
          %7717 = vmatprep.subr.mxu0 %v4235
          %7718 = vmatpush1.msra.mxu0 %v4234
          %7719 = vmatprep.subr.mxu0 %v4243
          %7720 = vmatpush1.msra.mxu0 %v4242
          %7721 = vmatprep.subr.mxu0 %v4251
          %7722 = vmatpush1.msra.mxu0 %v4250
          %7723 = vmatprep.subr.mxu0 %v4259
          %7724 = vmatpush1.msra.mxu0 %v4258
          %7725 = vmatprep.subr.mxu0 %v4267
          %7726 = vmatpush1.msra.mxu0 %v4266
          %7727 = vmatprep.subr.mxu0 %v4275
          %7728 = vmatpush1.msra.mxu0 %v4274
          %7729 = vmatprep.subr.mxu0 %v4283
          %7730 = vmatpush1.msra.mxu0 %v4282
          %7731 = vmatprep.subr.mxu0 %v4291
          %7732 = vmatpush1.msra.mxu0 %v4290
          %7733 = vmatprep.subr.mxu0 %v4299
          %7734 = vmatpush1.msra.mxu0 %v4298
          %7735 = vmatprep.subr.mxu0 %v4307
          %7736 = vmatpush1.msra.mxu0 %v4306
          %7737 = vmatprep.subr.mxu0 %v4315
          %7738 = vmatpush1.msra.mxu0 %v4314
          %7739 = vmatprep.subr.mxu0 %v4323
          %7740 = vmatpush1.msra.mxu0 %v4322
          %7741 = vmatprep.mubr.f32.mxu0 %v3799
          %7742 = vmatmul.mubr.f32.gmra.mrb[0].mxu0 %v3798
          %v7743 = vpop.f32.mrb[0].mxu0
          %v7744 = vadd.f32 %v7673, %v7743
          %v7745 = vpop.f32.mrb[0].mxu0
          %v7746 = vadd.f32 %v7675, %v7745
          %7747 = vdwg.mxu0
          %7748 = vmatprep.subr.mxu0 %v4331
          %7749 = vmatpush1.msra.mxu0 %v4330
          %7750 = vmatprep.subr.mxu0 %v4339
          %7751 = vmatpush1.msra.mxu0 %v4338
          %7752 = vmatprep.subr.mxu0 %v4347
          %7753 = vmatpush1.msra.mxu0 %v4346
          %7754 = vmatprep.subr.mxu0 %v4355
          %7755 = vmatpush1.msra.mxu0 %v4354
          %7756 = vmatprep.subr.mxu0 %v4363
          %7757 = vmatpush1.msra.mxu0 %v4362
          %7758 = vmatprep.subr.mxu0 %v4371
          %7759 = vmatpush1.msra.mxu0 %v4370
          %7760 = vmatprep.subr.mxu0 %v4379
          %7761 = vmatpush1.msra.mxu0 %v4378
          %7762 = vmatprep.subr.mxu0 %v4387
          %7763 = vmatpush1.msra.mxu0 %v4386
          %7764 = vmatprep.subr.mxu0 %v4395
          %7765 = vmatpush1.msra.mxu0 %v4394
          %7766 = vmatprep.subr.mxu0 %v4403
          %7767 = vmatpush1.msra.mxu0 %v4402
          %7768 = vmatprep.subr.mxu0 %v4411
          %7769 = vmatpush1.msra.mxu0 %v4410
          %7770 = vmatprep.subr.mxu0 %v4419
          %7771 = vmatpush1.msra.mxu0 %v4418
          %7772 = vmatprep.subr.mxu0 %v4427
          %7773 = vmatpush1.msra.mxu0 %v4426
          %7774 = vmatprep.subr.mxu0 %v4435
          %7775 = vmatpush1.msra.mxu0 %v4434
          %7776 = vmatprep.subr.mxu0 %v4443
          %7777 = vmatpush1.msra.mxu0 %v4442
          %7778 = vmatprep.subr.mxu0 %v4451
          %7779 = vmatpush1.msra.mxu0 %v4450
          %7780 = vmatprep.subr.mxu0 %v4459
          %7781 = vmatpush1.msra.mxu0 %v4458
          %7782 = vmatprep.subr.mxu0 %v4467
          %7783 = vmatpush1.msra.mxu0 %v4466
          %7784 = vmatprep.subr.mxu0 %v4475
          %7785 = vmatpush1.msra.mxu0 %v4474
          %7786 = vmatprep.subr.mxu0 %v4483
          %7787 = vmatpush1.msra.mxu0 %v4482
          %7788 = vmatprep.subr.mxu0 %v4491
          %7789 = vmatpush1.msra.mxu0 %v4490
          %7790 = vmatprep.subr.mxu0 %v4499
          %7791 = vmatpush1.msra.mxu0 %v4498
          %7792 = vmatprep.subr.mxu0 %v4507
          %7793 = vmatpush1.msra.mxu0 %v4506
          %7794 = vmatprep.subr.mxu0 %v4515
          %7795 = vmatpush1.msra.mxu0 %v4514
          %7796 = vmatprep.subr.mxu0 %v4523
          %7797 = vmatpush1.msra.mxu0 %v4522
          %7798 = vmatprep.subr.mxu0 %v4531
          %7799 = vmatpush1.msra.mxu0 %v4530
          %7800 = vmatprep.subr.mxu0 %v4539
          %7801 = vmatpush1.msra.mxu0 %v4538
          %7802 = vmatprep.subr.mxu0 %v4547
          %7803 = vmatpush1.msra.mxu0 %v4546
          %7804 = vmatprep.subr.mxu0 %v4555
          %7805 = vmatpush1.msra.mxu0 %v4554
          %7806 = vmatprep.subr.mxu0 %v4563
          %7807 = vmatpush1.msra.mxu0 %v4562
          %7808 = vmatprep.subr.mxu0 %v4571
          %7809 = vmatpush1.msra.mxu0 %v4570
          %7810 = vmatprep.subr.mxu0 %v4579
          %7811 = vmatpush1.msra.mxu0 %v4578
          %7812 = vmatprep.mubr.f32.mxu0 %v3801
          %7813 = vmatmul.mubr.f32.gmra.mrb[0].mxu0 %v3800
          %v7814 = vpop.f32.mrb[0].mxu0
          %v7815 = vadd.f32 %v7744, %v7814
          %v7816 = vpop.f32.mrb[0].mxu0
          %v7817 = vadd.f32 %v7746, %v7816
          %7818 = vdwg.mxu0
          %7819 = vmatprep.subr.mxu0 %v4587
          %7820 = vmatpush1.msra.mxu0 %v4586
          %7821 = vmatprep.subr.mxu0 %v4595
          %7822 = vmatpush1.msra.mxu0 %v4594
          %7823 = vmatprep.subr.mxu0 %v4603
          %7824 = vmatpush1.msra.mxu0 %v4602
          %7825 = vmatprep.subr.mxu0 %v4611
          %7826 = vmatpush1.msra.mxu0 %v4610
          %7827 = vmatprep.subr.mxu0 %v4619
          %7828 = vmatpush1.msra.mxu0 %v4618
          %7829 = vmatprep.subr.mxu0 %v4627
          %7830 = vmatpush1.msra.mxu0 %v4626
          %7831 = vmatprep.subr.mxu0 %v4635
          %7832 = vmatpush1.msra.mxu0 %v4634
          %7833 = vmatprep.subr.mxu0 %v4643
          %7834 = vmatpush1.msra.mxu0 %v4642
          %7835 = vmatprep.subr.mxu0 %v4651
          %7836 = vmatpush1.msra.mxu0 %v4650
          %7837 = vmatprep.subr.mxu0 %v4659
          %7838 = vmatpush1.msra.mxu0 %v4658
          %7839 = vmatprep.subr.mxu0 %v4667
          %7840 = vmatpush1.msra.mxu0 %v4666
          %7841 = vmatprep.subr.mxu0 %v4675
          %7842 = vmatpush1.msra.mxu0 %v4674
          %7843 = vmatprep.subr.mxu0 %v4683
          %7844 = vmatpush1.msra.mxu0 %v4682
          %7845 = vmatprep.subr.mxu0 %v4691
          %7846 = vmatpush1.msra.mxu0 %v4690
          %7847 = vmatprep.subr.mxu0 %v4699
          %7848 = vmatpush1.msra.mxu0 %v4698
          %7849 = vmatprep.subr.mxu0 %v4707
          %7850 = vmatpush1.msra.mxu0 %v4706
          %7851 = vmatprep.subr.mxu0 %v4715
          %7852 = vmatpush1.msra.mxu0 %v4714
          %7853 = vmatprep.subr.mxu0 %v4723
          %7854 = vmatpush1.msra.mxu0 %v4722
          %7855 = vmatprep.subr.mxu0 %v4731
          %7856 = vmatpush1.msra.mxu0 %v4730
          %7857 = vmatprep.subr.mxu0 %v4739
          %7858 = vmatpush1.msra.mxu0 %v4738
          %7859 = vmatprep.subr.mxu0 %v4747
          %7860 = vmatpush1.msra.mxu0 %v4746
          %7861 = vmatprep.subr.mxu0 %v4755
          %7862 = vmatpush1.msra.mxu0 %v4754
          %7863 = vmatprep.subr.mxu0 %v4763
          %7864 = vmatpush1.msra.mxu0 %v4762
          %7865 = vmatprep.subr.mxu0 %v4771
          %7866 = vmatpush1.msra.mxu0 %v4770
          %7867 = vmatprep.subr.mxu0 %v4779
          %7868 = vmatpush1.msra.mxu0 %v4778
          %7869 = vmatprep.subr.mxu0 %v4787
          %7870 = vmatpush1.msra.mxu0 %v4786
          %7871 = vmatprep.subr.mxu0 %v4795
          %7872 = vmatpush1.msra.mxu0 %v4794
          %7873 = vmatprep.subr.mxu0 %v4803
          %7874 = vmatpush1.msra.mxu0 %v4802
          %7875 = vmatprep.subr.mxu0 %v4811
          %7876 = vmatpush1.msra.mxu0 %v4810
          %7877 = vmatprep.subr.mxu0 %v4819
          %7878 = vmatpush1.msra.mxu0 %v4818
          %7879 = vmatprep.subr.mxu0 %v4827
          %7880 = vmatpush1.msra.mxu0 %v4826
          %7881 = vmatprep.subr.mxu0 %v4835
          %7882 = vmatpush1.msra.mxu0 %v4834
          %7883 = vmatprep.mubr.f32.mxu0 %v3803
          %7884 = vmatmul.mubr.f32.gmra.mrb[0].mxu0 %v3802
          %v7885 = vpop.f32.mrb[0].mxu0
          %v7886 = vadd.f32 %v7815, %v7885
          %v7887 = vpop.f32.mrb[0].mxu0
          %v7888 = vadd.f32 %v7817, %v7887
          %7889 = vdwg.mxu0
          %7890 = vmatprep.subr.mxu0 %v4843
          %7891 = vmatpush1.msra.mxu0 %v4842
          %7892 = vmatprep.subr.mxu0 %v4851
          %7893 = vmatpush1.msra.mxu0 %v4850
          %7894 = vmatprep.subr.mxu0 %v4859
          %7895 = vmatpush1.msra.mxu0 %v4858
          %7896 = vmatprep.subr.mxu0 %v4867
          %7897 = vmatpush1.msra.mxu0 %v4866
          %7898 = vmatprep.subr.mxu0 %v4875
          %7899 = vmatpush1.msra.mxu0 %v4874
          %7900 = vmatprep.subr.mxu0 %v4883
          %7901 = vmatpush1.msra.mxu0 %v4882
          %7902 = vmatprep.subr.mxu0 %v4891
          %7903 = vmatpush1.msra.mxu0 %v4890
          %7904 = vmatprep.subr.mxu0 %v4899
          %7905 = vmatpush1.msra.mxu0 %v4898
          %7906 = vmatprep.subr.mxu0 %v4907
          %7907 = vmatpush1.msra.mxu0 %v4906
          %7908 = vmatprep.subr.mxu0 %v4915
          %7909 = vmatpush1.msra.mxu0 %v4914
          %7910 = vmatprep.subr.mxu0 %v4923
          %7911 = vmatpush1.msra.mxu0 %v4922
          %7912 = vmatprep.subr.mxu0 %v4931
          %7913 = vmatpush1.msra.mxu0 %v4930
          %7914 = vmatprep.subr.mxu0 %v4939
          %7915 = vmatpush1.msra.mxu0 %v4938
          %7916 = vmatprep.subr.mxu0 %v4947
          %7917 = vmatpush1.msra.mxu0 %v4946
          %7918 = vmatprep.subr.mxu0 %v4955
          %7919 = vmatpush1.msra.mxu0 %v4954
          %7920 = vmatprep.subr.mxu0 %v4963
          %7921 = vmatpush1.msra.mxu0 %v4962
          %7922 = vmatprep.subr.mxu0 %v4971
          %7923 = vmatpush1.msra.mxu0 %v4970
          %7924 = vmatprep.subr.mxu0 %v4979
          %7925 = vmatpush1.msra.mxu0 %v4978
          %7926 = vmatprep.subr.mxu0 %v4987
          %7927 = vmatpush1.msra.mxu0 %v4986
          %7928 = vmatprep.subr.mxu0 %v4995
          %7929 = vmatpush1.msra.mxu0 %v4994
          %7930 = vmatprep.subr.mxu0 %v5003
          %7931 = vmatpush1.msra.mxu0 %v5002
          %7932 = vmatprep.subr.mxu0 %v5011
          %7933 = vmatpush1.msra.mxu0 %v5010
          %7934 = vmatprep.subr.mxu0 %v5019
          %7935 = vmatpush1.msra.mxu0 %v5018
          %7936 = vmatprep.subr.mxu0 %v5027
          %7937 = vmatpush1.msra.mxu0 %v5026
          %7938 = vmatprep.subr.mxu0 %v5035
          %7939 = vmatpush1.msra.mxu0 %v5034
          %7940 = vmatprep.subr.mxu0 %v5043
          %7941 = vmatpush1.msra.mxu0 %v5042
          %7942 = vmatprep.subr.mxu0 %v5051
          %7943 = vmatpush1.msra.mxu0 %v5050
          %7944 = vmatprep.subr.mxu0 %v5059
          %7945 = vmatpush1.msra.mxu0 %v5058
          %7946 = vmatprep.subr.mxu0 %v5067
          %7947 = vmatpush1.msra.mxu0 %v5066
          %7948 = vmatprep.subr.mxu0 %v5075
          %7949 = vmatpush1.msra.mxu0 %v5074
          %7950 = vmatprep.subr.mxu0 %v5083
          %7951 = vmatpush1.msra.mxu0 %v5082
          %7952 = vmatprep.subr.mxu0 %v5091
          %7953 = vmatpush1.msra.mxu0 %v5090
          %7954 = vmatprep.mubr.f32.mxu0 %v3805
          %7955 = vmatmul.mubr.f32.gmra.mrb[0].mxu0 %v3804
          %v7956 = vpop.f32.mrb[0].mxu0
          %v7957 = vadd.f32 %v7886, %v7956
          %v7958 = vpop.f32.mrb[0].mxu0
          %v7959 = vadd.f32 %v7888, %v7958
          %7960 = vdwg.mxu0
          %7961 = vmatprep.subr.mxu0 %v5099
          %7962 = vmatpush1.msra.mxu0 %v5098
          %7963 = vmatprep.subr.mxu0 %v5107
          %7964 = vmatpush1.msra.mxu0 %v5106
          %7965 = vmatprep.subr.mxu0 %v5115
          %7966 = vmatpush1.msra.mxu0 %v5114
          %7967 = vmatprep.subr.mxu0 %v5123
          %7968 = vmatpush1.msra.mxu0 %v5122
          %7969 = vmatprep.subr.mxu0 %v5131
          %7970 = vmatpush1.msra.mxu0 %v5130
          %7971 = vmatprep.subr.mxu0 %v5139
          %7972 = vmatpush1.msra.mxu0 %v5138
          %7973 = vmatprep.subr.mxu0 %v5147
          %7974 = vmatpush1.msra.mxu0 %v5146
          %7975 = vmatprep.subr.mxu0 %v5155
          %7976 = vmatpush1.msra.mxu0 %v5154
          %7977 = vmatprep.subr.mxu0 %v5163
          %7978 = vmatpush1.msra.mxu0 %v5162
          %7979 = vmatprep.subr.mxu0 %v5171
          %7980 = vmatpush1.msra.mxu0 %v5170
          %7981 = vmatprep.subr.mxu0 %v5179
          %7982 = vmatpush1.msra.mxu0 %v5178
          %7983 = vmatprep.subr.mxu0 %v5187
          %7984 = vmatpush1.msra.mxu0 %v5186
          %7985 = vmatprep.subr.mxu0 %v5195
          %7986 = vmatpush1.msra.mxu0 %v5194
          %7987 = vmatprep.subr.mxu0 %v5203
          %7988 = vmatpush1.msra.mxu0 %v5202
          %7989 = vmatprep.subr.mxu0 %v5211
          %7990 = vmatpush1.msra.mxu0 %v5210
          %7991 = vmatprep.subr.mxu0 %v5219
          %7992 = vmatpush1.msra.mxu0 %v5218
          %7993 = vmatprep.subr.mxu0 %v5227
          %7994 = vmatpush1.msra.mxu0 %v5226
          %7995 = vmatprep.subr.mxu0 %v5235
          %7996 = vmatpush1.msra.mxu0 %v5234
          %7997 = vmatprep.subr.mxu0 %v5243
          %7998 = vmatpush1.msra.mxu0 %v5242
          %7999 = vmatprep.subr.mxu0 %v5251
          %8000 = vmatpush1.msra.mxu0 %v5250
          %8001 = vmatprep.subr.mxu0 %v5259
          %8002 = vmatpush1.msra.mxu0 %v5258
          %8003 = vmatprep.subr.mxu0 %v5267
          %8004 = vmatpush1.msra.mxu0 %v5266
          %8005 = vmatprep.subr.mxu0 %v5275
          %8006 = vmatpush1.msra.mxu0 %v5274
          %8007 = vmatprep.subr.mxu0 %v5283
          %8008 = vmatpush1.msra.mxu0 %v5282
          %8009 = vmatprep.subr.mxu0 %v5291
          %8010 = vmatpush1.msra.mxu0 %v5290
          %8011 = vmatprep.subr.mxu0 %v5299
          %8012 = vmatpush1.msra.mxu0 %v5298
          %8013 = vmatprep.subr.mxu0 %v5307
          %8014 = vmatpush1.msra.mxu0 %v5306
          %8015 = vmatprep.subr.mxu0 %v5315
          %8016 = vmatpush1.msra.mxu0 %v5314
          %8017 = vmatprep.subr.mxu0 %v5323
          %8018 = vmatpush1.msra.mxu0 %v5322
          %8019 = vmatprep.subr.mxu0 %v5331
          %8020 = vmatpush1.msra.mxu0 %v5330
          %8021 = vmatprep.subr.mxu0 %v5339
          %8022 = vmatpush1.msra.mxu0 %v5338
          %8023 = vmatprep.subr.mxu0 %v5347
          %8024 = vmatpush1.msra.mxu0 %v5346
          %8025 = vmatprep.mubr.f32.mxu0 %v3807
          %8026 = vmatmul.mubr.f32.gmra.mrb[0].mxu0 %v3806
          %v8027 = vpop.f32.mrb[0].mxu0
          %v8028 = vadd.f32 %v7957, %v8027
          %v8029 = vpop.f32.mrb[0].mxu0
          %v8030 = vadd.f32 %v7959, %v8029
          %8031 = vdwg.mxu0
          %8032 = vmatprep.subr.mxu0 %v5355
          %8033 = vmatpush1.msra.mxu0 %v5354
          %8034 = vmatprep.subr.mxu0 %v5363
          %8035 = vmatpush1.msra.mxu0 %v5362
          %8036 = vmatprep.subr.mxu0 %v5371
          %8037 = vmatpush1.msra.mxu0 %v5370
          %8038 = vmatprep.subr.mxu0 %v5379
          %8039 = vmatpush1.msra.mxu0 %v5378
          %8040 = vmatprep.subr.mxu0 %v5387
          %8041 = vmatpush1.msra.mxu0 %v5386
          %8042 = vmatprep.subr.mxu0 %v5395
          %8043 = vmatpush1.msra.mxu0 %v5394
          %8044 = vmatprep.subr.mxu0 %v5403
          %8045 = vmatpush1.msra.mxu0 %v5402
          %8046 = vmatprep.subr.mxu0 %v5411
          %8047 = vmatpush1.msra.mxu0 %v5410
          %8048 = vmatprep.subr.mxu0 %v5419
          %8049 = vmatpush1.msra.mxu0 %v5418
          %8050 = vmatprep.subr.mxu0 %v5427
          %8051 = vmatpush1.msra.mxu0 %v5426
          %8052 = vmatprep.subr.mxu0 %v5435
          %8053 = vmatpush1.msra.mxu0 %v5434
          %8054 = vmatprep.subr.mxu0 %v5443
          %8055 = vmatpush1.msra.mxu0 %v5442
          %8056 = vmatprep.subr.mxu0 %v5451
          %8057 = vmatpush1.msra.mxu0 %v5450
          %8058 = vmatprep.subr.mxu0 %v5459
          %8059 = vmatpush1.msra.mxu0 %v5458
          %8060 = vmatprep.subr.mxu0 %v5467
          %8061 = vmatpush1.msra.mxu0 %v5466
          %8062 = vmatprep.subr.mxu0 %v5475
          %8063 = vmatpush1.msra.mxu0 %v5474
          %8064 = vmatprep.subr.mxu0 %v5483
          %8065 = vmatpush1.msra.mxu0 %v5482
          %8066 = vmatprep.subr.mxu0 %v5491
          %8067 = vmatpush1.msra.mxu0 %v5490
          %8068 = vmatprep.subr.mxu0 %v5499
          %8069 = vmatpush1.msra.mxu0 %v5498
          %8070 = vmatprep.subr.mxu0 %v5507
          %8071 = vmatpush1.msra.mxu0 %v5506
          %8072 = vmatprep.subr.mxu0 %v5515
          %8073 = vmatpush1.msra.mxu0 %v5514
          %8074 = vmatprep.subr.mxu0 %v5523
          %8075 = vmatpush1.msra.mxu0 %v5522
          %8076 = vmatprep.subr.mxu0 %v5531
          %8077 = vmatpush1.msra.mxu0 %v5530
          %8078 = vmatprep.subr.mxu0 %v5539
          %8079 = vmatpush1.msra.mxu0 %v5538
          %8080 = vmatprep.subr.mxu0 %v5547
          %8081 = vmatpush1.msra.mxu0 %v5546
          %8082 = vmatprep.subr.mxu0 %v5555
          %8083 = vmatpush1.msra.mxu0 %v5554
          %8084 = vmatprep.subr.mxu0 %v5563
          %8085 = vmatpush1.msra.mxu0 %v5562
          %8086 = vmatprep.subr.mxu0 %v5571
          %8087 = vmatpush1.msra.mxu0 %v5570
          %8088 = vmatprep.subr.mxu0 %v5579
          %8089 = vmatpush1.msra.mxu0 %v5578
          %8090 = vmatprep.subr.mxu0 %v5587
          %8091 = vmatpush1.msra.mxu0 %v5586
          %8092 = vmatprep.subr.mxu0 %v5595
          %8093 = vmatpush1.msra.mxu0 %v5594
          %8094 = vmatprep.subr.mxu0 %v5603
          %8095 = vmatpush1.msra.mxu0 %v5602
          %8096 = vmatprep.mubr.f32.mxu0 %v3809
          %8097 = vmatmul.mubr.f32.gmra.mrb[0].mxu0 %v3808
          %v8098 = vpop.f32.mrb[0].mxu0
          %v8099 = vadd.f32 %v8028, %v8098
          %v8100 = vpop.f32.mrb[0].mxu0
          %v8101 = vadd.f32 %v8030, %v8100
          %8102 = vdwg.mxu0
          %8103 = vmatprep.subr.mxu0 %v5611
          %8104 = vmatpush1.msra.mxu0 %v5610
          %8105 = vmatprep.subr.mxu0 %v5619
          %8106 = vmatpush1.msra.mxu0 %v5618
          %8107 = vmatprep.subr.mxu0 %v5627
          %8108 = vmatpush1.msra.mxu0 %v5626
          %8109 = vmatprep.subr.mxu0 %v5635
          %8110 = vmatpush1.msra.mxu0 %v5634
          %8111 = vmatprep.subr.mxu0 %v5643
          %8112 = vmatpush1.msra.mxu0 %v5642
          %8113 = vmatprep.subr.mxu0 %v5651
          %8114 = vmatpush1.msra.mxu0 %v5650
          %8115 = vmatprep.subr.mxu0 %v5659
          %8116 = vmatpush1.msra.mxu0 %v5658
          %8117 = vmatprep.subr.mxu0 %v5667
          %8118 = vmatpush1.msra.mxu0 %v5666
          %8119 = vmatprep.subr.mxu0 %v5675
          %8120 = vmatpush1.msra.mxu0 %v5674
          %8121 = vmatprep.subr.mxu0 %v5683
          %8122 = vmatpush1.msra.mxu0 %v5682
          %8123 = vmatprep.subr.mxu0 %v5691
          %8124 = vmatpush1.msra.mxu0 %v5690
          %8125 = vmatprep.subr.mxu0 %v5699
          %8126 = vmatpush1.msra.mxu0 %v5698
          %8127 = vmatprep.subr.mxu0 %v5707
          %8128 = vmatpush1.msra.mxu0 %v5706
          %8129 = vmatprep.subr.mxu0 %v5715
          %8130 = vmatpush1.msra.mxu0 %v5714
          %8131 = vmatprep.subr.mxu0 %v5723
          %8132 = vmatpush1.msra.mxu0 %v5722
          %8133 = vmatprep.subr.mxu0 %v5731
          %8134 = vmatpush1.msra.mxu0 %v5730
          %8135 = vmatprep.subr.mxu0 %v5739
          %8136 = vmatpush1.msra.mxu0 %v5738
          %8137 = vmatprep.subr.mxu0 %v5747
          %8138 = vmatpush1.msra.mxu0 %v5746
          %8139 = vmatprep.subr.mxu0 %v5755
          %8140 = vmatpush1.msra.mxu0 %v5754
          %8141 = vmatprep.subr.mxu0 %v5763
          %8142 = vmatpush1.msra.mxu0 %v5762
          %8143 = vmatprep.subr.mxu0 %v5771
          %8144 = vmatpush1.msra.mxu0 %v5770
          %8145 = vmatprep.subr.mxu0 %v5779
          %8146 = vmatpush1.msra.mxu0 %v5778
          %8147 = vmatprep.subr.mxu0 %v5787
          %8148 = vmatpush1.msra.mxu0 %v5786
          %8149 = vmatprep.subr.mxu0 %v5795
          %8150 = vmatpush1.msra.mxu0 %v5794
          %8151 = vmatprep.subr.mxu0 %v5803
          %8152 = vmatpush1.msra.mxu0 %v5802
          %8153 = vmatprep.subr.mxu0 %v5811
          %8154 = vmatpush1.msra.mxu0 %v5810
          %8155 = vmatprep.subr.mxu0 %v5819
          %8156 = vmatpush1.msra.mxu0 %v5818
          %8157 = vmatprep.subr.mxu0 %v5827
          %8158 = vmatpush1.msra.mxu0 %v5826
          %8159 = vmatprep.subr.mxu0 %v5835
          %8160 = vmatpush1.msra.mxu0 %v5834
          %8161 = vmatprep.subr.mxu0 %v5843
          %8162 = vmatpush1.msra.mxu0 %v5842
          %8163 = vmatprep.subr.mxu0 %v5851
          %8164 = vmatpush1.msra.mxu0 %v5850
          %8165 = vmatprep.subr.mxu0 %v5859
          %8166 = vmatpush1.msra.mxu0 %v5858
          %8167 = vmatprep.mubr.f32.mxu0 %v3811
          %8168 = vmatmul.mubr.f32.gmra.mrb[0].mxu0 %v3810
          %v8169 = vpop.f32.mrb[0].mxu0
          %v8170 = vadd.f32 %v8099, %v8169
          %v8171 = vpop.f32.mrb[0].mxu0
          %v8172 = vadd.f32 %v8101, %v8171
          %8173 = vdwg.mxu0
          %8174 = vst [vmem:[#allocation15] sm:$0xff] %v6466
          %8175 = vst [vmem:[#allocation15 + $0x8] sm:$0xff] %v6468
          %8176 = vst [vmem:[#allocation15 + $0x10] sm:$0xff] %v7034
          %8177 = vst [vmem:[#allocation15 + $0x18] sm:$0xff] %v7036
          %8178 = vst [vmem:[#allocation15 + $0x20] sm:$0xff] %v7602
          %8179 = vst [vmem:[#allocation15 + $0x28] sm:$0xff] %v7604
          %8180 = vst [vmem:[#allocation15 + $0x30] sm:$0xff] %v8170
          %8181 = vst [vmem:[#allocation15 + $0x38] sm:$0xff] %v8172
          %v8182 = vld [vmem:[#allocation11] sm:$0xff]
          %v8183 = vld [vmem:[#allocation11 + $0x8] sm:$0xff]
          %v8184 = vld [vmem:[#allocation11 + $0x10] sm:$0xff]
          %v8185 = vld [vmem:[#allocation11 + $0x18] sm:$0xff]
          %v8186 = vld [vmem:[#allocation11 + $0x20] sm:$0xff]
          %v8187 = vld [vmem:[#allocation11 + $0x28] sm:$0xff]
          %v8188 = vld [vmem:[#allocation11 + $0x30] sm:$0xff]
          %v8189 = vld [vmem:[#allocation11 + $0x38] sm:$0xff]
          %v8190 = vld [vmem:[#allocation11 + $0x40] sm:$0xff]
          %v8191 = vld [vmem:[#allocation11 + $0x48] sm:$0xff]
          %v8192 = vld [vmem:[#allocation11 + $0x50] sm:$0xff]
          %v8193 = vld [vmem:[#allocation11 + $0x58] sm:$0xff]
          %v8194 = vld [vmem:[#allocation11 + $0x60] sm:$0xff]
          %v8195 = vld [vmem:[#allocation11 + $0x68] sm:$0xff]
          %v8196 = vld [vmem:[#allocation11 + $0x70] sm:$0xff]
          %v8197 = vld [vmem:[#allocation11 + $0x78] sm:$0xff]
          %v8198 = vld [vmem:[#allocation11 + $0x80] sm:$0xff]
          %v8199 = vld [vmem:[#allocation11 + $0x88] sm:$0xff]
          %v8200 = vld [vmem:[#allocation11 + $0x90] sm:$0xff]
          %v8201 = vld [vmem:[#allocation11 + $0x98] sm:$0xff]
          %v8202 = vld [vmem:[#allocation11 + $0xa0] sm:$0xff]
          %v8203 = vld [vmem:[#allocation11 + $0xa8] sm:$0xff]
          %v8204 = vld [vmem:[#allocation11 + $0xb0] sm:$0xff]
          %v8205 = vld [vmem:[#allocation11 + $0xb8] sm:$0xff]
          %v8206 = vld [vmem:[#allocation11 + $0xc0] sm:$0xff]
          %v8207 = vld [vmem:[#allocation11 + $0xc8] sm:$0xff]
          %v8208 = vld [vmem:[#allocation11 + $0xd0] sm:$0xff]
          %v8209 = vld [vmem:[#allocation11 + $0xd8] sm:$0xff]
          %v8210 = vld [vmem:[#allocation11 + $0xe0] sm:$0xff]
          %v8211 = vld [vmem:[#allocation11 + $0xe8] sm:$0xff]
          %v8212 = vld [vmem:[#allocation11 + $0xf0] sm:$0xff]
          %v8213 = vld [vmem:[#allocation11 + $0xf8] sm:$0xff]
          %v8214 = vld [vmem:[#allocation11 + $0x100] sm:$0xff]
          %v8215 = vld [vmem:[#allocation11 + $0x108] sm:$0xff]
          %v8216 = vld [vmem:[#allocation11 + $0x110] sm:$0xff]
          %v8217 = vld [vmem:[#allocation11 + $0x118] sm:$0xff]
          %v8218 = vld [vmem:[#allocation11 + $0x120] sm:$0xff]
          %v8219 = vld [vmem:[#allocation11 + $0x128] sm:$0xff]
          %v8220 = vld [vmem:[#allocation11 + $0x130] sm:$0xff]
          %v8221 = vld [vmem:[#allocation11 + $0x138] sm:$0xff]
          %v8222 = vld [vmem:[#allocation11 + $0x140] sm:$0xff]
          %v8223 = vld [vmem:[#allocation11 + $0x148] sm:$0xff]
          %v8224 = vld [vmem:[#allocation11 + $0x150] sm:$0xff]
          %v8225 = vld [vmem:[#allocation11 + $0x158] sm:$0xff]
          %v8226 = vld [vmem:[#allocation11 + $0x160] sm:$0xff]
          %v8227 = vld [vmem:[#allocation11 + $0x168] sm:$0xff]
          %v8228 = vld [vmem:[#allocation11 + $0x170] sm:$0xff]
          %v8229 = vld [vmem:[#allocation11 + $0x178] sm:$0xff]
          %v8230 = vld [vmem:[#allocation11 + $0x180] sm:$0xff]
          %v8231 = vld [vmem:[#allocation11 + $0x188] sm:$0xff]
          %v8232 = vld [vmem:[#allocation11 + $0x190] sm:$0xff]
          %v8233 = vld [vmem:[#allocation11 + $0x198] sm:$0xff]
          %v8234 = vld [vmem:[#allocation11 + $0x1a0] sm:$0xff]
          %v8235 = vld [vmem:[#allocation11 + $0x1a8] sm:$0xff]
          %v8236 = vld [vmem:[#allocation11 + $0x1b0] sm:$0xff]
          %v8237 = vld [vmem:[#allocation11 + $0x1b8] sm:$0xff]
          %v8238 = vld [vmem:[#allocation11 + $0x1c0] sm:$0xff]
          %v8239 = vld [vmem:[#allocation11 + $0x1c8] sm:$0xff]
          %v8240 = vld [vmem:[#allocation11 + $0x1d0] sm:$0xff]
          %v8241 = vld [vmem:[#allocation11 + $0x1d8] sm:$0xff]
          %v8242 = vld [vmem:[#allocation11 + $0x1e0] sm:$0xff]
          %v8243 = vld [vmem:[#allocation11 + $0x1e8] sm:$0xff]
          %v8244 = vld [vmem:[#allocation11 + $0x1f0] sm:$0xff]
          %v8245 = vld [vmem:[#allocation11 + $0x1f8] sm:$0xff]
          %v8246 = vld [vmem:[#allocation11 + $0x200] sm:$0xff]
          %v8247 = vld [vmem:[#allocation11 + $0x208] sm:$0xff]
          %v8248 = vld [vmem:[#allocation11 + $0x210] sm:$0xff]
          %v8249 = vld [vmem:[#allocation11 + $0x218] sm:$0xff]
          %v8250 = vld [vmem:[#allocation11 + $0x220] sm:$0xff]
          %v8251 = vld [vmem:[#allocation11 + $0x228] sm:$0xff]
          %v8252 = vld [vmem:[#allocation11 + $0x230] sm:$0xff]
          %v8253 = vld [vmem:[#allocation11 + $0x238] sm:$0xff]
          %v8254 = vld [vmem:[#allocation11 + $0x240] sm:$0xff]
          %v8255 = vld [vmem:[#allocation11 + $0x248] sm:$0xff]
          %v8256 = vld [vmem:[#allocation11 + $0x250] sm:$0xff]
          %v8257 = vld [vmem:[#allocation11 + $0x258] sm:$0xff]
          %v8258 = vld [vmem:[#allocation11 + $0x260] sm:$0xff]
          %v8259 = vld [vmem:[#allocation11 + $0x268] sm:$0xff]
          %v8260 = vld [vmem:[#allocation11 + $0x270] sm:$0xff]
          %v8261 = vld [vmem:[#allocation11 + $0x278] sm:$0xff]
          %v8262 = vld [vmem:[#allocation11 + $0x280] sm:$0xff]
          %v8263 = vld [vmem:[#allocation11 + $0x288] sm:$0xff]
          %v8264 = vld [vmem:[#allocation11 + $0x290] sm:$0xff]
          %v8265 = vld [vmem:[#allocation11 + $0x298] sm:$0xff]
          %v8266 = vld [vmem:[#allocation11 + $0x2a0] sm:$0xff]
          %v8267 = vld [vmem:[#allocation11 + $0x2a8] sm:$0xff]
          %v8268 = vld [vmem:[#allocation11 + $0x2b0] sm:$0xff]
          %v8269 = vld [vmem:[#allocation11 + $0x2b8] sm:$0xff]
          %v8270 = vld [vmem:[#allocation11 + $0x2c0] sm:$0xff]
          %v8271 = vld [vmem:[#allocation11 + $0x2c8] sm:$0xff]
          %v8272 = vld [vmem:[#allocation11 + $0x2d0] sm:$0xff]
          %v8273 = vld [vmem:[#allocation11 + $0x2d8] sm:$0xff]
          %v8274 = vld [vmem:[#allocation11 + $0x2e0] sm:$0xff]
          %v8275 = vld [vmem:[#allocation11 + $0x2e8] sm:$0xff]
          %v8276 = vld [vmem:[#allocation11 + $0x2f0] sm:$0xff]
          %v8277 = vld [vmem:[#allocation11 + $0x2f8] sm:$0xff]
          %v8278 = vld [vmem:[#allocation11 + $0x300] sm:$0xff]
          %v8279 = vld [vmem:[#allocation11 + $0x308] sm:$0xff]
          %v8280 = vld [vmem:[#allocation11 + $0x310] sm:$0xff]
          %v8281 = vld [vmem:[#allocation11 + $0x318] sm:$0xff]
          %v8282 = vld [vmem:[#allocation11 + $0x320] sm:$0xff]
          %v8283 = vld [vmem:[#allocation11 + $0x328] sm:$0xff]
          %v8284 = vld [vmem:[#allocation11 + $0x330] sm:$0xff]
          %v8285 = vld [vmem:[#allocation11 + $0x338] sm:$0xff]
          %v8286 = vld [vmem:[#allocation11 + $0x340] sm:$0xff]
          %v8287 = vld [vmem:[#allocation11 + $0x348] sm:$0xff]
          %v8288 = vld [vmem:[#allocation11 + $0x350] sm:$0xff]
          %v8289 = vld [vmem:[#allocation11 + $0x358] sm:$0xff]
          %v8290 = vld [vmem:[#allocation11 + $0x360] sm:$0xff]
          %v8291 = vld [vmem:[#allocation11 + $0x368] sm:$0xff]
          %v8292 = vld [vmem:[#allocation11 + $0x370] sm:$0xff]
          %v8293 = vld [vmem:[#allocation11 + $0x378] sm:$0xff]
          %v8294 = vld [vmem:[#allocation11 + $0x380] sm:$0xff]
          %v8295 = vld [vmem:[#allocation11 + $0x388] sm:$0xff]
          %v8296 = vld [vmem:[#allocation11 + $0x390] sm:$0xff]
          %v8297 = vld [vmem:[#allocation11 + $0x398] sm:$0xff]
          %v8298 = vld [vmem:[#allocation11 + $0x3a0] sm:$0xff]
          %v8299 = vld [vmem:[#allocation11 + $0x3a8] sm:$0xff]
          %v8300 = vld [vmem:[#allocation11 + $0x3b0] sm:$0xff]
          %v8301 = vld [vmem:[#allocation11 + $0x3b8] sm:$0xff]
          %v8302 = vld [vmem:[#allocation11 + $0x3c0] sm:$0xff]
          %v8303 = vld [vmem:[#allocation11 + $0x3c8] sm:$0xff]
          %v8304 = vld [vmem:[#allocation11 + $0x3d0] sm:$0xff]
          %v8305 = vld [vmem:[#allocation11 + $0x3d8] sm:$0xff]
          %v8306 = vld [vmem:[#allocation11 + $0x3e0] sm:$0xff]
          %v8307 = vld [vmem:[#allocation11 + $0x3e8] sm:$0xff]
          %v8308 = vld [vmem:[#allocation11 + $0x3f0] sm:$0xff]
          %v8309 = vld [vmem:[#allocation11 + $0x3f8] sm:$0xff]
          %v8310 = vld [vmem:[#allocation12] sm:$0x1]
          %v8312 = vlaneseq
          %v8313 = vshrl.u32 %v8312, 7
          %v8314 = vsub.s32 0, %v8313
          %v8315 = vrot.slane %v8310, %v8314
          %8317 = vmatprep.subr.mxu0 0.0
          %8318 = vmatpush1.msra.mxu0 %v8182
          %8319 = vmatprep.subr.mxu0 0.0
          %8320 = vmatpush1.msra.mxu0 %v8183
          %8321 = vmatprep.subr.mxu0 0.0
          %8322 = vmatpush1.msra.mxu0 %v8184
          %8323 = vmatprep.subr.mxu0 0.0
          %8324 = vmatpush1.msra.mxu0 %v8185
          %8325 = vmatprep.subr.mxu0 0.0
          %8326 = vmatpush1.msra.mxu0 %v8186
          %8327 = vmatprep.subr.mxu0 0.0
          %8328 = vmatpush1.msra.mxu0 %v8187
          %8329 = vmatprep.subr.mxu0 0.0
          %8330 = vmatpush1.msra.mxu0 %v8188
          %8331 = vmatprep.subr.mxu0 0.0
          %8332 = vmatpush1.msra.mxu0 %v8189
          %8333 = vmatprep.subr.mxu0 0.0
          %8334 = vmatpush1.msra.mxu0 %v8190
          %8335 = vmatprep.subr.mxu0 0.0
          %8336 = vmatpush1.msra.mxu0 %v8191
          %8337 = vmatprep.subr.mxu0 0.0
          %8338 = vmatpush1.msra.mxu0 %v8192
          %8339 = vmatprep.subr.mxu0 0.0
          %8340 = vmatpush1.msra.mxu0 %v8193
          %8341 = vmatprep.subr.mxu0 0.0
          %8342 = vmatpush1.msra.mxu0 %v8194
          %8343 = vmatprep.subr.mxu0 0.0
          %8344 = vmatpush1.msra.mxu0 %v8195
          %8345 = vmatprep.subr.mxu0 0.0
          %8346 = vmatpush1.msra.mxu0 %v8196
          %8347 = vmatprep.subr.mxu0 0.0
          %8348 = vmatpush1.msra.mxu0 %v8197
          %8349 = vmatprep.subr.mxu0 0.0
          %8350 = vmatpush1.msra.mxu0 %v8198
          %8351 = vmatprep.subr.mxu0 0.0
          %8352 = vmatpush1.msra.mxu0 %v8199
          %8353 = vmatprep.subr.mxu0 0.0
          %8354 = vmatpush1.msra.mxu0 %v8200
          %8355 = vmatprep.subr.mxu0 0.0
          %8356 = vmatpush1.msra.mxu0 %v8201
          %8357 = vmatprep.subr.mxu0 0.0
          %8358 = vmatpush1.msra.mxu0 %v8202
          %8359 = vmatprep.subr.mxu0 0.0
          %8360 = vmatpush1.msra.mxu0 %v8203
          %8361 = vmatprep.subr.mxu0 0.0
          %8362 = vmatpush1.msra.mxu0 %v8204
          %8363 = vmatprep.subr.mxu0 0.0
          %8364 = vmatpush1.msra.mxu0 %v8205
          %8365 = vmatprep.subr.mxu0 0.0
          %8366 = vmatpush1.msra.mxu0 %v8206
          %8367 = vmatprep.subr.mxu0 0.0
          %8368 = vmatpush1.msra.mxu0 %v8207
          %8369 = vmatprep.subr.mxu0 0.0
          %8370 = vmatpush1.msra.mxu0 %v8208
          %8371 = vmatprep.subr.mxu0 0.0
          %8372 = vmatpush1.msra.mxu0 %v8209
          %8373 = vmatprep.subr.mxu0 0.0
          %8374 = vmatpush1.msra.mxu0 %v8210
          %8375 = vmatprep.subr.mxu0 0.0
          %8376 = vmatpush1.msra.mxu0 %v8211
          %8377 = vmatprep.subr.mxu0 0.0
          %8378 = vmatpush1.msra.mxu0 %v8212
          %8379 = vmatprep.subr.mxu0 0.0
          %8380 = vmatpush1.msra.mxu0 %v8213
          %8381 = vmatprep.mubr.f32.mxu0 %v6468
          %8382 = vmatmul.mubr.f32.gmra.mrb[0].mxu0 %v6466
          %v8383 = vpop.f32.mrb[0].mxu0
          %v8384 = vadd.f32 %v8315, %v8383
          %v8385 = vpop.f32.mrb[0].mxu0
          %8386 = vdwg.mxu0
          %8387 = vmatprep.subr.mxu0 0.0
          %8388 = vmatpush1.msra.mxu0 %v8214
          %8389 = vmatprep.subr.mxu0 0.0
          %8390 = vmatpush1.msra.mxu0 %v8215
          %8391 = vmatprep.subr.mxu0 0.0
          %8392 = vmatpush1.msra.mxu0 %v8216
          %8393 = vmatprep.subr.mxu0 0.0
          %8394 = vmatpush1.msra.mxu0 %v8217
          %8395 = vmatprep.subr.mxu0 0.0
          %8396 = vmatpush1.msra.mxu0 %v8218
          %8397 = vmatprep.subr.mxu0 0.0
          %8398 = vmatpush1.msra.mxu0 %v8219
          %8399 = vmatprep.subr.mxu0 0.0
          %8400 = vmatpush1.msra.mxu0 %v8220
          %8401 = vmatprep.subr.mxu0 0.0
          %8402 = vmatpush1.msra.mxu0 %v8221
          %8403 = vmatprep.subr.mxu0 0.0
          %8404 = vmatpush1.msra.mxu0 %v8222
          %8405 = vmatprep.subr.mxu0 0.0
          %8406 = vmatpush1.msra.mxu0 %v8223
          %8407 = vmatprep.subr.mxu0 0.0
          %8408 = vmatpush1.msra.mxu0 %v8224
          %8409 = vmatprep.subr.mxu0 0.0
          %8410 = vmatpush1.msra.mxu0 %v8225
          %8411 = vmatprep.subr.mxu0 0.0
          %8412 = vmatpush1.msra.mxu0 %v8226
          %8413 = vmatprep.subr.mxu0 0.0
          %8414 = vmatpush1.msra.mxu0 %v8227
          %8415 = vmatprep.subr.mxu0 0.0
          %8416 = vmatpush1.msra.mxu0 %v8228
          %8417 = vmatprep.subr.mxu0 0.0
          %8418 = vmatpush1.msra.mxu0 %v8229
          %8419 = vmatprep.subr.mxu0 0.0
          %8420 = vmatpush1.msra.mxu0 %v8230
          %8421 = vmatprep.subr.mxu0 0.0
          %8422 = vmatpush1.msra.mxu0 %v8231
          %8423 = vmatprep.subr.mxu0 0.0
          %8424 = vmatpush1.msra.mxu0 %v8232
          %8425 = vmatprep.subr.mxu0 0.0
          %8426 = vmatpush1.msra.mxu0 %v8233
          %8427 = vmatprep.subr.mxu0 0.0
          %8428 = vmatpush1.msra.mxu0 %v8234
          %8429 = vmatprep.subr.mxu0 0.0
          %8430 = vmatpush1.msra.mxu0 %v8235
          %8431 = vmatprep.subr.mxu0 0.0
          %8432 = vmatpush1.msra.mxu0 %v8236
          %8433 = vmatprep.subr.mxu0 0.0
          %8434 = vmatpush1.msra.mxu0 %v8237
          %8435 = vmatprep.subr.mxu0 0.0
          %8436 = vmatpush1.msra.mxu0 %v8238
          %8437 = vmatprep.subr.mxu0 0.0
          %8438 = vmatpush1.msra.mxu0 %v8239
          %8439 = vmatprep.subr.mxu0 0.0
          %8440 = vmatpush1.msra.mxu0 %v8240
          %8441 = vmatprep.subr.mxu0 0.0
          %8442 = vmatpush1.msra.mxu0 %v8241
          %8443 = vmatprep.subr.mxu0 0.0
          %8444 = vmatpush1.msra.mxu0 %v8242
          %8445 = vmatprep.subr.mxu0 0.0
          %8446 = vmatpush1.msra.mxu0 %v8243
          %8447 = vmatprep.subr.mxu0 0.0
          %8448 = vmatpush1.msra.mxu0 %v8244
          %8449 = vmatprep.subr.mxu0 0.0
          %8450 = vmatpush1.msra.mxu0 %v8245
          %8451 = vmatprep.mubr.f32.mxu0 %v7036
          %8452 = vmatmul.mubr.f32.gmra.mrb[0].mxu0 %v7034
          %v8453 = vpop.f32.mrb[0].mxu0
          %v8454 = vadd.f32 %v8384, %v8453
          %v8455 = vpop.f32.mrb[0].mxu0
          %8456 = vdwg.mxu0
          %8457 = vmatprep.subr.mxu0 0.0
          %8458 = vmatpush1.msra.mxu0 %v8246
          %8459 = vmatprep.subr.mxu0 0.0
          %8460 = vmatpush1.msra.mxu0 %v8247
          %8461 = vmatprep.subr.mxu0 0.0
          %8462 = vmatpush1.msra.mxu0 %v8248
          %8463 = vmatprep.subr.mxu0 0.0
          %8464 = vmatpush1.msra.mxu0 %v8249
          %8465 = vmatprep.subr.mxu0 0.0
          %8466 = vmatpush1.msra.mxu0 %v8250
          %8467 = vmatprep.subr.mxu0 0.0
          %8468 = vmatpush1.msra.mxu0 %v8251
          %8469 = vmatprep.subr.mxu0 0.0
          %8470 = vmatpush1.msra.mxu0 %v8252
          %8471 = vmatprep.subr.mxu0 0.0
          %8472 = vmatpush1.msra.mxu0 %v8253
          %8473 = vmatprep.subr.mxu0 0.0
          %8474 = vmatpush1.msra.mxu0 %v8254
          %8475 = vmatprep.subr.mxu0 0.0
          %8476 = vmatpush1.msra.mxu0 %v8255
          %8477 = vmatprep.subr.mxu0 0.0
          %8478 = vmatpush1.msra.mxu0 %v8256
          %8479 = vmatprep.subr.mxu0 0.0
          %8480 = vmatpush1.msra.mxu0 %v8257
          %8481 = vmatprep.subr.mxu0 0.0
          %8482 = vmatpush1.msra.mxu0 %v8258
          %8483 = vmatprep.subr.mxu0 0.0
          %8484 = vmatpush1.msra.mxu0 %v8259
          %8485 = vmatprep.subr.mxu0 0.0
          %8486 = vmatpush1.msra.mxu0 %v8260
          %8487 = vmatprep.subr.mxu0 0.0
          %8488 = vmatpush1.msra.mxu0 %v8261
          %8489 = vmatprep.subr.mxu0 0.0
          %8490 = vmatpush1.msra.mxu0 %v8262
          %8491 = vmatprep.subr.mxu0 0.0
          %8492 = vmatpush1.msra.mxu0 %v8263
          %8493 = vmatprep.subr.mxu0 0.0
          %8494 = vmatpush1.msra.mxu0 %v8264
          %8495 = vmatprep.subr.mxu0 0.0
          %8496 = vmatpush1.msra.mxu0 %v8265
          %8497 = vmatprep.subr.mxu0 0.0
          %8498 = vmatpush1.msra.mxu0 %v8266
          %8499 = vmatprep.subr.mxu0 0.0
          %8500 = vmatpush1.msra.mxu0 %v8267
          %8501 = vmatprep.subr.mxu0 0.0
          %8502 = vmatpush1.msra.mxu0 %v8268
          %8503 = vmatprep.subr.mxu0 0.0
          %8504 = vmatpush1.msra.mxu0 %v8269
          %8505 = vmatprep.subr.mxu0 0.0
          %8506 = vmatpush1.msra.mxu0 %v8270
          %8507 = vmatprep.subr.mxu0 0.0
          %8508 = vmatpush1.msra.mxu0 %v8271
          %8509 = vmatprep.subr.mxu0 0.0
          %8510 = vmatpush1.msra.mxu0 %v8272
          %8511 = vmatprep.subr.mxu0 0.0
          %8512 = vmatpush1.msra.mxu0 %v8273
          %8513 = vmatprep.subr.mxu0 0.0
          %8514 = vmatpush1.msra.mxu0 %v8274
          %8515 = vmatprep.subr.mxu0 0.0
          %8516 = vmatpush1.msra.mxu0 %v8275
          %8517 = vmatprep.subr.mxu0 0.0
          %8518 = vmatpush1.msra.mxu0 %v8276
          %8519 = vmatprep.subr.mxu0 0.0
          %8520 = vmatpush1.msra.mxu0 %v8277
          %8521 = vmatprep.mubr.f32.mxu0 %v7604
          %8522 = vmatmul.mubr.f32.gmra.mrb[0].mxu0 %v7602
          %v8523 = vpop.f32.mrb[0].mxu0
          %v8524 = vadd.f32 %v8454, %v8523
          %v8525 = vpop.f32.mrb[0].mxu0
          %8526 = vdwg.mxu0
          %8527 = vmatprep.subr.mxu0 0.0
          %8528 = vmatpush1.msra.mxu0 %v8278
          %8529 = vmatprep.subr.mxu0 0.0
          %8530 = vmatpush1.msra.mxu0 %v8279
          %8531 = vmatprep.subr.mxu0 0.0
          %8532 = vmatpush1.msra.mxu0 %v8280
          %8533 = vmatprep.subr.mxu0 0.0
          %8534 = vmatpush1.msra.mxu0 %v8281
          %8535 = vmatprep.subr.mxu0 0.0
          %8536 = vmatpush1.msra.mxu0 %v8282
          %8537 = vmatprep.subr.mxu0 0.0
          %8538 = vmatpush1.msra.mxu0 %v8283
          %8539 = vmatprep.subr.mxu0 0.0
          %8540 = vmatpush1.msra.mxu0 %v8284
          %8541 = vmatprep.subr.mxu0 0.0
          %8542 = vmatpush1.msra.mxu0 %v8285
          %8543 = vmatprep.subr.mxu0 0.0
          %8544 = vmatpush1.msra.mxu0 %v8286
          %8545 = vmatprep.subr.mxu0 0.0
          %8546 = vmatpush1.msra.mxu0 %v8287
          %8547 = vmatprep.subr.mxu0 0.0
          %8548 = vmatpush1.msra.mxu0 %v8288
          %8549 = vmatprep.subr.mxu0 0.0
          %8550 = vmatpush1.msra.mxu0 %v8289
          %8551 = vmatprep.subr.mxu0 0.0
          %8552 = vmatpush1.msra.mxu0 %v8290
          %8553 = vmatprep.subr.mxu0 0.0
          %8554 = vmatpush1.msra.mxu0 %v8291
          %8555 = vmatprep.subr.mxu0 0.0
          %8556 = vmatpush1.msra.mxu0 %v8292
          %8557 = vmatprep.subr.mxu0 0.0
          %8558 = vmatpush1.msra.mxu0 %v8293
          %8559 = vmatprep.subr.mxu0 0.0
          %8560 = vmatpush1.msra.mxu0 %v8294
          %8561 = vmatprep.subr.mxu0 0.0
          %8562 = vmatpush1.msra.mxu0 %v8295
          %8563 = vmatprep.subr.mxu0 0.0
          %8564 = vmatpush1.msra.mxu0 %v8296
          %8565 = vmatprep.subr.mxu0 0.0
          %8566 = vmatpush1.msra.mxu0 %v8297
          %8567 = vmatprep.subr.mxu0 0.0
          %8568 = vmatpush1.msra.mxu0 %v8298
          %8569 = vmatprep.subr.mxu0 0.0
          %8570 = vmatpush1.msra.mxu0 %v8299
          %8571 = vmatprep.subr.mxu0 0.0
          %8572 = vmatpush1.msra.mxu0 %v8300
          %8573 = vmatprep.subr.mxu0 0.0
          %8574 = vmatpush1.msra.mxu0 %v8301
          %8575 = vmatprep.subr.mxu0 0.0
          %8576 = vmatpush1.msra.mxu0 %v8302
          %8577 = vmatprep.subr.mxu0 0.0
          %8578 = vmatpush1.msra.mxu0 %v8303
          %8579 = vmatprep.subr.mxu0 0.0
          %8580 = vmatpush1.msra.mxu0 %v8304
          %8581 = vmatprep.subr.mxu0 0.0
          %8582 = vmatpush1.msra.mxu0 %v8305
          %8583 = vmatprep.subr.mxu0 0.0
          %8584 = vmatpush1.msra.mxu0 %v8306
          %8585 = vmatprep.subr.mxu0 0.0
          %8586 = vmatpush1.msra.mxu0 %v8307
          %8587 = vmatprep.subr.mxu0 0.0
          %8588 = vmatpush1.msra.mxu0 %v8308
          %8589 = vmatprep.subr.mxu0 0.0
          %8590 = vmatpush1.msra.mxu0 %v8309
          %8591 = vmatprep.mubr.f32.mxu0 %v8172
          %8592 = vmatmul.mubr.f32.gmra.mrb[0].mxu0 %v8170
          %v8593 = vpop.f32.mrb[0].mxu0
          %v8594 = vadd.f32 %v8524, %v8593
          %v8595 = vpop.f32.mrb[0].mxu0
          %8596 = vdwg.mxu0
          %8597 = vst [vmem:[#allocation14] sm:$0xff] %v8594
        $region76: #{tpu_custom_call.1} parent=43 // pred_fallthru
          _
        // Predicated region
        $region77: #{tpu_custom_call.1} parent=43 // pred_check
          %p8598 = pneg %p190
        $region78: #{tpu_custom_call.1} parent=43 // pred_check_branch
          %8600 = sbr.rel (%p8598) target = $region80
        $region79: #{tpu_custom_call.1} parent=43 // pred_region
          %s8602 = ssub.s32 128, 128
          %8603 = vsyncadd [#allocation5], %s8602
          %s8604 = smul.addr %s31, 128
          %s8605 = scalar_lea.hbm %s6, %s8604
          %s8607 = sshll.u32 [#allocation14], 4
          %s8608 = int_to_ptr.vmem [resolvable:$true] %s8607
          %8610 = dma.vmem_to_hbm [thread:$0]  %s8608, 128, %s8605, [#allocation5]
        $region80: #{tpu_custom_call.1} parent=43 // pred_fallthru
          _
        // Predicated region
        $region81: #{tpu_custom_call.1} parent=43 // pred_check
          %p8611 = pneg %p216
        $region82: #{tpu_custom_call.1} parent=43 // pred_check_branch
          %8613 = sbr.rel (%p8611) target = $region84
        $region83: #{tpu_custom_call.1} parent=43 // pred_region
          %s8615 = ssub.s32 1024, 1024
          %8616 = vsyncadd [#allocation16], %s8615
          %s8617 = smul.addr %s31, 8
          %s8618 = smul.addr %s8617, 128
          %s8619 = scalar_lea.hbm %s7, %s8618
          %s8621 = sshll.u32 [#allocation15], 4
          %s8622 = int_to_ptr.vmem [resolvable:$true] %s8621
          %8624 = dma.vmem_to_hbm [thread:$0]  %s8622, 1024, %s8619, [#allocation16]
        $region84: #{tpu_custom_call.1} parent=43 // pred_fallthru
          _
        // Predicated region
        $region85: #{tpu_custom_call.1} parent=43 // pred_check
          %p8625 = pneg %p190
        $region86: #{tpu_custom_call.1} parent=43 // pred_check_branch
          %8627 = sbr.rel (%p8625) target = $region88
        $region87: #{tpu_custom_call.1} parent=43 // pred_region
          %8628 = dma.done [#allocation5], 128
        $region88: #{tpu_custom_call.1} parent=43 // pred_fallthru
          _
        // Predicated region
        $region89: #{tpu_custom_call.1} parent=43 // pred_check
          %p8629 = pneg %p216
        $region90: #{tpu_custom_call.1} parent=43 // pred_check_branch
          %8631 = sbr.rel (%p8629) target = $region92
        $region91: #{tpu_custom_call.1} parent=43 // pred_region
          %8632 = dma.done [#allocation16], 1024
        $region92: #{tpu_custom_call.1} parent=43 // pred_fallthru
          _
      $region44: #{tpu_custom_call.1} parent=5 // pred_fallthru
        _
      %p8633 = scmp.le.s32.totalorder 2, %s22
      // Predicated region
      $region93: #{tpu_custom_call.1} parent=5 // pred_check
        %p8634 = pneg %p8633
      $region94: #{tpu_custom_call.1} parent=5 // pred_check_branch
        %8636 = sbr.rel (%p8634) target = $region96
      $region95: #{tpu_custom_call.1} parent=5 // pred_region
        %s8637 = ssub.s32 %s22, 2
      $region96: #{tpu_custom_call.1} parent=5 // pred_fallthru
        _
    $region6: #{tpu_custom_call.1} parent=1 // loop_footer
      %s26 = sadd.s32 1, %s22
    $region7: #{tpu_custom_call.1} parent=1 // loop_footer_branch
      %21 = sbr.rel target = $region3
    $region8: #{tpu_custom_call.1} parent=1 // loop_exit
      _
    %8638 = vsyncpa [#allocation4], 1
    %s8639 = scalar_lea.sflag [#allocation4], 1
    %8640 = vsyncpa %s8639, 1
    %8641 = vsyncpa [#allocation7], 1
    %8642 = vsyncpa [#allocation10], 1
    %8643 = vsyncpa [#allocation13], 1
    %8644 = vsyncpa [#allocation5], 1
    %s8645 = scalar_lea.sflag [#allocation5], 1
    %8646 = vsyncpa %s8645, 1
    %8647 = vsyncpa [#allocation16], 1

</llo_original>
